<compile_context>
chip_gen: v7x
topology: tpu7x:2x2x1
jax: 0.10.0
libtpu: 0.0.40
codegen_flags: <defaults>
</compile_context>

<pallas_src>
import functools

import jax
import jax.numpy as jnp
from jax import lax
from jax.experimental import pallas as pl
from jax.experimental.pallas import tpu as pltpu

LANES = 128


def _round_up(x, m):
    return (x + m - 1) // m * m


# ---------------------------------------------------------------------------
# Fused BasicBlock kernel (one image per grid step, NHWC with channels padded
# to CP = multiple of 128 lanes).
# ---------------------------------------------------------------------------
def _basic_block_kernel(x_ref, w1_ref, w2_ref, s1_ref, b1_ref, s2_ref, b2_ref,
                        out_ref, xs1_ref, xs2_ref, acc_ref, *, H, W, Cin, CP):
    # Stage the spatially (+1 halo) and channel (to CP) zero-padded input in
    # VMEM.  xs1 stays f32 so the residual add later is exact.
    xs1_ref[...] = jnp.zeros_like(xs1_ref)
    xs2_ref[...] = jnp.zeros_like(xs2_ref)
    xs1_ref[1:H + 1, 1:W + 1, 0:Cin] = x_ref[0]

    def conv3x3(src_ref, w_ref, cast_to_bf16):
        # 9 statically unrolled tap matmuls accumulated in f32 VMEM scratch.
        acc_ref[...] = jnp.zeros_like(acc_ref)
        for t in range(9):
            dy, dx = divmod(t, 3)
            a = src_ref[dy:dy + H, dx:dx + W, :].reshape(H * W, CP)
            if cast_to_bf16:
                a = a.astype(jnp.bfloat16)
            acc_ref[...] += jnp.dot(a, w_ref[t],
                                    preferred_element_type=jnp.float32)
        return acc_ref[...]                               # (H*W, CP) f32

    # ---- conv1 + BN1 + ReLU (intermediate kept in VMEM as bf16) -------------
    y1 = conv3x3(xs1_ref, w1_ref, cast_to_bf16=True)
    y1 = jnp.maximum(y1 * s1_ref[...] + b1_ref[...], 0.0)
    xs2_ref[1:H + 1, 1:W + 1, :] = y1.reshape(H, W, CP).astype(jnp.bfloat16)

    # ---- conv2 + BN2 + residual + ReLU --------------------------------------
    y2 = conv3x3(xs2_ref, w2_ref, cast_to_bf16=False)
    y2 = y2 * s2_ref[...] + b2_ref[...]
    res = xs1_ref[1:H + 1, 1:W + 1, :].reshape(H * W, CP)  # exact f32 residual
    out_ref[0] = jnp.maximum(y2 + res, 0.0).astype(out_ref.dtype)


# ---------------------------------------------------------------------------
# Parameter preparation + wrapper
# ---------------------------------------------------------------------------
def _fold_bn(gamma, beta, mean, var, eps=1e-5):
    scale = gamma / jnp.sqrt(var + eps)
    bias = beta - mean * scale
    return scale, bias


def _prep_weight(w_hwio, CP):
    """(3,3,Cin,Cout) -> (9, CP, CP) bf16, zero-padded channels."""
    kh, kw, cin, cout = w_hwio.shape
    w = w_hwio.reshape(kh * kw, cin, cout)
    w = jnp.pad(w, ((0, 0), (0, CP - cin), (0, CP - cout)))
    return w.astype(jnp.bfloat16)


def _prep_vec(v, CP):
    return jnp.pad(v, (0, CP - v.shape[0])).reshape(1, CP).astype(jnp.float32)


def basic_block_forward(x_nchw, params):
    N, C, H, W = x_nchw.shape
    CP = _round_up(max(C, LANES), LANES)

    x_nhwc = jnp.transpose(x_nchw, (0, 2, 3, 1))          # NCHW -> NHWC

    s1, b1 = _fold_bn(params["gamma1"], params["beta1"],
                      params["mean1"], params["var1"])
    s2, b2 = _fold_bn(params["gamma2"], params["beta2"],
                      params["mean2"], params["var2"])

    w1p = _prep_weight(params["w1"], CP)
    w2p = _prep_weight(params["w2"], CP)

    kern = functools.partial(_basic_block_kernel, H=H, W=W, Cin=C, CP=CP)

    out2d = pl.pallas_call(
        kern,
        out_shape=jax.ShapeDtypeStruct((N, H * W, CP), x_nchw.dtype),
        grid=(N,),
        in_specs=[
            pl.BlockSpec((1, H, W, C), lambda n: (n, 0, 0, 0)),
            pl.BlockSpec((9, CP, CP), lambda n: (0, 0, 0)),
            pl.BlockSpec((9, CP, CP), lambda n: (0, 0, 0)),
            pl.BlockSpec((1, CP), lambda n: (0, 0)),
            pl.BlockSpec((1, CP), lambda n: (0, 0)),
            pl.BlockSpec((1, CP), lambda n: (0, 0)),
            pl.BlockSpec((1, CP), lambda n: (0, 0)),
        ],
        out_specs=pl.BlockSpec((1, H * W, CP), lambda n: (n, 0, 0)),
        scratch_shapes=[
            pltpu.VMEM((H + 2, W + 2, CP), jnp.float32),    # padded input
            pltpu.VMEM((H + 2, W + 2, CP), jnp.bfloat16),   # padded conv1 out
            pltpu.VMEM((H * W, CP), jnp.float32),           # f32 accumulator
        ],
        compiler_params=pltpu.CompilerParams(
            dimension_semantics=("parallel",),
            vmem_limit_bytes=32 * 1024 * 1024),
    )(x_nhwc, w1p, w2p,
      _prep_vec(s1, CP), _prep_vec(b1, CP),
      _prep_vec(s2, CP), _prep_vec(b2, CP))

    out = out2d.reshape(N, H, W, CP)[..., :C]              # drop lane padding
    return jnp.transpose(out, (0, 3, 1, 2))                # NHWC -> NCHW


# ---------------------------------------------------------------------------
# Pure-JAX reference (mirrors the kernel's bf16-operand / f32-accumulate
# inference policy so the comparison is tight).
# ---------------------------------------------------------------------------
def _ref_forward(x_nchw, params):
    x = jnp.transpose(x_nchw, (0, 2, 3, 1))
    s1, b1 = _fold_bn(params["gamma1"], params["beta1"],
                      params["mean1"], params["var1"])
    s2, b2 = _fold_bn(params["gamma2"], params["beta2"],
                      params["mean2"], params["var2"])
    dn = ("NHWC", "HWIO", "NHWC")

    def conv(a, w):
        return lax.conv_general_dilated(
            a.astype(jnp.bfloat16), w.astype(jnp.bfloat16), (1, 1), "SAME",
            dimension_numbers=dn, preferred_element_type=jnp.float32)

    h = jnp.maximum(conv(x, params["w1"]) * s1 + b1, 0.0)
    out = jnp.maximum(conv(h, params["w2"]) * s2 + b2 + x, 0.0)
    return jnp.transpose(out, (0, 3, 1, 2))


# ---------------------------------------------------------------------------
if __name__ == "__main__":
    N, C, H, W = 2, 4, 16, 16          # inplanes == planes == 4, stride = 1
    key = jax.random.PRNGKey(0)
    kx, kw1, kw2 = jax.random.split(key, 3)

    x = jax.random.normal(kx, (N, C, H, W), jnp.float32)

    params = {
        "w1": jax.random.normal(kw1, (3, 3, C, C), jnp.float32) * 0.2,
        "w2": jax.random.normal(kw2, (3, 3, C, C), jnp.float32) * 0.2,
        # deterministic, non-trivial BN statistics/affine params (inference)
        "gamma1": 1.0 + 0.05 * jnp.arange(C, dtype=jnp.float32),
        "beta1": 0.01 * jnp.arange(C, dtype=jnp.float32),
        "mean1": 0.02 * jnp.arange(C, dtype=jnp.float32),
        "var1": 1.0 + 0.1 * jnp.arange(C, dtype=jnp.float32),
        "gamma2": 1.0 - 0.03 * jnp.arange(C, dtype=jnp.float32),
        "beta2": -0.02 * jnp.arange(C, dtype=jnp.float32),
        "mean2": -0.01 * jnp.arange(C, dtype=jnp.float32),
        "var2": 1.0 + 0.05 * jnp.arange(C, dtype=jnp.float32),
    }

    out = jax.block_until_ready(basic_block_forward(x, params))
    ref = jax.block_until_ready(_ref_forward(x, params))

    assert out.shape == (N, C, H, W), out.shape
    max_err = float(jnp.max(jnp.abs(out - ref)))
    # bf16 MXU operands (matched in the reference) -> relaxed tolerance.
    assert jnp.allclose(out, ref, atol=1e-2, rtol=1e-2), max_err
    print("KERNEL_OK")
</pallas_src>

<mosaic_0001>
module attributes {stable_mosaic.version = 11 : i64} {
  func.func @_basic_block_kernel(%arg0: i32, %arg1: memref<1x16x16x4xf32, #tpu.memory_space<vmem>>, %arg2: memref<9x128x128xbf16, #tpu.memory_space<vmem>>, %arg3: memref<9x128x128xbf16, #tpu.memory_space<vmem>>, %arg4: memref<1x128xf32, #tpu.memory_space<vmem>>, %arg5: memref<1x128xf32, #tpu.memory_space<vmem>>, %arg6: memref<1x128xf32, #tpu.memory_space<vmem>>, %arg7: memref<1x128xf32, #tpu.memory_space<vmem>>, %arg8: memref<1x256x128xf32, #tpu.memory_space<vmem>>, %arg9: memref<18x18x128xf32, #tpu.memory_space<vmem>>, %arg10: memref<18x18x128xbf16, #tpu.memory_space<vmem>>, %arg11: memref<256x128xf32, #tpu.memory_space<vmem>>) attributes {dimension_semantics = [#tpu.dimension_semantics<parallel>], iteration_bounds = array<i64: 2>, scalar_prefetch = 0 : i64, scratch_operands = 3 : i64, tpu.core_type = #tpu.core_type<tc>, window_params = [{transform_indices = @transform_0, window_bounds = array<i64: 1, 16, 16, 4>}, {pipeline_mode = #tpu.pipeline_mode<synchronous>, transform_indices = @transform_1, window_bounds = array<i64: 9, 128, 128>}, {pipeline_mode = #tpu.pipeline_mode<synchronous>, transform_indices = @transform_2, window_bounds = array<i64: 9, 128, 128>}, {pipeline_mode = #tpu.pipeline_mode<synchronous>, transform_indices = @transform_3, window_bounds = array<i64: 1, 128>}, {pipeline_mode = #tpu.pipeline_mode<synchronous>, transform_indices = @transform_4, window_bounds = array<i64: 1, 128>}, {pipeline_mode = #tpu.pipeline_mode<synchronous>, transform_indices = @transform_5, window_bounds = array<i64: 1, 128>}, {pipeline_mode = #tpu.pipeline_mode<synchronous>, transform_indices = @transform_6, window_bounds = array<i64: 1, 128>}, {transform_indices = @transform_7, window_bounds = array<i64: 1, 256, 128>}]} {
    %cst = arith.constant 0.000000e+00 : f32
    %0 = vector.broadcast %cst : f32 to vector<18x18x128xf32>
    %c0 = arith.constant 0 : index
    %c0_0 = arith.constant 0 : index
    %c0_1 = arith.constant 0 : index
    %1 = vector.load %arg9[%c0, %c0_0, %c0_1] : memref<18x18x128xf32, #tpu.memory_space<vmem>>, vector<18x18x128xf32>
    tpu.vector_store %arg9[%c0, %c0_0, %c0_1], %0 {strides = array<i32>} : memref<18x18x128xf32, #tpu.memory_space<vmem>>, vector<18x18x128xf32>,
    %cst_2 = arith.constant 0.000000e+00 : bf16
    %2 = vector.broadcast %cst_2 : bf16 to vector<18x18x128xbf16>
    %c0_3 = arith.constant 0 : index
    %c0_4 = arith.constant 0 : index
    %c0_5 = arith.constant 0 : index
    %3 = vector.load %arg10[%c0_3, %c0_4, %c0_5] : memref<18x18x128xbf16, #tpu.memory_space<vmem>>, vector<18x18x128xbf16>
    tpu.vector_store %arg10[%c0_3, %c0_4, %c0_5], %2 {strides = array<i32>} : memref<18x18x128xbf16, #tpu.memory_space<vmem>>, vector<18x18x128xbf16>,
    %c0_6 = arith.constant 0 : index
    %c0_7 = arith.constant 0 : index
    %c0_8 = arith.constant 0 : index
    %c0_9 = arith.constant 0 : index
    %4 = vector.load %arg1[%c0_6, %c0_7, %c0_8, %c0_9] : memref<1x16x16x4xf32, #tpu.memory_space<vmem>>, vector<1x16x16x4xf32>
    %5 = vector.shape_cast %4 : vector<1x16x16x4xf32> to vector<16x16x4xf32>
    %c1 = arith.constant 1 : index
    %c1_10 = arith.constant 1 : index
    %c0_11 = arith.constant 0 : index
    %6 = vector.load %arg9[%c1, %c1_10, %c0_11] : memref<18x18x128xf32, #tpu.memory_space<vmem>>, vector<16x16x4xf32>
    tpu.vector_store %arg9[%c1, %c1_10, %c0_11], %5 {strides = array<i32>} : memref<18x18x128xf32, #tpu.memory_space<vmem>>, vector<16x16x4xf32>,
    %cst_12 = arith.constant 0.000000e+00 : f32
    %7 = vector.broadcast %cst_12 : f32 to vector<256x128xf32>
    %c0_13 = arith.constant 0 : index
    %c0_14 = arith.constant 0 : index
    %8 = vector.load %arg11[%c0_13, %c0_14] : memref<256x128xf32, #tpu.memory_space<vmem>>, vector<256x128xf32>
    tpu.vector_store %arg11[%c0_13, %c0_14], %7 {strides = array<i32>} : memref<256x128xf32, #tpu.memory_space<vmem>>, vector<256x128xf32>,
    %c0_15 = arith.constant 0 : index
    %c0_16 = arith.constant 0 : index
    %c0_17 = arith.constant 0 : index
    %9 = vector.load %arg9[%c0_15, %c0_16, %c0_17] : memref<18x18x128xf32, #tpu.memory_space<vmem>>, vector<16x16x128xf32>
    %10 = vector.shape_cast %9 : vector<16x16x128xf32> to vector<256x128xf32>
    %11 = arith.truncf %10 : vector<256x128xf32> to vector<256x128xbf16>
    %c0_18 = arith.constant 0 : index
    %c0_19 = arith.constant 0 : index
    %12 = vector.load %arg11[%c0_18, %c0_19] : memref<256x128xf32, #tpu.memory_space<vmem>>, vector<256x128xf32>
    %c0_20 = arith.constant 0 : index
    %c0_21 = arith.constant 0 : index
    %c0_22 = arith.constant 0 : index
    %13 = vector.load %arg2[%c0_20, %c0_21, %c0_22] : memref<9x128x128xbf16, #tpu.memory_space<vmem>>, vector<1x128x128xbf16>
    %14 = vector.shape_cast %13 : vector<1x128x128xbf16> to vector<128x128xbf16>
    %cst_23 = arith.constant dense<0.000000e+00> : vector<256x128xf32>
    %15 = tpu.matmul %11, %14, %cst_23 {dimension_numbers = #tpu.dot_dimension_numbers<[1], [0], [0], [1], [0, 0, 1, 1], [], []>} : vector<256x128xbf16>, vector<128x128xbf16>, vector<256x128xf32> -> vector<256x128xf32>
    %16 = arith.addf %12, %15 : vector<256x128xf32>
    %c0_24 = arith.constant 0 : index
    %c0_25 = arith.constant 0 : index
    %17 = vector.load %arg11[%c0_24, %c0_25] : memref<256x128xf32, #tpu.memory_space<vmem>>, vector<256x128xf32>
    tpu.vector_store %arg11[%c0_24, %c0_25], %16 {strides = array<i32>} : memref<256x128xf32, #tpu.memory_space<vmem>>, vector<256x128xf32>,
    %c0_26 = arith.constant 0 : index
    %c1_27 = arith.constant 1 : index
    %c0_28 = arith.constant 0 : index
    %18 = vector.load %arg9[%c0_26, %c1_27, %c0_28] : memref<18x18x128xf32, #tpu.memory_space<vmem>>, vector<16x16x128xf32>
    %19 = vector.shape_cast %18 : vector<16x16x128xf32> to vector<256x128xf32>
    %20 = arith.truncf %19 : vector<256x128xf32> to vector<256x128xbf16>
    %c0_29 = arith.constant 0 : index
    %c0_30 = arith.constant 0 : index
    %21 = vector.load %arg11[%c0_29, %c0_30] : memref<256x128xf32, #tpu.memory_space<vmem>>, vector<256x128xf32>
    %c1_31 = arith.constant 1 : index
    %c0_32 = arith.constant 0 : index
    %c0_33 = arith.constant 0 : index
    %22 = vector.load %arg2[%c1_31, %c0_32, %c0_33] : memref<9x128x128xbf16, #tpu.memory_space<vmem>>, vector<1x128x128xbf16>
    %23 = vector.shape_cast %22 : vector<1x128x128xbf16> to vector<128x128xbf16>
    %cst_34 = arith.constant dense<0.000000e+00> : vector<256x128xf32>
    %24 = tpu.matmul %20, %23, %cst_34 {dimension_numbers = #tpu.dot_dimension_numbers<[1], [0], [0], [1], [0, 0, 1, 1], [], []>} : vector<256x128xbf16>, vector<128x128xbf16>, vector<256x128xf32> -> vector<256x128xf32>
    %25 = arith.addf %21, %24 : vector<256x128xf32>
    %c0_35 = arith.constant 0 : index
    %c0_36 = arith.constant 0 : index
    %26 = vector.load %arg11[%c0_35, %c0_36] : memref<256x128xf32, #tpu.memory_space<vmem>>, vector<256x128xf32>
    tpu.vector_store %arg11[%c0_35, %c0_36], %25 {strides = array<i32>} : memref<256x128xf32, #tpu.memory_space<vmem>>, vector<256x128xf32>,
    %c0_37 = arith.constant 0 : index
    %c2 = arith.constant 2 : index
    %c0_38 = arith.constant 0 : index
    %27 = vector.load %arg9[%c0_37, %c2, %c0_38] : memref<18x18x128xf32, #tpu.memory_space<vmem>>, vector<16x16x128xf32>
    %28 = vector.shape_cast %27 : vector<16x16x128xf32> to vector<256x128xf32>
    %29 = arith.truncf %28 : vector<256x128xf32> to vector<256x128xbf16>
    %c0_39 = arith.constant 0 : index
    %c0_40 = arith.constant 0 : index
    %30 = vector.load %arg11[%c0_39, %c0_40] : memref<256x128xf32, #tpu.memory_space<vmem>>, vector<256x128xf32>
    %c2_41 = arith.constant 2 : index
    %c0_42 = arith.constant 0 : index
    %c0_43 = arith.constant 0 : index
    %31 = vector.load %arg2[%c2_41, %c0_42, %c0_43] : memref<9x128x128xbf16, #tpu.memory_space<vmem>>, vector<1x128x128xbf16>
    %32 = vector.shape_cast %31 : vector<1x128x128xbf16> to vector<128x128xbf16>
    %cst_44 = arith.constant dense<0.000000e+00> : vector<256x128xf32>
    %33 = tpu.matmul %29, %32, %cst_44 {dimension_numbers = #tpu.dot_dimension_numbers<[1], [0], [0], [1], [0, 0, 1, 1], [], []>} : vector<256x128xbf16>, vector<128x128xbf16>, vector<256x128xf32> -> vector<256x128xf32>
    %34 = arith.addf %30, %33 : vector<256x128xf32>
    %c0_45 = arith.constant 0 : index
    %c0_46 = arith.constant 0 : index
    %35 = vector.load %arg11[%c0_45, %c0_46] : memref<256x128xf32, #tpu.memory_space<vmem>>, vector<256x128xf32>
    tpu.vector_store %arg11[%c0_45, %c0_46], %34 {strides = array<i32>} : memref<256x128xf32, #tpu.memory_space<vmem>>, vector<256x128xf32>,
    %c1_47 = arith.constant 1 : index
    %c0_48 = arith.constant 0 : index
    %c0_49 = arith.constant 0 : index
    %36 = vector.load %arg9[%c1_47, %c0_48, %c0_49] : memref<18x18x128xf32, #tpu.memory_space<vmem>>, vector<16x16x128xf32>
    %37 = vector.shape_cast %36 : vector<16x16x128xf32> to vector<256x128xf32>
    %38 = arith.truncf %37 : vector<256x128xf32> to vector<256x128xbf16>
    %c0_50 = arith.constant 0 : index
    %c0_51 = arith.constant 0 : index
    %39 = vector.load %arg11[%c0_50, %c0_51] : memref<256x128xf32, #tpu.memory_space<vmem>>, vector<256x128xf32>
    %c3 = arith.constant 3 : index
    %c0_52 = arith.constant 0 : index
    %c0_53 = arith.constant 0 : index
    %40 = vector.load %arg2[%c3, %c0_52, %c0_53] : memref<9x128x128xbf16, #tpu.memory_space<vmem>>, vector<1x128x128xbf16>
    %41 = vector.shape_cast %40 : vector<1x128x128xbf16> to vector<128x128xbf16>
    %cst_54 = arith.constant dense<0.000000e+00> : vector<256x128xf32>
    %42 = tpu.matmul %38, %41, %cst_54 {dimension_numbers = #tpu.dot_dimension_numbers<[1], [0], [0], [1], [0, 0, 1, 1], [], []>} : vector<256x128xbf16>, vector<128x128xbf16>, vector<256x128xf32> -> vector<256x128xf32>
    %43 = arith.addf %39, %42 : vector<256x128xf32>
    %c0_55 = arith.constant 0 : index
    %c0_56 = arith.constant 0 : index
    %44 = vector.load %arg11[%c0_55, %c0_56] : memref<256x128xf32, #tpu.memory_space<vmem>>, vector<256x128xf32>
    tpu.vector_store %arg11[%c0_55, %c0_56], %43 {strides = array<i32>} : memref<256x128xf32, #tpu.memory_space<vmem>>, vector<256x128xf32>,
    %c1_57 = arith.constant 1 : index
    %c1_58 = arith.constant 1 : index
    %c0_59 = arith.constant 0 : index
    %45 = vector.load %arg9[%c1_57, %c1_58, %c0_59] : memref<18x18x128xf32, #tpu.memory_space<vmem>>, vector<16x16x128xf32>
    %46 = vector.shape_cast %45 : vector<16x16x128xf32> to vector<256x128xf32>
    %47 = arith.truncf %46 : vector<256x128xf32> to vector<256x128xbf16>
    %c0_60 = arith.constant 0 : index
    %c0_61 = arith.constant 0 : index
    %48 = vector.load %arg11[%c0_60, %c0_61] : memref<256x128xf32, #tpu.memory_space<vmem>>, vector<256x128xf32>
    %c4 = arith.constant 4 : index
    %c0_62 = arith.constant 0 : index
    %c0_63 = arith.constant 0 : index
    %49 = vector.load %arg2[%c4, %c0_62, %c0_63] : memref<9x128x128xbf16, #tpu.memory_space<vmem>>, vector<1x128x128xbf16>
    %50 = vector.shape_cast %49 : vector<1x128x128xbf16> to vector<128x128xbf16>
    %cst_64 = arith.constant dense<0.000000e+00> : vector<256x128xf32>
    %51 = tpu.matmul %47, %50, %cst_64 {dimension_numbers = #tpu.dot_dimension_numbers<[1], [0], [0], [1], [0, 0, 1, 1], [], []>} : vector<256x128xbf16>, vector<128x128xbf16>, vector<256x128xf32> -> vector<256x128xf32>
    %52 = arith.addf %48, %51 : vector<256x128xf32>
    %c0_65 = arith.constant 0 : index
    %c0_66 = arith.constant 0 : index
    %53 = vector.load %arg11[%c0_65, %c0_66] : memref<256x128xf32, #tpu.memory_space<vmem>>, vector<256x128xf32>
    tpu.vector_store %arg11[%c0_65, %c0_66], %52 {strides = array<i32>} : memref<256x128xf32, #tpu.memory_space<vmem>>, vector<256x128xf32>,
    %c1_67 = arith.constant 1 : index
    %c2_68 = arith.constant 2 : index
    %c0_69 = arith.constant 0 : index
    %54 = vector.load %arg9[%c1_67, %c2_68, %c0_69] : memref<18x18x128xf32, #tpu.memory_space<vmem>>, vector<16x16x128xf32>
    %55 = vector.shape_cast %54 : vector<16x16x128xf32> to vector<256x128xf32>
    %56 = arith.truncf %55 : vector<256x128xf32> to vector<256x128xbf16>
    %c0_70 = arith.constant 0 : index
    %c0_71 = arith.constant 0 : index
    %57 = vector.load %arg11[%c0_70, %c0_71] : memref<256x128xf32, #tpu.memory_space<vmem>>, vector<256x128xf32>
    %c5 = arith.constant 5 : index
    %c0_72 = arith.constant 0 : index
    %c0_73 = arith.constant 0 : index
    %58 = vector.load %arg2[%c5, %c0_72, %c0_73] : memref<9x128x128xbf16, #tpu.memory_space<vmem>>, vector<1x128x128xbf16>
    %59 = vector.shape_cast %58 : vector<1x128x128xbf16> to vector<128x128xbf16>
    %cst_74 = arith.constant dense<0.000000e+00> : vector<256x128xf32>
    %60 = tpu.matmul %56, %59, %cst_74 {dimension_numbers = #tpu.dot_dimension_numbers<[1], [0], [0], [1], [0, 0, 1, 1], [], []>} : vector<256x128xbf16>, vector<128x128xbf16>, vector<256x128xf32> -> vector<256x128xf32>
    %61 = arith.addf %57, %60 : vector<256x128xf32>
    %c0_75 = arith.constant 0 : index
    %c0_76 = arith.constant 0 : index
    %62 = vector.load %arg11[%c0_75, %c0_76] : memref<256x128xf32, #tpu.memory_space<vmem>>, vector<256x128xf32>
    tpu.vector_store %arg11[%c0_75, %c0_76], %61 {strides = array<i32>} : memref<256x128xf32, #tpu.memory_space<vmem>>, vector<256x128xf32>,
    %c2_77 = arith.constant 2 : index
    %c0_78 = arith.constant 0 : index
    %c0_79 = arith.constant 0 : index
    %63 = vector.load %arg9[%c2_77, %c0_78, %c0_79] : memref<18x18x128xf32, #tpu.memory_space<vmem>>, vector<16x16x128xf32>
    %64 = vector.shape_cast %63 : vector<16x16x128xf32> to vector<256x128xf32>
    %65 = arith.truncf %64 : vector<256x128xf32> to vector<256x128xbf16>
    %c0_80 = arith.constant 0 : index
    %c0_81 = arith.constant 0 : index
    %66 = vector.load %arg11[%c0_80, %c0_81] : memref<256x128xf32, #tpu.memory_space<vmem>>, vector<256x128xf32>
    %c6 = arith.constant 6 : index
    %c0_82 = arith.constant 0 : index
    %c0_83 = arith.constant 0 : index
    %67 = vector.load %arg2[%c6, %c0_82, %c0_83] : memref<9x128x128xbf16, #tpu.memory_space<vmem>>, vector<1x128x128xbf16>
    %68 = vector.shape_cast %67 : vector<1x128x128xbf16> to vector<128x128xbf16>
    %cst_84 = arith.constant dense<0.000000e+00> : vector<256x128xf32>
    %69 = tpu.matmul %65, %68, %cst_84 {dimension_numbers = #tpu.dot_dimension_numbers<[1], [0], [0], [1], [0, 0, 1, 1], [], []>} : vector<256x128xbf16>, vector<128x128xbf16>, vector<256x128xf32> -> vector<256x128xf32>
    %70 = arith.addf %66, %69 : vector<256x128xf32>
    %c0_85 = arith.constant 0 : index
    %c0_86 = arith.constant 0 : index
    %71 = vector.load %arg11[%c0_85, %c0_86] : memref<256x128xf32, #tpu.memory_space<vmem>>, vector<256x128xf32>
    tpu.vector_store %arg11[%c0_85, %c0_86], %70 {strides = array<i32>} : memref<256x128xf32, #tpu.memory_space<vmem>>, vector<256x128xf32>,
    %c2_87 = arith.constant 2 : index
    %c1_88 = arith.constant 1 : index
    %c0_89 = arith.constant 0 : index
    %72 = vector.load %arg9[%c2_87, %c1_88, %c0_89] : memref<18x18x128xf32, #tpu.memory_space<vmem>>, vector<16x16x128xf32>
    %73 = vector.shape_cast %72 : vector<16x16x128xf32> to vector<256x128xf32>
    %74 = arith.truncf %73 : vector<256x128xf32> to vector<256x128xbf16>
    %c0_90 = arith.constant 0 : index
    %c0_91 = arith.constant 0 : index
    %75 = vector.load %arg11[%c0_90, %c0_91] : memref<256x128xf32, #tpu.memory_space<vmem>>, vector<256x128xf32>
    %c7 = arith.constant 7 : index
    %c0_92 = arith.constant 0 : index
    %c0_93 = arith.constant 0 : index
    %76 = vector.load %arg2[%c7, %c0_92, %c0_93] : memref<9x128x128xbf16, #tpu.memory_space<vmem>>, vector<1x128x128xbf16>
    %77 = vector.shape_cast %76 : vector<1x128x128xbf16> to vector<128x128xbf16>
    %cst_94 = arith.constant dense<0.000000e+00> : vector<256x128xf32>
    %78 = tpu.matmul %74, %77, %cst_94 {dimension_numbers = #tpu.dot_dimension_numbers<[1], [0], [0], [1], [0, 0, 1, 1], [], []>} : vector<256x128xbf16>, vector<128x128xbf16>, vector<256x128xf32> -> vector<256x128xf32>
    %79 = arith.addf %75, %78 : vector<256x128xf32>
    %c0_95 = arith.constant 0 : index
    %c0_96 = arith.constant 0 : index
    %80 = vector.load %arg11[%c0_95, %c0_96] : memref<256x128xf32, #tpu.memory_space<vmem>>, vector<256x128xf32>
    tpu.vector_store %arg11[%c0_95, %c0_96], %79 {strides = array<i32>} : memref<256x128xf32, #tpu.memory_space<vmem>>, vector<256x128xf32>,
    %c2_97 = arith.constant 2 : index
    %c2_98 = arith.constant 2 : index
    %c0_99 = arith.constant 0 : index
    %81 = vector.load %arg9[%c2_97, %c2_98, %c0_99] : memref<18x18x128xf32, #tpu.memory_space<vmem>>, vector<16x16x128xf32>
    %82 = vector.shape_cast %81 : vector<16x16x128xf32> to vector<256x128xf32>
    %83 = arith.truncf %82 : vector<256x128xf32> to vector<256x128xbf16>
    %c0_100 = arith.constant 0 : index
    %c0_101 = arith.constant 0 : index
    %84 = vector.load %arg11[%c0_100, %c0_101] : memref<256x128xf32, #tpu.memory_space<vmem>>, vector<256x128xf32>
    %c8 = arith.constant 8 : index
    %c0_102 = arith.constant 0 : index
    %c0_103 = arith.constant 0 : index
    %85 = vector.load %arg2[%c8, %c0_102, %c0_103] : memref<9x128x128xbf16, #tpu.memory_space<vmem>>, vector<1x128x128xbf16>
    %86 = vector.shape_cast %85 : vector<1x128x128xbf16> to vector<128x128xbf16>
    %cst_104 = arith.constant dense<0.000000e+00> : vector<256x128xf32>
    %87 = tpu.matmul %83, %86, %cst_104 {dimension_numbers = #tpu.dot_dimension_numbers<[1], [0], [0], [1], [0, 0, 1, 1], [], []>} : vector<256x128xbf16>, vector<128x128xbf16>, vector<256x128xf32> -> vector<256x128xf32>
    %88 = arith.addf %84, %87 : vector<256x128xf32>
    %c0_105 = arith.constant 0 : index
    %c0_106 = arith.constant 0 : index
    %89 = vector.load %arg11[%c0_105, %c0_106] : memref<256x128xf32, #tpu.memory_space<vmem>>, vector<256x128xf32>
    tpu.vector_store %arg11[%c0_105, %c0_106], %88 {strides = array<i32>} : memref<256x128xf32, #tpu.memory_space<vmem>>, vector<256x128xf32>,
    %c0_107 = arith.constant 0 : index
    %c0_108 = arith.constant 0 : index
    %90 = vector.load %arg11[%c0_107, %c0_108] : memref<256x128xf32, #tpu.memory_space<vmem>>, vector<256x128xf32>
    %c0_109 = arith.constant 0 : index
    %c0_110 = arith.constant 0 : index
    %91 = vector.load %arg4[%c0_109, %c0_110] : memref<1x128xf32, #tpu.memory_space<vmem>>, vector<1x128xf32>
    %92 = vector.broadcast %91 : vector<1x128xf32> to vector<256x128xf32>
    %93 = arith.mulf %90, %92 : vector<256x128xf32>
    %c0_111 = arith.constant 0 : index
    %c0_112 = arith.constant 0 : index
    %94 = vector.load %arg5[%c0_111, %c0_112] : memref<1x128xf32, #tpu.memory_space<vmem>>, vector<1x128xf32>
    %95 = vector.broadcast %94 : vector<1x128xf32> to vector<256x128xf32>
    %96 = arith.addf %93, %95 : vector<256x128xf32>
    %cst_113 = arith.constant 0.000000e+00 : f32
    %97 = vector.broadcast %cst_113 : f32 to vector<256x128xf32>
    %98 = arith.maximumf %96, %97 : vector<256x128xf32>
    %99 = vector.shape_cast %98 : vector<256x128xf32> to vector<16x16x128xf32>
    %100 = arith.truncf %99 : vector<16x16x128xf32> to vector<16x16x128xbf16>
    %c1_114 = arith.constant 1 : index
    %c1_115 = arith.constant 1 : index
    %c0_116 = arith.constant 0 : index
    %101 = vector.load %arg10[%c1_114, %c1_115, %c0_116] : memref<18x18x128xbf16, #tpu.memory_space<vmem>>, vector<16x16x128xbf16>
    tpu.vector_store %arg10[%c1_114, %c1_115, %c0_116], %100 {strides = array<i32>} : memref<18x18x128xbf16, #tpu.memory_space<vmem>>, vector<16x16x128xbf16>,
    %cst_117 = arith.constant 0.000000e+00 : f32
    %102 = vector.broadcast %cst_117 : f32 to vector<256x128xf32>
    %c0_118 = arith.constant 0 : index
    %c0_119 = arith.constant 0 : index
    %103 = vector.load %arg11[%c0_118, %c0_119] : memref<256x128xf32, #tpu.memory_space<vmem>>, vector<256x128xf32>
    tpu.vector_store %arg11[%c0_118, %c0_119], %102 {strides = array<i32>} : memref<256x128xf32, #tpu.memory_space<vmem>>, vector<256x128xf32>,
    %c0_120 = arith.constant 0 : index
    %c0_121 = arith.constant 0 : index
    %c0_122 = arith.constant 0 : index
    %104 = vector.load %arg10[%c0_120, %c0_121, %c0_122] : memref<18x18x128xbf16, #tpu.memory_space<vmem>>, vector<16x16x128xbf16>
    %105 = vector.shape_cast %104 : vector<16x16x128xbf16> to vector<256x128xbf16>
    %c0_123 = arith.constant 0 : index
    %c0_124 = arith.constant 0 : index
    %106 = vector.load %arg11[%c0_123, %c0_124] : memref<256x128xf32, #tpu.memory_space<vmem>>, vector<256x128xf32>
    %c0_125 = arith.constant 0 : index
    %c0_126 = arith.constant 0 : index
    %c0_127 = arith.constant 0 : index
    %107 = vector.load %arg3[%c0_125, %c0_126, %c0_127] : memref<9x128x128xbf16, #tpu.memory_space<vmem>>, vector<1x128x128xbf16>
    %108 = vector.shape_cast %107 : vector<1x128x128xbf16> to vector<128x128xbf16>
    %cst_128 = arith.constant dense<0.000000e+00> : vector<256x128xf32>
    %109 = tpu.matmul %105, %108, %cst_128 {dimension_numbers = #tpu.dot_dimension_numbers<[1], [0], [0], [1], [0, 0, 1, 1], [], []>} : vector<256x128xbf16>, vector<128x128xbf16>, vector<256x128xf32> -> vector<256x128xf32>
    %110 = arith.addf %106, %109 : vector<256x128xf32>
    %c0_129 = arith.constant 0 : index
    %c0_130 = arith.constant 0 : index
    %111 = vector.load %arg11[%c0_129, %c0_130] : memref<256x128xf32, #tpu.memory_space<vmem>>, vector<256x128xf32>
    tpu.vector_store %arg11[%c0_129, %c0_130], %110 {strides = array<i32>} : memref<256x128xf32, #tpu.memory_space<vmem>>, vector<256x128xf32>,
    %c0_131 = arith.constant 0 : index
    %c1_132 = arith.constant 1 : index
    %c0_133 = arith.constant 0 : index
    %112 = vector.load %arg10[%c0_131, %c1_132, %c0_133] : memref<18x18x128xbf16, #tpu.memory_space<vmem>>, vector<16x16x128xbf16>
    %113 = vector.shape_cast %112 : vector<16x16x128xbf16> to vector<256x128xbf16>
    %c0_134 = arith.constant 0 : index
    %c0_135 = arith.constant 0 : index
    %114 = vector.load %arg11[%c0_134, %c0_135] : memref<256x128xf32, #tpu.memory_space<vmem>>, vector<256x128xf32>
    %c1_136 = arith.constant 1 : index
    %c0_137 = arith.constant 0 : index
    %c0_138 = arith.constant 0 : index
    %115 = vector.load %arg3[%c1_136, %c0_137, %c0_138] : memref<9x128x128xbf16, #tpu.memory_space<vmem>>, vector<1x128x128xbf16>
    %116 = vector.shape_cast %115 : vector<1x128x128xbf16> to vector<128x128xbf16>
    %cst_139 = arith.constant dense<0.000000e+00> : vector<256x128xf32>
    %117 = tpu.matmul %113, %116, %cst_139 {dimension_numbers = #tpu.dot_dimension_numbers<[1], [0], [0], [1], [0, 0, 1, 1], [], []>} : vector<256x128xbf16>, vector<128x128xbf16>, vector<256x128xf32> -> vector<256x128xf32>
    %118 = arith.addf %114, %117 : vector<256x128xf32>
    %c0_140 = arith.constant 0 : index
    %c0_141 = arith.constant 0 : index
    %119 = vector.load %arg11[%c0_140, %c0_141] : memref<256x128xf32, #tpu.memory_space<vmem>>, vector<256x128xf32>
    tpu.vector_store %arg11[%c0_140, %c0_141], %118 {strides = array<i32>} : memref<256x128xf32, #tpu.memory_space<vmem>>, vector<256x128xf32>,
    %c0_142 = arith.constant 0 : index
    %c2_143 = arith.constant 2 : index
    %c0_144 = arith.constant 0 : index
    %120 = vector.load %arg10[%c0_142, %c2_143, %c0_144] : memref<18x18x128xbf16, #tpu.memory_space<vmem>>, vector<16x16x128xbf16>
    %121 = vector.shape_cast %120 : vector<16x16x128xbf16> to vector<256x128xbf16>
    %c0_145 = arith.constant 0 : index
    %c0_146 = arith.constant 0 : index
    %122 = vector.load %arg11[%c0_145, %c0_146] : memref<256x128xf32, #tpu.memory_space<vmem>>, vector<256x128xf32>
    %c2_147 = arith.constant 2 : index
    %c0_148 = arith.constant 0 : index
    %c0_149 = arith.constant 0 : index
    %123 = vector.load %arg3[%c2_147, %c0_148, %c0_149] : memref<9x128x128xbf16, #tpu.memory_space<vmem>>, vector<1x128x128xbf16>
    %124 = vector.shape_cast %123 : vector<1x128x128xbf16> to vector<128x128xbf16>
    %cst_150 = arith.constant dense<0.000000e+00> : vector<256x128xf32>
    %125 = tpu.matmul %121, %124, %cst_150 {dimension_numbers = #tpu.dot_dimension_numbers<[1], [0], [0], [1], [0, 0, 1, 1], [], []>} : vector<256x128xbf16>, vector<128x128xbf16>, vector<256x128xf32> -> vector<256x128xf32>
    %126 = arith.addf %122, %125 : vector<256x128xf32>
    %c0_151 = arith.constant 0 : index
    %c0_152 = arith.constant 0 : index
    %127 = vector.load %arg11[%c0_151, %c0_152] : memref<256x128xf32, #tpu.memory_space<vmem>>, vector<256x128xf32>
    tpu.vector_store %arg11[%c0_151, %c0_152], %126 {strides = array<i32>} : memref<256x128xf32, #tpu.memory_space<vmem>>, vector<256x128xf32>,
    %c1_153 = arith.constant 1 : index
    %c0_154 = arith.constant 0 : index
    %c0_155 = arith.constant 0 : index
    %128 = vector.load %arg10[%c1_153, %c0_154, %c0_155] : memref<18x18x128xbf16, #tpu.memory_space<vmem>>, vector<16x16x128xbf16>
    %129 = vector.shape_cast %128 : vector<16x16x128xbf16> to vector<256x128xbf16>
    %c0_156 = arith.constant 0 : index
    %c0_157 = arith.constant 0 : index
    %130 = vector.load %arg11[%c0_156, %c0_157] : memref<256x128xf32, #tpu.memory_space<vmem>>, vector<256x128xf32>
    %c3_158 = arith.constant 3 : index
    %c0_159 = arith.constant 0 : index
    %c0_160 = arith.constant 0 : index
    %131 = vector.load %arg3[%c3_158, %c0_159, %c0_160] : memref<9x128x128xbf16, #tpu.memory_space<vmem>>, vector<1x128x128xbf16>
    %132 = vector.shape_cast %131 : vector<1x128x128xbf16> to vector<128x128xbf16>
    %cst_161 = arith.constant dense<0.000000e+00> : vector<256x128xf32>
    %133 = tpu.matmul %129, %132, %cst_161 {dimension_numbers = #tpu.dot_dimension_numbers<[1], [0], [0], [1], [0, 0, 1, 1], [], []>} : vector<256x128xbf16>, vector<128x128xbf16>, vector<256x128xf32> -> vector<256x128xf32>
    %134 = arith.addf %130, %133 : vector<256x128xf32>
    %c0_162 = arith.constant 0 : index
    %c0_163 = arith.constant 0 : index
    %135 = vector.load %arg11[%c0_162, %c0_163] : memref<256x128xf32, #tpu.memory_space<vmem>>, vector<256x128xf32>
    tpu.vector_store %arg11[%c0_162, %c0_163], %134 {strides = array<i32>} : memref<256x128xf32, #tpu.memory_space<vmem>>, vector<256x128xf32>,
    %c1_164 = arith.constant 1 : index
    %c1_165 = arith.constant 1 : index
    %c0_166 = arith.constant 0 : index
    %136 = vector.load %arg10[%c1_164, %c1_165, %c0_166] : memref<18x18x128xbf16, #tpu.memory_space<vmem>>, vector<16x16x128xbf16>
    %137 = vector.shape_cast %136 : vector<16x16x128xbf16> to vector<256x128xbf16>
    %c0_167 = arith.constant 0 : index
    %c0_168 = arith.constant 0 : index
    %138 = vector.load %arg11[%c0_167, %c0_168] : memref<256x128xf32, #tpu.memory_space<vmem>>, vector<256x128xf32>
    %c4_169 = arith.constant 4 : index
    %c0_170 = arith.constant 0 : index
    %c0_171 = arith.constant 0 : index
    %139 = vector.load %arg3[%c4_169, %c0_170, %c0_171] : memref<9x128x128xbf16, #tpu.memory_space<vmem>>, vector<1x128x128xbf16>
    %140 = vector.shape_cast %139 : vector<1x128x128xbf16> to vector<128x128xbf16>
    %cst_172 = arith.constant dense<0.000000e+00> : vector<256x128xf32>
    %141 = tpu.matmul %137, %140, %cst_172 {dimension_numbers = #tpu.dot_dimension_numbers<[1], [0], [0], [1], [0, 0, 1, 1], [], []>} : vector<256x128xbf16>, vector<128x128xbf16>, vector<256x128xf32> -> vector<256x128xf32>
    %142 = arith.addf %138, %141 : vector<256x128xf32>
    %c0_173 = arith.constant 0 : index
    %c0_174 = arith.constant 0 : index
    %143 = vector.load %arg11[%c0_173, %c0_174] : memref<256x128xf32, #tpu.memory_space<vmem>>, vector<256x128xf32>
    tpu.vector_store %arg11[%c0_173, %c0_174], %142 {strides = array<i32>} : memref<256x128xf32, #tpu.memory_space<vmem>>, vector<256x128xf32>,
    %c1_175 = arith.constant 1 : index
    %c2_176 = arith.constant 2 : index
    %c0_177 = arith.constant 0 : index
    %144 = vector.load %arg10[%c1_175, %c2_176, %c0_177] : memref<18x18x128xbf16, #tpu.memory_space<vmem>>, vector<16x16x128xbf16>
    %145 = vector.shape_cast %144 : vector<16x16x128xbf16> to vector<256x128xbf16>
    %c0_178 = arith.constant 0 : index
    %c0_179 = arith.constant 0 : index
    %146 = vector.load %arg11[%c0_178, %c0_179] : memref<256x128xf32, #tpu.memory_space<vmem>>, vector<256x128xf32>
    %c5_180 = arith.constant 5 : index
    %c0_181 = arith.constant 0 : index
    %c0_182 = arith.constant 0 : index
    %147 = vector.load %arg3[%c5_180, %c0_181, %c0_182] : memref<9x128x128xbf16, #tpu.memory_space<vmem>>, vector<1x128x128xbf16>
    %148 = vector.shape_cast %147 : vector<1x128x128xbf16> to vector<128x128xbf16>
    %cst_183 = arith.constant dense<0.000000e+00> : vector<256x128xf32>
    %149 = tpu.matmul %145, %148, %cst_183 {dimension_numbers = #tpu.dot_dimension_numbers<[1], [0], [0], [1], [0, 0, 1, 1], [], []>} : vector<256x128xbf16>, vector<128x128xbf16>, vector<256x128xf32> -> vector<256x128xf32>
    %150 = arith.addf %146, %149 : vector<256x128xf32>
    %c0_184 = arith.constant 0 : index
    %c0_185 = arith.constant 0 : index
    %151 = vector.load %arg11[%c0_184, %c0_185] : memref<256x128xf32, #tpu.memory_space<vmem>>, vector<256x128xf32>
    tpu.vector_store %arg11[%c0_184, %c0_185], %150 {strides = array<i32>} : memref<256x128xf32, #tpu.memory_space<vmem>>, vector<256x128xf32>,
    %c2_186 = arith.constant 2 : index
    %c0_187 = arith.constant 0 : index
    %c0_188 = arith.constant 0 : index
    %152 = vector.load %arg10[%c2_186, %c0_187, %c0_188] : memref<18x18x128xbf16, #tpu.memory_space<vmem>>, vector<16x16x128xbf16>
    %153 = vector.shape_cast %152 : vector<16x16x128xbf16> to vector<256x128xbf16>
    %c0_189 = arith.constant 0 : index
    %c0_190 = arith.constant 0 : index
    %154 = vector.load %arg11[%c0_189, %c0_190] : memref<256x128xf32, #tpu.memory_space<vmem>>, vector<256x128xf32>
    %c6_191 = arith.constant 6 : index
    %c0_192 = arith.constant 0 : index
    %c0_193 = arith.constant 0 : index
    %155 = vector.load %arg3[%c6_191, %c0_192, %c0_193] : memref<9x128x128xbf16, #tpu.memory_space<vmem>>, vector<1x128x128xbf16>
    %156 = vector.shape_cast %155 : vector<1x128x128xbf16> to vector<128x128xbf16>
    %cst_194 = arith.constant dense<0.000000e+00> : vector<256x128xf32>
    %157 = tpu.matmul %153, %156, %cst_194 {dimension_numbers = #tpu.dot_dimension_numbers<[1], [0], [0], [1], [0, 0, 1, 1], [], []>} : vector<256x128xbf16>, vector<128x128xbf16>, vector<256x128xf32> -> vector<256x128xf32>
    %158 = arith.addf %154, %157 : vector<256x128xf32>
    %c0_195 = arith.constant 0 : index
    %c0_196 = arith.constant 0 : index
    %159 = vector.load %arg11[%c0_195, %c0_196] : memref<256x128xf32, #tpu.memory_space<vmem>>, vector<256x128xf32>
    tpu.vector_store %arg11[%c0_195, %c0_196], %158 {strides = array<i32>} : memref<256x128xf32, #tpu.memory_space<vmem>>, vector<256x128xf32>,
    %c2_197 = arith.constant 2 : index
    %c1_198 = arith.constant 1 : index
    %c0_199 = arith.constant 0 : index
    %160 = vector.load %arg10[%c2_197, %c1_198, %c0_199] : memref<18x18x128xbf16, #tpu.memory_space<vmem>>, vector<16x16x128xbf16>
    %161 = vector.shape_cast %160 : vector<16x16x128xbf16> to vector<256x128xbf16>
    %c0_200 = arith.constant 0 : index
    %c0_201 = arith.constant 0 : index
    %162 = vector.load %arg11[%c0_200, %c0_201] : memref<256x128xf32, #tpu.memory_space<vmem>>, vector<256x128xf32>
    %c7_202 = arith.constant 7 : index
    %c0_203 = arith.constant 0 : index
    %c0_204 = arith.constant 0 : index
    %163 = vector.load %arg3[%c7_202, %c0_203, %c0_204] : memref<9x128x128xbf16, #tpu.memory_space<vmem>>, vector<1x128x128xbf16>
    %164 = vector.shape_cast %163 : vector<1x128x128xbf16> to vector<128x128xbf16>
    %cst_205 = arith.constant dense<0.000000e+00> : vector<256x128xf32>
    %165 = tpu.matmul %161, %164, %cst_205 {dimension_numbers = #tpu.dot_dimension_numbers<[1], [0], [0], [1], [0, 0, 1, 1], [], []>} : vector<256x128xbf16>, vector<128x128xbf16>, vector<256x128xf32> -> vector<256x128xf32>
    %166 = arith.addf %162, %165 : vector<256x128xf32>
    %c0_206 = arith.constant 0 : index
    %c0_207 = arith.constant 0 : index
    %167 = vector.load %arg11[%c0_206, %c0_207] : memref<256x128xf32, #tpu.memory_space<vmem>>, vector<256x128xf32>
    tpu.vector_store %arg11[%c0_206, %c0_207], %166 {strides = array<i32>} : memref<256x128xf32, #tpu.memory_space<vmem>>, vector<256x128xf32>,
    %c2_208 = arith.constant 2 : index
    %c2_209 = arith.constant 2 : index
    %c0_210 = arith.constant 0 : index
    %168 = vector.load %arg10[%c2_208, %c2_209, %c0_210] : memref<18x18x128xbf16, #tpu.memory_space<vmem>>, vector<16x16x128xbf16>
    %169 = vector.shape_cast %168 : vector<16x16x128xbf16> to vector<256x128xbf16>
    %c0_211 = arith.constant 0 : index
    %c0_212 = arith.constant 0 : index
    %170 = vector.load %arg11[%c0_211, %c0_212] : memref<256x128xf32, #tpu.memory_space<vmem>>, vector<256x128xf32>
    %c8_213 = arith.constant 8 : index
    %c0_214 = arith.constant 0 : index
    %c0_215 = arith.constant 0 : index
    %171 = vector.load %arg3[%c8_213, %c0_214, %c0_215] : memref<9x128x128xbf16, #tpu.memory_space<vmem>>, vector<1x128x128xbf16>
    %172 = vector.shape_cast %171 : vector<1x128x128xbf16> to vector<128x128xbf16>
    %cst_216 = arith.constant dense<0.000000e+00> : vector<256x128xf32>
    %173 = tpu.matmul %169, %172, %cst_216 {dimension_numbers = #tpu.dot_dimension_numbers<[1], [0], [0], [1], [0, 0, 1, 1], [], []>} : vector<256x128xbf16>, vector<128x128xbf16>, vector<256x128xf32> -> vector<256x128xf32>
    %174 = arith.addf %170, %173 : vector<256x128xf32>
    %c0_217 = arith.constant 0 : index
    %c0_218 = arith.constant 0 : index
    %175 = vector.load %arg11[%c0_217, %c0_218] : memref<256x128xf32, #tpu.memory_space<vmem>>, vector<256x128xf32>
    tpu.vector_store %arg11[%c0_217, %c0_218], %174 {strides = array<i32>} : memref<256x128xf32, #tpu.memory_space<vmem>>, vector<256x128xf32>,
    %c0_219 = arith.constant 0 : index
    %c0_220 = arith.constant 0 : index
    %176 = vector.load %arg11[%c0_219, %c0_220] : memref<256x128xf32, #tpu.memory_space<vmem>>, vector<256x128xf32>
    %c0_221 = arith.constant 0 : index
    %c0_222 = arith.constant 0 : index
    %177 = vector.load %arg6[%c0_221, %c0_222] : memref<1x128xf32, #tpu.memory_space<vmem>>, vector<1x128xf32>
    %178 = vector.broadcast %177 : vector<1x128xf32> to vector<256x128xf32>
    %179 = arith.mulf %176, %178 : vector<256x128xf32>
    %c0_223 = arith.constant 0 : index
    %c0_224 = arith.constant 0 : index
    %180 = vector.load %arg7[%c0_223, %c0_224] : memref<1x128xf32, #tpu.memory_space<vmem>>, vector<1x128xf32>
    %181 = vector.broadcast %180 : vector<1x128xf32> to vector<256x128xf32>
    %182 = arith.addf %179, %181 : vector<256x128xf32>
    %c1_225 = arith.constant 1 : index
    %c1_226 = arith.constant 1 : index
    %c0_227 = arith.constant 0 : index
    %183 = vector.load %arg9[%c1_225, %c1_226, %c0_227] : memref<18x18x128xf32, #tpu.memory_space<vmem>>, vector<16x16x128xf32>
    %184 = vector.shape_cast %183 : vector<16x16x128xf32> to vector<256x128xf32>
    %185 = arith.addf %182, %184 : vector<256x128xf32>
    %cst_228 = arith.constant 0.000000e+00 : f32
    %186 = vector.broadcast %cst_228 : f32 to vector<256x128xf32>
    %187 = arith.maximumf %185, %186 : vector<256x128xf32>
    %c0_229 = arith.constant 0 : index
    %c0_230 = arith.constant 0 : index
    %c0_231 = arith.constant 0 : index
    %188 = vector.load %arg8[%c0_229, %c0_230, %c0_231] : memref<1x256x128xf32, #tpu.memory_space<vmem>>, vector<1x256x128xf32>
    %189 = vector.shape_cast %188 : vector<1x256x128xf32> to vector<256x128xf32>
    %190 = vector.shape_cast %187 : vector<256x128xf32> to vector<1x256x128xf32>
    tpu.vector_store %arg8[%c0_229, %c0_230, %c0_231], %190 {strides = array<i32>} : memref<1x256x128xf32, #tpu.memory_space<vmem>>, vector<1x256x128xf32>,
    return
  }
  func.func @transform_0(%arg0: i32) -> (i32, i32, i32, i32) {
    %c0_i32 = arith.constant 0 : i32
    %c0_i32_0 = arith.constant 0 : i32
    %c0_i32_1 = arith.constant 0 : i32
    %c0_i32_2 = arith.constant 0 : i32
    return %arg0, %c0_i32, %c0_i32_0, %c0_i32_1 : i32, i32, i32, i32
  }
  func.func @transform_1(%arg0: i32) -> (i32, i32, i32) {
    %c0_i32 = arith.constant 0 : i32
    %c0_i32_0 = arith.constant 0 : i32
    %c0_i32_1 = arith.constant 0 : i32
    %c0_i32_2 = arith.constant 0 : i32
    return %c0_i32, %c0_i32_0, %c0_i32_1 : i32, i32, i32
  }
  func.func @transform_2(%arg0: i32) -> (i32, i32, i32) {
    %c0_i32 = arith.constant 0 : i32
    %c0_i32_0 = arith.constant 0 : i32
    %c0_i32_1 = arith.constant 0 : i32
    %c0_i32_2 = arith.constant 0 : i32
    return %c0_i32, %c0_i32_0, %c0_i32_1 : i32, i32, i32
  }
  func.func @transform_3(%arg0: i32) -> (i32, i32) {
    %c0_i32 = arith.constant 0 : i32
    %c0_i32_0 = arith.constant 0 : i32
    %c0_i32_1 = arith.constant 0 : i32
    return %c0_i32, %c0_i32_0 : i32, i32
  }
  func.func @transform_4(%arg0: i32) -> (i32, i32) {
    %c0_i32 = arith.constant 0 : i32
    %c0_i32_0 = arith.constant 0 : i32
    %c0_i32_1 = arith.constant 0 : i32
    return %c0_i32, %c0_i32_0 : i32, i32
  }
  func.func @transform_5(%arg0: i32) -> (i32, i32) {
    %c0_i32 = arith.constant 0 : i32
    %c0_i32_0 = arith.constant 0 : i32
    %c0_i32_1 = arith.constant 0 : i32
    return %c0_i32, %c0_i32_0 : i32, i32
  }
  func.func @transform_6(%arg0: i32) -> (i32, i32) {
    %c0_i32 = arith.constant 0 : i32
    %c0_i32_0 = arith.constant 0 : i32
    %c0_i32_1 = arith.constant 0 : i32
    return %c0_i32, %c0_i32_0 : i32, i32
  }
  func.func @transform_7(%arg0: i32) -> (i32, i32, i32) {
    %c0_i32 = arith.constant 0 : i32
    %c0_i32_0 = arith.constant 0 : i32
    %c0_i32_1 = arith.constant 0 : i32
    return %arg0, %c0_i32, %c0_i32_0 : i32, i32, i32
  }
}

</mosaic_0001>

<llo_original>
// kernel: tpu_custom_call.1
$region0: #{tpu_custom_call.1}
  #allocation0 [shape = 'u32[]', space=smem, size = 0x4, offset = 0x4, fixed_abs, tag = 'smem constant byte address 0x4 - core index']
  #allocation1 [shape = 'u32[144,128]{1,0:T(1,128)}', space=vmem, size = 0x12000, scoped, tag = 'internal scratch']
  #allocation2 [shape = 'f32[18,18,128]{2,1,0:T(8,128)}', space=vmem, size = 0x36000, scoped, tag = 'scratch operand']
  #allocation3 [shape = 'bf16[18,18,128]{2,1,0:T(8,128)(2,1)}', space=vmem, size = 0x1b000, scoped, tag = 'scratch operand']
  #allocation4 [shape = 'f32[256,128]{1,0:T(8,128)}', space=vmem, size = 0x20000, scoped, tag = 'scratch operand']
  %s0 = inlined_call_operand.vmem [shape: f32[2,16,16,4], index: 0, kind: input, shape index: {}]
  %s1 = inlined_call_operand.vmem [shape: bf16[9,128,128], index: 1, kind: input, shape index: {}]
  %s2 = inlined_call_operand.hbm [shape: bf16[9,128,128], index: 2, kind: input, shape index: {}]
  %s3 = inlined_call_operand.vmem [shape: f32[1,128], index: 3, kind: input, shape index: {}]
  %s4 = inlined_call_operand.vmem [shape: f32[1,128], index: 4, kind: input, shape index: {}]
  %s5 = inlined_call_operand.vmem [shape: f32[1,128], index: 5, kind: input, shape index: {}]
  %s6 = inlined_call_operand.vmem [shape: f32[1,128], index: 6, kind: input, shape index: {}]
  %s7 = inlined_call_operand.hbm [shape: f32[2,256,128], index: 7, kind: output, shape index: {}]
  %s8 = sld [smem:[#allocation0]]
  $region65: #{tpu_custom_call.1} parent=0
    _
  %s10 = ssub.s32 1, %s8
  %s11 = scalar_select 0, %s10, %s8
  $region1: #{tpu_custom_call.1} parent=0
    #allocation5 [shape = 'u8[294912]{0}', space=vmem, size = 0x48000, scoped, tag = 'input window, operand 2, single buffered']
    #allocation6 [shape = 's32[2]{0}', space=sflag, size = 0x8, scoped, tag = 'scoped memory for tpu_custom_call.1']
    #allocation7 [shape = 's32[2]{0}', space=sflag, size = 0x8, scoped, tag = 'scoped memory for tpu_custom_call.1']
    #allocation8 [shape = 'u8[262144]{0}', space=vmem, size = 0x40000, scoped, tag = 'output window, operand 0']
    %12 = vsyncpa [#allocation6], 0
    %13 = vsyncpa [#allocation7], 0
    %s14 = scalar_lea.sflag [#allocation7], 1
    %15 = vsyncpa %s14, 0
    loop: start=0, step=1, limit=4
    $region2: #{tpu_custom_call.1} parent=1 // loop_pre_header
      _
    $region3: #{tpu_custom_call.1} parent=1 // loop_header
      %s17 = sphi 0, %s21
      %p18 = scmp.ge.s32.totalorder %s17, 4
      %s27 = sphi 0, %s29
      %s30 = sphi 0, %s27
      %s31 = sphi 0, %s30
      %s47 = sphi 0, %s31
      %s51 = sphi 0, %s51
      %s53 = sphi 0, %s51
      %s54 = sphi 0, %s53
      %s68 = sphi 0, %s54
      %s72 = sphi 0, %s72
      %s74 = sphi 0, %s72
      %s75 = sphi 0, %s74
      %s89 = sphi 0, %s75
      %s93 = sphi 0, %s93
      %s95 = sphi 0, %s93
      %s96 = sphi 0, %s95
      %s110 = sphi 0, %s96
      %s114 = sphi 0, %s114
      %s116 = sphi 0, %s114
      %s117 = sphi 0, %s116
      %s131 = sphi 0, %s117
      %s135 = sphi 0, %s135
      %s137 = sphi 0, %s135
      %s138 = sphi 0, %s137
      %s152 = sphi 0, %s138
      %s156 = sphi 0, %s156
      %s158 = sphi 0, %s156
      %s159 = sphi 0, %s158
      %s173 = sphi 0, %s159
      %s179 = sphi 0, %s181
      %s182 = sphi 0, %s179
      %s183 = sphi 0, %s182
      %s199 = sphi 0, %s183
    $region4: #{tpu_custom_call.1} parent=1 // loop_header_branch
      %20 = sbr.rel (%p18) target = $region8
    $region5: #{tpu_custom_call.1} parent=1 // loop_body
      %s22 = ssub.s32 %s17, 1
      %s23 = ssub.s32 %s17, 2
      %s24 = sadd.s32 %s17, 1
      %s25 = ssub.s32 %s17, %s24
      %p26 = scmp.eq.s32.totalorder %s25, 0
      %s28 = sadd.s32 %s27, 1
      %s29 = scalar_select %p26, %s27, %s28
      %p32 = pneg %p26
      %p33 = scmp.eq.s32.totalorder %s17, 1
      %p34 = por %p32, %p33
      %p35 = scmp.ne.s32.totalorder %s27, %s30
      %p36 = scmp.eq.s32.totalorder %s17, 0
      %p37 = por %p35, %p36
      %p38 = scmp.ne.s32.totalorder %s27, %s30
      %p39 = scmp.eq.s32.totalorder %s22, 1
      %p40 = por %p38, %p39
      %p41 = scmp.ne.s32.totalorder %s30, %s31
      %p42 = scmp.eq.s32.totalorder %s22, 0
      %p43 = por %p41, %p42
      %p44 = scmp.ne.s32.totalorder %s30, %s31
      %p45 = scmp.eq.s32.totalorder %s23, 1
      %p46 = por %p44, %p45
      %p48 = scmp.ne.s32.totalorder %s31, %s47
      %p49 = scmp.eq.s32.totalorder %s23, 0
      %p50 = por %p48, %p49
      %s52 = sadd.s32 %s51, 1
      %p55 = scmp.eq.s32.totalorder %s17, 1
      %p56 = scmp.ne.s32.totalorder %s51, %s53
      %p57 = scmp.eq.s32.totalorder %s17, 0
      %p58 = por %p56, %p57
      %p59 = scmp.ne.s32.totalorder %s51, %s53
      %p60 = scmp.eq.s32.totalorder %s22, 1
      %p61 = por %p59, %p60
      %p62 = scmp.ne.s32.totalorder %s53, %s54
      %p63 = scmp.eq.s32.totalorder %s22, 0
      %p64 = por %p62, %p63
      %p65 = scmp.ne.s32.totalorder %s53, %s54
      %p66 = scmp.eq.s32.totalorder %s23, 1
      %p67 = por %p65, %p66
      %p69 = scmp.ne.s32.totalorder %s54, %s68
      %p70 = scmp.eq.s32.totalorder %s23, 0
      %p71 = por %p69, %p70
      %s73 = sadd.s32 %s72, 1
      %p76 = scmp.eq.s32.totalorder %s17, 1
      %p77 = scmp.ne.s32.totalorder %s72, %s74
      %p78 = scmp.eq.s32.totalorder %s17, 0
      %p79 = por %p77, %p78
      %p80 = scmp.ne.s32.totalorder %s72, %s74
      %p81 = scmp.eq.s32.totalorder %s22, 1
      %p82 = por %p80, %p81
      %p83 = scmp.ne.s32.totalorder %s74, %s75
      %p84 = scmp.eq.s32.totalorder %s22, 0
      %p85 = por %p83, %p84
      %p86 = scmp.ne.s32.totalorder %s74, %s75
      %p87 = scmp.eq.s32.totalorder %s23, 1
      %p88 = por %p86, %p87
      %p90 = scmp.ne.s32.totalorder %s75, %s89
      %p91 = scmp.eq.s32.totalorder %s23, 0
      %p92 = por %p90, %p91
      %s94 = sadd.s32 %s93, 1
      %p97 = scmp.eq.s32.totalorder %s17, 1
      %p98 = scmp.ne.s32.totalorder %s93, %s95
      %p99 = scmp.eq.s32.totalorder %s17, 0
      %p100 = por %p98, %p99
      %p101 = scmp.ne.s32.totalorder %s93, %s95
      %p102 = scmp.eq.s32.totalorder %s22, 1
      %p103 = por %p101, %p102
      %p104 = scmp.ne.s32.totalorder %s95, %s96
      %p105 = scmp.eq.s32.totalorder %s22, 0
      %p106 = por %p104, %p105
      %p107 = scmp.ne.s32.totalorder %s95, %s96
      %p108 = scmp.eq.s32.totalorder %s23, 1
      %p109 = por %p107, %p108
      %p111 = scmp.ne.s32.totalorder %s96, %s110
      %p112 = scmp.eq.s32.totalorder %s23, 0
      %p113 = por %p111, %p112
      %s115 = sadd.s32 %s114, 1
      %p118 = scmp.eq.s32.totalorder %s17, 1
      %p119 = scmp.ne.s32.totalorder %s114, %s116
      %p120 = scmp.eq.s32.totalorder %s17, 0
      %p121 = por %p119, %p120
      %p122 = scmp.ne.s32.totalorder %s114, %s116
      %p123 = scmp.eq.s32.totalorder %s22, 1
      %p124 = por %p122, %p123
      %p125 = scmp.ne.s32.totalorder %s116, %s117
      %p126 = scmp.eq.s32.totalorder %s22, 0
      %p127 = por %p125, %p126
      %p128 = scmp.ne.s32.totalorder %s116, %s117
      %p129 = scmp.eq.s32.totalorder %s23, 1
      %p130 = por %p128, %p129
      %p132 = scmp.ne.s32.totalorder %s117, %s131
      %p133 = scmp.eq.s32.totalorder %s23, 0
      %p134 = por %p132, %p133
      %s136 = sadd.s32 %s135, 1
      %p139 = scmp.eq.s32.totalorder %s17, 1
      %p140 = scmp.ne.s32.totalorder %s135, %s137
      %p141 = scmp.eq.s32.totalorder %s17, 0
      %p142 = por %p140, %p141
      %p143 = scmp.ne.s32.totalorder %s135, %s137
      %p144 = scmp.eq.s32.totalorder %s22, 1
      %p145 = por %p143, %p144
      %p146 = scmp.ne.s32.totalorder %s137, %s138
      %p147 = scmp.eq.s32.totalorder %s22, 0
      %p148 = por %p146, %p147
      %p149 = scmp.ne.s32.totalorder %s137, %s138
      %p150 = scmp.eq.s32.totalorder %s23, 1
      %p151 = por %p149, %p150
      %p153 = scmp.ne.s32.totalorder %s138, %s152
      %p154 = scmp.eq.s32.totalorder %s23, 0
      %p155 = por %p153, %p154
      %s157 = sadd.s32 %s156, 1
      %p160 = scmp.eq.s32.totalorder %s17, 1
      %p161 = scmp.ne.s32.totalorder %s156, %s158
      %p162 = scmp.eq.s32.totalorder %s17, 0
      %p163 = por %p161, %p162
      %p164 = scmp.ne.s32.totalorder %s156, %s158
      %p165 = scmp.eq.s32.totalorder %s22, 1
      %p166 = por %p164, %p165
      %p167 = scmp.ne.s32.totalorder %s158, %s159
      %p168 = scmp.eq.s32.totalorder %s22, 0
      %p169 = por %p167, %p168
      %p170 = scmp.ne.s32.totalorder %s158, %s159
      %p171 = scmp.eq.s32.totalorder %s23, 1
      %p172 = por %p170, %p171
      %p174 = scmp.ne.s32.totalorder %s159, %s173
      %p175 = scmp.eq.s32.totalorder %s23, 0
      %p176 = por %p174, %p175
      %s177 = ssub.s32 %s17, %s24
      %p178 = scmp.eq.s32.totalorder %s177, 0
      %s180 = sadd.s32 %s179, 1
      %s181 = scalar_select %p178, %s179, %s180
      %p184 = pneg %p178
      %p185 = scmp.eq.s32.totalorder %s17, 1
      %p186 = por %p184, %p185
      %p187 = scmp.ne.s32.totalorder %s179, %s182
      %p188 = scmp.eq.s32.totalorder %s17, 0
      %p189 = por %p187, %p188
      %p190 = scmp.ne.s32.totalorder %s179, %s182
      %p191 = scmp.eq.s32.totalorder %s22, 1
      %p192 = por %p190, %p191
      %p193 = scmp.ne.s32.totalorder %s182, %s183
      %p194 = scmp.eq.s32.totalorder %s22, 0
      %p195 = por %p193, %p194
      %p196 = scmp.ne.s32.totalorder %s182, %s183
      %p197 = scmp.eq.s32.totalorder %s23, 1
      %p198 = por %p196, %p197
      %p200 = scmp.ne.s32.totalorder %s183, %s199
      %p201 = scmp.eq.s32.totalorder %s23, 0
      %p202 = por %p200, %p201
      %p203 = scmp.le.s32.totalorder 1, %s17
      %p204 = scmp.lt.s32.totalorder %s17, 3
      %p205 = pnand %p203, %p204
      %p206 = pneg %p205
      // Predicated region
      $region9: #{tpu_custom_call.1} parent=5 // pred_check
        _
      $region10: #{tpu_custom_call.1} parent=5 // pred_check_branch
        %208 = sbr.rel (%p205) target = $region12
      $region11: #{tpu_custom_call.1} parent=5 // pred_region
        %s209 = ssub.s32 %s17, 1
        // Predicated region
        $region13: #{tpu_custom_call.1} parent=11 // pred_check
          %p210 = pneg %p64
        $region14: #{tpu_custom_call.1} parent=11 // pred_check_branch
          %212 = sbr.rel (%p210) target = $region16
        $region15: #{tpu_custom_call.1} parent=11 // pred_region
          _
        $region16: #{tpu_custom_call.1} parent=11 // pred_fallthru
          _
        // Predicated region
        $region17: #{tpu_custom_call.1} parent=11 // pred_check
          %p213 = pneg %p85
        $region18: #{tpu_custom_call.1} parent=11 // pred_check_branch
          %215 = sbr.rel (%p213) target = $region20
        $region19: #{tpu_custom_call.1} parent=11 // pred_region
          %s217 = ssub.s32 9216, 9216
          %218 = vsyncadd [#allocation6], %s217
          %s219 = sshll.u32 [#allocation5], 4
          %s220 = int_to_ptr.vmem [resolvable:$true] %s219
          %225 = dma.hbm_to_vmem [thread:$0]  %s2, 9216, %s220, [#allocation6], 64, 64, 4
        $region20: #{tpu_custom_call.1} parent=11 // pred_fallthru
          _
        // Predicated region
        $region21: #{tpu_custom_call.1} parent=11 // pred_check
          %p226 = pneg %p106
        $region22: #{tpu_custom_call.1} parent=11 // pred_check_branch
          %228 = sbr.rel (%p226) target = $region24
        $region23: #{tpu_custom_call.1} parent=11 // pred_region
          _
        $region24: #{tpu_custom_call.1} parent=11 // pred_fallthru
          _
        // Predicated region
        $region25: #{tpu_custom_call.1} parent=11 // pred_check
          %p229 = pneg %p127
        $region26: #{tpu_custom_call.1} parent=11 // pred_check_branch
          %231 = sbr.rel (%p229) target = $region28
        $region27: #{tpu_custom_call.1} parent=11 // pred_region
          _
        $region28: #{tpu_custom_call.1} parent=11 // pred_fallthru
          _
        // Predicated region
        $region29: #{tpu_custom_call.1} parent=11 // pred_check
          %p232 = pneg %p148
        $region30: #{tpu_custom_call.1} parent=11 // pred_check_branch
          %234 = sbr.rel (%p232) target = $region32
        $region31: #{tpu_custom_call.1} parent=11 // pred_region
          _
        $region32: #{tpu_custom_call.1} parent=11 // pred_fallthru
          _
        // Predicated region
        $region33: #{tpu_custom_call.1} parent=11 // pred_check
          %p235 = pneg %p169
        $region34: #{tpu_custom_call.1} parent=11 // pred_check_branch
          %237 = sbr.rel (%p235) target = $region36
        $region35: #{tpu_custom_call.1} parent=11 // pred_region
          _
        $region36: #{tpu_custom_call.1} parent=11 // pred_fallthru
          _
      $region12: #{tpu_custom_call.1} parent=5 // pred_fallthru
        _
      %p238 = scmp.lt.s32.totalorder %s17, 2
      // Predicated region
      $region37: #{tpu_custom_call.1} parent=5 // pred_check
        %p239 = pneg %p238
      $region38: #{tpu_custom_call.1} parent=5 // pred_check_branch
        %241 = sbr.rel (%p239) target = $region40
      $region39: #{tpu_custom_call.1} parent=5 // pred_region
        // Predicated region
        $region41: #{tpu_custom_call.1} parent=39 // pred_check
          %p242 = pneg %p37
        $region42: #{tpu_custom_call.1} parent=39 // pred_check_branch
          %244 = sbr.rel (%p242) target = $region44
        $region43: #{tpu_custom_call.1} parent=39 // pred_region
          %p245 = scmp.lt.s32.totalorder %s17, 1
          %s246 = scalar_select %p245, %s17, 1
          %s247 = smul.addr %s246, 32
          %s248 = smul.addr %s247, 8
          %s249 = scalar_lea.vmem %s0, %s248
        $region44: #{tpu_custom_call.1} parent=39 // pred_fallthru
          _
      $region40: #{tpu_custom_call.1} parent=5 // pred_fallthru
        _
      %p250 = scmp.le.s32.totalorder 1, %s17
      %p251 = scmp.lt.s32.totalorder %s17, 3
      %p252 = pnand %p250, %p251
      %p253 = pneg %p252
      // Predicated region
      $region45: #{tpu_custom_call.1} parent=5 // pred_check
        _
      $region46: #{tpu_custom_call.1} parent=5 // pred_check_branch
        %255 = sbr.rel (%p252) target = $region48
      $region47: #{tpu_custom_call.1} parent=5 // pred_region
        %s256 = ssub.s32 %s17, 1
        // Predicated region
        $region49: #{tpu_custom_call.1} parent=47 // pred_check
          %p257 = pneg %p85
        $region50: #{tpu_custom_call.1} parent=47 // pred_check_branch
          %259 = sbr.rel (%p257) target = $region52
        $region51: #{tpu_custom_call.1} parent=47 // pred_region
          %260 = dma.done [#allocation6], 9216
        $region52: #{tpu_custom_call.1} parent=47 // pred_fallthru
          _
        %p261 = scmp.lt.s32.totalorder %s22, 1
        %s262 = scalar_select %p261, %s22, 1
        %s263 = smul.addr %s262, 32
        %s264 = smul.addr %s263, 8
        %s265 = scalar_lea.vmem %s0, %s264
        %p266 = pneg %p43
        %p267 = pneg %p40
        %p268 = pneg %p64
        %p269 = pneg %p61
        %p270 = pneg %p85
        %p271 = pneg %p82
        %p272 = pneg %p106
        %p273 = pneg %p103
        %p274 = pneg %p127
        %p275 = pneg %p124
        %p276 = pneg %p148
        %p277 = pneg %p145
        %p278 = pneg %p169
        %p279 = pneg %p166
        %p280 = pneg %p195
        %p281 = pneg %p192
        %s282 = sand.u32 %s182, 1
        %s283 = scalar_lea.sflag [#allocation7], %s282
        %s284 = sand.u32 %s182, 1
        %s285 = smul.addr %s284, 256
        %s286 = scalar_lea.vmem [#allocation8], %s285
        %p287 = scmp.lt.s32.totalorder %s22, 1
        %s288 = scalar_select %p287, %s22, 1
        %s289 = smul.addr %s288, 32
        %s290 = smul.addr %s289, 8
        %s291 = scalar_lea.vmem %s0, %s290
        %293 = vst [vmem:[#allocation2] sm:$0xff] 0.0
        %294 = vst [vmem:[#allocation2 + $0x8] sm:$0xff] 0.0
        %295 = vst [vmem:[#allocation2 + $0x10] sm:$0x3] 0.0
        %296 = vst [vmem:[#allocation2 + $0x18] sm:$0xff] 0.0
        %297 = vst [vmem:[#allocation2 + $0x20] sm:$0xff] 0.0
        %298 = vst [vmem:[#allocation2 + $0x28] sm:$0x3] 0.0
        %299 = vst [vmem:[#allocation2 + $0x30] sm:$0xff] 0.0
        %300 = vst [vmem:[#allocation2 + $0x38] sm:$0xff] 0.0
        %301 = vst [vmem:[#allocation2 + $0x40] sm:$0x3] 0.0
        %302 = vst [vmem:[#allocation2 + $0x48] sm:$0xff] 0.0
        %303 = vst [vmem:[#allocation2 + $0x50] sm:$0xff] 0.0
        %304 = vst [vmem:[#allocation2 + $0x58] sm:$0x3] 0.0
        %305 = vst [vmem:[#allocation2 + $0x60] sm:$0xff] 0.0
        %306 = vst [vmem:[#allocation2 + $0x68] sm:$0xff] 0.0
        %307 = vst [vmem:[#allocation2 + $0x70] sm:$0x3] 0.0
        %308 = vst [vmem:[#allocation2 + $0x78] sm:$0xff] 0.0
        %309 = vst [vmem:[#allocation2 + $0x80] sm:$0xff] 0.0
        %310 = vst [vmem:[#allocation2 + $0x88] sm:$0x3] 0.0
        %311 = vst [vmem:[#allocation2 + $0x90] sm:$0xff] 0.0
        %312 = vst [vmem:[#allocation2 + $0x98] sm:$0xff] 0.0
        %313 = vst [vmem:[#allocation2 + $0xa0] sm:$0x3] 0.0
        %314 = vst [vmem:[#allocation2 + $0xa8] sm:$0xff] 0.0
        %315 = vst [vmem:[#allocation2 + $0xb0] sm:$0xff] 0.0
        %316 = vst [vmem:[#allocation2 + $0xb8] sm:$0x3] 0.0
        %317 = vst [vmem:[#allocation2 + $0xc0] sm:$0xff] 0.0
        %318 = vst [vmem:[#allocation2 + $0xc8] sm:$0xff] 0.0
        %319 = vst [vmem:[#allocation2 + $0xd0] sm:$0x3] 0.0
        %320 = vst [vmem:[#allocation2 + $0xd8] sm:$0xff] 0.0
        %321 = vst [vmem:[#allocation2 + $0xe0] sm:$0xff] 0.0
        %322 = vst [vmem:[#allocation2 + $0xe8] sm:$0x3] 0.0
        %323 = vst [vmem:[#allocation2 + $0xf0] sm:$0xff] 0.0
        %324 = vst [vmem:[#allocation2 + $0xf8] sm:$0xff] 0.0
        %325 = vst [vmem:[#allocation2 + $0x100] sm:$0x3] 0.0
        %326 = vst [vmem:[#allocation2 + $0x108] sm:$0xff] 0.0
        %327 = vst [vmem:[#allocation2 + $0x110] sm:$0xff] 0.0
        %328 = vst [vmem:[#allocation2 + $0x118] sm:$0x3] 0.0
        %329 = vst [vmem:[#allocation2 + $0x120] sm:$0xff] 0.0
        %330 = vst [vmem:[#allocation2 + $0x128] sm:$0xff] 0.0
        %331 = vst [vmem:[#allocation2 + $0x130] sm:$0x3] 0.0
        %332 = vst [vmem:[#allocation2 + $0x138] sm:$0xff] 0.0
        %333 = vst [vmem:[#allocation2 + $0x140] sm:$0xff] 0.0
        %334 = vst [vmem:[#allocation2 + $0x148] sm:$0x3] 0.0
        %335 = vst [vmem:[#allocation2 + $0x150] sm:$0xff] 0.0
        %336 = vst [vmem:[#allocation2 + $0x158] sm:$0xff] 0.0
        %337 = vst [vmem:[#allocation2 + $0x160] sm:$0x3] 0.0
        %338 = vst [vmem:[#allocation2 + $0x168] sm:$0xff] 0.0
        %339 = vst [vmem:[#allocation2 + $0x170] sm:$0xff] 0.0
        %340 = vst [vmem:[#allocation2 + $0x178] sm:$0x3] 0.0
        %341 = vst [vmem:[#allocation2 + $0x180] sm:$0xff] 0.0
        %342 = vst [vmem:[#allocation2 + $0x188] sm:$0xff] 0.0
        %343 = vst [vmem:[#allocation2 + $0x190] sm:$0x3] 0.0
        %344 = vst [vmem:[#allocation2 + $0x198] sm:$0xff] 0.0
        %345 = vst [vmem:[#allocation2 + $0x1a0] sm:$0xff] 0.0
        %346 = vst [vmem:[#allocation2 + $0x1a8] sm:$0x3] 0.0
        %347 = vst [vmem:[#allocation3] sm:$0xf] 0
        %348 = vst [vmem:[#allocation3 + $0x4] sm:$0xf] 0
        %349 = vst [vmem:[#allocation3 + $0x8] sm:$0x1] 0
        %350 = vst [vmem:[#allocation3 + $0xc] sm:$0xf] 0
        %351 = vst [vmem:[#allocation3 + $0x10] sm:$0xf] 0
        %352 = vst [vmem:[#allocation3 + $0x14] sm:$0x1] 0
        %353 = vst [vmem:[#allocation3 + $0x18] sm:$0xf] 0
        %354 = vst [vmem:[#allocation3 + $0x1c] sm:$0xf] 0
        %355 = vst [vmem:[#allocation3 + $0x20] sm:$0x1] 0
        %356 = vst [vmem:[#allocation3 + $0x24] sm:$0xf] 0
        %357 = vst [vmem:[#allocation3 + $0x28] sm:$0xf] 0
        %358 = vst [vmem:[#allocation3 + $0x2c] sm:$0x1] 0
        %359 = vst [vmem:[#allocation3 + $0x30] sm:$0xf] 0
        %360 = vst [vmem:[#allocation3 + $0x34] sm:$0xf] 0
        %361 = vst [vmem:[#allocation3 + $0x38] sm:$0x1] 0
        %362 = vst [vmem:[#allocation3 + $0x3c] sm:$0xf] 0
        %363 = vst [vmem:[#allocation3 + $0x40] sm:$0xf] 0
        %364 = vst [vmem:[#allocation3 + $0x44] sm:$0x1] 0
        %365 = vst [vmem:[#allocation3 + $0x48] sm:$0xf] 0
        %366 = vst [vmem:[#allocation3 + $0x4c] sm:$0xf] 0
        %367 = vst [vmem:[#allocation3 + $0x50] sm:$0x1] 0
        %368 = vst [vmem:[#allocation3 + $0x54] sm:$0xf] 0
        %369 = vst [vmem:[#allocation3 + $0x58] sm:$0xf] 0
        %370 = vst [vmem:[#allocation3 + $0x5c] sm:$0x1] 0
        %371 = vst [vmem:[#allocation3 + $0x60] sm:$0xf] 0
        %372 = vst [vmem:[#allocation3 + $0x64] sm:$0xf] 0
        %373 = vst [vmem:[#allocation3 + $0x68] sm:$0x1] 0
        %374 = vst [vmem:[#allocation3 + $0x6c] sm:$0xf] 0
        %375 = vst [vmem:[#allocation3 + $0x70] sm:$0xf] 0
        %376 = vst [vmem:[#allocation3 + $0x74] sm:$0x1] 0
        %377 = vst [vmem:[#allocation3 + $0x78] sm:$0xf] 0
        %378 = vst [vmem:[#allocation3 + $0x7c] sm:$0xf] 0
        %379 = vst [vmem:[#allocation3 + $0x80] sm:$0x1] 0
        %380 = vst [vmem:[#allocation3 + $0x84] sm:$0xf] 0
        %381 = vst [vmem:[#allocation3 + $0x88] sm:$0xf] 0
        %382 = vst [vmem:[#allocation3 + $0x8c] sm:$0x1] 0
        %383 = vst [vmem:[#allocation3 + $0x90] sm:$0xf] 0
        %384 = vst [vmem:[#allocation3 + $0x94] sm:$0xf] 0
        %385 = vst [vmem:[#allocation3 + $0x98] sm:$0x1] 0
        %386 = vst [vmem:[#allocation3 + $0x9c] sm:$0xf] 0
        %387 = vst [vmem:[#allocation3 + $0xa0] sm:$0xf] 0
        %388 = vst [vmem:[#allocation3 + $0xa4] sm:$0x1] 0
        %389 = vst [vmem:[#allocation3 + $0xa8] sm:$0xf] 0
        %390 = vst [vmem:[#allocation3 + $0xac] sm:$0xf] 0
        %391 = vst [vmem:[#allocation3 + $0xb0] sm:$0x1] 0
        %392 = vst [vmem:[#allocation3 + $0xb4] sm:$0xf] 0
        %393 = vst [vmem:[#allocation3 + $0xb8] sm:$0xf] 0
        %394 = vst [vmem:[#allocation3 + $0xbc] sm:$0x1] 0
        %395 = vst [vmem:[#allocation3 + $0xc0] sm:$0xf] 0
        %396 = vst [vmem:[#allocation3 + $0xc4] sm:$0xf] 0
        %397 = vst [vmem:[#allocation3 + $0xc8] sm:$0x1] 0
        %398 = vst [vmem:[#allocation3 + $0xcc] sm:$0xf] 0
        %399 = vst [vmem:[#allocation3 + $0xd0] sm:$0xf] 0
        %400 = vst [vmem:[#allocation3 + $0xd4] sm:$0x1] 0
        %v401 = vld [vmem:[%s291] sm:$0xff]
        %v402 = vld [vmem:[%s291 + $0x8] sm:$0xff]
        %v403 = vld [vmem:[%s291 + $0x10] sm:$0xff]
        %v404 = vld [vmem:[%s291 + $0x18] sm:$0xff]
        %v405 = vld [vmem:[%s291 + $0x20] sm:$0xff]
        %v406 = vld [vmem:[%s291 + $0x28] sm:$0xff]
        %v407 = vld [vmem:[%s291 + $0x30] sm:$0xff]
        %v408 = vld [vmem:[%s291 + $0x38] sm:$0xff]
        %v409 = vld [vmem:[%s291 + $0x40] sm:$0xff]
        %v410 = vld [vmem:[%s291 + $0x48] sm:$0xff]
        %v411 = vld [vmem:[%s291 + $0x50] sm:$0xff]
        %v412 = vld [vmem:[%s291 + $0x58] sm:$0xff]
        %v413 = vld [vmem:[%s291 + $0x60] sm:$0xff]
        %v414 = vld [vmem:[%s291 + $0x68] sm:$0xff]
        %v415 = vld [vmem:[%s291 + $0x70] sm:$0xff]
        %v416 = vld [vmem:[%s291 + $0x78] sm:$0xff]
        %v417 = vld [vmem:[%s291 + $0x80] sm:$0xff]
        %v418 = vld [vmem:[%s291 + $0x88] sm:$0xff]
        %v419 = vld [vmem:[%s291 + $0x90] sm:$0xff]
        %v420 = vld [vmem:[%s291 + $0x98] sm:$0xff]
        %v421 = vld [vmem:[%s291 + $0xa0] sm:$0xff]
        %v422 = vld [vmem:[%s291 + $0xa8] sm:$0xff]
        %v423 = vld [vmem:[%s291 + $0xb0] sm:$0xff]
        %v424 = vld [vmem:[%s291 + $0xb8] sm:$0xff]
        %v425 = vld [vmem:[%s291 + $0xc0] sm:$0xff]
        %v426 = vld [vmem:[%s291 + $0xc8] sm:$0xff]
        %v427 = vld [vmem:[%s291 + $0xd0] sm:$0xff]
        %v428 = vld [vmem:[%s291 + $0xd8] sm:$0xff]
        %v429 = vld [vmem:[%s291 + $0xe0] sm:$0xff]
        %v430 = vld [vmem:[%s291 + $0xe8] sm:$0xff]
        %v431 = vld [vmem:[%s291 + $0xf0] sm:$0xff]
        %v432 = vld [vmem:[%s291 + $0xf8] sm:$0xff]
        %s433 = scalar_lea.vmem [#allocation2], 24
        %vm434 = vcmask 31744
        %435 = vst.msk [vmem:[%s433 + $0x1] sm:$0xff] %vm434, %v401
        %436 = vst.msk [vmem:[%s433 + $0x9] sm:$0xff] %vm434, %v402
        %437 = vst.msk [vmem:[%s433 + $0x19] sm:$0xff] %vm434, %v403
        %438 = vst.msk [vmem:[%s433 + $0x21] sm:$0xff] %vm434, %v404
        %439 = vst.msk [vmem:[%s433 + $0x31] sm:$0xff] %vm434, %v405
        %440 = vst.msk [vmem:[%s433 + $0x39] sm:$0xff] %vm434, %v406
        %441 = vst.msk [vmem:[%s433 + $0x49] sm:$0xff] %vm434, %v407
        %442 = vst.msk [vmem:[%s433 + $0x51] sm:$0xff] %vm434, %v408
        %443 = vst.msk [vmem:[%s433 + $0x61] sm:$0xff] %vm434, %v409
        %444 = vst.msk [vmem:[%s433 + $0x69] sm:$0xff] %vm434, %v410
        %445 = vst.msk [vmem:[%s433 + $0x79] sm:$0xff] %vm434, %v411
        %446 = vst.msk [vmem:[%s433 + $0x81] sm:$0xff] %vm434, %v412
        %447 = vst.msk [vmem:[%s433 + $0x91] sm:$0xff] %vm434, %v413
        %448 = vst.msk [vmem:[%s433 + $0x99] sm:$0xff] %vm434, %v414
        %449 = vst.msk [vmem:[%s433 + $0xa9] sm:$0xff] %vm434, %v415
        %450 = vst.msk [vmem:[%s433 + $0xb1] sm:$0xff] %vm434, %v416
        %451 = vst.msk [vmem:[%s433 + $0xc1] sm:$0xff] %vm434, %v417
        %452 = vst.msk [vmem:[%s433 + $0xc9] sm:$0xff] %vm434, %v418
        %453 = vst.msk [vmem:[%s433 + $0xd9] sm:$0xff] %vm434, %v419
        %454 = vst.msk [vmem:[%s433 + $0xe1] sm:$0xff] %vm434, %v420
        %455 = vst.msk [vmem:[%s433 + $0xf1] sm:$0xff] %vm434, %v421
        %456 = vst.msk [vmem:[%s433 + $0xf9] sm:$0xff] %vm434, %v422
        %457 = vst.msk [vmem:[%s433 + $0x109] sm:$0xff] %vm434, %v423
        %458 = vst.msk [vmem:[%s433 + $0x111] sm:$0xff] %vm434, %v424
        %459 = vst.msk [vmem:[%s433 + $0x121] sm:$0xff] %vm434, %v425
        %460 = vst.msk [vmem:[%s433 + $0x129] sm:$0xff] %vm434, %v426
        %461 = vst.msk [vmem:[%s433 + $0x139] sm:$0xff] %vm434, %v427
        %462 = vst.msk [vmem:[%s433 + $0x141] sm:$0xff] %vm434, %v428
        %463 = vst.msk [vmem:[%s433 + $0x151] sm:$0xff] %vm434, %v429
        %464 = vst.msk [vmem:[%s433 + $0x159] sm:$0xff] %vm434, %v430
        %465 = vst.msk [vmem:[%s433 + $0x169] sm:$0xff] %vm434, %v431
        %466 = vst.msk [vmem:[%s433 + $0x171] sm:$0xff] %vm434, %v432
        %467 = vst [vmem:[#allocation4] sm:$0xff] 0.0
        %468 = vst [vmem:[#allocation4 + $0x8] sm:$0xff] 0.0
        %469 = vst [vmem:[#allocation4 + $0x10] sm:$0xff] 0.0
        %470 = vst [vmem:[#allocation4 + $0x18] sm:$0xff] 0.0
        %471 = vst [vmem:[#allocation4 + $0x20] sm:$0xff] 0.0
        %472 = vst [vmem:[#allocation4 + $0x28] sm:$0xff] 0.0
        %473 = vst [vmem:[#allocation4 + $0x30] sm:$0xff] 0.0
        %474 = vst [vmem:[#allocation4 + $0x38] sm:$0xff] 0.0
        %475 = vst [vmem:[#allocation4 + $0x40] sm:$0xff] 0.0
        %476 = vst [vmem:[#allocation4 + $0x48] sm:$0xff] 0.0
        %477 = vst [vmem:[#allocation4 + $0x50] sm:$0xff] 0.0
        %478 = vst [vmem:[#allocation4 + $0x58] sm:$0xff] 0.0
        %479 = vst [vmem:[#allocation4 + $0x60] sm:$0xff] 0.0
        %480 = vst [vmem:[#allocation4 + $0x68] sm:$0xff] 0.0
        %481 = vst [vmem:[#allocation4 + $0x70] sm:$0xff] 0.0
        %482 = vst [vmem:[#allocation4 + $0x78] sm:$0xff] 0.0
        %483 = vst [vmem:[#allocation4 + $0x80] sm:$0xff] 0.0
        %484 = vst [vmem:[#allocation4 + $0x88] sm:$0xff] 0.0
        %485 = vst [vmem:[#allocation4 + $0x90] sm:$0xff] 0.0
        %486 = vst [vmem:[#allocation4 + $0x98] sm:$0xff] 0.0
        %487 = vst [vmem:[#allocation4 + $0xa0] sm:$0xff] 0.0
        %488 = vst [vmem:[#allocation4 + $0xa8] sm:$0xff] 0.0
        %489 = vst [vmem:[#allocation4 + $0xb0] sm:$0xff] 0.0
        %490 = vst [vmem:[#allocation4 + $0xb8] sm:$0xff] 0.0
        %491 = vst [vmem:[#allocation4 + $0xc0] sm:$0xff] 0.0
        %492 = vst [vmem:[#allocation4 + $0xc8] sm:$0xff] 0.0
        %493 = vst [vmem:[#allocation4 + $0xd0] sm:$0xff] 0.0
        %494 = vst [vmem:[#allocation4 + $0xd8] sm:$0xff] 0.0
        %495 = vst [vmem:[#allocation4 + $0xe0] sm:$0xff] 0.0
        %496 = vst [vmem:[#allocation4 + $0xe8] sm:$0xff] 0.0
        %497 = vst [vmem:[#allocation4 + $0xf0] sm:$0xff] 0.0
        %498 = vst [vmem:[#allocation4 + $0xf8] sm:$0xff] 0.0
        %v499 = vld [vmem:[#allocation2] sm:$0xff]
        %v500 = vld [vmem:[#allocation2 + $0x8] sm:$0xff]
        %v501 = vld [vmem:[#allocation2 + $0x18] sm:$0xff]
        %v502 = vld [vmem:[#allocation2 + $0x20] sm:$0xff]
        %v503 = vld [vmem:[#allocation2 + $0x30] sm:$0xff]
        %v504 = vld [vmem:[#allocation2 + $0x38] sm:$0xff]
        %v505 = vld [vmem:[#allocation2 + $0x48] sm:$0xff]
        %v506 = vld [vmem:[#allocation2 + $0x50] sm:$0xff]
        %v507 = vld [vmem:[#allocation2 + $0x60] sm:$0xff]
        %v508 = vld [vmem:[#allocation2 + $0x68] sm:$0xff]
        %v509 = vld [vmem:[#allocation2 + $0x78] sm:$0xff]
        %v510 = vld [vmem:[#allocation2 + $0x80] sm:$0xff]
        %v511 = vld [vmem:[#allocation2 + $0x90] sm:$0xff]
        %v512 = vld [vmem:[#allocation2 + $0x98] sm:$0xff]
        %v513 = vld [vmem:[#allocation2 + $0xa8] sm:$0xff]
        %v514 = vld [vmem:[#allocation2 + $0xb0] sm:$0xff]
        %v515 = vld [vmem:[#allocation2 + $0xc0] sm:$0xff]
        %v516 = vld [vmem:[#allocation2 + $0xc8] sm:$0xff]
        %v517 = vld [vmem:[#allocation2 + $0xd8] sm:$0xff]
        %v518 = vld [vmem:[#allocation2 + $0xe0] sm:$0xff]
        %v519 = vld [vmem:[#allocation2 + $0xf0] sm:$0xff]
        %v520 = vld [vmem:[#allocation2 + $0xf8] sm:$0xff]
        %v521 = vld [vmem:[#allocation2 + $0x108] sm:$0xff]
        %v522 = vld [vmem:[#allocation2 + $0x110] sm:$0xff]
        %v523 = vld [vmem:[#allocation2 + $0x120] sm:$0xff]
        %v524 = vld [vmem:[#allocation2 + $0x128] sm:$0xff]
        %v525 = vld [vmem:[#allocation2 + $0x138] sm:$0xff]
        %v526 = vld [vmem:[#allocation2 + $0x140] sm:$0xff]
        %v527 = vld [vmem:[#allocation2 + $0x150] sm:$0xff]
        %v528 = vld [vmem:[#allocation2 + $0x158] sm:$0xff]
        %v529 = vld [vmem:[#allocation2 + $0x168] sm:$0xff]
        %v530 = vld [vmem:[#allocation2 + $0x170] sm:$0xff]
        %v531 = vpack.c.bf16 %v500, %v499
        %v532 = vpack.c.bf16 %v502, %v501
        %v533 = vpack.c.bf16 %v504, %v503
        %v534 = vpack.c.bf16 %v506, %v505
        %v535 = vpack.c.bf16 %v508, %v507
        %v536 = vpack.c.bf16 %v510, %v509
        %v537 = vpack.c.bf16 %v512, %v511
        %v538 = vpack.c.bf16 %v514, %v513
        %v539 = vpack.c.bf16 %v516, %v515
        %v540 = vpack.c.bf16 %v518, %v517
        %v541 = vpack.c.bf16 %v520, %v519
        %v542 = vpack.c.bf16 %v522, %v521
        %v543 = vpack.c.bf16 %v524, %v523
        %v544 = vpack.c.bf16 %v526, %v525
        %v545 = vpack.c.bf16 %v528, %v527
        %v546 = vpack.c.bf16 %v530, %v529
        %v547 = vld [vmem:[#allocation4] sm:$0xff]
        %v548 = vld [vmem:[#allocation4 + $0x8] sm:$0xff]
        %v549 = vld [vmem:[#allocation4 + $0x10] sm:$0xff]
        %v550 = vld [vmem:[#allocation4 + $0x18] sm:$0xff]
        %v551 = vld [vmem:[#allocation4 + $0x20] sm:$0xff]
        %v552 = vld [vmem:[#allocation4 + $0x28] sm:$0xff]
        %v553 = vld [vmem:[#allocation4 + $0x30] sm:$0xff]
        %v554 = vld [vmem:[#allocation4 + $0x38] sm:$0xff]
        %v555 = vld [vmem:[#allocation4 + $0x40] sm:$0xff]
        %v556 = vld [vmem:[#allocation4 + $0x48] sm:$0xff]
        %v557 = vld [vmem:[#allocation4 + $0x50] sm:$0xff]
        %v558 = vld [vmem:[#allocation4 + $0x58] sm:$0xff]
        %v559 = vld [vmem:[#allocation4 + $0x60] sm:$0xff]
        %v560 = vld [vmem:[#allocation4 + $0x68] sm:$0xff]
        %v561 = vld [vmem:[#allocation4 + $0x70] sm:$0xff]
        %v562 = vld [vmem:[#allocation4 + $0x78] sm:$0xff]
        %v563 = vld [vmem:[#allocation4 + $0x80] sm:$0xff]
        %v564 = vld [vmem:[#allocation4 + $0x88] sm:$0xff]
        %v565 = vld [vmem:[#allocation4 + $0x90] sm:$0xff]
        %v566 = vld [vmem:[#allocation4 + $0x98] sm:$0xff]
        %v567 = vld [vmem:[#allocation4 + $0xa0] sm:$0xff]
        %v568 = vld [vmem:[#allocation4 + $0xa8] sm:$0xff]
        %v569 = vld [vmem:[#allocation4 + $0xb0] sm:$0xff]
        %v570 = vld [vmem:[#allocation4 + $0xb8] sm:$0xff]
        %v571 = vld [vmem:[#allocation4 + $0xc0] sm:$0xff]
        %v572 = vld [vmem:[#allocation4 + $0xc8] sm:$0xff]
        %v573 = vld [vmem:[#allocation4 + $0xd0] sm:$0xff]
        %v574 = vld [vmem:[#allocation4 + $0xd8] sm:$0xff]
        %v575 = vld [vmem:[#allocation4 + $0xe0] sm:$0xff]
        %v576 = vld [vmem:[#allocation4 + $0xe8] sm:$0xff]
        %v577 = vld [vmem:[#allocation4 + $0xf0] sm:$0xff]
        %v578 = vld [vmem:[#allocation4 + $0xf8] sm:$0xff]
        %v579 = vld [vmem:[%s1] sm:$0xf]
        %v580 = vld [vmem:[%s1 + $0x4] sm:$0xf]
        %v581 = vld [vmem:[%s1 + $0x8] sm:$0xf]
        %v582 = vld [vmem:[%s1 + $0xc] sm:$0xf]
        %v583 = vld [vmem:[%s1 + $0x10] sm:$0xf]
        %v584 = vld [vmem:[%s1 + $0x14] sm:$0xf]
        %v585 = vld [vmem:[%s1 + $0x18] sm:$0xf]
        %v586 = vld [vmem:[%s1 + $0x1c] sm:$0xf]
        %v587 = vld [vmem:[%s1 + $0x20] sm:$0xf]
        %v588 = vld [vmem:[%s1 + $0x24] sm:$0xf]
        %v589 = vld [vmem:[%s1 + $0x28] sm:$0xf]
        %v590 = vld [vmem:[%s1 + $0x2c] sm:$0xf]
        %v591 = vld [vmem:[%s1 + $0x30] sm:$0xf]
        %v592 = vld [vmem:[%s1 + $0x34] sm:$0xf]
        %v593 = vld [vmem:[%s1 + $0x38] sm:$0xf]
        %v594 = vld [vmem:[%s1 + $0x3c] sm:$0xf]
        %v611 = vunpack.c.l.b16 %v579
        %v612 = vunpack.c.l.b16 %v580
        %v613 = vunpack.c.l.b16 %v581
        %v614 = vunpack.c.l.b16 %v582
        %v615 = vunpack.c.l.b16 %v583
        %v616 = vunpack.c.l.b16 %v584
        %v617 = vunpack.c.l.b16 %v585
        %v618 = vunpack.c.l.b16 %v586
        %v619 = vunpack.c.l.b16 %v587
        %v620 = vunpack.c.l.b16 %v588
        %v621 = vunpack.c.l.b16 %v589
        %v622 = vunpack.c.l.b16 %v590
        %v623 = vunpack.c.l.b16 %v591
        %v624 = vunpack.c.l.b16 %v592
        %v625 = vunpack.c.l.b16 %v593
        %v626 = vunpack.c.l.b16 %v594
        %v627 = vpack.c.b16 %v612, %v611
        %v628 = vpack.c.b16 %v614, %v613
        %v629 = vpack.c.b16 %v616, %v615
        %v630 = vpack.c.b16 %v618, %v617
        %v631 = vpack.c.b16 %v620, %v619
        %v632 = vpack.c.b16 %v622, %v621
        %v633 = vpack.c.b16 %v624, %v623
        %v634 = vpack.c.b16 %v626, %v625
        %643 = vmatprep.subr.bf16.mxu0 0
        %644 = vmatpush1.bf16.msra.mxu0 %v627
        %645 = vmatprep.subr.bf16.mxu0 0
        %646 = vmatpush1.bf16.msra.mxu0 %v628
        %647 = vmatprep.subr.bf16.mxu0 0
        %648 = vmatpush1.bf16.msra.mxu0 %v629
        %649 = vmatprep.subr.bf16.mxu0 0
        %650 = vmatpush1.bf16.msra.mxu0 %v630
        %651 = vmatprep.subr.bf16.mxu0 0
        %652 = vmatpush1.bf16.msra.mxu0 %v631
        %653 = vmatprep.subr.bf16.mxu0 0
        %654 = vmatpush1.bf16.msra.mxu0 %v632
        %655 = vmatprep.subr.bf16.mxu0 0
        %656 = vmatpush1.bf16.msra.mxu0 %v633
        %657 = vmatprep.subr.bf16.mxu0 0
        %658 = vmatpush1.bf16.msra.mxu0 %v634
        %659 = vmatprep.subr.bf16.mxu0 0
        %660 = vmatpush1.bf16.msra.mxu0 0
        %661 = vmatprep.subr.bf16.mxu0 0
        %662 = vmatpush1.bf16.msra.mxu0 0
        %663 = vmatprep.subr.bf16.mxu0 0
        %664 = vmatpush1.bf16.msra.mxu0 0
        %665 = vmatprep.subr.bf16.mxu0 0
        %666 = vmatpush1.bf16.msra.mxu0 0
        %667 = vmatprep.subr.bf16.mxu0 0
        %668 = vmatpush1.bf16.msra.mxu0 0
        %669 = vmatprep.subr.bf16.mxu0 0
        %670 = vmatpush1.bf16.msra.mxu0 0
        %671 = vmatprep.subr.bf16.mxu0 0
        %672 = vmatpush1.bf16.msra.mxu0 0
        %673 = vmatprep.subr.bf16.mxu0 0
        %674 = vmatpush1.bf16.msra.mxu0 0
        %675 = vmatprep.mubr.bf16.mxu0 0
        %676 = vmatmul.mubr.bf16.gmra.mrb[0].mxu0 %v531
        %v677 = vpop.f32.mrb[0].mxu0
        %v678 = vadd.f32 0.0, %v677
        %v679 = vpop.f32.mrb[0].mxu0
        %v680 = vpop.f32.mrb[0].mxu0
        %v681 = vadd.f32 0.0, %v680
        %v682 = vpop.f32.mrb[0].mxu0
        %683 = vmatprep.mubr.bf16.mxu0 0
        %684 = vmatmul.mubr.bf16.gmra.mrb[0].mxu0 %v532
        %v685 = vpop.f32.mrb[0].mxu0
        %v686 = vadd.f32 0.0, %v685
        %v687 = vpop.f32.mrb[0].mxu0
        %v688 = vpop.f32.mrb[0].mxu0
        %v689 = vadd.f32 0.0, %v688
        %v690 = vpop.f32.mrb[0].mxu0
        %691 = vmatprep.mubr.bf16.mxu0 0
        %692 = vmatmul.mubr.bf16.gmra.mrb[0].mxu0 %v533
        %v693 = vpop.f32.mrb[0].mxu0
        %v694 = vadd.f32 0.0, %v693
        %v695 = vpop.f32.mrb[0].mxu0
        %v696 = vpop.f32.mrb[0].mxu0
        %v697 = vadd.f32 0.0, %v696
        %v698 = vpop.f32.mrb[0].mxu0
        %699 = vmatprep.mubr.bf16.mxu0 0
        %700 = vmatmul.mubr.bf16.gmra.mrb[0].mxu0 %v534
        %v701 = vpop.f32.mrb[0].mxu0
        %v702 = vadd.f32 0.0, %v701
        %v703 = vpop.f32.mrb[0].mxu0
        %v704 = vpop.f32.mrb[0].mxu0
        %v705 = vadd.f32 0.0, %v704
        %v706 = vpop.f32.mrb[0].mxu0
        %707 = vmatprep.mubr.bf16.mxu0 0
        %708 = vmatmul.mubr.bf16.gmra.mrb[0].mxu0 %v535
        %v709 = vpop.f32.mrb[0].mxu0
        %v710 = vadd.f32 0.0, %v709
        %v711 = vpop.f32.mrb[0].mxu0
        %v712 = vpop.f32.mrb[0].mxu0
        %v713 = vadd.f32 0.0, %v712
        %v714 = vpop.f32.mrb[0].mxu0
        %715 = vmatprep.mubr.bf16.mxu0 0
        %716 = vmatmul.mubr.bf16.gmra.mrb[0].mxu0 %v536
        %v717 = vpop.f32.mrb[0].mxu0
        %v718 = vadd.f32 0.0, %v717
        %v719 = vpop.f32.mrb[0].mxu0
        %v720 = vpop.f32.mrb[0].mxu0
        %v721 = vadd.f32 0.0, %v720
        %v722 = vpop.f32.mrb[0].mxu0
        %723 = vmatprep.mubr.bf16.mxu0 0
        %724 = vmatmul.mubr.bf16.gmra.mrb[0].mxu0 %v537
        %v725 = vpop.f32.mrb[0].mxu0
        %v726 = vadd.f32 0.0, %v725
        %v727 = vpop.f32.mrb[0].mxu0
        %v728 = vpop.f32.mrb[0].mxu0
        %v729 = vadd.f32 0.0, %v728
        %v730 = vpop.f32.mrb[0].mxu0
        %731 = vmatprep.mubr.bf16.mxu0 0
        %732 = vmatmul.mubr.bf16.gmra.mrb[0].mxu0 %v538
        %v733 = vpop.f32.mrb[0].mxu0
        %v734 = vadd.f32 0.0, %v733
        %v735 = vpop.f32.mrb[0].mxu0
        %v736 = vpop.f32.mrb[0].mxu0
        %v737 = vadd.f32 0.0, %v736
        %v738 = vpop.f32.mrb[0].mxu0
        %739 = vmatprep.mubr.bf16.mxu0 0
        %740 = vmatmul.mubr.bf16.gmra.mrb[0].mxu0 %v539
        %v741 = vpop.f32.mrb[0].mxu0
        %v742 = vadd.f32 0.0, %v741
        %v743 = vpop.f32.mrb[0].mxu0
        %v744 = vpop.f32.mrb[0].mxu0
        %v745 = vadd.f32 0.0, %v744
        %v746 = vpop.f32.mrb[0].mxu0
        %747 = vmatprep.mubr.bf16.mxu0 0
        %748 = vmatmul.mubr.bf16.gmra.mrb[0].mxu0 %v540
        %v749 = vpop.f32.mrb[0].mxu0
        %v750 = vadd.f32 0.0, %v749
        %v751 = vpop.f32.mrb[0].mxu0
        %v752 = vpop.f32.mrb[0].mxu0
        %v753 = vadd.f32 0.0, %v752
        %v754 = vpop.f32.mrb[0].mxu0
        %755 = vmatprep.mubr.bf16.mxu0 0
        %756 = vmatmul.mubr.bf16.gmra.mrb[0].mxu0 %v541
        %v757 = vpop.f32.mrb[0].mxu0
        %v758 = vadd.f32 0.0, %v757
        %v759 = vpop.f32.mrb[0].mxu0
        %v760 = vpop.f32.mrb[0].mxu0
        %v761 = vadd.f32 0.0, %v760
        %v762 = vpop.f32.mrb[0].mxu0
        %763 = vmatprep.mubr.bf16.mxu0 0
        %764 = vmatmul.mubr.bf16.gmra.mrb[0].mxu0 %v542
        %v765 = vpop.f32.mrb[0].mxu0
        %v766 = vadd.f32 0.0, %v765
        %v767 = vpop.f32.mrb[0].mxu0
        %v768 = vpop.f32.mrb[0].mxu0
        %v769 = vadd.f32 0.0, %v768
        %v770 = vpop.f32.mrb[0].mxu0
        %771 = vmatprep.mubr.bf16.mxu0 0
        %772 = vmatmul.mubr.bf16.gmra.mrb[0].mxu0 %v543
        %v773 = vpop.f32.mrb[0].mxu0
        %v774 = vadd.f32 0.0, %v773
        %v775 = vpop.f32.mrb[0].mxu0
        %v776 = vpop.f32.mrb[0].mxu0
        %v777 = vadd.f32 0.0, %v776
        %v778 = vpop.f32.mrb[0].mxu0
        %779 = vmatprep.mubr.bf16.mxu0 0
        %780 = vmatmul.mubr.bf16.gmra.mrb[0].mxu0 %v544
        %v781 = vpop.f32.mrb[0].mxu0
        %v782 = vadd.f32 0.0, %v781
        %v783 = vpop.f32.mrb[0].mxu0
        %v784 = vpop.f32.mrb[0].mxu0
        %v785 = vadd.f32 0.0, %v784
        %v786 = vpop.f32.mrb[0].mxu0
        %787 = vmatprep.mubr.bf16.mxu0 0
        %788 = vmatmul.mubr.bf16.gmra.mrb[0].mxu0 %v545
        %v789 = vpop.f32.mrb[0].mxu0
        %v790 = vadd.f32 0.0, %v789
        %v791 = vpop.f32.mrb[0].mxu0
        %v792 = vpop.f32.mrb[0].mxu0
        %v793 = vadd.f32 0.0, %v792
        %v794 = vpop.f32.mrb[0].mxu0
        %795 = vmatprep.mubr.bf16.mxu0 0
        %796 = vmatmul.mubr.bf16.gmra.mrb[0].mxu0 %v546
        %v797 = vpop.f32.mrb[0].mxu0
        %v798 = vadd.f32 0.0, %v797
        %v799 = vpop.f32.mrb[0].mxu0
        %v800 = vpop.f32.mrb[0].mxu0
        %v801 = vadd.f32 0.0, %v800
        %v802 = vpop.f32.mrb[0].mxu0
        %803 = vdwg.mxu0
        %v804 = vadd.f32 %v547, %v678
        %v805 = vadd.f32 %v548, %v681
        %v806 = vadd.f32 %v549, %v686
        %v807 = vadd.f32 %v550, %v689
        %v808 = vadd.f32 %v551, %v694
        %v809 = vadd.f32 %v552, %v697
        %v810 = vadd.f32 %v553, %v702
        %v811 = vadd.f32 %v554, %v705
        %v812 = vadd.f32 %v555, %v710
        %v813 = vadd.f32 %v556, %v713
        %v814 = vadd.f32 %v557, %v718
        %v815 = vadd.f32 %v558, %v721
        %v816 = vadd.f32 %v559, %v726
        %v817 = vadd.f32 %v560, %v729
        %v818 = vadd.f32 %v561, %v734
        %v819 = vadd.f32 %v562, %v737
        %v820 = vadd.f32 %v563, %v742
        %v821 = vadd.f32 %v564, %v745
        %v822 = vadd.f32 %v565, %v750
        %v823 = vadd.f32 %v566, %v753
        %v824 = vadd.f32 %v567, %v758
        %v825 = vadd.f32 %v568, %v761
        %v826 = vadd.f32 %v569, %v766
        %v827 = vadd.f32 %v570, %v769
        %v828 = vadd.f32 %v571, %v774
        %v829 = vadd.f32 %v572, %v777
        %v830 = vadd.f32 %v573, %v782
        %v831 = vadd.f32 %v574, %v785
        %v832 = vadd.f32 %v575, %v790
        %v833 = vadd.f32 %v576, %v793
        %v834 = vadd.f32 %v577, %v798
        %v835 = vadd.f32 %v578, %v801
        %836 = vst [vmem:[#allocation4] sm:$0xff] %v804
        %837 = vst [vmem:[#allocation4 + $0x8] sm:$0xff] %v805
        %838 = vst [vmem:[#allocation4 + $0x10] sm:$0xff] %v806
        %839 = vst [vmem:[#allocation4 + $0x18] sm:$0xff] %v807
        %840 = vst [vmem:[#allocation4 + $0x20] sm:$0xff] %v808
        %841 = vst [vmem:[#allocation4 + $0x28] sm:$0xff] %v809
        %842 = vst [vmem:[#allocation4 + $0x30] sm:$0xff] %v810
        %843 = vst [vmem:[#allocation4 + $0x38] sm:$0xff] %v811
        %844 = vst [vmem:[#allocation4 + $0x40] sm:$0xff] %v812
        %845 = vst [vmem:[#allocation4 + $0x48] sm:$0xff] %v813
        %846 = vst [vmem:[#allocation4 + $0x50] sm:$0xff] %v814
        %847 = vst [vmem:[#allocation4 + $0x58] sm:$0xff] %v815
        %848 = vst [vmem:[#allocation4 + $0x60] sm:$0xff] %v816
        %849 = vst [vmem:[#allocation4 + $0x68] sm:$0xff] %v817
        %850 = vst [vmem:[#allocation4 + $0x70] sm:$0xff] %v818
        %851 = vst [vmem:[#allocation4 + $0x78] sm:$0xff] %v819
        %852 = vst [vmem:[#allocation4 + $0x80] sm:$0xff] %v820
        %853 = vst [vmem:[#allocation4 + $0x88] sm:$0xff] %v821
        %854 = vst [vmem:[#allocation4 + $0x90] sm:$0xff] %v822
        %855 = vst [vmem:[#allocation4 + $0x98] sm:$0xff] %v823
        %856 = vst [vmem:[#allocation4 + $0xa0] sm:$0xff] %v824
        %857 = vst [vmem:[#allocation4 + $0xa8] sm:$0xff] %v825
        %858 = vst [vmem:[#allocation4 + $0xb0] sm:$0xff] %v826
        %859 = vst [vmem:[#allocation4 + $0xb8] sm:$0xff] %v827
        %860 = vst [vmem:[#allocation4 + $0xc0] sm:$0xff] %v828
        %861 = vst [vmem:[#allocation4 + $0xc8] sm:$0xff] %v829
        %862 = vst [vmem:[#allocation4 + $0xd0] sm:$0xff] %v830
        %863 = vst [vmem:[#allocation4 + $0xd8] sm:$0xff] %v831
        %864 = vst [vmem:[#allocation4 + $0xe0] sm:$0xff] %v832
        %865 = vst [vmem:[#allocation4 + $0xe8] sm:$0xff] %v833
        %866 = vst [vmem:[#allocation4 + $0xf0] sm:$0xff] %v834
        %867 = vst [vmem:[#allocation4 + $0xf8] sm:$0xff] %v835
        %v868 = vld [vmem:[#allocation2 + $0x1] sm:$0xff]
        %v869 = vld [vmem:[#allocation2 + $0x9] sm:$0xff]
        %v870 = vld [vmem:[#allocation2 + $0x19] sm:$0xff]
        %v871 = vld [vmem:[#allocation2 + $0x21] sm:$0xff]
        %v872 = vld [vmem:[#allocation2 + $0x31] sm:$0xff]
        %v873 = vld [vmem:[#allocation2 + $0x39] sm:$0xff]
        %v874 = vld [vmem:[#allocation2 + $0x49] sm:$0xff]
        %v875 = vld [vmem:[#allocation2 + $0x51] sm:$0xff]
        %v876 = vld [vmem:[#allocation2 + $0x61] sm:$0xff]
        %v877 = vld [vmem:[#allocation2 + $0x69] sm:$0xff]
        %v878 = vld [vmem:[#allocation2 + $0x79] sm:$0xff]
        %v879 = vld [vmem:[#allocation2 + $0x81] sm:$0xff]
        %v880 = vld [vmem:[#allocation2 + $0x91] sm:$0xff]
        %v881 = vld [vmem:[#allocation2 + $0x99] sm:$0xff]
        %v882 = vld [vmem:[#allocation2 + $0xa9] sm:$0xff]
        %v883 = vld [vmem:[#allocation2 + $0xb1] sm:$0xff]
        %v884 = vld [vmem:[#allocation2 + $0xc1] sm:$0xff]
        %v885 = vld [vmem:[#allocation2 + $0xc9] sm:$0xff]
        %v886 = vld [vmem:[#allocation2 + $0xd9] sm:$0xff]
        %v887 = vld [vmem:[#allocation2 + $0xe1] sm:$0xff]
        %v888 = vld [vmem:[#allocation2 + $0xf1] sm:$0xff]
        %v889 = vld [vmem:[#allocation2 + $0xf9] sm:$0xff]
        %v890 = vld [vmem:[#allocation2 + $0x109] sm:$0xff]
        %v891 = vld [vmem:[#allocation2 + $0x111] sm:$0xff]
        %v892 = vld [vmem:[#allocation2 + $0x121] sm:$0xff]
        %v893 = vld [vmem:[#allocation2 + $0x129] sm:$0xff]
        %v894 = vld [vmem:[#allocation2 + $0x139] sm:$0xff]
        %v895 = vld [vmem:[#allocation2 + $0x141] sm:$0xff]
        %v896 = vld [vmem:[#allocation2 + $0x151] sm:$0xff]
        %v897 = vld [vmem:[#allocation2 + $0x159] sm:$0xff]
        %v898 = vld [vmem:[#allocation2 + $0x169] sm:$0xff]
        %v899 = vld [vmem:[#allocation2 + $0x171] sm:$0xff]
        %v900 = vpack.c.bf16 %v869, %v868
        %v901 = vpack.c.bf16 %v871, %v870
        %v902 = vpack.c.bf16 %v873, %v872
        %v903 = vpack.c.bf16 %v875, %v874
        %v904 = vpack.c.bf16 %v877, %v876
        %v905 = vpack.c.bf16 %v879, %v878
        %v906 = vpack.c.bf16 %v881, %v880
        %v907 = vpack.c.bf16 %v883, %v882
        %v908 = vpack.c.bf16 %v885, %v884
        %v909 = vpack.c.bf16 %v887, %v886
        %v910 = vpack.c.bf16 %v889, %v888
        %v911 = vpack.c.bf16 %v891, %v890
        %v912 = vpack.c.bf16 %v893, %v892
        %v913 = vpack.c.bf16 %v895, %v894
        %v914 = vpack.c.bf16 %v897, %v896
        %v915 = vpack.c.bf16 %v899, %v898
        %v916 = vld [vmem:[#allocation4] sm:$0xff]
        %v917 = vld [vmem:[#allocation4 + $0x8] sm:$0xff]
        %v918 = vld [vmem:[#allocation4 + $0x10] sm:$0xff]
        %v919 = vld [vmem:[#allocation4 + $0x18] sm:$0xff]
        %v920 = vld [vmem:[#allocation4 + $0x20] sm:$0xff]
        %v921 = vld [vmem:[#allocation4 + $0x28] sm:$0xff]
        %v922 = vld [vmem:[#allocation4 + $0x30] sm:$0xff]
        %v923 = vld [vmem:[#allocation4 + $0x38] sm:$0xff]
        %v924 = vld [vmem:[#allocation4 + $0x40] sm:$0xff]
        %v925 = vld [vmem:[#allocation4 + $0x48] sm:$0xff]
        %v926 = vld [vmem:[#allocation4 + $0x50] sm:$0xff]
        %v927 = vld [vmem:[#allocation4 + $0x58] sm:$0xff]
        %v928 = vld [vmem:[#allocation4 + $0x60] sm:$0xff]
        %v929 = vld [vmem:[#allocation4 + $0x68] sm:$0xff]
        %v930 = vld [vmem:[#allocation4 + $0x70] sm:$0xff]
        %v931 = vld [vmem:[#allocation4 + $0x78] sm:$0xff]
        %v932 = vld [vmem:[#allocation4 + $0x80] sm:$0xff]
        %v933 = vld [vmem:[#allocation4 + $0x88] sm:$0xff]
        %v934 = vld [vmem:[#allocation4 + $0x90] sm:$0xff]
        %v935 = vld [vmem:[#allocation4 + $0x98] sm:$0xff]
        %v936 = vld [vmem:[#allocation4 + $0xa0] sm:$0xff]
        %v937 = vld [vmem:[#allocation4 + $0xa8] sm:$0xff]
        %v938 = vld [vmem:[#allocation4 + $0xb0] sm:$0xff]
        %v939 = vld [vmem:[#allocation4 + $0xb8] sm:$0xff]
        %v940 = vld [vmem:[#allocation4 + $0xc0] sm:$0xff]
        %v941 = vld [vmem:[#allocation4 + $0xc8] sm:$0xff]
        %v942 = vld [vmem:[#allocation4 + $0xd0] sm:$0xff]
        %v943 = vld [vmem:[#allocation4 + $0xd8] sm:$0xff]
        %v944 = vld [vmem:[#allocation4 + $0xe0] sm:$0xff]
        %v945 = vld [vmem:[#allocation4 + $0xe8] sm:$0xff]
        %v946 = vld [vmem:[#allocation4 + $0xf0] sm:$0xff]
        %v947 = vld [vmem:[#allocation4 + $0xf8] sm:$0xff]
        %s948 = scalar_lea.vmem %s1, 64
        %v949 = vld [vmem:[%s948] sm:$0xf]
        %v950 = vld [vmem:[%s948 + $0x4] sm:$0xf]
        %v951 = vld [vmem:[%s948 + $0x8] sm:$0xf]
        %v952 = vld [vmem:[%s948 + $0xc] sm:$0xf]
        %v953 = vld [vmem:[%s948 + $0x10] sm:$0xf]
        %v954 = vld [vmem:[%s948 + $0x14] sm:$0xf]
        %v955 = vld [vmem:[%s948 + $0x18] sm:$0xf]
        %v956 = vld [vmem:[%s948 + $0x1c] sm:$0xf]
        %v957 = vld [vmem:[%s948 + $0x20] sm:$0xf]
        %v958 = vld [vmem:[%s948 + $0x24] sm:$0xf]
        %v959 = vld [vmem:[%s948 + $0x28] sm:$0xf]
        %v960 = vld [vmem:[%s948 + $0x2c] sm:$0xf]
        %v961 = vld [vmem:[%s948 + $0x30] sm:$0xf]
        %v962 = vld [vmem:[%s948 + $0x34] sm:$0xf]
        %v963 = vld [vmem:[%s948 + $0x38] sm:$0xf]
        %v964 = vld [vmem:[%s948 + $0x3c] sm:$0xf]
        %v981 = vunpack.c.l.b16 %v949
        %v982 = vunpack.c.l.b16 %v950
        %v983 = vunpack.c.l.b16 %v951
        %v984 = vunpack.c.l.b16 %v952
        %v985 = vunpack.c.l.b16 %v953
        %v986 = vunpack.c.l.b16 %v954
        %v987 = vunpack.c.l.b16 %v955
        %v988 = vunpack.c.l.b16 %v956
        %v989 = vunpack.c.l.b16 %v957
        %v990 = vunpack.c.l.b16 %v958
        %v991 = vunpack.c.l.b16 %v959
        %v992 = vunpack.c.l.b16 %v960
        %v993 = vunpack.c.l.b16 %v961
        %v994 = vunpack.c.l.b16 %v962
        %v995 = vunpack.c.l.b16 %v963
        %v996 = vunpack.c.l.b16 %v964
        %v997 = vpack.c.b16 %v982, %v981
        %v998 = vpack.c.b16 %v984, %v983
        %v999 = vpack.c.b16 %v986, %v985
        %v1000 = vpack.c.b16 %v988, %v987
        %v1001 = vpack.c.b16 %v990, %v989
        %v1002 = vpack.c.b16 %v992, %v991
        %v1003 = vpack.c.b16 %v994, %v993
        %v1004 = vpack.c.b16 %v996, %v995
        %1013 = vmatprep.subr.bf16.mxu0 0
        %1014 = vmatpush1.bf16.msra.mxu0 %v997
        %1015 = vmatprep.subr.bf16.mxu0 0
        %1016 = vmatpush1.bf16.msra.mxu0 %v998
        %1017 = vmatprep.subr.bf16.mxu0 0
        %1018 = vmatpush1.bf16.msra.mxu0 %v999
        %1019 = vmatprep.subr.bf16.mxu0 0
        %1020 = vmatpush1.bf16.msra.mxu0 %v1000
        %1021 = vmatprep.subr.bf16.mxu0 0
        %1022 = vmatpush1.bf16.msra.mxu0 %v1001
        %1023 = vmatprep.subr.bf16.mxu0 0
        %1024 = vmatpush1.bf16.msra.mxu0 %v1002
        %1025 = vmatprep.subr.bf16.mxu0 0
        %1026 = vmatpush1.bf16.msra.mxu0 %v1003
        %1027 = vmatprep.subr.bf16.mxu0 0
        %1028 = vmatpush1.bf16.msra.mxu0 %v1004
        %1029 = vmatprep.subr.bf16.mxu0 0
        %1030 = vmatpush1.bf16.msra.mxu0 0
        %1031 = vmatprep.subr.bf16.mxu0 0
        %1032 = vmatpush1.bf16.msra.mxu0 0
        %1033 = vmatprep.subr.bf16.mxu0 0
        %1034 = vmatpush1.bf16.msra.mxu0 0
        %1035 = vmatprep.subr.bf16.mxu0 0
        %1036 = vmatpush1.bf16.msra.mxu0 0
        %1037 = vmatprep.subr.bf16.mxu0 0
        %1038 = vmatpush1.bf16.msra.mxu0 0
        %1039 = vmatprep.subr.bf16.mxu0 0
        %1040 = vmatpush1.bf16.msra.mxu0 0
        %1041 = vmatprep.subr.bf16.mxu0 0
        %1042 = vmatpush1.bf16.msra.mxu0 0
        %1043 = vmatprep.subr.bf16.mxu0 0
        %1044 = vmatpush1.bf16.msra.mxu0 0
        %1045 = vmatprep.mubr.bf16.mxu0 0
        %1046 = vmatmul.mubr.bf16.gmra.mrb[0].mxu0 %v900
        %v1047 = vpop.f32.mrb[0].mxu0
        %v1048 = vadd.f32 0.0, %v1047
        %v1049 = vpop.f32.mrb[0].mxu0
        %v1050 = vpop.f32.mrb[0].mxu0
        %v1051 = vadd.f32 0.0, %v1050
        %v1052 = vpop.f32.mrb[0].mxu0
        %1053 = vmatprep.mubr.bf16.mxu0 0
        %1054 = vmatmul.mubr.bf16.gmra.mrb[0].mxu0 %v901
        %v1055 = vpop.f32.mrb[0].mxu0
        %v1056 = vadd.f32 0.0, %v1055
        %v1057 = vpop.f32.mrb[0].mxu0
        %v1058 = vpop.f32.mrb[0].mxu0
        %v1059 = vadd.f32 0.0, %v1058
        %v1060 = vpop.f32.mrb[0].mxu0
        %1061 = vmatprep.mubr.bf16.mxu0 0
        %1062 = vmatmul.mubr.bf16.gmra.mrb[0].mxu0 %v902
        %v1063 = vpop.f32.mrb[0].mxu0
        %v1064 = vadd.f32 0.0, %v1063
        %v1065 = vpop.f32.mrb[0].mxu0
        %v1066 = vpop.f32.mrb[0].mxu0
        %v1067 = vadd.f32 0.0, %v1066
        %v1068 = vpop.f32.mrb[0].mxu0
        %1069 = vmatprep.mubr.bf16.mxu0 0
        %1070 = vmatmul.mubr.bf16.gmra.mrb[0].mxu0 %v903
        %v1071 = vpop.f32.mrb[0].mxu0
        %v1072 = vadd.f32 0.0, %v1071
        %v1073 = vpop.f32.mrb[0].mxu0
        %v1074 = vpop.f32.mrb[0].mxu0
        %v1075 = vadd.f32 0.0, %v1074
        %v1076 = vpop.f32.mrb[0].mxu0
        %1077 = vmatprep.mubr.bf16.mxu0 0
        %1078 = vmatmul.mubr.bf16.gmra.mrb[0].mxu0 %v904
        %v1079 = vpop.f32.mrb[0].mxu0
        %v1080 = vadd.f32 0.0, %v1079
        %v1081 = vpop.f32.mrb[0].mxu0
        %v1082 = vpop.f32.mrb[0].mxu0
        %v1083 = vadd.f32 0.0, %v1082
        %v1084 = vpop.f32.mrb[0].mxu0
        %1085 = vmatprep.mubr.bf16.mxu0 0
        %1086 = vmatmul.mubr.bf16.gmra.mrb[0].mxu0 %v905
        %v1087 = vpop.f32.mrb[0].mxu0
        %v1088 = vadd.f32 0.0, %v1087
        %v1089 = vpop.f32.mrb[0].mxu0
        %v1090 = vpop.f32.mrb[0].mxu0
        %v1091 = vadd.f32 0.0, %v1090
        %v1092 = vpop.f32.mrb[0].mxu0
        %1093 = vmatprep.mubr.bf16.mxu0 0
        %1094 = vmatmul.mubr.bf16.gmra.mrb[0].mxu0 %v906
        %v1095 = vpop.f32.mrb[0].mxu0
        %v1096 = vadd.f32 0.0, %v1095
        %v1097 = vpop.f32.mrb[0].mxu0
        %v1098 = vpop.f32.mrb[0].mxu0
        %v1099 = vadd.f32 0.0, %v1098
        %v1100 = vpop.f32.mrb[0].mxu0
        %1101 = vmatprep.mubr.bf16.mxu0 0
        %1102 = vmatmul.mubr.bf16.gmra.mrb[0].mxu0 %v907
        %v1103 = vpop.f32.mrb[0].mxu0
        %v1104 = vadd.f32 0.0, %v1103
        %v1105 = vpop.f32.mrb[0].mxu0
        %v1106 = vpop.f32.mrb[0].mxu0
        %v1107 = vadd.f32 0.0, %v1106
        %v1108 = vpop.f32.mrb[0].mxu0
        %1109 = vmatprep.mubr.bf16.mxu0 0
        %1110 = vmatmul.mubr.bf16.gmra.mrb[0].mxu0 %v908
        %v1111 = vpop.f32.mrb[0].mxu0
        %v1112 = vadd.f32 0.0, %v1111
        %v1113 = vpop.f32.mrb[0].mxu0
        %v1114 = vpop.f32.mrb[0].mxu0
        %v1115 = vadd.f32 0.0, %v1114
        %v1116 = vpop.f32.mrb[0].mxu0
        %1117 = vmatprep.mubr.bf16.mxu0 0
        %1118 = vmatmul.mubr.bf16.gmra.mrb[0].mxu0 %v909
        %v1119 = vpop.f32.mrb[0].mxu0
        %v1120 = vadd.f32 0.0, %v1119
        %v1121 = vpop.f32.mrb[0].mxu0
        %v1122 = vpop.f32.mrb[0].mxu0
        %v1123 = vadd.f32 0.0, %v1122
        %v1124 = vpop.f32.mrb[0].mxu0
        %1125 = vmatprep.mubr.bf16.mxu0 0
        %1126 = vmatmul.mubr.bf16.gmra.mrb[0].mxu0 %v910
        %v1127 = vpop.f32.mrb[0].mxu0
        %v1128 = vadd.f32 0.0, %v1127
        %v1129 = vpop.f32.mrb[0].mxu0
        %v1130 = vpop.f32.mrb[0].mxu0
        %v1131 = vadd.f32 0.0, %v1130
        %v1132 = vpop.f32.mrb[0].mxu0
        %1133 = vmatprep.mubr.bf16.mxu0 0
        %1134 = vmatmul.mubr.bf16.gmra.mrb[0].mxu0 %v911
        %v1135 = vpop.f32.mrb[0].mxu0
        %v1136 = vadd.f32 0.0, %v1135
        %v1137 = vpop.f32.mrb[0].mxu0
        %v1138 = vpop.f32.mrb[0].mxu0
        %v1139 = vadd.f32 0.0, %v1138
        %v1140 = vpop.f32.mrb[0].mxu0
        %1141 = vmatprep.mubr.bf16.mxu0 0
        %1142 = vmatmul.mubr.bf16.gmra.mrb[0].mxu0 %v912
        %v1143 = vpop.f32.mrb[0].mxu0
        %v1144 = vadd.f32 0.0, %v1143
        %v1145 = vpop.f32.mrb[0].mxu0
        %v1146 = vpop.f32.mrb[0].mxu0
        %v1147 = vadd.f32 0.0, %v1146
        %v1148 = vpop.f32.mrb[0].mxu0
        %1149 = vmatprep.mubr.bf16.mxu0 0
        %1150 = vmatmul.mubr.bf16.gmra.mrb[0].mxu0 %v913
        %v1151 = vpop.f32.mrb[0].mxu0
        %v1152 = vadd.f32 0.0, %v1151
        %v1153 = vpop.f32.mrb[0].mxu0
        %v1154 = vpop.f32.mrb[0].mxu0
        %v1155 = vadd.f32 0.0, %v1154
        %v1156 = vpop.f32.mrb[0].mxu0
        %1157 = vmatprep.mubr.bf16.mxu0 0
        %1158 = vmatmul.mubr.bf16.gmra.mrb[0].mxu0 %v914
        %v1159 = vpop.f32.mrb[0].mxu0
        %v1160 = vadd.f32 0.0, %v1159
        %v1161 = vpop.f32.mrb[0].mxu0
        %v1162 = vpop.f32.mrb[0].mxu0
        %v1163 = vadd.f32 0.0, %v1162
        %v1164 = vpop.f32.mrb[0].mxu0
        %1165 = vmatprep.mubr.bf16.mxu0 0
        %1166 = vmatmul.mubr.bf16.gmra.mrb[0].mxu0 %v915
        %v1167 = vpop.f32.mrb[0].mxu0
        %v1168 = vadd.f32 0.0, %v1167
        %v1169 = vpop.f32.mrb[0].mxu0
        %v1170 = vpop.f32.mrb[0].mxu0
        %v1171 = vadd.f32 0.0, %v1170
        %v1172 = vpop.f32.mrb[0].mxu0
        %1173 = vdwg.mxu0
        %v1174 = vadd.f32 %v916, %v1048
        %v1175 = vadd.f32 %v917, %v1051
        %v1176 = vadd.f32 %v918, %v1056
        %v1177 = vadd.f32 %v919, %v1059
        %v1178 = vadd.f32 %v920, %v1064
        %v1179 = vadd.f32 %v921, %v1067
        %v1180 = vadd.f32 %v922, %v1072
        %v1181 = vadd.f32 %v923, %v1075
        %v1182 = vadd.f32 %v924, %v1080
        %v1183 = vadd.f32 %v925, %v1083
        %v1184 = vadd.f32 %v926, %v1088
        %v1185 = vadd.f32 %v927, %v1091
        %v1186 = vadd.f32 %v928, %v1096
        %v1187 = vadd.f32 %v929, %v1099
        %v1188 = vadd.f32 %v930, %v1104
        %v1189 = vadd.f32 %v931, %v1107
        %v1190 = vadd.f32 %v932, %v1112
        %v1191 = vadd.f32 %v933, %v1115
        %v1192 = vadd.f32 %v934, %v1120
        %v1193 = vadd.f32 %v935, %v1123
        %v1194 = vadd.f32 %v936, %v1128
        %v1195 = vadd.f32 %v937, %v1131
        %v1196 = vadd.f32 %v938, %v1136
        %v1197 = vadd.f32 %v939, %v1139
        %v1198 = vadd.f32 %v940, %v1144
        %v1199 = vadd.f32 %v941, %v1147
        %v1200 = vadd.f32 %v942, %v1152
        %v1201 = vadd.f32 %v943, %v1155
        %v1202 = vadd.f32 %v944, %v1160
        %v1203 = vadd.f32 %v945, %v1163
        %v1204 = vadd.f32 %v946, %v1168
        %v1205 = vadd.f32 %v947, %v1171
        %1206 = vst [vmem:[#allocation4] sm:$0xff] %v1174
        %1207 = vst [vmem:[#allocation4 + $0x8] sm:$0xff] %v1175
        %1208 = vst [vmem:[#allocation4 + $0x10] sm:$0xff] %v1176
        %1209 = vst [vmem:[#allocation4 + $0x18] sm:$0xff] %v1177
        %1210 = vst [vmem:[#allocation4 + $0x20] sm:$0xff] %v1178
        %1211 = vst [vmem:[#allocation4 + $0x28] sm:$0xff] %v1179
        %1212 = vst [vmem:[#allocation4 + $0x30] sm:$0xff] %v1180
        %1213 = vst [vmem:[#allocation4 + $0x38] sm:$0xff] %v1181
        %1214 = vst [vmem:[#allocation4 + $0x40] sm:$0xff] %v1182
        %1215 = vst [vmem:[#allocation4 + $0x48] sm:$0xff] %v1183
        %1216 = vst [vmem:[#allocation4 + $0x50] sm:$0xff] %v1184
        %1217 = vst [vmem:[#allocation4 + $0x58] sm:$0xff] %v1185
        %1218 = vst [vmem:[#allocation4 + $0x60] sm:$0xff] %v1186
        %1219 = vst [vmem:[#allocation4 + $0x68] sm:$0xff] %v1187
        %1220 = vst [vmem:[#allocation4 + $0x70] sm:$0xff] %v1188
        %1221 = vst [vmem:[#allocation4 + $0x78] sm:$0xff] %v1189
        %1222 = vst [vmem:[#allocation4 + $0x80] sm:$0xff] %v1190
        %1223 = vst [vmem:[#allocation4 + $0x88] sm:$0xff] %v1191
        %1224 = vst [vmem:[#allocation4 + $0x90] sm:$0xff] %v1192
        %1225 = vst [vmem:[#allocation4 + $0x98] sm:$0xff] %v1193
        %1226 = vst [vmem:[#allocation4 + $0xa0] sm:$0xff] %v1194
        %1227 = vst [vmem:[#allocation4 + $0xa8] sm:$0xff] %v1195
        %1228 = vst [vmem:[#allocation4 + $0xb0] sm:$0xff] %v1196
        %1229 = vst [vmem:[#allocation4 + $0xb8] sm:$0xff] %v1197
        %1230 = vst [vmem:[#allocation4 + $0xc0] sm:$0xff] %v1198
        %1231 = vst [vmem:[#allocation4 + $0xc8] sm:$0xff] %v1199
        %1232 = vst [vmem:[#allocation4 + $0xd0] sm:$0xff] %v1200
        %1233 = vst [vmem:[#allocation4 + $0xd8] sm:$0xff] %v1201
        %1234 = vst [vmem:[#allocation4 + $0xe0] sm:$0xff] %v1202
        %1235 = vst [vmem:[#allocation4 + $0xe8] sm:$0xff] %v1203
        %1236 = vst [vmem:[#allocation4 + $0xf0] sm:$0xff] %v1204
        %1237 = vst [vmem:[#allocation4 + $0xf8] sm:$0xff] %v1205
        %v1238 = vld [vmem:[#allocation2 + $0x2] sm:$0xff]
        %v1239 = vld [vmem:[#allocation2 + $0xa] sm:$0xff]
        %v1240 = vld [vmem:[#allocation2 + $0x1a] sm:$0xff]
        %v1241 = vld [vmem:[#allocation2 + $0x22] sm:$0xff]
        %v1242 = vld [vmem:[#allocation2 + $0x32] sm:$0xff]
        %v1243 = vld [vmem:[#allocation2 + $0x3a] sm:$0xff]
        %v1244 = vld [vmem:[#allocation2 + $0x4a] sm:$0xff]
        %v1245 = vld [vmem:[#allocation2 + $0x52] sm:$0xff]
        %v1246 = vld [vmem:[#allocation2 + $0x62] sm:$0xff]
        %v1247 = vld [vmem:[#allocation2 + $0x6a] sm:$0xff]
        %v1248 = vld [vmem:[#allocation2 + $0x7a] sm:$0xff]
        %v1249 = vld [vmem:[#allocation2 + $0x82] sm:$0xff]
        %v1250 = vld [vmem:[#allocation2 + $0x92] sm:$0xff]
        %v1251 = vld [vmem:[#allocation2 + $0x9a] sm:$0xff]
        %v1252 = vld [vmem:[#allocation2 + $0xaa] sm:$0xff]
        %v1253 = vld [vmem:[#allocation2 + $0xb2] sm:$0xff]
        %v1254 = vld [vmem:[#allocation2 + $0xc2] sm:$0xff]
        %v1255 = vld [vmem:[#allocation2 + $0xca] sm:$0xff]
        %v1256 = vld [vmem:[#allocation2 + $0xda] sm:$0xff]
        %v1257 = vld [vmem:[#allocation2 + $0xe2] sm:$0xff]
        %v1258 = vld [vmem:[#allocation2 + $0xf2] sm:$0xff]
        %v1259 = vld [vmem:[#allocation2 + $0xfa] sm:$0xff]
        %v1260 = vld [vmem:[#allocation2 + $0x10a] sm:$0xff]
        %v1261 = vld [vmem:[#allocation2 + $0x112] sm:$0xff]
        %v1262 = vld [vmem:[#allocation2 + $0x122] sm:$0xff]
        %v1263 = vld [vmem:[#allocation2 + $0x12a] sm:$0xff]
        %v1264 = vld [vmem:[#allocation2 + $0x13a] sm:$0xff]
        %v1265 = vld [vmem:[#allocation2 + $0x142] sm:$0xff]
        %v1266 = vld [vmem:[#allocation2 + $0x152] sm:$0xff]
        %v1267 = vld [vmem:[#allocation2 + $0x15a] sm:$0xff]
        %v1268 = vld [vmem:[#allocation2 + $0x16a] sm:$0xff]
        %v1269 = vld [vmem:[#allocation2 + $0x172] sm:$0xff]
        %v1270 = vpack.c.bf16 %v1239, %v1238
        %v1271 = vpack.c.bf16 %v1241, %v1240
        %v1272 = vpack.c.bf16 %v1243, %v1242
        %v1273 = vpack.c.bf16 %v1245, %v1244
        %v1274 = vpack.c.bf16 %v1247, %v1246
        %v1275 = vpack.c.bf16 %v1249, %v1248
        %v1276 = vpack.c.bf16 %v1251, %v1250
        %v1277 = vpack.c.bf16 %v1253, %v1252
        %v1278 = vpack.c.bf16 %v1255, %v1254
        %v1279 = vpack.c.bf16 %v1257, %v1256
        %v1280 = vpack.c.bf16 %v1259, %v1258
        %v1281 = vpack.c.bf16 %v1261, %v1260
        %v1282 = vpack.c.bf16 %v1263, %v1262
        %v1283 = vpack.c.bf16 %v1265, %v1264
        %v1284 = vpack.c.bf16 %v1267, %v1266
        %v1285 = vpack.c.bf16 %v1269, %v1268
        %v1286 = vld [vmem:[#allocation4] sm:$0xff]
        %v1287 = vld [vmem:[#allocation4 + $0x8] sm:$0xff]
        %v1288 = vld [vmem:[#allocation4 + $0x10] sm:$0xff]
        %v1289 = vld [vmem:[#allocation4 + $0x18] sm:$0xff]
        %v1290 = vld [vmem:[#allocation4 + $0x20] sm:$0xff]
        %v1291 = vld [vmem:[#allocation4 + $0x28] sm:$0xff]
        %v1292 = vld [vmem:[#allocation4 + $0x30] sm:$0xff]
        %v1293 = vld [vmem:[#allocation4 + $0x38] sm:$0xff]
        %v1294 = vld [vmem:[#allocation4 + $0x40] sm:$0xff]
        %v1295 = vld [vmem:[#allocation4 + $0x48] sm:$0xff]
        %v1296 = vld [vmem:[#allocation4 + $0x50] sm:$0xff]
        %v1297 = vld [vmem:[#allocation4 + $0x58] sm:$0xff]
        %v1298 = vld [vmem:[#allocation4 + $0x60] sm:$0xff]
        %v1299 = vld [vmem:[#allocation4 + $0x68] sm:$0xff]
        %v1300 = vld [vmem:[#allocation4 + $0x70] sm:$0xff]
        %v1301 = vld [vmem:[#allocation4 + $0x78] sm:$0xff]
        %v1302 = vld [vmem:[#allocation4 + $0x80] sm:$0xff]
        %v1303 = vld [vmem:[#allocation4 + $0x88] sm:$0xff]
        %v1304 = vld [vmem:[#allocation4 + $0x90] sm:$0xff]
        %v1305 = vld [vmem:[#allocation4 + $0x98] sm:$0xff]
        %v1306 = vld [vmem:[#allocation4 + $0xa0] sm:$0xff]
        %v1307 = vld [vmem:[#allocation4 + $0xa8] sm:$0xff]
        %v1308 = vld [vmem:[#allocation4 + $0xb0] sm:$0xff]
        %v1309 = vld [vmem:[#allocation4 + $0xb8] sm:$0xff]
        %v1310 = vld [vmem:[#allocation4 + $0xc0] sm:$0xff]
        %v1311 = vld [vmem:[#allocation4 + $0xc8] sm:$0xff]
        %v1312 = vld [vmem:[#allocation4 + $0xd0] sm:$0xff]
        %v1313 = vld [vmem:[#allocation4 + $0xd8] sm:$0xff]
        %v1314 = vld [vmem:[#allocation4 + $0xe0] sm:$0xff]
        %v1315 = vld [vmem:[#allocation4 + $0xe8] sm:$0xff]
        %v1316 = vld [vmem:[#allocation4 + $0xf0] sm:$0xff]
        %v1317 = vld [vmem:[#allocation4 + $0xf8] sm:$0xff]
        %s1318 = scalar_lea.vmem %s1, 128
        %v1319 = vld [vmem:[%s1318] sm:$0xf]
        %v1320 = vld [vmem:[%s1318 + $0x4] sm:$0xf]
        %v1321 = vld [vmem:[%s1318 + $0x8] sm:$0xf]
        %v1322 = vld [vmem:[%s1318 + $0xc] sm:$0xf]
        %v1323 = vld [vmem:[%s1318 + $0x10] sm:$0xf]
        %v1324 = vld [vmem:[%s1318 + $0x14] sm:$0xf]
        %v1325 = vld [vmem:[%s1318 + $0x18] sm:$0xf]
        %v1326 = vld [vmem:[%s1318 + $0x1c] sm:$0xf]
        %v1327 = vld [vmem:[%s1318 + $0x20] sm:$0xf]
        %v1328 = vld [vmem:[%s1318 + $0x24] sm:$0xf]
        %v1329 = vld [vmem:[%s1318 + $0x28] sm:$0xf]
        %v1330 = vld [vmem:[%s1318 + $0x2c] sm:$0xf]
        %v1331 = vld [vmem:[%s1318 + $0x30] sm:$0xf]
        %v1332 = vld [vmem:[%s1318 + $0x34] sm:$0xf]
        %v1333 = vld [vmem:[%s1318 + $0x38] sm:$0xf]
        %v1334 = vld [vmem:[%s1318 + $0x3c] sm:$0xf]
        %v1351 = vunpack.c.l.b16 %v1319
        %v1352 = vunpack.c.l.b16 %v1320
        %v1353 = vunpack.c.l.b16 %v1321
        %v1354 = vunpack.c.l.b16 %v1322
        %v1355 = vunpack.c.l.b16 %v1323
        %v1356 = vunpack.c.l.b16 %v1324
        %v1357 = vunpack.c.l.b16 %v1325
        %v1358 = vunpack.c.l.b16 %v1326
        %v1359 = vunpack.c.l.b16 %v1327
        %v1360 = vunpack.c.l.b16 %v1328
        %v1361 = vunpack.c.l.b16 %v1329
        %v1362 = vunpack.c.l.b16 %v1330
        %v1363 = vunpack.c.l.b16 %v1331
        %v1364 = vunpack.c.l.b16 %v1332
        %v1365 = vunpack.c.l.b16 %v1333
        %v1366 = vunpack.c.l.b16 %v1334
        %v1367 = vpack.c.b16 %v1352, %v1351
        %v1368 = vpack.c.b16 %v1354, %v1353
        %v1369 = vpack.c.b16 %v1356, %v1355
        %v1370 = vpack.c.b16 %v1358, %v1357
        %v1371 = vpack.c.b16 %v1360, %v1359
        %v1372 = vpack.c.b16 %v1362, %v1361
        %v1373 = vpack.c.b16 %v1364, %v1363
        %v1374 = vpack.c.b16 %v1366, %v1365
        %1383 = vmatprep.subr.bf16.mxu0 0
        %1384 = vmatpush1.bf16.msra.mxu0 %v1367
        %1385 = vmatprep.subr.bf16.mxu0 0
        %1386 = vmatpush1.bf16.msra.mxu0 %v1368
        %1387 = vmatprep.subr.bf16.mxu0 0
        %1388 = vmatpush1.bf16.msra.mxu0 %v1369
        %1389 = vmatprep.subr.bf16.mxu0 0
        %1390 = vmatpush1.bf16.msra.mxu0 %v1370
        %1391 = vmatprep.subr.bf16.mxu0 0
        %1392 = vmatpush1.bf16.msra.mxu0 %v1371
        %1393 = vmatprep.subr.bf16.mxu0 0
        %1394 = vmatpush1.bf16.msra.mxu0 %v1372
        %1395 = vmatprep.subr.bf16.mxu0 0
        %1396 = vmatpush1.bf16.msra.mxu0 %v1373
        %1397 = vmatprep.subr.bf16.mxu0 0
        %1398 = vmatpush1.bf16.msra.mxu0 %v1374
        %1399 = vmatprep.subr.bf16.mxu0 0
        %1400 = vmatpush1.bf16.msra.mxu0 0
        %1401 = vmatprep.subr.bf16.mxu0 0
        %1402 = vmatpush1.bf16.msra.mxu0 0
        %1403 = vmatprep.subr.bf16.mxu0 0
        %1404 = vmatpush1.bf16.msra.mxu0 0
        %1405 = vmatprep.subr.bf16.mxu0 0
        %1406 = vmatpush1.bf16.msra.mxu0 0
        %1407 = vmatprep.subr.bf16.mxu0 0
        %1408 = vmatpush1.bf16.msra.mxu0 0
        %1409 = vmatprep.subr.bf16.mxu0 0
        %1410 = vmatpush1.bf16.msra.mxu0 0
        %1411 = vmatprep.subr.bf16.mxu0 0
        %1412 = vmatpush1.bf16.msra.mxu0 0
        %1413 = vmatprep.subr.bf16.mxu0 0
        %1414 = vmatpush1.bf16.msra.mxu0 0
        %1415 = vmatprep.mubr.bf16.mxu0 0
        %1416 = vmatmul.mubr.bf16.gmra.mrb[0].mxu0 %v1270
        %v1417 = vpop.f32.mrb[0].mxu0
        %v1418 = vadd.f32 0.0, %v1417
        %v1419 = vpop.f32.mrb[0].mxu0
        %v1420 = vpop.f32.mrb[0].mxu0
        %v1421 = vadd.f32 0.0, %v1420
        %v1422 = vpop.f32.mrb[0].mxu0
        %1423 = vmatprep.mubr.bf16.mxu0 0
        %1424 = vmatmul.mubr.bf16.gmra.mrb[0].mxu0 %v1271
        %v1425 = vpop.f32.mrb[0].mxu0
        %v1426 = vadd.f32 0.0, %v1425
        %v1427 = vpop.f32.mrb[0].mxu0
        %v1428 = vpop.f32.mrb[0].mxu0
        %v1429 = vadd.f32 0.0, %v1428
        %v1430 = vpop.f32.mrb[0].mxu0
        %1431 = vmatprep.mubr.bf16.mxu0 0
        %1432 = vmatmul.mubr.bf16.gmra.mrb[0].mxu0 %v1272
        %v1433 = vpop.f32.mrb[0].mxu0
        %v1434 = vadd.f32 0.0, %v1433
        %v1435 = vpop.f32.mrb[0].mxu0
        %v1436 = vpop.f32.mrb[0].mxu0
        %v1437 = vadd.f32 0.0, %v1436
        %v1438 = vpop.f32.mrb[0].mxu0
        %1439 = vmatprep.mubr.bf16.mxu0 0
        %1440 = vmatmul.mubr.bf16.gmra.mrb[0].mxu0 %v1273
        %v1441 = vpop.f32.mrb[0].mxu0
        %v1442 = vadd.f32 0.0, %v1441
        %v1443 = vpop.f32.mrb[0].mxu0
        %v1444 = vpop.f32.mrb[0].mxu0
        %v1445 = vadd.f32 0.0, %v1444
        %v1446 = vpop.f32.mrb[0].mxu0
        %1447 = vmatprep.mubr.bf16.mxu0 0
        %1448 = vmatmul.mubr.bf16.gmra.mrb[0].mxu0 %v1274
        %v1449 = vpop.f32.mrb[0].mxu0
        %v1450 = vadd.f32 0.0, %v1449
        %v1451 = vpop.f32.mrb[0].mxu0
        %v1452 = vpop.f32.mrb[0].mxu0
        %v1453 = vadd.f32 0.0, %v1452
        %v1454 = vpop.f32.mrb[0].mxu0
        %1455 = vmatprep.mubr.bf16.mxu0 0
        %1456 = vmatmul.mubr.bf16.gmra.mrb[0].mxu0 %v1275
        %v1457 = vpop.f32.mrb[0].mxu0
        %v1458 = vadd.f32 0.0, %v1457
        %v1459 = vpop.f32.mrb[0].mxu0
        %v1460 = vpop.f32.mrb[0].mxu0
        %v1461 = vadd.f32 0.0, %v1460
        %v1462 = vpop.f32.mrb[0].mxu0
        %1463 = vmatprep.mubr.bf16.mxu0 0
        %1464 = vmatmul.mubr.bf16.gmra.mrb[0].mxu0 %v1276
        %v1465 = vpop.f32.mrb[0].mxu0
        %v1466 = vadd.f32 0.0, %v1465
        %v1467 = vpop.f32.mrb[0].mxu0
        %v1468 = vpop.f32.mrb[0].mxu0
        %v1469 = vadd.f32 0.0, %v1468
        %v1470 = vpop.f32.mrb[0].mxu0
        %1471 = vmatprep.mubr.bf16.mxu0 0
        %1472 = vmatmul.mubr.bf16.gmra.mrb[0].mxu0 %v1277
        %v1473 = vpop.f32.mrb[0].mxu0
        %v1474 = vadd.f32 0.0, %v1473
        %v1475 = vpop.f32.mrb[0].mxu0
        %v1476 = vpop.f32.mrb[0].mxu0
        %v1477 = vadd.f32 0.0, %v1476
        %v1478 = vpop.f32.mrb[0].mxu0
        %1479 = vmatprep.mubr.bf16.mxu0 0
        %1480 = vmatmul.mubr.bf16.gmra.mrb[0].mxu0 %v1278
        %v1481 = vpop.f32.mrb[0].mxu0
        %v1482 = vadd.f32 0.0, %v1481
        %v1483 = vpop.f32.mrb[0].mxu0
        %v1484 = vpop.f32.mrb[0].mxu0
        %v1485 = vadd.f32 0.0, %v1484
        %v1486 = vpop.f32.mrb[0].mxu0
        %1487 = vmatprep.mubr.bf16.mxu0 0
        %1488 = vmatmul.mubr.bf16.gmra.mrb[0].mxu0 %v1279
        %v1489 = vpop.f32.mrb[0].mxu0
        %v1490 = vadd.f32 0.0, %v1489
        %v1491 = vpop.f32.mrb[0].mxu0
        %v1492 = vpop.f32.mrb[0].mxu0
        %v1493 = vadd.f32 0.0, %v1492
        %v1494 = vpop.f32.mrb[0].mxu0
        %1495 = vmatprep.mubr.bf16.mxu0 0
        %1496 = vmatmul.mubr.bf16.gmra.mrb[0].mxu0 %v1280
        %v1497 = vpop.f32.mrb[0].mxu0
        %v1498 = vadd.f32 0.0, %v1497
        %v1499 = vpop.f32.mrb[0].mxu0
        %v1500 = vpop.f32.mrb[0].mxu0
        %v1501 = vadd.f32 0.0, %v1500
        %v1502 = vpop.f32.mrb[0].mxu0
        %1503 = vmatprep.mubr.bf16.mxu0 0
        %1504 = vmatmul.mubr.bf16.gmra.mrb[0].mxu0 %v1281
        %v1505 = vpop.f32.mrb[0].mxu0
        %v1506 = vadd.f32 0.0, %v1505
        %v1507 = vpop.f32.mrb[0].mxu0
        %v1508 = vpop.f32.mrb[0].mxu0
        %v1509 = vadd.f32 0.0, %v1508
        %v1510 = vpop.f32.mrb[0].mxu0
        %1511 = vmatprep.mubr.bf16.mxu0 0
        %1512 = vmatmul.mubr.bf16.gmra.mrb[0].mxu0 %v1282
        %v1513 = vpop.f32.mrb[0].mxu0
        %v1514 = vadd.f32 0.0, %v1513
        %v1515 = vpop.f32.mrb[0].mxu0
        %v1516 = vpop.f32.mrb[0].mxu0
        %v1517 = vadd.f32 0.0, %v1516
        %v1518 = vpop.f32.mrb[0].mxu0
        %1519 = vmatprep.mubr.bf16.mxu0 0
        %1520 = vmatmul.mubr.bf16.gmra.mrb[0].mxu0 %v1283
        %v1521 = vpop.f32.mrb[0].mxu0
        %v1522 = vadd.f32 0.0, %v1521
        %v1523 = vpop.f32.mrb[0].mxu0
        %v1524 = vpop.f32.mrb[0].mxu0
        %v1525 = vadd.f32 0.0, %v1524
        %v1526 = vpop.f32.mrb[0].mxu0
        %1527 = vmatprep.mubr.bf16.mxu0 0
        %1528 = vmatmul.mubr.bf16.gmra.mrb[0].mxu0 %v1284
        %v1529 = vpop.f32.mrb[0].mxu0
        %v1530 = vadd.f32 0.0, %v1529
        %v1531 = vpop.f32.mrb[0].mxu0
        %v1532 = vpop.f32.mrb[0].mxu0
        %v1533 = vadd.f32 0.0, %v1532
        %v1534 = vpop.f32.mrb[0].mxu0
        %1535 = vmatprep.mubr.bf16.mxu0 0
        %1536 = vmatmul.mubr.bf16.gmra.mrb[0].mxu0 %v1285
        %v1537 = vpop.f32.mrb[0].mxu0
        %v1538 = vadd.f32 0.0, %v1537
        %v1539 = vpop.f32.mrb[0].mxu0
        %v1540 = vpop.f32.mrb[0].mxu0
        %v1541 = vadd.f32 0.0, %v1540
        %v1542 = vpop.f32.mrb[0].mxu0
        %1543 = vdwg.mxu0
        %v1544 = vadd.f32 %v1286, %v1418
        %v1545 = vadd.f32 %v1287, %v1421
        %v1546 = vadd.f32 %v1288, %v1426
        %v1547 = vadd.f32 %v1289, %v1429
        %v1548 = vadd.f32 %v1290, %v1434
        %v1549 = vadd.f32 %v1291, %v1437
        %v1550 = vadd.f32 %v1292, %v1442
        %v1551 = vadd.f32 %v1293, %v1445
        %v1552 = vadd.f32 %v1294, %v1450
        %v1553 = vadd.f32 %v1295, %v1453
        %v1554 = vadd.f32 %v1296, %v1458
        %v1555 = vadd.f32 %v1297, %v1461
        %v1556 = vadd.f32 %v1298, %v1466
        %v1557 = vadd.f32 %v1299, %v1469
        %v1558 = vadd.f32 %v1300, %v1474
        %v1559 = vadd.f32 %v1301, %v1477
        %v1560 = vadd.f32 %v1302, %v1482
        %v1561 = vadd.f32 %v1303, %v1485
        %v1562 = vadd.f32 %v1304, %v1490
        %v1563 = vadd.f32 %v1305, %v1493
        %v1564 = vadd.f32 %v1306, %v1498
        %v1565 = vadd.f32 %v1307, %v1501
        %v1566 = vadd.f32 %v1308, %v1506
        %v1567 = vadd.f32 %v1309, %v1509
        %v1568 = vadd.f32 %v1310, %v1514
        %v1569 = vadd.f32 %v1311, %v1517
        %v1570 = vadd.f32 %v1312, %v1522
        %v1571 = vadd.f32 %v1313, %v1525
        %v1572 = vadd.f32 %v1314, %v1530
        %v1573 = vadd.f32 %v1315, %v1533
        %v1574 = vadd.f32 %v1316, %v1538
        %v1575 = vadd.f32 %v1317, %v1541
        %1576 = vst [vmem:[#allocation4] sm:$0xff] %v1544
        %1577 = vst [vmem:[#allocation4 + $0x8] sm:$0xff] %v1545
        %1578 = vst [vmem:[#allocation4 + $0x10] sm:$0xff] %v1546
        %1579 = vst [vmem:[#allocation4 + $0x18] sm:$0xff] %v1547
        %1580 = vst [vmem:[#allocation4 + $0x20] sm:$0xff] %v1548
        %1581 = vst [vmem:[#allocation4 + $0x28] sm:$0xff] %v1549
        %1582 = vst [vmem:[#allocation4 + $0x30] sm:$0xff] %v1550
        %1583 = vst [vmem:[#allocation4 + $0x38] sm:$0xff] %v1551
        %1584 = vst [vmem:[#allocation4 + $0x40] sm:$0xff] %v1552
        %1585 = vst [vmem:[#allocation4 + $0x48] sm:$0xff] %v1553
        %1586 = vst [vmem:[#allocation4 + $0x50] sm:$0xff] %v1554
        %1587 = vst [vmem:[#allocation4 + $0x58] sm:$0xff] %v1555
        %1588 = vst [vmem:[#allocation4 + $0x60] sm:$0xff] %v1556
        %1589 = vst [vmem:[#allocation4 + $0x68] sm:$0xff] %v1557
        %1590 = vst [vmem:[#allocation4 + $0x70] sm:$0xff] %v1558
        %1591 = vst [vmem:[#allocation4 + $0x78] sm:$0xff] %v1559
        %1592 = vst [vmem:[#allocation4 + $0x80] sm:$0xff] %v1560
        %1593 = vst [vmem:[#allocation4 + $0x88] sm:$0xff] %v1561
        %1594 = vst [vmem:[#allocation4 + $0x90] sm:$0xff] %v1562
        %1595 = vst [vmem:[#allocation4 + $0x98] sm:$0xff] %v1563
        %1596 = vst [vmem:[#allocation4 + $0xa0] sm:$0xff] %v1564
        %1597 = vst [vmem:[#allocation4 + $0xa8] sm:$0xff] %v1565
        %1598 = vst [vmem:[#allocation4 + $0xb0] sm:$0xff] %v1566
        %1599 = vst [vmem:[#allocation4 + $0xb8] sm:$0xff] %v1567
        %1600 = vst [vmem:[#allocation4 + $0xc0] sm:$0xff] %v1568
        %1601 = vst [vmem:[#allocation4 + $0xc8] sm:$0xff] %v1569
        %1602 = vst [vmem:[#allocation4 + $0xd0] sm:$0xff] %v1570
        %1603 = vst [vmem:[#allocation4 + $0xd8] sm:$0xff] %v1571
        %1604 = vst [vmem:[#allocation4 + $0xe0] sm:$0xff] %v1572
        %1605 = vst [vmem:[#allocation4 + $0xe8] sm:$0xff] %v1573
        %1606 = vst [vmem:[#allocation4 + $0xf0] sm:$0xff] %v1574
        %1607 = vst [vmem:[#allocation4 + $0xf8] sm:$0xff] %v1575
        %v1608 = vld [vmem:[%s433] sm:$0xff]
        %v1609 = vld [vmem:[%s433 + $0x8] sm:$0xff]
        %v1610 = vld [vmem:[%s433 + $0x18] sm:$0xff]
        %v1611 = vld [vmem:[%s433 + $0x20] sm:$0xff]
        %v1612 = vld [vmem:[%s433 + $0x30] sm:$0xff]
        %v1613 = vld [vmem:[%s433 + $0x38] sm:$0xff]
        %v1614 = vld [vmem:[%s433 + $0x48] sm:$0xff]
        %v1615 = vld [vmem:[%s433 + $0x50] sm:$0xff]
        %v1616 = vld [vmem:[%s433 + $0x60] sm:$0xff]
        %v1617 = vld [vmem:[%s433 + $0x68] sm:$0xff]
        %v1618 = vld [vmem:[%s433 + $0x78] sm:$0xff]
        %v1619 = vld [vmem:[%s433 + $0x80] sm:$0xff]
        %v1620 = vld [vmem:[%s433 + $0x90] sm:$0xff]
        %v1621 = vld [vmem:[%s433 + $0x98] sm:$0xff]
        %v1622 = vld [vmem:[%s433 + $0xa8] sm:$0xff]
        %v1623 = vld [vmem:[%s433 + $0xb0] sm:$0xff]
        %v1624 = vld [vmem:[%s433 + $0xc0] sm:$0xff]
        %v1625 = vld [vmem:[%s433 + $0xc8] sm:$0xff]
        %v1626 = vld [vmem:[%s433 + $0xd8] sm:$0xff]
        %v1627 = vld [vmem:[%s433 + $0xe0] sm:$0xff]
        %v1628 = vld [vmem:[%s433 + $0xf0] sm:$0xff]
        %v1629 = vld [vmem:[%s433 + $0xf8] sm:$0xff]
        %v1630 = vld [vmem:[%s433 + $0x108] sm:$0xff]
        %v1631 = vld [vmem:[%s433 + $0x110] sm:$0xff]
        %v1632 = vld [vmem:[%s433 + $0x120] sm:$0xff]
        %v1633 = vld [vmem:[%s433 + $0x128] sm:$0xff]
        %v1634 = vld [vmem:[%s433 + $0x138] sm:$0xff]
        %v1635 = vld [vmem:[%s433 + $0x140] sm:$0xff]
        %v1636 = vld [vmem:[%s433 + $0x150] sm:$0xff]
        %v1637 = vld [vmem:[%s433 + $0x158] sm:$0xff]
        %v1638 = vld [vmem:[%s433 + $0x168] sm:$0xff]
        %v1639 = vld [vmem:[%s433 + $0x170] sm:$0xff]
        %v1640 = vpack.c.bf16 %v1609, %v1608
        %v1641 = vpack.c.bf16 %v1611, %v1610
        %v1642 = vpack.c.bf16 %v1613, %v1612
        %v1643 = vpack.c.bf16 %v1615, %v1614
        %v1644 = vpack.c.bf16 %v1617, %v1616
        %v1645 = vpack.c.bf16 %v1619, %v1618
        %v1646 = vpack.c.bf16 %v1621, %v1620
        %v1647 = vpack.c.bf16 %v1623, %v1622
        %v1648 = vpack.c.bf16 %v1625, %v1624
        %v1649 = vpack.c.bf16 %v1627, %v1626
        %v1650 = vpack.c.bf16 %v1629, %v1628
        %v1651 = vpack.c.bf16 %v1631, %v1630
        %v1652 = vpack.c.bf16 %v1633, %v1632
        %v1653 = vpack.c.bf16 %v1635, %v1634
        %v1654 = vpack.c.bf16 %v1637, %v1636
        %v1655 = vpack.c.bf16 %v1639, %v1638
        %v1656 = vld [vmem:[#allocation4] sm:$0xff]
        %v1657 = vld [vmem:[#allocation4 + $0x8] sm:$0xff]
        %v1658 = vld [vmem:[#allocation4 + $0x10] sm:$0xff]
        %v1659 = vld [vmem:[#allocation4 + $0x18] sm:$0xff]
        %v1660 = vld [vmem:[#allocation4 + $0x20] sm:$0xff]
        %v1661 = vld [vmem:[#allocation4 + $0x28] sm:$0xff]
        %v1662 = vld [vmem:[#allocation4 + $0x30] sm:$0xff]
        %v1663 = vld [vmem:[#allocation4 + $0x38] sm:$0xff]
        %v1664 = vld [vmem:[#allocation4 + $0x40] sm:$0xff]
        %v1665 = vld [vmem:[#allocation4 + $0x48] sm:$0xff]
        %v1666 = vld [vmem:[#allocation4 + $0x50] sm:$0xff]
        %v1667 = vld [vmem:[#allocation4 + $0x58] sm:$0xff]
        %v1668 = vld [vmem:[#allocation4 + $0x60] sm:$0xff]
        %v1669 = vld [vmem:[#allocation4 + $0x68] sm:$0xff]
        %v1670 = vld [vmem:[#allocation4 + $0x70] sm:$0xff]
        %v1671 = vld [vmem:[#allocation4 + $0x78] sm:$0xff]
        %v1672 = vld [vmem:[#allocation4 + $0x80] sm:$0xff]
        %v1673 = vld [vmem:[#allocation4 + $0x88] sm:$0xff]
        %v1674 = vld [vmem:[#allocation4 + $0x90] sm:$0xff]
        %v1675 = vld [vmem:[#allocation4 + $0x98] sm:$0xff]
        %v1676 = vld [vmem:[#allocation4 + $0xa0] sm:$0xff]
        %v1677 = vld [vmem:[#allocation4 + $0xa8] sm:$0xff]
        %v1678 = vld [vmem:[#allocation4 + $0xb0] sm:$0xff]
        %v1679 = vld [vmem:[#allocation4 + $0xb8] sm:$0xff]
        %v1680 = vld [vmem:[#allocation4 + $0xc0] sm:$0xff]
        %v1681 = vld [vmem:[#allocation4 + $0xc8] sm:$0xff]
        %v1682 = vld [vmem:[#allocation4 + $0xd0] sm:$0xff]
        %v1683 = vld [vmem:[#allocation4 + $0xd8] sm:$0xff]
        %v1684 = vld [vmem:[#allocation4 + $0xe0] sm:$0xff]
        %v1685 = vld [vmem:[#allocation4 + $0xe8] sm:$0xff]
        %v1686 = vld [vmem:[#allocation4 + $0xf0] sm:$0xff]
        %v1687 = vld [vmem:[#allocation4 + $0xf8] sm:$0xff]
        %s1688 = scalar_lea.vmem %s1, 192
        %v1689 = vld [vmem:[%s1688] sm:$0xf]
        %v1690 = vld [vmem:[%s1688 + $0x4] sm:$0xf]
        %v1691 = vld [vmem:[%s1688 + $0x8] sm:$0xf]
        %v1692 = vld [vmem:[%s1688 + $0xc] sm:$0xf]
        %v1693 = vld [vmem:[%s1688 + $0x10] sm:$0xf]
        %v1694 = vld [vmem:[%s1688 + $0x14] sm:$0xf]
        %v1695 = vld [vmem:[%s1688 + $0x18] sm:$0xf]
        %v1696 = vld [vmem:[%s1688 + $0x1c] sm:$0xf]
        %v1697 = vld [vmem:[%s1688 + $0x20] sm:$0xf]
        %v1698 = vld [vmem:[%s1688 + $0x24] sm:$0xf]
        %v1699 = vld [vmem:[%s1688 + $0x28] sm:$0xf]
        %v1700 = vld [vmem:[%s1688 + $0x2c] sm:$0xf]
        %v1701 = vld [vmem:[%s1688 + $0x30] sm:$0xf]
        %v1702 = vld [vmem:[%s1688 + $0x34] sm:$0xf]
        %v1703 = vld [vmem:[%s1688 + $0x38] sm:$0xf]
        %v1704 = vld [vmem:[%s1688 + $0x3c] sm:$0xf]
        %v1721 = vunpack.c.l.b16 %v1689
        %v1722 = vunpack.c.l.b16 %v1690
        %v1723 = vunpack.c.l.b16 %v1691
        %v1724 = vunpack.c.l.b16 %v1692
        %v1725 = vunpack.c.l.b16 %v1693
        %v1726 = vunpack.c.l.b16 %v1694
        %v1727 = vunpack.c.l.b16 %v1695
        %v1728 = vunpack.c.l.b16 %v1696
        %v1729 = vunpack.c.l.b16 %v1697
        %v1730 = vunpack.c.l.b16 %v1698
        %v1731 = vunpack.c.l.b16 %v1699
        %v1732 = vunpack.c.l.b16 %v1700
        %v1733 = vunpack.c.l.b16 %v1701
        %v1734 = vunpack.c.l.b16 %v1702
        %v1735 = vunpack.c.l.b16 %v1703
        %v1736 = vunpack.c.l.b16 %v1704
        %v1737 = vpack.c.b16 %v1722, %v1721
        %v1738 = vpack.c.b16 %v1724, %v1723
        %v1739 = vpack.c.b16 %v1726, %v1725
        %v1740 = vpack.c.b16 %v1728, %v1727
        %v1741 = vpack.c.b16 %v1730, %v1729
        %v1742 = vpack.c.b16 %v1732, %v1731
        %v1743 = vpack.c.b16 %v1734, %v1733
        %v1744 = vpack.c.b16 %v1736, %v1735
        %1753 = vmatprep.subr.bf16.mxu0 0
        %1754 = vmatpush1.bf16.msra.mxu0 %v1737
        %1755 = vmatprep.subr.bf16.mxu0 0
        %1756 = vmatpush1.bf16.msra.mxu0 %v1738
        %1757 = vmatprep.subr.bf16.mxu0 0
        %1758 = vmatpush1.bf16.msra.mxu0 %v1739
        %1759 = vmatprep.subr.bf16.mxu0 0
        %1760 = vmatpush1.bf16.msra.mxu0 %v1740
        %1761 = vmatprep.subr.bf16.mxu0 0
        %1762 = vmatpush1.bf16.msra.mxu0 %v1741
        %1763 = vmatprep.subr.bf16.mxu0 0
        %1764 = vmatpush1.bf16.msra.mxu0 %v1742
        %1765 = vmatprep.subr.bf16.mxu0 0
        %1766 = vmatpush1.bf16.msra.mxu0 %v1743
        %1767 = vmatprep.subr.bf16.mxu0 0
        %1768 = vmatpush1.bf16.msra.mxu0 %v1744
        %1769 = vmatprep.subr.bf16.mxu0 0
        %1770 = vmatpush1.bf16.msra.mxu0 0
        %1771 = vmatprep.subr.bf16.mxu0 0
        %1772 = vmatpush1.bf16.msra.mxu0 0
        %1773 = vmatprep.subr.bf16.mxu0 0
        %1774 = vmatpush1.bf16.msra.mxu0 0
        %1775 = vmatprep.subr.bf16.mxu0 0
        %1776 = vmatpush1.bf16.msra.mxu0 0
        %1777 = vmatprep.subr.bf16.mxu0 0
        %1778 = vmatpush1.bf16.msra.mxu0 0
        %1779 = vmatprep.subr.bf16.mxu0 0
        %1780 = vmatpush1.bf16.msra.mxu0 0
        %1781 = vmatprep.subr.bf16.mxu0 0
        %1782 = vmatpush1.bf16.msra.mxu0 0
        %1783 = vmatprep.subr.bf16.mxu0 0
        %1784 = vmatpush1.bf16.msra.mxu0 0
        %1785 = vmatprep.mubr.bf16.mxu0 0
        %1786 = vmatmul.mubr.bf16.gmra.mrb[0].mxu0 %v1640
        %v1787 = vpop.f32.mrb[0].mxu0
        %v1788 = vadd.f32 0.0, %v1787
        %v1789 = vpop.f32.mrb[0].mxu0
        %v1790 = vpop.f32.mrb[0].mxu0
        %v1791 = vadd.f32 0.0, %v1790
        %v1792 = vpop.f32.mrb[0].mxu0
        %1793 = vmatprep.mubr.bf16.mxu0 0
        %1794 = vmatmul.mubr.bf16.gmra.mrb[0].mxu0 %v1641
        %v1795 = vpop.f32.mrb[0].mxu0
        %v1796 = vadd.f32 0.0, %v1795
        %v1797 = vpop.f32.mrb[0].mxu0
        %v1798 = vpop.f32.mrb[0].mxu0
        %v1799 = vadd.f32 0.0, %v1798
        %v1800 = vpop.f32.mrb[0].mxu0
        %1801 = vmatprep.mubr.bf16.mxu0 0
        %1802 = vmatmul.mubr.bf16.gmra.mrb[0].mxu0 %v1642
        %v1803 = vpop.f32.mrb[0].mxu0
        %v1804 = vadd.f32 0.0, %v1803
        %v1805 = vpop.f32.mrb[0].mxu0
        %v1806 = vpop.f32.mrb[0].mxu0
        %v1807 = vadd.f32 0.0, %v1806
        %v1808 = vpop.f32.mrb[0].mxu0
        %1809 = vmatprep.mubr.bf16.mxu0 0
        %1810 = vmatmul.mubr.bf16.gmra.mrb[0].mxu0 %v1643
        %v1811 = vpop.f32.mrb[0].mxu0
        %v1812 = vadd.f32 0.0, %v1811
        %v1813 = vpop.f32.mrb[0].mxu0
        %v1814 = vpop.f32.mrb[0].mxu0
        %v1815 = vadd.f32 0.0, %v1814
        %v1816 = vpop.f32.mrb[0].mxu0
        %1817 = vmatprep.mubr.bf16.mxu0 0
        %1818 = vmatmul.mubr.bf16.gmra.mrb[0].mxu0 %v1644
        %v1819 = vpop.f32.mrb[0].mxu0
        %v1820 = vadd.f32 0.0, %v1819
        %v1821 = vpop.f32.mrb[0].mxu0
        %v1822 = vpop.f32.mrb[0].mxu0
        %v1823 = vadd.f32 0.0, %v1822
        %v1824 = vpop.f32.mrb[0].mxu0
        %1825 = vmatprep.mubr.bf16.mxu0 0
        %1826 = vmatmul.mubr.bf16.gmra.mrb[0].mxu0 %v1645
        %v1827 = vpop.f32.mrb[0].mxu0
        %v1828 = vadd.f32 0.0, %v1827
        %v1829 = vpop.f32.mrb[0].mxu0
        %v1830 = vpop.f32.mrb[0].mxu0
        %v1831 = vadd.f32 0.0, %v1830
        %v1832 = vpop.f32.mrb[0].mxu0
        %1833 = vmatprep.mubr.bf16.mxu0 0
        %1834 = vmatmul.mubr.bf16.gmra.mrb[0].mxu0 %v1646
        %v1835 = vpop.f32.mrb[0].mxu0
        %v1836 = vadd.f32 0.0, %v1835
        %v1837 = vpop.f32.mrb[0].mxu0
        %v1838 = vpop.f32.mrb[0].mxu0
        %v1839 = vadd.f32 0.0, %v1838
        %v1840 = vpop.f32.mrb[0].mxu0
        %1841 = vmatprep.mubr.bf16.mxu0 0
        %1842 = vmatmul.mubr.bf16.gmra.mrb[0].mxu0 %v1647
        %v1843 = vpop.f32.mrb[0].mxu0
        %v1844 = vadd.f32 0.0, %v1843
        %v1845 = vpop.f32.mrb[0].mxu0
        %v1846 = vpop.f32.mrb[0].mxu0
        %v1847 = vadd.f32 0.0, %v1846
        %v1848 = vpop.f32.mrb[0].mxu0
        %1849 = vmatprep.mubr.bf16.mxu0 0
        %1850 = vmatmul.mubr.bf16.gmra.mrb[0].mxu0 %v1648
        %v1851 = vpop.f32.mrb[0].mxu0
        %v1852 = vadd.f32 0.0, %v1851
        %v1853 = vpop.f32.mrb[0].mxu0
        %v1854 = vpop.f32.mrb[0].mxu0
        %v1855 = vadd.f32 0.0, %v1854
        %v1856 = vpop.f32.mrb[0].mxu0
        %1857 = vmatprep.mubr.bf16.mxu0 0
        %1858 = vmatmul.mubr.bf16.gmra.mrb[0].mxu0 %v1649
        %v1859 = vpop.f32.mrb[0].mxu0
        %v1860 = vadd.f32 0.0, %v1859
        %v1861 = vpop.f32.mrb[0].mxu0
        %v1862 = vpop.f32.mrb[0].mxu0
        %v1863 = vadd.f32 0.0, %v1862
        %v1864 = vpop.f32.mrb[0].mxu0
        %1865 = vmatprep.mubr.bf16.mxu0 0
        %1866 = vmatmul.mubr.bf16.gmra.mrb[0].mxu0 %v1650
        %v1867 = vpop.f32.mrb[0].mxu0
        %v1868 = vadd.f32 0.0, %v1867
        %v1869 = vpop.f32.mrb[0].mxu0
        %v1870 = vpop.f32.mrb[0].mxu0
        %v1871 = vadd.f32 0.0, %v1870
        %v1872 = vpop.f32.mrb[0].mxu0
        %1873 = vmatprep.mubr.bf16.mxu0 0
        %1874 = vmatmul.mubr.bf16.gmra.mrb[0].mxu0 %v1651
        %v1875 = vpop.f32.mrb[0].mxu0
        %v1876 = vadd.f32 0.0, %v1875
        %v1877 = vpop.f32.mrb[0].mxu0
        %v1878 = vpop.f32.mrb[0].mxu0
        %v1879 = vadd.f32 0.0, %v1878
        %v1880 = vpop.f32.mrb[0].mxu0
        %1881 = vmatprep.mubr.bf16.mxu0 0
        %1882 = vmatmul.mubr.bf16.gmra.mrb[0].mxu0 %v1652
        %v1883 = vpop.f32.mrb[0].mxu0
        %v1884 = vadd.f32 0.0, %v1883
        %v1885 = vpop.f32.mrb[0].mxu0
        %v1886 = vpop.f32.mrb[0].mxu0
        %v1887 = vadd.f32 0.0, %v1886
        %v1888 = vpop.f32.mrb[0].mxu0
        %1889 = vmatprep.mubr.bf16.mxu0 0
        %1890 = vmatmul.mubr.bf16.gmra.mrb[0].mxu0 %v1653
        %v1891 = vpop.f32.mrb[0].mxu0
        %v1892 = vadd.f32 0.0, %v1891
        %v1893 = vpop.f32.mrb[0].mxu0
        %v1894 = vpop.f32.mrb[0].mxu0
        %v1895 = vadd.f32 0.0, %v1894
        %v1896 = vpop.f32.mrb[0].mxu0
        %1897 = vmatprep.mubr.bf16.mxu0 0
        %1898 = vmatmul.mubr.bf16.gmra.mrb[0].mxu0 %v1654
        %v1899 = vpop.f32.mrb[0].mxu0
        %v1900 = vadd.f32 0.0, %v1899
        %v1901 = vpop.f32.mrb[0].mxu0
        %v1902 = vpop.f32.mrb[0].mxu0
        %v1903 = vadd.f32 0.0, %v1902
        %v1904 = vpop.f32.mrb[0].mxu0
        %1905 = vmatprep.mubr.bf16.mxu0 0
        %1906 = vmatmul.mubr.bf16.gmra.mrb[0].mxu0 %v1655
        %v1907 = vpop.f32.mrb[0].mxu0
        %v1908 = vadd.f32 0.0, %v1907
        %v1909 = vpop.f32.mrb[0].mxu0
        %v1910 = vpop.f32.mrb[0].mxu0
        %v1911 = vadd.f32 0.0, %v1910
        %v1912 = vpop.f32.mrb[0].mxu0
        %1913 = vdwg.mxu0
        %v1914 = vadd.f32 %v1656, %v1788
        %v1915 = vadd.f32 %v1657, %v1791
        %v1916 = vadd.f32 %v1658, %v1796
        %v1917 = vadd.f32 %v1659, %v1799
        %v1918 = vadd.f32 %v1660, %v1804
        %v1919 = vadd.f32 %v1661, %v1807
        %v1920 = vadd.f32 %v1662, %v1812
        %v1921 = vadd.f32 %v1663, %v1815
        %v1922 = vadd.f32 %v1664, %v1820
        %v1923 = vadd.f32 %v1665, %v1823
        %v1924 = vadd.f32 %v1666, %v1828
        %v1925 = vadd.f32 %v1667, %v1831
        %v1926 = vadd.f32 %v1668, %v1836
        %v1927 = vadd.f32 %v1669, %v1839
        %v1928 = vadd.f32 %v1670, %v1844
        %v1929 = vadd.f32 %v1671, %v1847
        %v1930 = vadd.f32 %v1672, %v1852
        %v1931 = vadd.f32 %v1673, %v1855
        %v1932 = vadd.f32 %v1674, %v1860
        %v1933 = vadd.f32 %v1675, %v1863
        %v1934 = vadd.f32 %v1676, %v1868
        %v1935 = vadd.f32 %v1677, %v1871
        %v1936 = vadd.f32 %v1678, %v1876
        %v1937 = vadd.f32 %v1679, %v1879
        %v1938 = vadd.f32 %v1680, %v1884
        %v1939 = vadd.f32 %v1681, %v1887
        %v1940 = vadd.f32 %v1682, %v1892
        %v1941 = vadd.f32 %v1683, %v1895
        %v1942 = vadd.f32 %v1684, %v1900
        %v1943 = vadd.f32 %v1685, %v1903
        %v1944 = vadd.f32 %v1686, %v1908
        %v1945 = vadd.f32 %v1687, %v1911
        %1946 = vst [vmem:[#allocation4] sm:$0xff] %v1914
        %1947 = vst [vmem:[#allocation4 + $0x8] sm:$0xff] %v1915
        %1948 = vst [vmem:[#allocation4 + $0x10] sm:$0xff] %v1916
        %1949 = vst [vmem:[#allocation4 + $0x18] sm:$0xff] %v1917
        %1950 = vst [vmem:[#allocation4 + $0x20] sm:$0xff] %v1918
        %1951 = vst [vmem:[#allocation4 + $0x28] sm:$0xff] %v1919
        %1952 = vst [vmem:[#allocation4 + $0x30] sm:$0xff] %v1920
        %1953 = vst [vmem:[#allocation4 + $0x38] sm:$0xff] %v1921
        %1954 = vst [vmem:[#allocation4 + $0x40] sm:$0xff] %v1922
        %1955 = vst [vmem:[#allocation4 + $0x48] sm:$0xff] %v1923
        %1956 = vst [vmem:[#allocation4 + $0x50] sm:$0xff] %v1924
        %1957 = vst [vmem:[#allocation4 + $0x58] sm:$0xff] %v1925
        %1958 = vst [vmem:[#allocation4 + $0x60] sm:$0xff] %v1926
        %1959 = vst [vmem:[#allocation4 + $0x68] sm:$0xff] %v1927
        %1960 = vst [vmem:[#allocation4 + $0x70] sm:$0xff] %v1928
        %1961 = vst [vmem:[#allocation4 + $0x78] sm:$0xff] %v1929
        %1962 = vst [vmem:[#allocation4 + $0x80] sm:$0xff] %v1930
        %1963 = vst [vmem:[#allocation4 + $0x88] sm:$0xff] %v1931
        %1964 = vst [vmem:[#allocation4 + $0x90] sm:$0xff] %v1932
        %1965 = vst [vmem:[#allocation4 + $0x98] sm:$0xff] %v1933
        %1966 = vst [vmem:[#allocation4 + $0xa0] sm:$0xff] %v1934
        %1967 = vst [vmem:[#allocation4 + $0xa8] sm:$0xff] %v1935
        %1968 = vst [vmem:[#allocation4 + $0xb0] sm:$0xff] %v1936
        %1969 = vst [vmem:[#allocation4 + $0xb8] sm:$0xff] %v1937
        %1970 = vst [vmem:[#allocation4 + $0xc0] sm:$0xff] %v1938
        %1971 = vst [vmem:[#allocation4 + $0xc8] sm:$0xff] %v1939
        %1972 = vst [vmem:[#allocation4 + $0xd0] sm:$0xff] %v1940
        %1973 = vst [vmem:[#allocation4 + $0xd8] sm:$0xff] %v1941
        %1974 = vst [vmem:[#allocation4 + $0xe0] sm:$0xff] %v1942
        %1975 = vst [vmem:[#allocation4 + $0xe8] sm:$0xff] %v1943
        %1976 = vst [vmem:[#allocation4 + $0xf0] sm:$0xff] %v1944
        %1977 = vst [vmem:[#allocation4 + $0xf8] sm:$0xff] %v1945
        %v1978 = vld [vmem:[%s433 + $0x1] sm:$0xff]
        %v1979 = vld [vmem:[%s433 + $0x9] sm:$0xff]
        %v1980 = vld [vmem:[%s433 + $0x19] sm:$0xff]
        %v1981 = vld [vmem:[%s433 + $0x21] sm:$0xff]
        %v1982 = vld [vmem:[%s433 + $0x31] sm:$0xff]
        %v1983 = vld [vmem:[%s433 + $0x39] sm:$0xff]
        %v1984 = vld [vmem:[%s433 + $0x49] sm:$0xff]
        %v1985 = vld [vmem:[%s433 + $0x51] sm:$0xff]
        %v1986 = vld [vmem:[%s433 + $0x61] sm:$0xff]
        %v1987 = vld [vmem:[%s433 + $0x69] sm:$0xff]
        %v1988 = vld [vmem:[%s433 + $0x79] sm:$0xff]
        %v1989 = vld [vmem:[%s433 + $0x81] sm:$0xff]
        %v1990 = vld [vmem:[%s433 + $0x91] sm:$0xff]
        %v1991 = vld [vmem:[%s433 + $0x99] sm:$0xff]
        %v1992 = vld [vmem:[%s433 + $0xa9] sm:$0xff]
        %v1993 = vld [vmem:[%s433 + $0xb1] sm:$0xff]
        %v1994 = vld [vmem:[%s433 + $0xc1] sm:$0xff]
        %v1995 = vld [vmem:[%s433 + $0xc9] sm:$0xff]
        %v1996 = vld [vmem:[%s433 + $0xd9] sm:$0xff]
        %v1997 = vld [vmem:[%s433 + $0xe1] sm:$0xff]
        %v1998 = vld [vmem:[%s433 + $0xf1] sm:$0xff]
        %v1999 = vld [vmem:[%s433 + $0xf9] sm:$0xff]
        %v2000 = vld [vmem:[%s433 + $0x109] sm:$0xff]
        %v2001 = vld [vmem:[%s433 + $0x111] sm:$0xff]
        %v2002 = vld [vmem:[%s433 + $0x121] sm:$0xff]
        %v2003 = vld [vmem:[%s433 + $0x129] sm:$0xff]
        %v2004 = vld [vmem:[%s433 + $0x139] sm:$0xff]
        %v2005 = vld [vmem:[%s433 + $0x141] sm:$0xff]
        %v2006 = vld [vmem:[%s433 + $0x151] sm:$0xff]
        %v2007 = vld [vmem:[%s433 + $0x159] sm:$0xff]
        %v2008 = vld [vmem:[%s433 + $0x169] sm:$0xff]
        %v2009 = vld [vmem:[%s433 + $0x171] sm:$0xff]
        %v2010 = vpack.c.bf16 %v1979, %v1978
        %v2011 = vpack.c.bf16 %v1981, %v1980
        %v2012 = vpack.c.bf16 %v1983, %v1982
        %v2013 = vpack.c.bf16 %v1985, %v1984
        %v2014 = vpack.c.bf16 %v1987, %v1986
        %v2015 = vpack.c.bf16 %v1989, %v1988
        %v2016 = vpack.c.bf16 %v1991, %v1990
        %v2017 = vpack.c.bf16 %v1993, %v1992
        %v2018 = vpack.c.bf16 %v1995, %v1994
        %v2019 = vpack.c.bf16 %v1997, %v1996
        %v2020 = vpack.c.bf16 %v1999, %v1998
        %v2021 = vpack.c.bf16 %v2001, %v2000
        %v2022 = vpack.c.bf16 %v2003, %v2002
        %v2023 = vpack.c.bf16 %v2005, %v2004
        %v2024 = vpack.c.bf16 %v2007, %v2006
        %v2025 = vpack.c.bf16 %v2009, %v2008
        %v2026 = vld [vmem:[#allocation4] sm:$0xff]
        %v2027 = vld [vmem:[#allocation4 + $0x8] sm:$0xff]
        %v2028 = vld [vmem:[#allocation4 + $0x10] sm:$0xff]
        %v2029 = vld [vmem:[#allocation4 + $0x18] sm:$0xff]
        %v2030 = vld [vmem:[#allocation4 + $0x20] sm:$0xff]
        %v2031 = vld [vmem:[#allocation4 + $0x28] sm:$0xff]
        %v2032 = vld [vmem:[#allocation4 + $0x30] sm:$0xff]
        %v2033 = vld [vmem:[#allocation4 + $0x38] sm:$0xff]
        %v2034 = vld [vmem:[#allocation4 + $0x40] sm:$0xff]
        %v2035 = vld [vmem:[#allocation4 + $0x48] sm:$0xff]
        %v2036 = vld [vmem:[#allocation4 + $0x50] sm:$0xff]
        %v2037 = vld [vmem:[#allocation4 + $0x58] sm:$0xff]
        %v2038 = vld [vmem:[#allocation4 + $0x60] sm:$0xff]
        %v2039 = vld [vmem:[#allocation4 + $0x68] sm:$0xff]
        %v2040 = vld [vmem:[#allocation4 + $0x70] sm:$0xff]
        %v2041 = vld [vmem:[#allocation4 + $0x78] sm:$0xff]
        %v2042 = vld [vmem:[#allocation4 + $0x80] sm:$0xff]
        %v2043 = vld [vmem:[#allocation4 + $0x88] sm:$0xff]
        %v2044 = vld [vmem:[#allocation4 + $0x90] sm:$0xff]
        %v2045 = vld [vmem:[#allocation4 + $0x98] sm:$0xff]
        %v2046 = vld [vmem:[#allocation4 + $0xa0] sm:$0xff]
        %v2047 = vld [vmem:[#allocation4 + $0xa8] sm:$0xff]
        %v2048 = vld [vmem:[#allocation4 + $0xb0] sm:$0xff]
        %v2049 = vld [vmem:[#allocation4 + $0xb8] sm:$0xff]
        %v2050 = vld [vmem:[#allocation4 + $0xc0] sm:$0xff]
        %v2051 = vld [vmem:[#allocation4 + $0xc8] sm:$0xff]
        %v2052 = vld [vmem:[#allocation4 + $0xd0] sm:$0xff]
        %v2053 = vld [vmem:[#allocation4 + $0xd8] sm:$0xff]
        %v2054 = vld [vmem:[#allocation4 + $0xe0] sm:$0xff]
        %v2055 = vld [vmem:[#allocation4 + $0xe8] sm:$0xff]
        %v2056 = vld [vmem:[#allocation4 + $0xf0] sm:$0xff]
        %v2057 = vld [vmem:[#allocation4 + $0xf8] sm:$0xff]
        %s2058 = scalar_lea.vmem %s1, 256
        %v2059 = vld [vmem:[%s2058] sm:$0xf]
        %v2060 = vld [vmem:[%s2058 + $0x4] sm:$0xf]
        %v2061 = vld [vmem:[%s2058 + $0x8] sm:$0xf]
        %v2062 = vld [vmem:[%s2058 + $0xc] sm:$0xf]
        %v2063 = vld [vmem:[%s2058 + $0x10] sm:$0xf]
        %v2064 = vld [vmem:[%s2058 + $0x14] sm:$0xf]
        %v2065 = vld [vmem:[%s2058 + $0x18] sm:$0xf]
        %v2066 = vld [vmem:[%s2058 + $0x1c] sm:$0xf]
        %v2067 = vld [vmem:[%s2058 + $0x20] sm:$0xf]
        %v2068 = vld [vmem:[%s2058 + $0x24] sm:$0xf]
        %v2069 = vld [vmem:[%s2058 + $0x28] sm:$0xf]
        %v2070 = vld [vmem:[%s2058 + $0x2c] sm:$0xf]
        %v2071 = vld [vmem:[%s2058 + $0x30] sm:$0xf]
        %v2072 = vld [vmem:[%s2058 + $0x34] sm:$0xf]
        %v2073 = vld [vmem:[%s2058 + $0x38] sm:$0xf]
        %v2074 = vld [vmem:[%s2058 + $0x3c] sm:$0xf]
        %v2091 = vunpack.c.l.b16 %v2059
        %v2092 = vunpack.c.l.b16 %v2060
        %v2093 = vunpack.c.l.b16 %v2061
        %v2094 = vunpack.c.l.b16 %v2062
        %v2095 = vunpack.c.l.b16 %v2063
        %v2096 = vunpack.c.l.b16 %v2064
        %v2097 = vunpack.c.l.b16 %v2065
        %v2098 = vunpack.c.l.b16 %v2066
        %v2099 = vunpack.c.l.b16 %v2067
        %v2100 = vunpack.c.l.b16 %v2068
        %v2101 = vunpack.c.l.b16 %v2069
        %v2102 = vunpack.c.l.b16 %v2070
        %v2103 = vunpack.c.l.b16 %v2071
        %v2104 = vunpack.c.l.b16 %v2072
        %v2105 = vunpack.c.l.b16 %v2073
        %v2106 = vunpack.c.l.b16 %v2074
        %v2107 = vpack.c.b16 %v2092, %v2091
        %v2108 = vpack.c.b16 %v2094, %v2093
        %v2109 = vpack.c.b16 %v2096, %v2095
        %v2110 = vpack.c.b16 %v2098, %v2097
        %v2111 = vpack.c.b16 %v2100, %v2099
        %v2112 = vpack.c.b16 %v2102, %v2101
        %v2113 = vpack.c.b16 %v2104, %v2103
        %v2114 = vpack.c.b16 %v2106, %v2105
        %2123 = vmatprep.subr.bf16.mxu0 0
        %2124 = vmatpush1.bf16.msra.mxu0 %v2107
        %2125 = vmatprep.subr.bf16.mxu0 0
        %2126 = vmatpush1.bf16.msra.mxu0 %v2108
        %2127 = vmatprep.subr.bf16.mxu0 0
        %2128 = vmatpush1.bf16.msra.mxu0 %v2109
        %2129 = vmatprep.subr.bf16.mxu0 0
        %2130 = vmatpush1.bf16.msra.mxu0 %v2110
        %2131 = vmatprep.subr.bf16.mxu0 0
        %2132 = vmatpush1.bf16.msra.mxu0 %v2111
        %2133 = vmatprep.subr.bf16.mxu0 0
        %2134 = vmatpush1.bf16.msra.mxu0 %v2112
        %2135 = vmatprep.subr.bf16.mxu0 0
        %2136 = vmatpush1.bf16.msra.mxu0 %v2113
        %2137 = vmatprep.subr.bf16.mxu0 0
        %2138 = vmatpush1.bf16.msra.mxu0 %v2114
        %2139 = vmatprep.subr.bf16.mxu0 0
        %2140 = vmatpush1.bf16.msra.mxu0 0
        %2141 = vmatprep.subr.bf16.mxu0 0
        %2142 = vmatpush1.bf16.msra.mxu0 0
        %2143 = vmatprep.subr.bf16.mxu0 0
        %2144 = vmatpush1.bf16.msra.mxu0 0
        %2145 = vmatprep.subr.bf16.mxu0 0
        %2146 = vmatpush1.bf16.msra.mxu0 0
        %2147 = vmatprep.subr.bf16.mxu0 0
        %2148 = vmatpush1.bf16.msra.mxu0 0
        %2149 = vmatprep.subr.bf16.mxu0 0
        %2150 = vmatpush1.bf16.msra.mxu0 0
        %2151 = vmatprep.subr.bf16.mxu0 0
        %2152 = vmatpush1.bf16.msra.mxu0 0
        %2153 = vmatprep.subr.bf16.mxu0 0
        %2154 = vmatpush1.bf16.msra.mxu0 0
        %2155 = vmatprep.mubr.bf16.mxu0 0
        %2156 = vmatmul.mubr.bf16.gmra.mrb[0].mxu0 %v2010
        %v2157 = vpop.f32.mrb[0].mxu0
        %v2158 = vadd.f32 0.0, %v2157
        %v2159 = vpop.f32.mrb[0].mxu0
        %v2160 = vpop.f32.mrb[0].mxu0
        %v2161 = vadd.f32 0.0, %v2160
        %v2162 = vpop.f32.mrb[0].mxu0
        %2163 = vmatprep.mubr.bf16.mxu0 0
        %2164 = vmatmul.mubr.bf16.gmra.mrb[0].mxu0 %v2011
        %v2165 = vpop.f32.mrb[0].mxu0
        %v2166 = vadd.f32 0.0, %v2165
        %v2167 = vpop.f32.mrb[0].mxu0
        %v2168 = vpop.f32.mrb[0].mxu0
        %v2169 = vadd.f32 0.0, %v2168
        %v2170 = vpop.f32.mrb[0].mxu0
        %2171 = vmatprep.mubr.bf16.mxu0 0
        %2172 = vmatmul.mubr.bf16.gmra.mrb[0].mxu0 %v2012
        %v2173 = vpop.f32.mrb[0].mxu0
        %v2174 = vadd.f32 0.0, %v2173
        %v2175 = vpop.f32.mrb[0].mxu0
        %v2176 = vpop.f32.mrb[0].mxu0
        %v2177 = vadd.f32 0.0, %v2176
        %v2178 = vpop.f32.mrb[0].mxu0
        %2179 = vmatprep.mubr.bf16.mxu0 0
        %2180 = vmatmul.mubr.bf16.gmra.mrb[0].mxu0 %v2013
        %v2181 = vpop.f32.mrb[0].mxu0
        %v2182 = vadd.f32 0.0, %v2181
        %v2183 = vpop.f32.mrb[0].mxu0
        %v2184 = vpop.f32.mrb[0].mxu0
        %v2185 = vadd.f32 0.0, %v2184
        %v2186 = vpop.f32.mrb[0].mxu0
        %2187 = vmatprep.mubr.bf16.mxu0 0
        %2188 = vmatmul.mubr.bf16.gmra.mrb[0].mxu0 %v2014
        %v2189 = vpop.f32.mrb[0].mxu0
        %v2190 = vadd.f32 0.0, %v2189
        %v2191 = vpop.f32.mrb[0].mxu0
        %v2192 = vpop.f32.mrb[0].mxu0
        %v2193 = vadd.f32 0.0, %v2192
        %v2194 = vpop.f32.mrb[0].mxu0
        %2195 = vmatprep.mubr.bf16.mxu0 0
        %2196 = vmatmul.mubr.bf16.gmra.mrb[0].mxu0 %v2015
        %v2197 = vpop.f32.mrb[0].mxu0
        %v2198 = vadd.f32 0.0, %v2197
        %v2199 = vpop.f32.mrb[0].mxu0
        %v2200 = vpop.f32.mrb[0].mxu0
        %v2201 = vadd.f32 0.0, %v2200
        %v2202 = vpop.f32.mrb[0].mxu0
        %2203 = vmatprep.mubr.bf16.mxu0 0
        %2204 = vmatmul.mubr.bf16.gmra.mrb[0].mxu0 %v2016
        %v2205 = vpop.f32.mrb[0].mxu0
        %v2206 = vadd.f32 0.0, %v2205
        %v2207 = vpop.f32.mrb[0].mxu0
        %v2208 = vpop.f32.mrb[0].mxu0
        %v2209 = vadd.f32 0.0, %v2208
        %v2210 = vpop.f32.mrb[0].mxu0
        %2211 = vmatprep.mubr.bf16.mxu0 0
        %2212 = vmatmul.mubr.bf16.gmra.mrb[0].mxu0 %v2017
        %v2213 = vpop.f32.mrb[0].mxu0
        %v2214 = vadd.f32 0.0, %v2213
        %v2215 = vpop.f32.mrb[0].mxu0
        %v2216 = vpop.f32.mrb[0].mxu0
        %v2217 = vadd.f32 0.0, %v2216
        %v2218 = vpop.f32.mrb[0].mxu0
        %2219 = vmatprep.mubr.bf16.mxu0 0
        %2220 = vmatmul.mubr.bf16.gmra.mrb[0].mxu0 %v2018
        %v2221 = vpop.f32.mrb[0].mxu0
        %v2222 = vadd.f32 0.0, %v2221
        %v2223 = vpop.f32.mrb[0].mxu0
        %v2224 = vpop.f32.mrb[0].mxu0
        %v2225 = vadd.f32 0.0, %v2224
        %v2226 = vpop.f32.mrb[0].mxu0
        %2227 = vmatprep.mubr.bf16.mxu0 0
        %2228 = vmatmul.mubr.bf16.gmra.mrb[0].mxu0 %v2019
        %v2229 = vpop.f32.mrb[0].mxu0
        %v2230 = vadd.f32 0.0, %v2229
        %v2231 = vpop.f32.mrb[0].mxu0
        %v2232 = vpop.f32.mrb[0].mxu0
        %v2233 = vadd.f32 0.0, %v2232
        %v2234 = vpop.f32.mrb[0].mxu0
        %2235 = vmatprep.mubr.bf16.mxu0 0
        %2236 = vmatmul.mubr.bf16.gmra.mrb[0].mxu0 %v2020
        %v2237 = vpop.f32.mrb[0].mxu0
        %v2238 = vadd.f32 0.0, %v2237
        %v2239 = vpop.f32.mrb[0].mxu0
        %v2240 = vpop.f32.mrb[0].mxu0
        %v2241 = vadd.f32 0.0, %v2240
        %v2242 = vpop.f32.mrb[0].mxu0
        %2243 = vmatprep.mubr.bf16.mxu0 0
        %2244 = vmatmul.mubr.bf16.gmra.mrb[0].mxu0 %v2021
        %v2245 = vpop.f32.mrb[0].mxu0
        %v2246 = vadd.f32 0.0, %v2245
        %v2247 = vpop.f32.mrb[0].mxu0
        %v2248 = vpop.f32.mrb[0].mxu0
        %v2249 = vadd.f32 0.0, %v2248
        %v2250 = vpop.f32.mrb[0].mxu0
        %2251 = vmatprep.mubr.bf16.mxu0 0
        %2252 = vmatmul.mubr.bf16.gmra.mrb[0].mxu0 %v2022
        %v2253 = vpop.f32.mrb[0].mxu0
        %v2254 = vadd.f32 0.0, %v2253
        %v2255 = vpop.f32.mrb[0].mxu0
        %v2256 = vpop.f32.mrb[0].mxu0
        %v2257 = vadd.f32 0.0, %v2256
        %v2258 = vpop.f32.mrb[0].mxu0
        %2259 = vmatprep.mubr.bf16.mxu0 0
        %2260 = vmatmul.mubr.bf16.gmra.mrb[0].mxu0 %v2023
        %v2261 = vpop.f32.mrb[0].mxu0
        %v2262 = vadd.f32 0.0, %v2261
        %v2263 = vpop.f32.mrb[0].mxu0
        %v2264 = vpop.f32.mrb[0].mxu0
        %v2265 = vadd.f32 0.0, %v2264
        %v2266 = vpop.f32.mrb[0].mxu0
        %2267 = vmatprep.mubr.bf16.mxu0 0
        %2268 = vmatmul.mubr.bf16.gmra.mrb[0].mxu0 %v2024
        %v2269 = vpop.f32.mrb[0].mxu0
        %v2270 = vadd.f32 0.0, %v2269
        %v2271 = vpop.f32.mrb[0].mxu0
        %v2272 = vpop.f32.mrb[0].mxu0
        %v2273 = vadd.f32 0.0, %v2272
        %v2274 = vpop.f32.mrb[0].mxu0
        %2275 = vmatprep.mubr.bf16.mxu0 0
        %2276 = vmatmul.mubr.bf16.gmra.mrb[0].mxu0 %v2025
        %v2277 = vpop.f32.mrb[0].mxu0
        %v2278 = vadd.f32 0.0, %v2277
        %v2279 = vpop.f32.mrb[0].mxu0
        %v2280 = vpop.f32.mrb[0].mxu0
        %v2281 = vadd.f32 0.0, %v2280
        %v2282 = vpop.f32.mrb[0].mxu0
        %2283 = vdwg.mxu0
        %v2284 = vadd.f32 %v2026, %v2158
        %v2285 = vadd.f32 %v2027, %v2161
        %v2286 = vadd.f32 %v2028, %v2166
        %v2287 = vadd.f32 %v2029, %v2169
        %v2288 = vadd.f32 %v2030, %v2174
        %v2289 = vadd.f32 %v2031, %v2177
        %v2290 = vadd.f32 %v2032, %v2182
        %v2291 = vadd.f32 %v2033, %v2185
        %v2292 = vadd.f32 %v2034, %v2190
        %v2293 = vadd.f32 %v2035, %v2193
        %v2294 = vadd.f32 %v2036, %v2198
        %v2295 = vadd.f32 %v2037, %v2201
        %v2296 = vadd.f32 %v2038, %v2206
        %v2297 = vadd.f32 %v2039, %v2209
        %v2298 = vadd.f32 %v2040, %v2214
        %v2299 = vadd.f32 %v2041, %v2217
        %v2300 = vadd.f32 %v2042, %v2222
        %v2301 = vadd.f32 %v2043, %v2225
        %v2302 = vadd.f32 %v2044, %v2230
        %v2303 = vadd.f32 %v2045, %v2233
        %v2304 = vadd.f32 %v2046, %v2238
        %v2305 = vadd.f32 %v2047, %v2241
        %v2306 = vadd.f32 %v2048, %v2246
        %v2307 = vadd.f32 %v2049, %v2249
        %v2308 = vadd.f32 %v2050, %v2254
        %v2309 = vadd.f32 %v2051, %v2257
        %v2310 = vadd.f32 %v2052, %v2262
        %v2311 = vadd.f32 %v2053, %v2265
        %v2312 = vadd.f32 %v2054, %v2270
        %v2313 = vadd.f32 %v2055, %v2273
        %v2314 = vadd.f32 %v2056, %v2278
        %v2315 = vadd.f32 %v2057, %v2281
        %2316 = vst [vmem:[#allocation4] sm:$0xff] %v2284
        %2317 = vst [vmem:[#allocation4 + $0x8] sm:$0xff] %v2285
        %2318 = vst [vmem:[#allocation4 + $0x10] sm:$0xff] %v2286
        %2319 = vst [vmem:[#allocation4 + $0x18] sm:$0xff] %v2287
        %2320 = vst [vmem:[#allocation4 + $0x20] sm:$0xff] %v2288
        %2321 = vst [vmem:[#allocation4 + $0x28] sm:$0xff] %v2289
        %2322 = vst [vmem:[#allocation4 + $0x30] sm:$0xff] %v2290
        %2323 = vst [vmem:[#allocation4 + $0x38] sm:$0xff] %v2291
        %2324 = vst [vmem:[#allocation4 + $0x40] sm:$0xff] %v2292
        %2325 = vst [vmem:[#allocation4 + $0x48] sm:$0xff] %v2293
        %2326 = vst [vmem:[#allocation4 + $0x50] sm:$0xff] %v2294
        %2327 = vst [vmem:[#allocation4 + $0x58] sm:$0xff] %v2295
        %2328 = vst [vmem:[#allocation4 + $0x60] sm:$0xff] %v2296
        %2329 = vst [vmem:[#allocation4 + $0x68] sm:$0xff] %v2297
        %2330 = vst [vmem:[#allocation4 + $0x70] sm:$0xff] %v2298
        %2331 = vst [vmem:[#allocation4 + $0x78] sm:$0xff] %v2299
        %2332 = vst [vmem:[#allocation4 + $0x80] sm:$0xff] %v2300
        %2333 = vst [vmem:[#allocation4 + $0x88] sm:$0xff] %v2301
        %2334 = vst [vmem:[#allocation4 + $0x90] sm:$0xff] %v2302
        %2335 = vst [vmem:[#allocation4 + $0x98] sm:$0xff] %v2303
        %2336 = vst [vmem:[#allocation4 + $0xa0] sm:$0xff] %v2304
        %2337 = vst [vmem:[#allocation4 + $0xa8] sm:$0xff] %v2305
        %2338 = vst [vmem:[#allocation4 + $0xb0] sm:$0xff] %v2306
        %2339 = vst [vmem:[#allocation4 + $0xb8] sm:$0xff] %v2307
        %2340 = vst [vmem:[#allocation4 + $0xc0] sm:$0xff] %v2308
        %2341 = vst [vmem:[#allocation4 + $0xc8] sm:$0xff] %v2309
        %2342 = vst [vmem:[#allocation4 + $0xd0] sm:$0xff] %v2310
        %2343 = vst [vmem:[#allocation4 + $0xd8] sm:$0xff] %v2311
        %2344 = vst [vmem:[#allocation4 + $0xe0] sm:$0xff] %v2312
        %2345 = vst [vmem:[#allocation4 + $0xe8] sm:$0xff] %v2313
        %2346 = vst [vmem:[#allocation4 + $0xf0] sm:$0xff] %v2314
        %2347 = vst [vmem:[#allocation4 + $0xf8] sm:$0xff] %v2315
        %v2348 = vld [vmem:[%s433 + $0x2] sm:$0xff]
        %v2349 = vld [vmem:[%s433 + $0xa] sm:$0xff]
        %v2350 = vld [vmem:[%s433 + $0x1a] sm:$0xff]
        %v2351 = vld [vmem:[%s433 + $0x22] sm:$0xff]
        %v2352 = vld [vmem:[%s433 + $0x32] sm:$0xff]
        %v2353 = vld [vmem:[%s433 + $0x3a] sm:$0xff]
        %v2354 = vld [vmem:[%s433 + $0x4a] sm:$0xff]
        %v2355 = vld [vmem:[%s433 + $0x52] sm:$0xff]
        %v2356 = vld [vmem:[%s433 + $0x62] sm:$0xff]
        %v2357 = vld [vmem:[%s433 + $0x6a] sm:$0xff]
        %v2358 = vld [vmem:[%s433 + $0x7a] sm:$0xff]
        %v2359 = vld [vmem:[%s433 + $0x82] sm:$0xff]
        %v2360 = vld [vmem:[%s433 + $0x92] sm:$0xff]
        %v2361 = vld [vmem:[%s433 + $0x9a] sm:$0xff]
        %v2362 = vld [vmem:[%s433 + $0xaa] sm:$0xff]
        %v2363 = vld [vmem:[%s433 + $0xb2] sm:$0xff]
        %v2364 = vld [vmem:[%s433 + $0xc2] sm:$0xff]
        %v2365 = vld [vmem:[%s433 + $0xca] sm:$0xff]
        %v2366 = vld [vmem:[%s433 + $0xda] sm:$0xff]
        %v2367 = vld [vmem:[%s433 + $0xe2] sm:$0xff]
        %v2368 = vld [vmem:[%s433 + $0xf2] sm:$0xff]
        %v2369 = vld [vmem:[%s433 + $0xfa] sm:$0xff]
        %v2370 = vld [vmem:[%s433 + $0x10a] sm:$0xff]
        %v2371 = vld [vmem:[%s433 + $0x112] sm:$0xff]
        %v2372 = vld [vmem:[%s433 + $0x122] sm:$0xff]
        %v2373 = vld [vmem:[%s433 + $0x12a] sm:$0xff]
        %v2374 = vld [vmem:[%s433 + $0x13a] sm:$0xff]
        %v2375 = vld [vmem:[%s433 + $0x142] sm:$0xff]
        %v2376 = vld [vmem:[%s433 + $0x152] sm:$0xff]
        %v2377 = vld [vmem:[%s433 + $0x15a] sm:$0xff]
        %v2378 = vld [vmem:[%s433 + $0x16a] sm:$0xff]
        %v2379 = vld [vmem:[%s433 + $0x172] sm:$0xff]
        %v2380 = vpack.c.bf16 %v2349, %v2348
        %v2381 = vpack.c.bf16 %v2351, %v2350
        %v2382 = vpack.c.bf16 %v2353, %v2352
        %v2383 = vpack.c.bf16 %v2355, %v2354
        %v2384 = vpack.c.bf16 %v2357, %v2356
        %v2385 = vpack.c.bf16 %v2359, %v2358
        %v2386 = vpack.c.bf16 %v2361, %v2360
        %v2387 = vpack.c.bf16 %v2363, %v2362
        %v2388 = vpack.c.bf16 %v2365, %v2364
        %v2389 = vpack.c.bf16 %v2367, %v2366
        %v2390 = vpack.c.bf16 %v2369, %v2368
        %v2391 = vpack.c.bf16 %v2371, %v2370
        %v2392 = vpack.c.bf16 %v2373, %v2372
        %v2393 = vpack.c.bf16 %v2375, %v2374
        %v2394 = vpack.c.bf16 %v2377, %v2376
        %v2395 = vpack.c.bf16 %v2379, %v2378
        %v2396 = vld [vmem:[#allocation4] sm:$0xff]
        %v2397 = vld [vmem:[#allocation4 + $0x8] sm:$0xff]
        %v2398 = vld [vmem:[#allocation4 + $0x10] sm:$0xff]
        %v2399 = vld [vmem:[#allocation4 + $0x18] sm:$0xff]
        %v2400 = vld [vmem:[#allocation4 + $0x20] sm:$0xff]
        %v2401 = vld [vmem:[#allocation4 + $0x28] sm:$0xff]
        %v2402 = vld [vmem:[#allocation4 + $0x30] sm:$0xff]
        %v2403 = vld [vmem:[#allocation4 + $0x38] sm:$0xff]
        %v2404 = vld [vmem:[#allocation4 + $0x40] sm:$0xff]
        %v2405 = vld [vmem:[#allocation4 + $0x48] sm:$0xff]
        %v2406 = vld [vmem:[#allocation4 + $0x50] sm:$0xff]
        %v2407 = vld [vmem:[#allocation4 + $0x58] sm:$0xff]
        %v2408 = vld [vmem:[#allocation4 + $0x60] sm:$0xff]
        %v2409 = vld [vmem:[#allocation4 + $0x68] sm:$0xff]
        %v2410 = vld [vmem:[#allocation4 + $0x70] sm:$0xff]
        %v2411 = vld [vmem:[#allocation4 + $0x78] sm:$0xff]
        %v2412 = vld [vmem:[#allocation4 + $0x80] sm:$0xff]
        %v2413 = vld [vmem:[#allocation4 + $0x88] sm:$0xff]
        %v2414 = vld [vmem:[#allocation4 + $0x90] sm:$0xff]
        %v2415 = vld [vmem:[#allocation4 + $0x98] sm:$0xff]
        %v2416 = vld [vmem:[#allocation4 + $0xa0] sm:$0xff]
        %v2417 = vld [vmem:[#allocation4 + $0xa8] sm:$0xff]
        %v2418 = vld [vmem:[#allocation4 + $0xb0] sm:$0xff]
        %v2419 = vld [vmem:[#allocation4 + $0xb8] sm:$0xff]
        %v2420 = vld [vmem:[#allocation4 + $0xc0] sm:$0xff]
        %v2421 = vld [vmem:[#allocation4 + $0xc8] sm:$0xff]
        %v2422 = vld [vmem:[#allocation4 + $0xd0] sm:$0xff]
        %v2423 = vld [vmem:[#allocation4 + $0xd8] sm:$0xff]
        %v2424 = vld [vmem:[#allocation4 + $0xe0] sm:$0xff]
        %v2425 = vld [vmem:[#allocation4 + $0xe8] sm:$0xff]
        %v2426 = vld [vmem:[#allocation4 + $0xf0] sm:$0xff]
        %v2427 = vld [vmem:[#allocation4 + $0xf8] sm:$0xff]
        %s2428 = scalar_lea.vmem %s1, 320
        %v2429 = vld [vmem:[%s2428] sm:$0xf]
        %v2430 = vld [vmem:[%s2428 + $0x4] sm:$0xf]
        %v2431 = vld [vmem:[%s2428 + $0x8] sm:$0xf]
        %v2432 = vld [vmem:[%s2428 + $0xc] sm:$0xf]
        %v2433 = vld [vmem:[%s2428 + $0x10] sm:$0xf]
        %v2434 = vld [vmem:[%s2428 + $0x14] sm:$0xf]
        %v2435 = vld [vmem:[%s2428 + $0x18] sm:$0xf]
        %v2436 = vld [vmem:[%s2428 + $0x1c] sm:$0xf]
        %v2437 = vld [vmem:[%s2428 + $0x20] sm:$0xf]
        %v2438 = vld [vmem:[%s2428 + $0x24] sm:$0xf]
        %v2439 = vld [vmem:[%s2428 + $0x28] sm:$0xf]
        %v2440 = vld [vmem:[%s2428 + $0x2c] sm:$0xf]
        %v2441 = vld [vmem:[%s2428 + $0x30] sm:$0xf]
        %v2442 = vld [vmem:[%s2428 + $0x34] sm:$0xf]
        %v2443 = vld [vmem:[%s2428 + $0x38] sm:$0xf]
        %v2444 = vld [vmem:[%s2428 + $0x3c] sm:$0xf]
        %v2461 = vunpack.c.l.b16 %v2429
        %v2462 = vunpack.c.l.b16 %v2430
        %v2463 = vunpack.c.l.b16 %v2431
        %v2464 = vunpack.c.l.b16 %v2432
        %v2465 = vunpack.c.l.b16 %v2433
        %v2466 = vunpack.c.l.b16 %v2434
        %v2467 = vunpack.c.l.b16 %v2435
        %v2468 = vunpack.c.l.b16 %v2436
        %v2469 = vunpack.c.l.b16 %v2437
        %v2470 = vunpack.c.l.b16 %v2438
        %v2471 = vunpack.c.l.b16 %v2439
        %v2472 = vunpack.c.l.b16 %v2440
        %v2473 = vunpack.c.l.b16 %v2441
        %v2474 = vunpack.c.l.b16 %v2442
        %v2475 = vunpack.c.l.b16 %v2443
        %v2476 = vunpack.c.l.b16 %v2444
        %v2477 = vpack.c.b16 %v2462, %v2461
        %v2478 = vpack.c.b16 %v2464, %v2463
        %v2479 = vpack.c.b16 %v2466, %v2465
        %v2480 = vpack.c.b16 %v2468, %v2467
        %v2481 = vpack.c.b16 %v2470, %v2469
        %v2482 = vpack.c.b16 %v2472, %v2471
        %v2483 = vpack.c.b16 %v2474, %v2473
        %v2484 = vpack.c.b16 %v2476, %v2475
        %2493 = vmatprep.subr.bf16.mxu0 0
        %2494 = vmatpush1.bf16.msra.mxu0 %v2477
        %2495 = vmatprep.subr.bf16.mxu0 0
        %2496 = vmatpush1.bf16.msra.mxu0 %v2478
        %2497 = vmatprep.subr.bf16.mxu0 0
        %2498 = vmatpush1.bf16.msra.mxu0 %v2479
        %2499 = vmatprep.subr.bf16.mxu0 0
        %2500 = vmatpush1.bf16.msra.mxu0 %v2480
        %2501 = vmatprep.subr.bf16.mxu0 0
        %2502 = vmatpush1.bf16.msra.mxu0 %v2481
        %2503 = vmatprep.subr.bf16.mxu0 0
        %2504 = vmatpush1.bf16.msra.mxu0 %v2482
        %2505 = vmatprep.subr.bf16.mxu0 0
        %2506 = vmatpush1.bf16.msra.mxu0 %v2483
        %2507 = vmatprep.subr.bf16.mxu0 0
        %2508 = vmatpush1.bf16.msra.mxu0 %v2484
        %2509 = vmatprep.subr.bf16.mxu0 0
        %2510 = vmatpush1.bf16.msra.mxu0 0
        %2511 = vmatprep.subr.bf16.mxu0 0
        %2512 = vmatpush1.bf16.msra.mxu0 0
        %2513 = vmatprep.subr.bf16.mxu0 0
        %2514 = vmatpush1.bf16.msra.mxu0 0
        %2515 = vmatprep.subr.bf16.mxu0 0
        %2516 = vmatpush1.bf16.msra.mxu0 0
        %2517 = vmatprep.subr.bf16.mxu0 0
        %2518 = vmatpush1.bf16.msra.mxu0 0
        %2519 = vmatprep.subr.bf16.mxu0 0
        %2520 = vmatpush1.bf16.msra.mxu0 0
        %2521 = vmatprep.subr.bf16.mxu0 0
        %2522 = vmatpush1.bf16.msra.mxu0 0
        %2523 = vmatprep.subr.bf16.mxu0 0
        %2524 = vmatpush1.bf16.msra.mxu0 0
        %2525 = vmatprep.mubr.bf16.mxu0 0
        %2526 = vmatmul.mubr.bf16.gmra.mrb[0].mxu0 %v2380
        %v2527 = vpop.f32.mrb[0].mxu0
        %v2528 = vadd.f32 0.0, %v2527
        %v2529 = vpop.f32.mrb[0].mxu0
        %v2530 = vpop.f32.mrb[0].mxu0
        %v2531 = vadd.f32 0.0, %v2530
        %v2532 = vpop.f32.mrb[0].mxu0
        %2533 = vmatprep.mubr.bf16.mxu0 0
        %2534 = vmatmul.mubr.bf16.gmra.mrb[0].mxu0 %v2381
        %v2535 = vpop.f32.mrb[0].mxu0
        %v2536 = vadd.f32 0.0, %v2535
        %v2537 = vpop.f32.mrb[0].mxu0
        %v2538 = vpop.f32.mrb[0].mxu0
        %v2539 = vadd.f32 0.0, %v2538
        %v2540 = vpop.f32.mrb[0].mxu0
        %2541 = vmatprep.mubr.bf16.mxu0 0
        %2542 = vmatmul.mubr.bf16.gmra.mrb[0].mxu0 %v2382
        %v2543 = vpop.f32.mrb[0].mxu0
        %v2544 = vadd.f32 0.0, %v2543
        %v2545 = vpop.f32.mrb[0].mxu0
        %v2546 = vpop.f32.mrb[0].mxu0
        %v2547 = vadd.f32 0.0, %v2546
        %v2548 = vpop.f32.mrb[0].mxu0
        %2549 = vmatprep.mubr.bf16.mxu0 0
        %2550 = vmatmul.mubr.bf16.gmra.mrb[0].mxu0 %v2383
        %v2551 = vpop.f32.mrb[0].mxu0
        %v2552 = vadd.f32 0.0, %v2551
        %v2553 = vpop.f32.mrb[0].mxu0
        %v2554 = vpop.f32.mrb[0].mxu0
        %v2555 = vadd.f32 0.0, %v2554
        %v2556 = vpop.f32.mrb[0].mxu0
        %2557 = vmatprep.mubr.bf16.mxu0 0
        %2558 = vmatmul.mubr.bf16.gmra.mrb[0].mxu0 %v2384
        %v2559 = vpop.f32.mrb[0].mxu0
        %v2560 = vadd.f32 0.0, %v2559
        %v2561 = vpop.f32.mrb[0].mxu0
        %v2562 = vpop.f32.mrb[0].mxu0
        %v2563 = vadd.f32 0.0, %v2562
        %v2564 = vpop.f32.mrb[0].mxu0
        %2565 = vmatprep.mubr.bf16.mxu0 0
        %2566 = vmatmul.mubr.bf16.gmra.mrb[0].mxu0 %v2385
        %v2567 = vpop.f32.mrb[0].mxu0
        %v2568 = vadd.f32 0.0, %v2567
        %v2569 = vpop.f32.mrb[0].mxu0
        %v2570 = vpop.f32.mrb[0].mxu0
        %v2571 = vadd.f32 0.0, %v2570
        %v2572 = vpop.f32.mrb[0].mxu0
        %2573 = vmatprep.mubr.bf16.mxu0 0
        %2574 = vmatmul.mubr.bf16.gmra.mrb[0].mxu0 %v2386
        %v2575 = vpop.f32.mrb[0].mxu0
        %v2576 = vadd.f32 0.0, %v2575
        %v2577 = vpop.f32.mrb[0].mxu0
        %v2578 = vpop.f32.mrb[0].mxu0
        %v2579 = vadd.f32 0.0, %v2578
        %v2580 = vpop.f32.mrb[0].mxu0
        %2581 = vmatprep.mubr.bf16.mxu0 0
        %2582 = vmatmul.mubr.bf16.gmra.mrb[0].mxu0 %v2387
        %v2583 = vpop.f32.mrb[0].mxu0
        %v2584 = vadd.f32 0.0, %v2583
        %v2585 = vpop.f32.mrb[0].mxu0
        %v2586 = vpop.f32.mrb[0].mxu0
        %v2587 = vadd.f32 0.0, %v2586
        %v2588 = vpop.f32.mrb[0].mxu0
        %2589 = vmatprep.mubr.bf16.mxu0 0
        %2590 = vmatmul.mubr.bf16.gmra.mrb[0].mxu0 %v2388
        %v2591 = vpop.f32.mrb[0].mxu0
        %v2592 = vadd.f32 0.0, %v2591
        %v2593 = vpop.f32.mrb[0].mxu0
        %v2594 = vpop.f32.mrb[0].mxu0
        %v2595 = vadd.f32 0.0, %v2594
        %v2596 = vpop.f32.mrb[0].mxu0
        %2597 = vmatprep.mubr.bf16.mxu0 0
        %2598 = vmatmul.mubr.bf16.gmra.mrb[0].mxu0 %v2389
        %v2599 = vpop.f32.mrb[0].mxu0
        %v2600 = vadd.f32 0.0, %v2599
        %v2601 = vpop.f32.mrb[0].mxu0
        %v2602 = vpop.f32.mrb[0].mxu0
        %v2603 = vadd.f32 0.0, %v2602
        %v2604 = vpop.f32.mrb[0].mxu0
        %2605 = vmatprep.mubr.bf16.mxu0 0
        %2606 = vmatmul.mubr.bf16.gmra.mrb[0].mxu0 %v2390
        %v2607 = vpop.f32.mrb[0].mxu0
        %v2608 = vadd.f32 0.0, %v2607
        %v2609 = vpop.f32.mrb[0].mxu0
        %v2610 = vpop.f32.mrb[0].mxu0
        %v2611 = vadd.f32 0.0, %v2610
        %v2612 = vpop.f32.mrb[0].mxu0
        %2613 = vmatprep.mubr.bf16.mxu0 0
        %2614 = vmatmul.mubr.bf16.gmra.mrb[0].mxu0 %v2391
        %v2615 = vpop.f32.mrb[0].mxu0
        %v2616 = vadd.f32 0.0, %v2615
        %v2617 = vpop.f32.mrb[0].mxu0
        %v2618 = vpop.f32.mrb[0].mxu0
        %v2619 = vadd.f32 0.0, %v2618
        %v2620 = vpop.f32.mrb[0].mxu0
        %2621 = vmatprep.mubr.bf16.mxu0 0
        %2622 = vmatmul.mubr.bf16.gmra.mrb[0].mxu0 %v2392
        %v2623 = vpop.f32.mrb[0].mxu0
        %v2624 = vadd.f32 0.0, %v2623
        %v2625 = vpop.f32.mrb[0].mxu0
        %v2626 = vpop.f32.mrb[0].mxu0
        %v2627 = vadd.f32 0.0, %v2626
        %v2628 = vpop.f32.mrb[0].mxu0
        %2629 = vmatprep.mubr.bf16.mxu0 0
        %2630 = vmatmul.mubr.bf16.gmra.mrb[0].mxu0 %v2393
        %v2631 = vpop.f32.mrb[0].mxu0
        %v2632 = vadd.f32 0.0, %v2631
        %v2633 = vpop.f32.mrb[0].mxu0
        %v2634 = vpop.f32.mrb[0].mxu0
        %v2635 = vadd.f32 0.0, %v2634
        %v2636 = vpop.f32.mrb[0].mxu0
        %2637 = vmatprep.mubr.bf16.mxu0 0
        %2638 = vmatmul.mubr.bf16.gmra.mrb[0].mxu0 %v2394
        %v2639 = vpop.f32.mrb[0].mxu0
        %v2640 = vadd.f32 0.0, %v2639
        %v2641 = vpop.f32.mrb[0].mxu0
        %v2642 = vpop.f32.mrb[0].mxu0
        %v2643 = vadd.f32 0.0, %v2642
        %v2644 = vpop.f32.mrb[0].mxu0
        %2645 = vmatprep.mubr.bf16.mxu0 0
        %2646 = vmatmul.mubr.bf16.gmra.mrb[0].mxu0 %v2395
        %v2647 = vpop.f32.mrb[0].mxu0
        %v2648 = vadd.f32 0.0, %v2647
        %v2649 = vpop.f32.mrb[0].mxu0
        %v2650 = vpop.f32.mrb[0].mxu0
        %v2651 = vadd.f32 0.0, %v2650
        %v2652 = vpop.f32.mrb[0].mxu0
        %2653 = vdwg.mxu0
        %v2654 = vadd.f32 %v2396, %v2528
        %v2655 = vadd.f32 %v2397, %v2531
        %v2656 = vadd.f32 %v2398, %v2536
        %v2657 = vadd.f32 %v2399, %v2539
        %v2658 = vadd.f32 %v2400, %v2544
        %v2659 = vadd.f32 %v2401, %v2547
        %v2660 = vadd.f32 %v2402, %v2552
        %v2661 = vadd.f32 %v2403, %v2555
        %v2662 = vadd.f32 %v2404, %v2560
        %v2663 = vadd.f32 %v2405, %v2563
        %v2664 = vadd.f32 %v2406, %v2568
        %v2665 = vadd.f32 %v2407, %v2571
        %v2666 = vadd.f32 %v2408, %v2576
        %v2667 = vadd.f32 %v2409, %v2579
        %v2668 = vadd.f32 %v2410, %v2584
        %v2669 = vadd.f32 %v2411, %v2587
        %v2670 = vadd.f32 %v2412, %v2592
        %v2671 = vadd.f32 %v2413, %v2595
        %v2672 = vadd.f32 %v2414, %v2600
        %v2673 = vadd.f32 %v2415, %v2603
        %v2674 = vadd.f32 %v2416, %v2608
        %v2675 = vadd.f32 %v2417, %v2611
        %v2676 = vadd.f32 %v2418, %v2616
        %v2677 = vadd.f32 %v2419, %v2619
        %v2678 = vadd.f32 %v2420, %v2624
        %v2679 = vadd.f32 %v2421, %v2627
        %v2680 = vadd.f32 %v2422, %v2632
        %v2681 = vadd.f32 %v2423, %v2635
        %v2682 = vadd.f32 %v2424, %v2640
        %v2683 = vadd.f32 %v2425, %v2643
        %v2684 = vadd.f32 %v2426, %v2648
        %v2685 = vadd.f32 %v2427, %v2651
        %2686 = vst [vmem:[#allocation4] sm:$0xff] %v2654
        %2687 = vst [vmem:[#allocation4 + $0x8] sm:$0xff] %v2655
        %2688 = vst [vmem:[#allocation4 + $0x10] sm:$0xff] %v2656
        %2689 = vst [vmem:[#allocation4 + $0x18] sm:$0xff] %v2657
        %2690 = vst [vmem:[#allocation4 + $0x20] sm:$0xff] %v2658
        %2691 = vst [vmem:[#allocation4 + $0x28] sm:$0xff] %v2659
        %2692 = vst [vmem:[#allocation4 + $0x30] sm:$0xff] %v2660
        %2693 = vst [vmem:[#allocation4 + $0x38] sm:$0xff] %v2661
        %2694 = vst [vmem:[#allocation4 + $0x40] sm:$0xff] %v2662
        %2695 = vst [vmem:[#allocation4 + $0x48] sm:$0xff] %v2663
        %2696 = vst [vmem:[#allocation4 + $0x50] sm:$0xff] %v2664
        %2697 = vst [vmem:[#allocation4 + $0x58] sm:$0xff] %v2665
        %2698 = vst [vmem:[#allocation4 + $0x60] sm:$0xff] %v2666
        %2699 = vst [vmem:[#allocation4 + $0x68] sm:$0xff] %v2667
        %2700 = vst [vmem:[#allocation4 + $0x70] sm:$0xff] %v2668
        %2701 = vst [vmem:[#allocation4 + $0x78] sm:$0xff] %v2669
        %2702 = vst [vmem:[#allocation4 + $0x80] sm:$0xff] %v2670
        %2703 = vst [vmem:[#allocation4 + $0x88] sm:$0xff] %v2671
        %2704 = vst [vmem:[#allocation4 + $0x90] sm:$0xff] %v2672
        %2705 = vst [vmem:[#allocation4 + $0x98] sm:$0xff] %v2673
        %2706 = vst [vmem:[#allocation4 + $0xa0] sm:$0xff] %v2674
        %2707 = vst [vmem:[#allocation4 + $0xa8] sm:$0xff] %v2675
        %2708 = vst [vmem:[#allocation4 + $0xb0] sm:$0xff] %v2676
        %2709 = vst [vmem:[#allocation4 + $0xb8] sm:$0xff] %v2677
        %2710 = vst [vmem:[#allocation4 + $0xc0] sm:$0xff] %v2678
        %2711 = vst [vmem:[#allocation4 + $0xc8] sm:$0xff] %v2679
        %2712 = vst [vmem:[#allocation4 + $0xd0] sm:$0xff] %v2680
        %2713 = vst [vmem:[#allocation4 + $0xd8] sm:$0xff] %v2681
        %2714 = vst [vmem:[#allocation4 + $0xe0] sm:$0xff] %v2682
        %2715 = vst [vmem:[#allocation4 + $0xe8] sm:$0xff] %v2683
        %2716 = vst [vmem:[#allocation4 + $0xf0] sm:$0xff] %v2684
        %2717 = vst [vmem:[#allocation4 + $0xf8] sm:$0xff] %v2685
        %s2718 = scalar_lea.vmem [#allocation2], 48
        %v2719 = vld [vmem:[%s2718] sm:$0xff]
        %v2720 = vld [vmem:[%s2718 + $0x8] sm:$0xff]
        %v2721 = vld [vmem:[%s2718 + $0x18] sm:$0xff]
        %v2722 = vld [vmem:[%s2718 + $0x20] sm:$0xff]
        %v2723 = vld [vmem:[%s2718 + $0x30] sm:$0xff]
        %v2724 = vld [vmem:[%s2718 + $0x38] sm:$0xff]
        %v2725 = vld [vmem:[%s2718 + $0x48] sm:$0xff]
        %v2726 = vld [vmem:[%s2718 + $0x50] sm:$0xff]
        %v2727 = vld [vmem:[%s2718 + $0x60] sm:$0xff]
        %v2728 = vld [vmem:[%s2718 + $0x68] sm:$0xff]
        %v2729 = vld [vmem:[%s2718 + $0x78] sm:$0xff]
        %v2730 = vld [vmem:[%s2718 + $0x80] sm:$0xff]
        %v2731 = vld [vmem:[%s2718 + $0x90] sm:$0xff]
        %v2732 = vld [vmem:[%s2718 + $0x98] sm:$0xff]
        %v2733 = vld [vmem:[%s2718 + $0xa8] sm:$0xff]
        %v2734 = vld [vmem:[%s2718 + $0xb0] sm:$0xff]
        %v2735 = vld [vmem:[%s2718 + $0xc0] sm:$0xff]
        %v2736 = vld [vmem:[%s2718 + $0xc8] sm:$0xff]
        %v2737 = vld [vmem:[%s2718 + $0xd8] sm:$0xff]
        %v2738 = vld [vmem:[%s2718 + $0xe0] sm:$0xff]
        %v2739 = vld [vmem:[%s2718 + $0xf0] sm:$0xff]
        %v2740 = vld [vmem:[%s2718 + $0xf8] sm:$0xff]
        %v2741 = vld [vmem:[%s2718 + $0x108] sm:$0xff]
        %v2742 = vld [vmem:[%s2718 + $0x110] sm:$0xff]
        %v2743 = vld [vmem:[%s2718 + $0x120] sm:$0xff]
        %v2744 = vld [vmem:[%s2718 + $0x128] sm:$0xff]
        %v2745 = vld [vmem:[%s2718 + $0x138] sm:$0xff]
        %v2746 = vld [vmem:[%s2718 + $0x140] sm:$0xff]
        %v2747 = vld [vmem:[%s2718 + $0x150] sm:$0xff]
        %v2748 = vld [vmem:[%s2718 + $0x158] sm:$0xff]
        %v2749 = vld [vmem:[%s2718 + $0x168] sm:$0xff]
        %v2750 = vld [vmem:[%s2718 + $0x170] sm:$0xff]
        %v2751 = vpack.c.bf16 %v2720, %v2719
        %v2752 = vpack.c.bf16 %v2722, %v2721
        %v2753 = vpack.c.bf16 %v2724, %v2723
        %v2754 = vpack.c.bf16 %v2726, %v2725
        %v2755 = vpack.c.bf16 %v2728, %v2727
        %v2756 = vpack.c.bf16 %v2730, %v2729
        %v2757 = vpack.c.bf16 %v2732, %v2731
        %v2758 = vpack.c.bf16 %v2734, %v2733
        %v2759 = vpack.c.bf16 %v2736, %v2735
        %v2760 = vpack.c.bf16 %v2738, %v2737
        %v2761 = vpack.c.bf16 %v2740, %v2739
        %v2762 = vpack.c.bf16 %v2742, %v2741
        %v2763 = vpack.c.bf16 %v2744, %v2743
        %v2764 = vpack.c.bf16 %v2746, %v2745
        %v2765 = vpack.c.bf16 %v2748, %v2747
        %v2766 = vpack.c.bf16 %v2750, %v2749
        %v2767 = vld [vmem:[#allocation4] sm:$0xff]
        %v2768 = vld [vmem:[#allocation4 + $0x8] sm:$0xff]
        %v2769 = vld [vmem:[#allocation4 + $0x10] sm:$0xff]
        %v2770 = vld [vmem:[#allocation4 + $0x18] sm:$0xff]
        %v2771 = vld [vmem:[#allocation4 + $0x20] sm:$0xff]
        %v2772 = vld [vmem:[#allocation4 + $0x28] sm:$0xff]
        %v2773 = vld [vmem:[#allocation4 + $0x30] sm:$0xff]
        %v2774 = vld [vmem:[#allocation4 + $0x38] sm:$0xff]
        %v2775 = vld [vmem:[#allocation4 + $0x40] sm:$0xff]
        %v2776 = vld [vmem:[#allocation4 + $0x48] sm:$0xff]
        %v2777 = vld [vmem:[#allocation4 + $0x50] sm:$0xff]
        %v2778 = vld [vmem:[#allocation4 + $0x58] sm:$0xff]
        %v2779 = vld [vmem:[#allocation4 + $0x60] sm:$0xff]
        %v2780 = vld [vmem:[#allocation4 + $0x68] sm:$0xff]
        %v2781 = vld [vmem:[#allocation4 + $0x70] sm:$0xff]
        %v2782 = vld [vmem:[#allocation4 + $0x78] sm:$0xff]
        %v2783 = vld [vmem:[#allocation4 + $0x80] sm:$0xff]
        %v2784 = vld [vmem:[#allocation4 + $0x88] sm:$0xff]
        %v2785 = vld [vmem:[#allocation4 + $0x90] sm:$0xff]
        %v2786 = vld [vmem:[#allocation4 + $0x98] sm:$0xff]
        %v2787 = vld [vmem:[#allocation4 + $0xa0] sm:$0xff]
        %v2788 = vld [vmem:[#allocation4 + $0xa8] sm:$0xff]
        %v2789 = vld [vmem:[#allocation4 + $0xb0] sm:$0xff]
        %v2790 = vld [vmem:[#allocation4 + $0xb8] sm:$0xff]
        %v2791 = vld [vmem:[#allocation4 + $0xc0] sm:$0xff]
        %v2792 = vld [vmem:[#allocation4 + $0xc8] sm:$0xff]
        %v2793 = vld [vmem:[#allocation4 + $0xd0] sm:$0xff]
        %v2794 = vld [vmem:[#allocation4 + $0xd8] sm:$0xff]
        %v2795 = vld [vmem:[#allocation4 + $0xe0] sm:$0xff]
        %v2796 = vld [vmem:[#allocation4 + $0xe8] sm:$0xff]
        %v2797 = vld [vmem:[#allocation4 + $0xf0] sm:$0xff]
        %v2798 = vld [vmem:[#allocation4 + $0xf8] sm:$0xff]
        %s2799 = scalar_lea.vmem %s1, 384
        %v2800 = vld [vmem:[%s2799] sm:$0xf]
        %v2801 = vld [vmem:[%s2799 + $0x4] sm:$0xf]
        %v2802 = vld [vmem:[%s2799 + $0x8] sm:$0xf]
        %v2803 = vld [vmem:[%s2799 + $0xc] sm:$0xf]
        %v2804 = vld [vmem:[%s2799 + $0x10] sm:$0xf]
        %v2805 = vld [vmem:[%s2799 + $0x14] sm:$0xf]
        %v2806 = vld [vmem:[%s2799 + $0x18] sm:$0xf]
        %v2807 = vld [vmem:[%s2799 + $0x1c] sm:$0xf]
        %v2808 = vld [vmem:[%s2799 + $0x20] sm:$0xf]
        %v2809 = vld [vmem:[%s2799 + $0x24] sm:$0xf]
        %v2810 = vld [vmem:[%s2799 + $0x28] sm:$0xf]
        %v2811 = vld [vmem:[%s2799 + $0x2c] sm:$0xf]
        %v2812 = vld [vmem:[%s2799 + $0x30] sm:$0xf]
        %v2813 = vld [vmem:[%s2799 + $0x34] sm:$0xf]
        %v2814 = vld [vmem:[%s2799 + $0x38] sm:$0xf]
        %v2815 = vld [vmem:[%s2799 + $0x3c] sm:$0xf]
        %v2832 = vunpack.c.l.b16 %v2800
        %v2833 = vunpack.c.l.b16 %v2801
        %v2834 = vunpack.c.l.b16 %v2802
        %v2835 = vunpack.c.l.b16 %v2803
        %v2836 = vunpack.c.l.b16 %v2804
        %v2837 = vunpack.c.l.b16 %v2805
        %v2838 = vunpack.c.l.b16 %v2806
        %v2839 = vunpack.c.l.b16 %v2807
        %v2840 = vunpack.c.l.b16 %v2808
        %v2841 = vunpack.c.l.b16 %v2809
        %v2842 = vunpack.c.l.b16 %v2810
        %v2843 = vunpack.c.l.b16 %v2811
        %v2844 = vunpack.c.l.b16 %v2812
        %v2845 = vunpack.c.l.b16 %v2813
        %v2846 = vunpack.c.l.b16 %v2814
        %v2847 = vunpack.c.l.b16 %v2815
        %v2848 = vpack.c.b16 %v2833, %v2832
        %v2849 = vpack.c.b16 %v2835, %v2834
        %v2850 = vpack.c.b16 %v2837, %v2836
        %v2851 = vpack.c.b16 %v2839, %v2838
        %v2852 = vpack.c.b16 %v2841, %v2840
        %v2853 = vpack.c.b16 %v2843, %v2842
        %v2854 = vpack.c.b16 %v2845, %v2844
        %v2855 = vpack.c.b16 %v2847, %v2846
        %2864 = vmatprep.subr.bf16.mxu0 0
        %2865 = vmatpush1.bf16.msra.mxu0 %v2848
        %2866 = vmatprep.subr.bf16.mxu0 0
        %2867 = vmatpush1.bf16.msra.mxu0 %v2849
        %2868 = vmatprep.subr.bf16.mxu0 0
        %2869 = vmatpush1.bf16.msra.mxu0 %v2850
        %2870 = vmatprep.subr.bf16.mxu0 0
        %2871 = vmatpush1.bf16.msra.mxu0 %v2851
        %2872 = vmatprep.subr.bf16.mxu0 0
        %2873 = vmatpush1.bf16.msra.mxu0 %v2852
        %2874 = vmatprep.subr.bf16.mxu0 0
        %2875 = vmatpush1.bf16.msra.mxu0 %v2853
        %2876 = vmatprep.subr.bf16.mxu0 0
        %2877 = vmatpush1.bf16.msra.mxu0 %v2854
        %2878 = vmatprep.subr.bf16.mxu0 0
        %2879 = vmatpush1.bf16.msra.mxu0 %v2855
        %2880 = vmatprep.subr.bf16.mxu0 0
        %2881 = vmatpush1.bf16.msra.mxu0 0
        %2882 = vmatprep.subr.bf16.mxu0 0
        %2883 = vmatpush1.bf16.msra.mxu0 0
        %2884 = vmatprep.subr.bf16.mxu0 0
        %2885 = vmatpush1.bf16.msra.mxu0 0
        %2886 = vmatprep.subr.bf16.mxu0 0
        %2887 = vmatpush1.bf16.msra.mxu0 0
        %2888 = vmatprep.subr.bf16.mxu0 0
        %2889 = vmatpush1.bf16.msra.mxu0 0
        %2890 = vmatprep.subr.bf16.mxu0 0
        %2891 = vmatpush1.bf16.msra.mxu0 0
        %2892 = vmatprep.subr.bf16.mxu0 0
        %2893 = vmatpush1.bf16.msra.mxu0 0
        %2894 = vmatprep.subr.bf16.mxu0 0
        %2895 = vmatpush1.bf16.msra.mxu0 0
        %2896 = vmatprep.mubr.bf16.mxu0 0
        %2897 = vmatmul.mubr.bf16.gmra.mrb[0].mxu0 %v2751
        %v2898 = vpop.f32.mrb[0].mxu0
        %v2899 = vadd.f32 0.0, %v2898
        %v2900 = vpop.f32.mrb[0].mxu0
        %v2901 = vpop.f32.mrb[0].mxu0
        %v2902 = vadd.f32 0.0, %v2901
        %v2903 = vpop.f32.mrb[0].mxu0
        %2904 = vmatprep.mubr.bf16.mxu0 0
        %2905 = vmatmul.mubr.bf16.gmra.mrb[0].mxu0 %v2752
        %v2906 = vpop.f32.mrb[0].mxu0
        %v2907 = vadd.f32 0.0, %v2906
        %v2908 = vpop.f32.mrb[0].mxu0
        %v2909 = vpop.f32.mrb[0].mxu0
        %v2910 = vadd.f32 0.0, %v2909
        %v2911 = vpop.f32.mrb[0].mxu0
        %2912 = vmatprep.mubr.bf16.mxu0 0
        %2913 = vmatmul.mubr.bf16.gmra.mrb[0].mxu0 %v2753
        %v2914 = vpop.f32.mrb[0].mxu0
        %v2915 = vadd.f32 0.0, %v2914
        %v2916 = vpop.f32.mrb[0].mxu0
        %v2917 = vpop.f32.mrb[0].mxu0
        %v2918 = vadd.f32 0.0, %v2917
        %v2919 = vpop.f32.mrb[0].mxu0
        %2920 = vmatprep.mubr.bf16.mxu0 0
        %2921 = vmatmul.mubr.bf16.gmra.mrb[0].mxu0 %v2754
        %v2922 = vpop.f32.mrb[0].mxu0
        %v2923 = vadd.f32 0.0, %v2922
        %v2924 = vpop.f32.mrb[0].mxu0
        %v2925 = vpop.f32.mrb[0].mxu0
        %v2926 = vadd.f32 0.0, %v2925
        %v2927 = vpop.f32.mrb[0].mxu0
        %2928 = vmatprep.mubr.bf16.mxu0 0
        %2929 = vmatmul.mubr.bf16.gmra.mrb[0].mxu0 %v2755
        %v2930 = vpop.f32.mrb[0].mxu0
        %v2931 = vadd.f32 0.0, %v2930
        %v2932 = vpop.f32.mrb[0].mxu0
        %v2933 = vpop.f32.mrb[0].mxu0
        %v2934 = vadd.f32 0.0, %v2933
        %v2935 = vpop.f32.mrb[0].mxu0
        %2936 = vmatprep.mubr.bf16.mxu0 0
        %2937 = vmatmul.mubr.bf16.gmra.mrb[0].mxu0 %v2756
        %v2938 = vpop.f32.mrb[0].mxu0
        %v2939 = vadd.f32 0.0, %v2938
        %v2940 = vpop.f32.mrb[0].mxu0
        %v2941 = vpop.f32.mrb[0].mxu0
        %v2942 = vadd.f32 0.0, %v2941
        %v2943 = vpop.f32.mrb[0].mxu0
        %2944 = vmatprep.mubr.bf16.mxu0 0
        %2945 = vmatmul.mubr.bf16.gmra.mrb[0].mxu0 %v2757
        %v2946 = vpop.f32.mrb[0].mxu0
        %v2947 = vadd.f32 0.0, %v2946
        %v2948 = vpop.f32.mrb[0].mxu0
        %v2949 = vpop.f32.mrb[0].mxu0
        %v2950 = vadd.f32 0.0, %v2949
        %v2951 = vpop.f32.mrb[0].mxu0
        %2952 = vmatprep.mubr.bf16.mxu0 0
        %2953 = vmatmul.mubr.bf16.gmra.mrb[0].mxu0 %v2758
        %v2954 = vpop.f32.mrb[0].mxu0
        %v2955 = vadd.f32 0.0, %v2954
        %v2956 = vpop.f32.mrb[0].mxu0
        %v2957 = vpop.f32.mrb[0].mxu0
        %v2958 = vadd.f32 0.0, %v2957
        %v2959 = vpop.f32.mrb[0].mxu0
        %2960 = vmatprep.mubr.bf16.mxu0 0
        %2961 = vmatmul.mubr.bf16.gmra.mrb[0].mxu0 %v2759
        %v2962 = vpop.f32.mrb[0].mxu0
        %v2963 = vadd.f32 0.0, %v2962
        %v2964 = vpop.f32.mrb[0].mxu0
        %v2965 = vpop.f32.mrb[0].mxu0
        %v2966 = vadd.f32 0.0, %v2965
        %v2967 = vpop.f32.mrb[0].mxu0
        %2968 = vmatprep.mubr.bf16.mxu0 0
        %2969 = vmatmul.mubr.bf16.gmra.mrb[0].mxu0 %v2760
        %v2970 = vpop.f32.mrb[0].mxu0
        %v2971 = vadd.f32 0.0, %v2970
        %v2972 = vpop.f32.mrb[0].mxu0
        %v2973 = vpop.f32.mrb[0].mxu0
        %v2974 = vadd.f32 0.0, %v2973
        %v2975 = vpop.f32.mrb[0].mxu0
        %2976 = vmatprep.mubr.bf16.mxu0 0
        %2977 = vmatmul.mubr.bf16.gmra.mrb[0].mxu0 %v2761
        %v2978 = vpop.f32.mrb[0].mxu0
        %v2979 = vadd.f32 0.0, %v2978
        %v2980 = vpop.f32.mrb[0].mxu0
        %v2981 = vpop.f32.mrb[0].mxu0
        %v2982 = vadd.f32 0.0, %v2981
        %v2983 = vpop.f32.mrb[0].mxu0
        %2984 = vmatprep.mubr.bf16.mxu0 0
        %2985 = vmatmul.mubr.bf16.gmra.mrb[0].mxu0 %v2762
        %v2986 = vpop.f32.mrb[0].mxu0
        %v2987 = vadd.f32 0.0, %v2986
        %v2988 = vpop.f32.mrb[0].mxu0
        %v2989 = vpop.f32.mrb[0].mxu0
        %v2990 = vadd.f32 0.0, %v2989
        %v2991 = vpop.f32.mrb[0].mxu0
        %2992 = vmatprep.mubr.bf16.mxu0 0
        %2993 = vmatmul.mubr.bf16.gmra.mrb[0].mxu0 %v2763
        %v2994 = vpop.f32.mrb[0].mxu0
        %v2995 = vadd.f32 0.0, %v2994
        %v2996 = vpop.f32.mrb[0].mxu0
        %v2997 = vpop.f32.mrb[0].mxu0
        %v2998 = vadd.f32 0.0, %v2997
        %v2999 = vpop.f32.mrb[0].mxu0
        %3000 = vmatprep.mubr.bf16.mxu0 0
        %3001 = vmatmul.mubr.bf16.gmra.mrb[0].mxu0 %v2764
        %v3002 = vpop.f32.mrb[0].mxu0
        %v3003 = vadd.f32 0.0, %v3002
        %v3004 = vpop.f32.mrb[0].mxu0
        %v3005 = vpop.f32.mrb[0].mxu0
        %v3006 = vadd.f32 0.0, %v3005
        %v3007 = vpop.f32.mrb[0].mxu0
        %3008 = vmatprep.mubr.bf16.mxu0 0
        %3009 = vmatmul.mubr.bf16.gmra.mrb[0].mxu0 %v2765
        %v3010 = vpop.f32.mrb[0].mxu0
        %v3011 = vadd.f32 0.0, %v3010
        %v3012 = vpop.f32.mrb[0].mxu0
        %v3013 = vpop.f32.mrb[0].mxu0
        %v3014 = vadd.f32 0.0, %v3013
        %v3015 = vpop.f32.mrb[0].mxu0
        %3016 = vmatprep.mubr.bf16.mxu0 0
        %3017 = vmatmul.mubr.bf16.gmra.mrb[0].mxu0 %v2766
        %v3018 = vpop.f32.mrb[0].mxu0
        %v3019 = vadd.f32 0.0, %v3018
        %v3020 = vpop.f32.mrb[0].mxu0
        %v3021 = vpop.f32.mrb[0].mxu0
        %v3022 = vadd.f32 0.0, %v3021
        %v3023 = vpop.f32.mrb[0].mxu0
        %3024 = vdwg.mxu0
        %v3025 = vadd.f32 %v2767, %v2899
        %v3026 = vadd.f32 %v2768, %v2902
        %v3027 = vadd.f32 %v2769, %v2907
        %v3028 = vadd.f32 %v2770, %v2910
        %v3029 = vadd.f32 %v2771, %v2915
        %v3030 = vadd.f32 %v2772, %v2918
        %v3031 = vadd.f32 %v2773, %v2923
        %v3032 = vadd.f32 %v2774, %v2926
        %v3033 = vadd.f32 %v2775, %v2931
        %v3034 = vadd.f32 %v2776, %v2934
        %v3035 = vadd.f32 %v2777, %v2939
        %v3036 = vadd.f32 %v2778, %v2942
        %v3037 = vadd.f32 %v2779, %v2947
        %v3038 = vadd.f32 %v2780, %v2950
        %v3039 = vadd.f32 %v2781, %v2955
        %v3040 = vadd.f32 %v2782, %v2958
        %v3041 = vadd.f32 %v2783, %v2963
        %v3042 = vadd.f32 %v2784, %v2966
        %v3043 = vadd.f32 %v2785, %v2971
        %v3044 = vadd.f32 %v2786, %v2974
        %v3045 = vadd.f32 %v2787, %v2979
        %v3046 = vadd.f32 %v2788, %v2982
        %v3047 = vadd.f32 %v2789, %v2987
        %v3048 = vadd.f32 %v2790, %v2990
        %v3049 = vadd.f32 %v2791, %v2995
        %v3050 = vadd.f32 %v2792, %v2998
        %v3051 = vadd.f32 %v2793, %v3003
        %v3052 = vadd.f32 %v2794, %v3006
        %v3053 = vadd.f32 %v2795, %v3011
        %v3054 = vadd.f32 %v2796, %v3014
        %v3055 = vadd.f32 %v2797, %v3019
        %v3056 = vadd.f32 %v2798, %v3022
        %3057 = vst [vmem:[#allocation4] sm:$0xff] %v3025
        %3058 = vst [vmem:[#allocation4 + $0x8] sm:$0xff] %v3026
        %3059 = vst [vmem:[#allocation4 + $0x10] sm:$0xff] %v3027
        %3060 = vst [vmem:[#allocation4 + $0x18] sm:$0xff] %v3028
        %3061 = vst [vmem:[#allocation4 + $0x20] sm:$0xff] %v3029
        %3062 = vst [vmem:[#allocation4 + $0x28] sm:$0xff] %v3030
        %3063 = vst [vmem:[#allocation4 + $0x30] sm:$0xff] %v3031
        %3064 = vst [vmem:[#allocation4 + $0x38] sm:$0xff] %v3032
        %3065 = vst [vmem:[#allocation4 + $0x40] sm:$0xff] %v3033
        %3066 = vst [vmem:[#allocation4 + $0x48] sm:$0xff] %v3034
        %3067 = vst [vmem:[#allocation4 + $0x50] sm:$0xff] %v3035
        %3068 = vst [vmem:[#allocation4 + $0x58] sm:$0xff] %v3036
        %3069 = vst [vmem:[#allocation4 + $0x60] sm:$0xff] %v3037
        %3070 = vst [vmem:[#allocation4 + $0x68] sm:$0xff] %v3038
        %3071 = vst [vmem:[#allocation4 + $0x70] sm:$0xff] %v3039
        %3072 = vst [vmem:[#allocation4 + $0x78] sm:$0xff] %v3040
        %3073 = vst [vmem:[#allocation4 + $0x80] sm:$0xff] %v3041
        %3074 = vst [vmem:[#allocation4 + $0x88] sm:$0xff] %v3042
        %3075 = vst [vmem:[#allocation4 + $0x90] sm:$0xff] %v3043
        %3076 = vst [vmem:[#allocation4 + $0x98] sm:$0xff] %v3044
        %3077 = vst [vmem:[#allocation4 + $0xa0] sm:$0xff] %v3045
        %3078 = vst [vmem:[#allocation4 + $0xa8] sm:$0xff] %v3046
        %3079 = vst [vmem:[#allocation4 + $0xb0] sm:$0xff] %v3047
        %3080 = vst [vmem:[#allocation4 + $0xb8] sm:$0xff] %v3048
        %3081 = vst [vmem:[#allocation4 + $0xc0] sm:$0xff] %v3049
        %3082 = vst [vmem:[#allocation4 + $0xc8] sm:$0xff] %v3050
        %3083 = vst [vmem:[#allocation4 + $0xd0] sm:$0xff] %v3051
        %3084 = vst [vmem:[#allocation4 + $0xd8] sm:$0xff] %v3052
        %3085 = vst [vmem:[#allocation4 + $0xe0] sm:$0xff] %v3053
        %3086 = vst [vmem:[#allocation4 + $0xe8] sm:$0xff] %v3054
        %3087 = vst [vmem:[#allocation4 + $0xf0] sm:$0xff] %v3055
        %3088 = vst [vmem:[#allocation4 + $0xf8] sm:$0xff] %v3056
        %v3089 = vld [vmem:[%s2718 + $0x1] sm:$0xff]
        %v3090 = vld [vmem:[%s2718 + $0x9] sm:$0xff]
        %v3091 = vld [vmem:[%s2718 + $0x19] sm:$0xff]
        %v3092 = vld [vmem:[%s2718 + $0x21] sm:$0xff]
        %v3093 = vld [vmem:[%s2718 + $0x31] sm:$0xff]
        %v3094 = vld [vmem:[%s2718 + $0x39] sm:$0xff]
        %v3095 = vld [vmem:[%s2718 + $0x49] sm:$0xff]
        %v3096 = vld [vmem:[%s2718 + $0x51] sm:$0xff]
        %v3097 = vld [vmem:[%s2718 + $0x61] sm:$0xff]
        %v3098 = vld [vmem:[%s2718 + $0x69] sm:$0xff]
        %v3099 = vld [vmem:[%s2718 + $0x79] sm:$0xff]
        %v3100 = vld [vmem:[%s2718 + $0x81] sm:$0xff]
        %v3101 = vld [vmem:[%s2718 + $0x91] sm:$0xff]
        %v3102 = vld [vmem:[%s2718 + $0x99] sm:$0xff]
        %v3103 = vld [vmem:[%s2718 + $0xa9] sm:$0xff]
        %v3104 = vld [vmem:[%s2718 + $0xb1] sm:$0xff]
        %v3105 = vld [vmem:[%s2718 + $0xc1] sm:$0xff]
        %v3106 = vld [vmem:[%s2718 + $0xc9] sm:$0xff]
        %v3107 = vld [vmem:[%s2718 + $0xd9] sm:$0xff]
        %v3108 = vld [vmem:[%s2718 + $0xe1] sm:$0xff]
        %v3109 = vld [vmem:[%s2718 + $0xf1] sm:$0xff]
        %v3110 = vld [vmem:[%s2718 + $0xf9] sm:$0xff]
        %v3111 = vld [vmem:[%s2718 + $0x109] sm:$0xff]
        %v3112 = vld [vmem:[%s2718 + $0x111] sm:$0xff]
        %v3113 = vld [vmem:[%s2718 + $0x121] sm:$0xff]
        %v3114 = vld [vmem:[%s2718 + $0x129] sm:$0xff]
        %v3115 = vld [vmem:[%s2718 + $0x139] sm:$0xff]
        %v3116 = vld [vmem:[%s2718 + $0x141] sm:$0xff]
        %v3117 = vld [vmem:[%s2718 + $0x151] sm:$0xff]
        %v3118 = vld [vmem:[%s2718 + $0x159] sm:$0xff]
        %v3119 = vld [vmem:[%s2718 + $0x169] sm:$0xff]
        %v3120 = vld [vmem:[%s2718 + $0x171] sm:$0xff]
        %v3121 = vpack.c.bf16 %v3090, %v3089
        %v3122 = vpack.c.bf16 %v3092, %v3091
        %v3123 = vpack.c.bf16 %v3094, %v3093
        %v3124 = vpack.c.bf16 %v3096, %v3095
        %v3125 = vpack.c.bf16 %v3098, %v3097
        %v3126 = vpack.c.bf16 %v3100, %v3099
        %v3127 = vpack.c.bf16 %v3102, %v3101
        %v3128 = vpack.c.bf16 %v3104, %v3103
        %v3129 = vpack.c.bf16 %v3106, %v3105
        %v3130 = vpack.c.bf16 %v3108, %v3107
        %v3131 = vpack.c.bf16 %v3110, %v3109
        %v3132 = vpack.c.bf16 %v3112, %v3111
        %v3133 = vpack.c.bf16 %v3114, %v3113
        %v3134 = vpack.c.bf16 %v3116, %v3115
        %v3135 = vpack.c.bf16 %v3118, %v3117
        %v3136 = vpack.c.bf16 %v3120, %v3119
        %v3137 = vld [vmem:[#allocation4] sm:$0xff]
        %v3138 = vld [vmem:[#allocation4 + $0x8] sm:$0xff]
        %v3139 = vld [vmem:[#allocation4 + $0x10] sm:$0xff]
        %v3140 = vld [vmem:[#allocation4 + $0x18] sm:$0xff]
        %v3141 = vld [vmem:[#allocation4 + $0x20] sm:$0xff]
        %v3142 = vld [vmem:[#allocation4 + $0x28] sm:$0xff]
        %v3143 = vld [vmem:[#allocation4 + $0x30] sm:$0xff]
        %v3144 = vld [vmem:[#allocation4 + $0x38] sm:$0xff]
        %v3145 = vld [vmem:[#allocation4 + $0x40] sm:$0xff]
        %v3146 = vld [vmem:[#allocation4 + $0x48] sm:$0xff]
        %v3147 = vld [vmem:[#allocation4 + $0x50] sm:$0xff]
        %v3148 = vld [vmem:[#allocation4 + $0x58] sm:$0xff]
        %v3149 = vld [vmem:[#allocation4 + $0x60] sm:$0xff]
        %v3150 = vld [vmem:[#allocation4 + $0x68] sm:$0xff]
        %v3151 = vld [vmem:[#allocation4 + $0x70] sm:$0xff]
        %v3152 = vld [vmem:[#allocation4 + $0x78] sm:$0xff]
        %v3153 = vld [vmem:[#allocation4 + $0x80] sm:$0xff]
        %v3154 = vld [vmem:[#allocation4 + $0x88] sm:$0xff]
        %v3155 = vld [vmem:[#allocation4 + $0x90] sm:$0xff]
        %v3156 = vld [vmem:[#allocation4 + $0x98] sm:$0xff]
        %v3157 = vld [vmem:[#allocation4 + $0xa0] sm:$0xff]
        %v3158 = vld [vmem:[#allocation4 + $0xa8] sm:$0xff]
        %v3159 = vld [vmem:[#allocation4 + $0xb0] sm:$0xff]
        %v3160 = vld [vmem:[#allocation4 + $0xb8] sm:$0xff]
        %v3161 = vld [vmem:[#allocation4 + $0xc0] sm:$0xff]
        %v3162 = vld [vmem:[#allocation4 + $0xc8] sm:$0xff]
        %v3163 = vld [vmem:[#allocation4 + $0xd0] sm:$0xff]
        %v3164 = vld [vmem:[#allocation4 + $0xd8] sm:$0xff]
        %v3165 = vld [vmem:[#allocation4 + $0xe0] sm:$0xff]
        %v3166 = vld [vmem:[#allocation4 + $0xe8] sm:$0xff]
        %v3167 = vld [vmem:[#allocation4 + $0xf0] sm:$0xff]
        %v3168 = vld [vmem:[#allocation4 + $0xf8] sm:$0xff]
        %s3169 = scalar_lea.vmem %s1, 448
        %v3170 = vld [vmem:[%s3169] sm:$0xf]
        %v3171 = vld [vmem:[%s3169 + $0x4] sm:$0xf]
        %v3172 = vld [vmem:[%s3169 + $0x8] sm:$0xf]
        %v3173 = vld [vmem:[%s3169 + $0xc] sm:$0xf]
        %v3174 = vld [vmem:[%s3169 + $0x10] sm:$0xf]
        %v3175 = vld [vmem:[%s3169 + $0x14] sm:$0xf]
        %v3176 = vld [vmem:[%s3169 + $0x18] sm:$0xf]
        %v3177 = vld [vmem:[%s3169 + $0x1c] sm:$0xf]
        %v3178 = vld [vmem:[%s3169 + $0x20] sm:$0xf]
        %v3179 = vld [vmem:[%s3169 + $0x24] sm:$0xf]
        %v3180 = vld [vmem:[%s3169 + $0x28] sm:$0xf]
        %v3181 = vld [vmem:[%s3169 + $0x2c] sm:$0xf]
        %v3182 = vld [vmem:[%s3169 + $0x30] sm:$0xf]
        %v3183 = vld [vmem:[%s3169 + $0x34] sm:$0xf]
        %v3184 = vld [vmem:[%s3169 + $0x38] sm:$0xf]
        %v3185 = vld [vmem:[%s3169 + $0x3c] sm:$0xf]
        %v3202 = vunpack.c.l.b16 %v3170
        %v3203 = vunpack.c.l.b16 %v3171
        %v3204 = vunpack.c.l.b16 %v3172
        %v3205 = vunpack.c.l.b16 %v3173
        %v3206 = vunpack.c.l.b16 %v3174
        %v3207 = vunpack.c.l.b16 %v3175
        %v3208 = vunpack.c.l.b16 %v3176
        %v3209 = vunpack.c.l.b16 %v3177
        %v3210 = vunpack.c.l.b16 %v3178
        %v3211 = vunpack.c.l.b16 %v3179
        %v3212 = vunpack.c.l.b16 %v3180
        %v3213 = vunpack.c.l.b16 %v3181
        %v3214 = vunpack.c.l.b16 %v3182
        %v3215 = vunpack.c.l.b16 %v3183
        %v3216 = vunpack.c.l.b16 %v3184
        %v3217 = vunpack.c.l.b16 %v3185
        %v3218 = vpack.c.b16 %v3203, %v3202
        %v3219 = vpack.c.b16 %v3205, %v3204
        %v3220 = vpack.c.b16 %v3207, %v3206
        %v3221 = vpack.c.b16 %v3209, %v3208
        %v3222 = vpack.c.b16 %v3211, %v3210
        %v3223 = vpack.c.b16 %v3213, %v3212
        %v3224 = vpack.c.b16 %v3215, %v3214
        %v3225 = vpack.c.b16 %v3217, %v3216
        %3234 = vmatprep.subr.bf16.mxu0 0
        %3235 = vmatpush1.bf16.msra.mxu0 %v3218
        %3236 = vmatprep.subr.bf16.mxu0 0
        %3237 = vmatpush1.bf16.msra.mxu0 %v3219
        %3238 = vmatprep.subr.bf16.mxu0 0
        %3239 = vmatpush1.bf16.msra.mxu0 %v3220
        %3240 = vmatprep.subr.bf16.mxu0 0
        %3241 = vmatpush1.bf16.msra.mxu0 %v3221
        %3242 = vmatprep.subr.bf16.mxu0 0
        %3243 = vmatpush1.bf16.msra.mxu0 %v3222
        %3244 = vmatprep.subr.bf16.mxu0 0
        %3245 = vmatpush1.bf16.msra.mxu0 %v3223
        %3246 = vmatprep.subr.bf16.mxu0 0
        %3247 = vmatpush1.bf16.msra.mxu0 %v3224
        %3248 = vmatprep.subr.bf16.mxu0 0
        %3249 = vmatpush1.bf16.msra.mxu0 %v3225
        %3250 = vmatprep.subr.bf16.mxu0 0
        %3251 = vmatpush1.bf16.msra.mxu0 0
        %3252 = vmatprep.subr.bf16.mxu0 0
        %3253 = vmatpush1.bf16.msra.mxu0 0
        %3254 = vmatprep.subr.bf16.mxu0 0
        %3255 = vmatpush1.bf16.msra.mxu0 0
        %3256 = vmatprep.subr.bf16.mxu0 0
        %3257 = vmatpush1.bf16.msra.mxu0 0
        %3258 = vmatprep.subr.bf16.mxu0 0
        %3259 = vmatpush1.bf16.msra.mxu0 0
        %3260 = vmatprep.subr.bf16.mxu0 0
        %3261 = vmatpush1.bf16.msra.mxu0 0
        %3262 = vmatprep.subr.bf16.mxu0 0
        %3263 = vmatpush1.bf16.msra.mxu0 0
        %3264 = vmatprep.subr.bf16.mxu0 0
        %3265 = vmatpush1.bf16.msra.mxu0 0
        %3266 = vmatprep.mubr.bf16.mxu0 0
        %3267 = vmatmul.mubr.bf16.gmra.mrb[0].mxu0 %v3121
        %v3268 = vpop.f32.mrb[0].mxu0
        %v3269 = vadd.f32 0.0, %v3268
        %v3270 = vpop.f32.mrb[0].mxu0
        %v3271 = vpop.f32.mrb[0].mxu0
        %v3272 = vadd.f32 0.0, %v3271
        %v3273 = vpop.f32.mrb[0].mxu0
        %3274 = vmatprep.mubr.bf16.mxu0 0
        %3275 = vmatmul.mubr.bf16.gmra.mrb[0].mxu0 %v3122
        %v3276 = vpop.f32.mrb[0].mxu0
        %v3277 = vadd.f32 0.0, %v3276
        %v3278 = vpop.f32.mrb[0].mxu0
        %v3279 = vpop.f32.mrb[0].mxu0
        %v3280 = vadd.f32 0.0, %v3279
        %v3281 = vpop.f32.mrb[0].mxu0
        %3282 = vmatprep.mubr.bf16.mxu0 0
        %3283 = vmatmul.mubr.bf16.gmra.mrb[0].mxu0 %v3123
        %v3284 = vpop.f32.mrb[0].mxu0
        %v3285 = vadd.f32 0.0, %v3284
        %v3286 = vpop.f32.mrb[0].mxu0
        %v3287 = vpop.f32.mrb[0].mxu0
        %v3288 = vadd.f32 0.0, %v3287
        %v3289 = vpop.f32.mrb[0].mxu0
        %3290 = vmatprep.mubr.bf16.mxu0 0
        %3291 = vmatmul.mubr.bf16.gmra.mrb[0].mxu0 %v3124
        %v3292 = vpop.f32.mrb[0].mxu0
        %v3293 = vadd.f32 0.0, %v3292
        %v3294 = vpop.f32.mrb[0].mxu0
        %v3295 = vpop.f32.mrb[0].mxu0
        %v3296 = vadd.f32 0.0, %v3295
        %v3297 = vpop.f32.mrb[0].mxu0
        %3298 = vmatprep.mubr.bf16.mxu0 0
        %3299 = vmatmul.mubr.bf16.gmra.mrb[0].mxu0 %v3125
        %v3300 = vpop.f32.mrb[0].mxu0
        %v3301 = vadd.f32 0.0, %v3300
        %v3302 = vpop.f32.mrb[0].mxu0
        %v3303 = vpop.f32.mrb[0].mxu0
        %v3304 = vadd.f32 0.0, %v3303
        %v3305 = vpop.f32.mrb[0].mxu0
        %3306 = vmatprep.mubr.bf16.mxu0 0
        %3307 = vmatmul.mubr.bf16.gmra.mrb[0].mxu0 %v3126
        %v3308 = vpop.f32.mrb[0].mxu0
        %v3309 = vadd.f32 0.0, %v3308
        %v3310 = vpop.f32.mrb[0].mxu0
        %v3311 = vpop.f32.mrb[0].mxu0
        %v3312 = vadd.f32 0.0, %v3311
        %v3313 = vpop.f32.mrb[0].mxu0
        %3314 = vmatprep.mubr.bf16.mxu0 0
        %3315 = vmatmul.mubr.bf16.gmra.mrb[0].mxu0 %v3127
        %v3316 = vpop.f32.mrb[0].mxu0
        %v3317 = vadd.f32 0.0, %v3316
        %v3318 = vpop.f32.mrb[0].mxu0
        %v3319 = vpop.f32.mrb[0].mxu0
        %v3320 = vadd.f32 0.0, %v3319
        %v3321 = vpop.f32.mrb[0].mxu0
        %3322 = vmatprep.mubr.bf16.mxu0 0
        %3323 = vmatmul.mubr.bf16.gmra.mrb[0].mxu0 %v3128
        %v3324 = vpop.f32.mrb[0].mxu0
        %v3325 = vadd.f32 0.0, %v3324
        %v3326 = vpop.f32.mrb[0].mxu0
        %v3327 = vpop.f32.mrb[0].mxu0
        %v3328 = vadd.f32 0.0, %v3327
        %v3329 = vpop.f32.mrb[0].mxu0
        %3330 = vmatprep.mubr.bf16.mxu0 0
        %3331 = vmatmul.mubr.bf16.gmra.mrb[0].mxu0 %v3129
        %v3332 = vpop.f32.mrb[0].mxu0
        %v3333 = vadd.f32 0.0, %v3332
        %v3334 = vpop.f32.mrb[0].mxu0
        %v3335 = vpop.f32.mrb[0].mxu0
        %v3336 = vadd.f32 0.0, %v3335
        %v3337 = vpop.f32.mrb[0].mxu0
        %3338 = vmatprep.mubr.bf16.mxu0 0
        %3339 = vmatmul.mubr.bf16.gmra.mrb[0].mxu0 %v3130
        %v3340 = vpop.f32.mrb[0].mxu0
        %v3341 = vadd.f32 0.0, %v3340
        %v3342 = vpop.f32.mrb[0].mxu0
        %v3343 = vpop.f32.mrb[0].mxu0
        %v3344 = vadd.f32 0.0, %v3343
        %v3345 = vpop.f32.mrb[0].mxu0
        %3346 = vmatprep.mubr.bf16.mxu0 0
        %3347 = vmatmul.mubr.bf16.gmra.mrb[0].mxu0 %v3131
        %v3348 = vpop.f32.mrb[0].mxu0
        %v3349 = vadd.f32 0.0, %v3348
        %v3350 = vpop.f32.mrb[0].mxu0
        %v3351 = vpop.f32.mrb[0].mxu0
        %v3352 = vadd.f32 0.0, %v3351
        %v3353 = vpop.f32.mrb[0].mxu0
        %3354 = vmatprep.mubr.bf16.mxu0 0
        %3355 = vmatmul.mubr.bf16.gmra.mrb[0].mxu0 %v3132
        %v3356 = vpop.f32.mrb[0].mxu0
        %v3357 = vadd.f32 0.0, %v3356
        %v3358 = vpop.f32.mrb[0].mxu0
        %v3359 = vpop.f32.mrb[0].mxu0
        %v3360 = vadd.f32 0.0, %v3359
        %v3361 = vpop.f32.mrb[0].mxu0
        %3362 = vmatprep.mubr.bf16.mxu0 0
        %3363 = vmatmul.mubr.bf16.gmra.mrb[0].mxu0 %v3133
        %v3364 = vpop.f32.mrb[0].mxu0
        %v3365 = vadd.f32 0.0, %v3364
        %v3366 = vpop.f32.mrb[0].mxu0
        %v3367 = vpop.f32.mrb[0].mxu0
        %v3368 = vadd.f32 0.0, %v3367
        %v3369 = vpop.f32.mrb[0].mxu0
        %3370 = vmatprep.mubr.bf16.mxu0 0
        %3371 = vmatmul.mubr.bf16.gmra.mrb[0].mxu0 %v3134
        %v3372 = vpop.f32.mrb[0].mxu0
        %v3373 = vadd.f32 0.0, %v3372
        %v3374 = vpop.f32.mrb[0].mxu0
        %v3375 = vpop.f32.mrb[0].mxu0
        %v3376 = vadd.f32 0.0, %v3375
        %v3377 = vpop.f32.mrb[0].mxu0
        %3378 = vmatprep.mubr.bf16.mxu0 0
        %3379 = vmatmul.mubr.bf16.gmra.mrb[0].mxu0 %v3135
        %v3380 = vpop.f32.mrb[0].mxu0
        %v3381 = vadd.f32 0.0, %v3380
        %v3382 = vpop.f32.mrb[0].mxu0
        %v3383 = vpop.f32.mrb[0].mxu0
        %v3384 = vadd.f32 0.0, %v3383
        %v3385 = vpop.f32.mrb[0].mxu0
        %3386 = vmatprep.mubr.bf16.mxu0 0
        %3387 = vmatmul.mubr.bf16.gmra.mrb[0].mxu0 %v3136
        %v3388 = vpop.f32.mrb[0].mxu0
        %v3389 = vadd.f32 0.0, %v3388
        %v3390 = vpop.f32.mrb[0].mxu0
        %v3391 = vpop.f32.mrb[0].mxu0
        %v3392 = vadd.f32 0.0, %v3391
        %v3393 = vpop.f32.mrb[0].mxu0
        %3394 = vdwg.mxu0
        %v3395 = vadd.f32 %v3137, %v3269
        %v3396 = vadd.f32 %v3138, %v3272
        %v3397 = vadd.f32 %v3139, %v3277
        %v3398 = vadd.f32 %v3140, %v3280
        %v3399 = vadd.f32 %v3141, %v3285
        %v3400 = vadd.f32 %v3142, %v3288
        %v3401 = vadd.f32 %v3143, %v3293
        %v3402 = vadd.f32 %v3144, %v3296
        %v3403 = vadd.f32 %v3145, %v3301
        %v3404 = vadd.f32 %v3146, %v3304
        %v3405 = vadd.f32 %v3147, %v3309
        %v3406 = vadd.f32 %v3148, %v3312
        %v3407 = vadd.f32 %v3149, %v3317
        %v3408 = vadd.f32 %v3150, %v3320
        %v3409 = vadd.f32 %v3151, %v3325
        %v3410 = vadd.f32 %v3152, %v3328
        %v3411 = vadd.f32 %v3153, %v3333
        %v3412 = vadd.f32 %v3154, %v3336
        %v3413 = vadd.f32 %v3155, %v3341
        %v3414 = vadd.f32 %v3156, %v3344
        %v3415 = vadd.f32 %v3157, %v3349
        %v3416 = vadd.f32 %v3158, %v3352
        %v3417 = vadd.f32 %v3159, %v3357
        %v3418 = vadd.f32 %v3160, %v3360
        %v3419 = vadd.f32 %v3161, %v3365
        %v3420 = vadd.f32 %v3162, %v3368
        %v3421 = vadd.f32 %v3163, %v3373
        %v3422 = vadd.f32 %v3164, %v3376
        %v3423 = vadd.f32 %v3165, %v3381
        %v3424 = vadd.f32 %v3166, %v3384
        %v3425 = vadd.f32 %v3167, %v3389
        %v3426 = vadd.f32 %v3168, %v3392
        %3427 = vst [vmem:[#allocation4] sm:$0xff] %v3395
        %3428 = vst [vmem:[#allocation4 + $0x8] sm:$0xff] %v3396
        %3429 = vst [vmem:[#allocation4 + $0x10] sm:$0xff] %v3397
        %3430 = vst [vmem:[#allocation4 + $0x18] sm:$0xff] %v3398
        %3431 = vst [vmem:[#allocation4 + $0x20] sm:$0xff] %v3399
        %3432 = vst [vmem:[#allocation4 + $0x28] sm:$0xff] %v3400
        %3433 = vst [vmem:[#allocation4 + $0x30] sm:$0xff] %v3401
        %3434 = vst [vmem:[#allocation4 + $0x38] sm:$0xff] %v3402
        %3435 = vst [vmem:[#allocation4 + $0x40] sm:$0xff] %v3403
        %3436 = vst [vmem:[#allocation4 + $0x48] sm:$0xff] %v3404
        %3437 = vst [vmem:[#allocation4 + $0x50] sm:$0xff] %v3405
        %3438 = vst [vmem:[#allocation4 + $0x58] sm:$0xff] %v3406
        %3439 = vst [vmem:[#allocation4 + $0x60] sm:$0xff] %v3407
        %3440 = vst [vmem:[#allocation4 + $0x68] sm:$0xff] %v3408
        %3441 = vst [vmem:[#allocation4 + $0x70] sm:$0xff] %v3409
        %3442 = vst [vmem:[#allocation4 + $0x78] sm:$0xff] %v3410
        %3443 = vst [vmem:[#allocation4 + $0x80] sm:$0xff] %v3411
        %3444 = vst [vmem:[#allocation4 + $0x88] sm:$0xff] %v3412
        %3445 = vst [vmem:[#allocation4 + $0x90] sm:$0xff] %v3413
        %3446 = vst [vmem:[#allocation4 + $0x98] sm:$0xff] %v3414
        %3447 = vst [vmem:[#allocation4 + $0xa0] sm:$0xff] %v3415
        %3448 = vst [vmem:[#allocation4 + $0xa8] sm:$0xff] %v3416
        %3449 = vst [vmem:[#allocation4 + $0xb0] sm:$0xff] %v3417
        %3450 = vst [vmem:[#allocation4 + $0xb8] sm:$0xff] %v3418
        %3451 = vst [vmem:[#allocation4 + $0xc0] sm:$0xff] %v3419
        %3452 = vst [vmem:[#allocation4 + $0xc8] sm:$0xff] %v3420
        %3453 = vst [vmem:[#allocation4 + $0xd0] sm:$0xff] %v3421
        %3454 = vst [vmem:[#allocation4 + $0xd8] sm:$0xff] %v3422
        %3455 = vst [vmem:[#allocation4 + $0xe0] sm:$0xff] %v3423
        %3456 = vst [vmem:[#allocation4 + $0xe8] sm:$0xff] %v3424
        %3457 = vst [vmem:[#allocation4 + $0xf0] sm:$0xff] %v3425
        %3458 = vst [vmem:[#allocation4 + $0xf8] sm:$0xff] %v3426
        %v3459 = vld [vmem:[%s2718 + $0x2] sm:$0xff]
        %v3460 = vld [vmem:[%s2718 + $0xa] sm:$0xff]
        %v3461 = vld [vmem:[%s2718 + $0x1a] sm:$0xff]
        %v3462 = vld [vmem:[%s2718 + $0x22] sm:$0xff]
        %v3463 = vld [vmem:[%s2718 + $0x32] sm:$0xff]
        %v3464 = vld [vmem:[%s2718 + $0x3a] sm:$0xff]
        %v3465 = vld [vmem:[%s2718 + $0x4a] sm:$0xff]
        %v3466 = vld [vmem:[%s2718 + $0x52] sm:$0xff]
        %v3467 = vld [vmem:[%s2718 + $0x62] sm:$0xff]
        %v3468 = vld [vmem:[%s2718 + $0x6a] sm:$0xff]
        %v3469 = vld [vmem:[%s2718 + $0x7a] sm:$0xff]
        %v3470 = vld [vmem:[%s2718 + $0x82] sm:$0xff]
        %v3471 = vld [vmem:[%s2718 + $0x92] sm:$0xff]
        %v3472 = vld [vmem:[%s2718 + $0x9a] sm:$0xff]
        %v3473 = vld [vmem:[%s2718 + $0xaa] sm:$0xff]
        %v3474 = vld [vmem:[%s2718 + $0xb2] sm:$0xff]
        %v3475 = vld [vmem:[%s2718 + $0xc2] sm:$0xff]
        %v3476 = vld [vmem:[%s2718 + $0xca] sm:$0xff]
        %v3477 = vld [vmem:[%s2718 + $0xda] sm:$0xff]
        %v3478 = vld [vmem:[%s2718 + $0xe2] sm:$0xff]
        %v3479 = vld [vmem:[%s2718 + $0xf2] sm:$0xff]
        %v3480 = vld [vmem:[%s2718 + $0xfa] sm:$0xff]
        %v3481 = vld [vmem:[%s2718 + $0x10a] sm:$0xff]
        %v3482 = vld [vmem:[%s2718 + $0x112] sm:$0xff]
        %v3483 = vld [vmem:[%s2718 + $0x122] sm:$0xff]
        %v3484 = vld [vmem:[%s2718 + $0x12a] sm:$0xff]
        %v3485 = vld [vmem:[%s2718 + $0x13a] sm:$0xff]
        %v3486 = vld [vmem:[%s2718 + $0x142] sm:$0xff]
        %v3487 = vld [vmem:[%s2718 + $0x152] sm:$0xff]
        %v3488 = vld [vmem:[%s2718 + $0x15a] sm:$0xff]
        %v3489 = vld [vmem:[%s2718 + $0x16a] sm:$0xff]
        %v3490 = vld [vmem:[%s2718 + $0x172] sm:$0xff]
        %v3491 = vpack.c.bf16 %v3460, %v3459
        %v3492 = vpack.c.bf16 %v3462, %v3461
        %v3493 = vpack.c.bf16 %v3464, %v3463
        %v3494 = vpack.c.bf16 %v3466, %v3465
        %v3495 = vpack.c.bf16 %v3468, %v3467
        %v3496 = vpack.c.bf16 %v3470, %v3469
        %v3497 = vpack.c.bf16 %v3472, %v3471
        %v3498 = vpack.c.bf16 %v3474, %v3473
        %v3499 = vpack.c.bf16 %v3476, %v3475
        %v3500 = vpack.c.bf16 %v3478, %v3477
        %v3501 = vpack.c.bf16 %v3480, %v3479
        %v3502 = vpack.c.bf16 %v3482, %v3481
        %v3503 = vpack.c.bf16 %v3484, %v3483
        %v3504 = vpack.c.bf16 %v3486, %v3485
        %v3505 = vpack.c.bf16 %v3488, %v3487
        %v3506 = vpack.c.bf16 %v3490, %v3489
        %v3507 = vld [vmem:[#allocation4] sm:$0xff]
        %v3508 = vld [vmem:[#allocation4 + $0x8] sm:$0xff]
        %v3509 = vld [vmem:[#allocation4 + $0x10] sm:$0xff]
        %v3510 = vld [vmem:[#allocation4 + $0x18] sm:$0xff]
        %v3511 = vld [vmem:[#allocation4 + $0x20] sm:$0xff]
        %v3512 = vld [vmem:[#allocation4 + $0x28] sm:$0xff]
        %v3513 = vld [vmem:[#allocation4 + $0x30] sm:$0xff]
        %v3514 = vld [vmem:[#allocation4 + $0x38] sm:$0xff]
        %v3515 = vld [vmem:[#allocation4 + $0x40] sm:$0xff]
        %v3516 = vld [vmem:[#allocation4 + $0x48] sm:$0xff]
        %v3517 = vld [vmem:[#allocation4 + $0x50] sm:$0xff]
        %v3518 = vld [vmem:[#allocation4 + $0x58] sm:$0xff]
        %v3519 = vld [vmem:[#allocation4 + $0x60] sm:$0xff]
        %v3520 = vld [vmem:[#allocation4 + $0x68] sm:$0xff]
        %v3521 = vld [vmem:[#allocation4 + $0x70] sm:$0xff]
        %v3522 = vld [vmem:[#allocation4 + $0x78] sm:$0xff]
        %v3523 = vld [vmem:[#allocation4 + $0x80] sm:$0xff]
        %v3524 = vld [vmem:[#allocation4 + $0x88] sm:$0xff]
        %v3525 = vld [vmem:[#allocation4 + $0x90] sm:$0xff]
        %v3526 = vld [vmem:[#allocation4 + $0x98] sm:$0xff]
        %v3527 = vld [vmem:[#allocation4 + $0xa0] sm:$0xff]
        %v3528 = vld [vmem:[#allocation4 + $0xa8] sm:$0xff]
        %v3529 = vld [vmem:[#allocation4 + $0xb0] sm:$0xff]
        %v3530 = vld [vmem:[#allocation4 + $0xb8] sm:$0xff]
        %v3531 = vld [vmem:[#allocation4 + $0xc0] sm:$0xff]
        %v3532 = vld [vmem:[#allocation4 + $0xc8] sm:$0xff]
        %v3533 = vld [vmem:[#allocation4 + $0xd0] sm:$0xff]
        %v3534 = vld [vmem:[#allocation4 + $0xd8] sm:$0xff]
        %v3535 = vld [vmem:[#allocation4 + $0xe0] sm:$0xff]
        %v3536 = vld [vmem:[#allocation4 + $0xe8] sm:$0xff]
        %v3537 = vld [vmem:[#allocation4 + $0xf0] sm:$0xff]
        %v3538 = vld [vmem:[#allocation4 + $0xf8] sm:$0xff]
        %s3539 = scalar_lea.vmem %s1, 512
        %v3540 = vld [vmem:[%s3539] sm:$0xf]
        %v3541 = vld [vmem:[%s3539 + $0x4] sm:$0xf]
        %v3542 = vld [vmem:[%s3539 + $0x8] sm:$0xf]
        %v3543 = vld [vmem:[%s3539 + $0xc] sm:$0xf]
        %v3544 = vld [vmem:[%s3539 + $0x10] sm:$0xf]
        %v3545 = vld [vmem:[%s3539 + $0x14] sm:$0xf]
        %v3546 = vld [vmem:[%s3539 + $0x18] sm:$0xf]
        %v3547 = vld [vmem:[%s3539 + $0x1c] sm:$0xf]
        %v3548 = vld [vmem:[%s3539 + $0x20] sm:$0xf]
        %v3549 = vld [vmem:[%s3539 + $0x24] sm:$0xf]
        %v3550 = vld [vmem:[%s3539 + $0x28] sm:$0xf]
        %v3551 = vld [vmem:[%s3539 + $0x2c] sm:$0xf]
        %v3552 = vld [vmem:[%s3539 + $0x30] sm:$0xf]
        %v3553 = vld [vmem:[%s3539 + $0x34] sm:$0xf]
        %v3554 = vld [vmem:[%s3539 + $0x38] sm:$0xf]
        %v3555 = vld [vmem:[%s3539 + $0x3c] sm:$0xf]
        %v3572 = vunpack.c.l.b16 %v3540
        %v3573 = vunpack.c.l.b16 %v3541
        %v3574 = vunpack.c.l.b16 %v3542
        %v3575 = vunpack.c.l.b16 %v3543
        %v3576 = vunpack.c.l.b16 %v3544
        %v3577 = vunpack.c.l.b16 %v3545
        %v3578 = vunpack.c.l.b16 %v3546
        %v3579 = vunpack.c.l.b16 %v3547
        %v3580 = vunpack.c.l.b16 %v3548
        %v3581 = vunpack.c.l.b16 %v3549
        %v3582 = vunpack.c.l.b16 %v3550
        %v3583 = vunpack.c.l.b16 %v3551
        %v3584 = vunpack.c.l.b16 %v3552
        %v3585 = vunpack.c.l.b16 %v3553
        %v3586 = vunpack.c.l.b16 %v3554
        %v3587 = vunpack.c.l.b16 %v3555
        %v3588 = vpack.c.b16 %v3573, %v3572
        %v3589 = vpack.c.b16 %v3575, %v3574
        %v3590 = vpack.c.b16 %v3577, %v3576
        %v3591 = vpack.c.b16 %v3579, %v3578
        %v3592 = vpack.c.b16 %v3581, %v3580
        %v3593 = vpack.c.b16 %v3583, %v3582
        %v3594 = vpack.c.b16 %v3585, %v3584
        %v3595 = vpack.c.b16 %v3587, %v3586
        %3604 = vmatprep.subr.bf16.mxu0 0
        %3605 = vmatpush1.bf16.msra.mxu0 %v3588
        %3606 = vmatprep.subr.bf16.mxu0 0
        %3607 = vmatpush1.bf16.msra.mxu0 %v3589
        %3608 = vmatprep.subr.bf16.mxu0 0
        %3609 = vmatpush1.bf16.msra.mxu0 %v3590
        %3610 = vmatprep.subr.bf16.mxu0 0
        %3611 = vmatpush1.bf16.msra.mxu0 %v3591
        %3612 = vmatprep.subr.bf16.mxu0 0
        %3613 = vmatpush1.bf16.msra.mxu0 %v3592
        %3614 = vmatprep.subr.bf16.mxu0 0
        %3615 = vmatpush1.bf16.msra.mxu0 %v3593
        %3616 = vmatprep.subr.bf16.mxu0 0
        %3617 = vmatpush1.bf16.msra.mxu0 %v3594
        %3618 = vmatprep.subr.bf16.mxu0 0
        %3619 = vmatpush1.bf16.msra.mxu0 %v3595
        %3620 = vmatprep.subr.bf16.mxu0 0
        %3621 = vmatpush1.bf16.msra.mxu0 0
        %3622 = vmatprep.subr.bf16.mxu0 0
        %3623 = vmatpush1.bf16.msra.mxu0 0
        %3624 = vmatprep.subr.bf16.mxu0 0
        %3625 = vmatpush1.bf16.msra.mxu0 0
        %3626 = vmatprep.subr.bf16.mxu0 0
        %3627 = vmatpush1.bf16.msra.mxu0 0
        %3628 = vmatprep.subr.bf16.mxu0 0
        %3629 = vmatpush1.bf16.msra.mxu0 0
        %3630 = vmatprep.subr.bf16.mxu0 0
        %3631 = vmatpush1.bf16.msra.mxu0 0
        %3632 = vmatprep.subr.bf16.mxu0 0
        %3633 = vmatpush1.bf16.msra.mxu0 0
        %3634 = vmatprep.subr.bf16.mxu0 0
        %3635 = vmatpush1.bf16.msra.mxu0 0
        %3636 = vmatprep.mubr.bf16.mxu0 0
        %3637 = vmatmul.mubr.bf16.gmra.mrb[0].mxu0 %v3491
        %v3638 = vpop.f32.mrb[0].mxu0
        %v3639 = vadd.f32 0.0, %v3638
        %v3640 = vpop.f32.mrb[0].mxu0
        %v3641 = vpop.f32.mrb[0].mxu0
        %v3642 = vadd.f32 0.0, %v3641
        %v3643 = vpop.f32.mrb[0].mxu0
        %3644 = vmatprep.mubr.bf16.mxu0 0
        %3645 = vmatmul.mubr.bf16.gmra.mrb[0].mxu0 %v3492
        %v3646 = vpop.f32.mrb[0].mxu0
        %v3647 = vadd.f32 0.0, %v3646
        %v3648 = vpop.f32.mrb[0].mxu0
        %v3649 = vpop.f32.mrb[0].mxu0
        %v3650 = vadd.f32 0.0, %v3649
        %v3651 = vpop.f32.mrb[0].mxu0
        %3652 = vmatprep.mubr.bf16.mxu0 0
        %3653 = vmatmul.mubr.bf16.gmra.mrb[0].mxu0 %v3493
        %v3654 = vpop.f32.mrb[0].mxu0
        %v3655 = vadd.f32 0.0, %v3654
        %v3656 = vpop.f32.mrb[0].mxu0
        %v3657 = vpop.f32.mrb[0].mxu0
        %v3658 = vadd.f32 0.0, %v3657
        %v3659 = vpop.f32.mrb[0].mxu0
        %3660 = vmatprep.mubr.bf16.mxu0 0
        %3661 = vmatmul.mubr.bf16.gmra.mrb[0].mxu0 %v3494
        %v3662 = vpop.f32.mrb[0].mxu0
        %v3663 = vadd.f32 0.0, %v3662
        %v3664 = vpop.f32.mrb[0].mxu0
        %v3665 = vpop.f32.mrb[0].mxu0
        %v3666 = vadd.f32 0.0, %v3665
        %v3667 = vpop.f32.mrb[0].mxu0
        %3668 = vmatprep.mubr.bf16.mxu0 0
        %3669 = vmatmul.mubr.bf16.gmra.mrb[0].mxu0 %v3495
        %v3670 = vpop.f32.mrb[0].mxu0
        %v3671 = vadd.f32 0.0, %v3670
        %v3672 = vpop.f32.mrb[0].mxu0
        %v3673 = vpop.f32.mrb[0].mxu0
        %v3674 = vadd.f32 0.0, %v3673
        %v3675 = vpop.f32.mrb[0].mxu0
        %3676 = vmatprep.mubr.bf16.mxu0 0
        %3677 = vmatmul.mubr.bf16.gmra.mrb[0].mxu0 %v3496
        %v3678 = vpop.f32.mrb[0].mxu0
        %v3679 = vadd.f32 0.0, %v3678
        %v3680 = vpop.f32.mrb[0].mxu0
        %v3681 = vpop.f32.mrb[0].mxu0
        %v3682 = vadd.f32 0.0, %v3681
        %v3683 = vpop.f32.mrb[0].mxu0
        %3684 = vmatprep.mubr.bf16.mxu0 0
        %3685 = vmatmul.mubr.bf16.gmra.mrb[0].mxu0 %v3497
        %v3686 = vpop.f32.mrb[0].mxu0
        %v3687 = vadd.f32 0.0, %v3686
        %v3688 = vpop.f32.mrb[0].mxu0
        %v3689 = vpop.f32.mrb[0].mxu0
        %v3690 = vadd.f32 0.0, %v3689
        %v3691 = vpop.f32.mrb[0].mxu0
        %3692 = vmatprep.mubr.bf16.mxu0 0
        %3693 = vmatmul.mubr.bf16.gmra.mrb[0].mxu0 %v3498
        %v3694 = vpop.f32.mrb[0].mxu0
        %v3695 = vadd.f32 0.0, %v3694
        %v3696 = vpop.f32.mrb[0].mxu0
        %v3697 = vpop.f32.mrb[0].mxu0
        %v3698 = vadd.f32 0.0, %v3697
        %v3699 = vpop.f32.mrb[0].mxu0
        %3700 = vmatprep.mubr.bf16.mxu0 0
        %3701 = vmatmul.mubr.bf16.gmra.mrb[0].mxu0 %v3499
        %v3702 = vpop.f32.mrb[0].mxu0
        %v3703 = vadd.f32 0.0, %v3702
        %v3704 = vpop.f32.mrb[0].mxu0
        %v3705 = vpop.f32.mrb[0].mxu0
        %v3706 = vadd.f32 0.0, %v3705
        %v3707 = vpop.f32.mrb[0].mxu0
        %3708 = vmatprep.mubr.bf16.mxu0 0
        %3709 = vmatmul.mubr.bf16.gmra.mrb[0].mxu0 %v3500
        %v3710 = vpop.f32.mrb[0].mxu0
        %v3711 = vadd.f32 0.0, %v3710
        %v3712 = vpop.f32.mrb[0].mxu0
        %v3713 = vpop.f32.mrb[0].mxu0
        %v3714 = vadd.f32 0.0, %v3713
        %v3715 = vpop.f32.mrb[0].mxu0
        %3716 = vmatprep.mubr.bf16.mxu0 0
        %3717 = vmatmul.mubr.bf16.gmra.mrb[0].mxu0 %v3501
        %v3718 = vpop.f32.mrb[0].mxu0
        %v3719 = vadd.f32 0.0, %v3718
        %v3720 = vpop.f32.mrb[0].mxu0
        %v3721 = vpop.f32.mrb[0].mxu0
        %v3722 = vadd.f32 0.0, %v3721
        %v3723 = vpop.f32.mrb[0].mxu0
        %3724 = vmatprep.mubr.bf16.mxu0 0
        %3725 = vmatmul.mubr.bf16.gmra.mrb[0].mxu0 %v3502
        %v3726 = vpop.f32.mrb[0].mxu0
        %v3727 = vadd.f32 0.0, %v3726
        %v3728 = vpop.f32.mrb[0].mxu0
        %v3729 = vpop.f32.mrb[0].mxu0
        %v3730 = vadd.f32 0.0, %v3729
        %v3731 = vpop.f32.mrb[0].mxu0
        %3732 = vmatprep.mubr.bf16.mxu0 0
        %3733 = vmatmul.mubr.bf16.gmra.mrb[0].mxu0 %v3503
        %v3734 = vpop.f32.mrb[0].mxu0
        %v3735 = vadd.f32 0.0, %v3734
        %v3736 = vpop.f32.mrb[0].mxu0
        %v3737 = vpop.f32.mrb[0].mxu0
        %v3738 = vadd.f32 0.0, %v3737
        %v3739 = vpop.f32.mrb[0].mxu0
        %3740 = vmatprep.mubr.bf16.mxu0 0
        %3741 = vmatmul.mubr.bf16.gmra.mrb[0].mxu0 %v3504
        %v3742 = vpop.f32.mrb[0].mxu0
        %v3743 = vadd.f32 0.0, %v3742
        %v3744 = vpop.f32.mrb[0].mxu0
        %v3745 = vpop.f32.mrb[0].mxu0
        %v3746 = vadd.f32 0.0, %v3745
        %v3747 = vpop.f32.mrb[0].mxu0
        %3748 = vmatprep.mubr.bf16.mxu0 0
        %3749 = vmatmul.mubr.bf16.gmra.mrb[0].mxu0 %v3505
        %v3750 = vpop.f32.mrb[0].mxu0
        %v3751 = vadd.f32 0.0, %v3750
        %v3752 = vpop.f32.mrb[0].mxu0
        %v3753 = vpop.f32.mrb[0].mxu0
        %v3754 = vadd.f32 0.0, %v3753
        %v3755 = vpop.f32.mrb[0].mxu0
        %3756 = vmatprep.mubr.bf16.mxu0 0
        %3757 = vmatmul.mubr.bf16.gmra.mrb[0].mxu0 %v3506
        %v3758 = vpop.f32.mrb[0].mxu0
        %v3759 = vadd.f32 0.0, %v3758
        %v3760 = vpop.f32.mrb[0].mxu0
        %v3761 = vpop.f32.mrb[0].mxu0
        %v3762 = vadd.f32 0.0, %v3761
        %v3763 = vpop.f32.mrb[0].mxu0
        %3764 = vdwg.mxu0
        %v3765 = vadd.f32 %v3507, %v3639
        %v3766 = vadd.f32 %v3508, %v3642
        %v3767 = vadd.f32 %v3509, %v3647
        %v3768 = vadd.f32 %v3510, %v3650
        %v3769 = vadd.f32 %v3511, %v3655
        %v3770 = vadd.f32 %v3512, %v3658
        %v3771 = vadd.f32 %v3513, %v3663
        %v3772 = vadd.f32 %v3514, %v3666
        %v3773 = vadd.f32 %v3515, %v3671
        %v3774 = vadd.f32 %v3516, %v3674
        %v3775 = vadd.f32 %v3517, %v3679
        %v3776 = vadd.f32 %v3518, %v3682
        %v3777 = vadd.f32 %v3519, %v3687
        %v3778 = vadd.f32 %v3520, %v3690
        %v3779 = vadd.f32 %v3521, %v3695
        %v3780 = vadd.f32 %v3522, %v3698
        %v3781 = vadd.f32 %v3523, %v3703
        %v3782 = vadd.f32 %v3524, %v3706
        %v3783 = vadd.f32 %v3525, %v3711
        %v3784 = vadd.f32 %v3526, %v3714
        %v3785 = vadd.f32 %v3527, %v3719
        %v3786 = vadd.f32 %v3528, %v3722
        %v3787 = vadd.f32 %v3529, %v3727
        %v3788 = vadd.f32 %v3530, %v3730
        %v3789 = vadd.f32 %v3531, %v3735
        %v3790 = vadd.f32 %v3532, %v3738
        %v3791 = vadd.f32 %v3533, %v3743
        %v3792 = vadd.f32 %v3534, %v3746
        %v3793 = vadd.f32 %v3535, %v3751
        %v3794 = vadd.f32 %v3536, %v3754
        %v3795 = vadd.f32 %v3537, %v3759
        %v3796 = vadd.f32 %v3538, %v3762
        %3797 = vst [vmem:[#allocation4] sm:$0xff] %v3765
        %3798 = vst [vmem:[#allocation4 + $0x8] sm:$0xff] %v3766
        %3799 = vst [vmem:[#allocation4 + $0x10] sm:$0xff] %v3767
        %3800 = vst [vmem:[#allocation4 + $0x18] sm:$0xff] %v3768
        %3801 = vst [vmem:[#allocation4 + $0x20] sm:$0xff] %v3769
        %3802 = vst [vmem:[#allocation4 + $0x28] sm:$0xff] %v3770
        %3803 = vst [vmem:[#allocation4 + $0x30] sm:$0xff] %v3771
        %3804 = vst [vmem:[#allocation4 + $0x38] sm:$0xff] %v3772
        %3805 = vst [vmem:[#allocation4 + $0x40] sm:$0xff] %v3773
        %3806 = vst [vmem:[#allocation4 + $0x48] sm:$0xff] %v3774
        %3807 = vst [vmem:[#allocation4 + $0x50] sm:$0xff] %v3775
        %3808 = vst [vmem:[#allocation4 + $0x58] sm:$0xff] %v3776
        %3809 = vst [vmem:[#allocation4 + $0x60] sm:$0xff] %v3777
        %3810 = vst [vmem:[#allocation4 + $0x68] sm:$0xff] %v3778
        %3811 = vst [vmem:[#allocation4 + $0x70] sm:$0xff] %v3779
        %3812 = vst [vmem:[#allocation4 + $0x78] sm:$0xff] %v3780
        %3813 = vst [vmem:[#allocation4 + $0x80] sm:$0xff] %v3781
        %3814 = vst [vmem:[#allocation4 + $0x88] sm:$0xff] %v3782
        %3815 = vst [vmem:[#allocation4 + $0x90] sm:$0xff] %v3783
        %3816 = vst [vmem:[#allocation4 + $0x98] sm:$0xff] %v3784
        %3817 = vst [vmem:[#allocation4 + $0xa0] sm:$0xff] %v3785
        %3818 = vst [vmem:[#allocation4 + $0xa8] sm:$0xff] %v3786
        %3819 = vst [vmem:[#allocation4 + $0xb0] sm:$0xff] %v3787
        %3820 = vst [vmem:[#allocation4 + $0xb8] sm:$0xff] %v3788
        %3821 = vst [vmem:[#allocation4 + $0xc0] sm:$0xff] %v3789
        %3822 = vst [vmem:[#allocation4 + $0xc8] sm:$0xff] %v3790
        %3823 = vst [vmem:[#allocation4 + $0xd0] sm:$0xff] %v3791
        %3824 = vst [vmem:[#allocation4 + $0xd8] sm:$0xff] %v3792
        %3825 = vst [vmem:[#allocation4 + $0xe0] sm:$0xff] %v3793
        %3826 = vst [vmem:[#allocation4 + $0xe8] sm:$0xff] %v3794
        %3827 = vst [vmem:[#allocation4 + $0xf0] sm:$0xff] %v3795
        %3828 = vst [vmem:[#allocation4 + $0xf8] sm:$0xff] %v3796
        %v3829 = vld [vmem:[#allocation4] sm:$0xff]
        %v3830 = vld [vmem:[#allocation4 + $0x8] sm:$0xff]
        %v3831 = vld [vmem:[#allocation4 + $0x10] sm:$0xff]
        %v3832 = vld [vmem:[#allocation4 + $0x18] sm:$0xff]
        %v3833 = vld [vmem:[#allocation4 + $0x20] sm:$0xff]
        %v3834 = vld [vmem:[#allocation4 + $0x28] sm:$0xff]
        %v3835 = vld [vmem:[#allocation4 + $0x30] sm:$0xff]
        %v3836 = vld [vmem:[#allocation4 + $0x38] sm:$0xff]
        %v3837 = vld [vmem:[#allocation4 + $0x40] sm:$0xff]
        %v3838 = vld [vmem:[#allocation4 + $0x48] sm:$0xff]
        %v3839 = vld [vmem:[#allocation4 + $0x50] sm:$0xff]
        %v3840 = vld [vmem:[#allocation4 + $0x58] sm:$0xff]
        %v3841 = vld [vmem:[#allocation4 + $0x60] sm:$0xff]
        %v3842 = vld [vmem:[#allocation4 + $0x68] sm:$0xff]
        %v3843 = vld [vmem:[#allocation4 + $0x70] sm:$0xff]
        %v3844 = vld [vmem:[#allocation4 + $0x78] sm:$0xff]
        %v3845 = vld [vmem:[#allocation4 + $0x80] sm:$0xff]
        %v3846 = vld [vmem:[#allocation4 + $0x88] sm:$0xff]
        %v3847 = vld [vmem:[#allocation4 + $0x90] sm:$0xff]
        %v3848 = vld [vmem:[#allocation4 + $0x98] sm:$0xff]
        %v3849 = vld [vmem:[#allocation4 + $0xa0] sm:$0xff]
        %v3850 = vld [vmem:[#allocation4 + $0xa8] sm:$0xff]
        %v3851 = vld [vmem:[#allocation4 + $0xb0] sm:$0xff]
        %v3852 = vld [vmem:[#allocation4 + $0xb8] sm:$0xff]
        %v3853 = vld [vmem:[#allocation4 + $0xc0] sm:$0xff]
        %v3854 = vld [vmem:[#allocation4 + $0xc8] sm:$0xff]
        %v3855 = vld [vmem:[#allocation4 + $0xd0] sm:$0xff]
        %v3856 = vld [vmem:[#allocation4 + $0xd8] sm:$0xff]
        %v3857 = vld [vmem:[#allocation4 + $0xe0] sm:$0xff]
        %v3858 = vld [vmem:[#allocation4 + $0xe8] sm:$0xff]
        %v3859 = vld [vmem:[#allocation4 + $0xf0] sm:$0xff]
        %v3860 = vld [vmem:[#allocation4 + $0xf8] sm:$0xff]
        %v3861 = vld [vmem:[%s3] sm:$0x1]
        %v3863 = vlaneseq
        %v3864 = vshrl.u32 %v3863, 7
        %v3865 = vsub.s32 0, %v3864
        %v3866 = vrot.slane %v3861, %v3865
        %v3868 = vmul.f32 %v3829, %v3866
        %v3869 = vmul.f32 %v3830, %v3866
        %v3870 = vmul.f32 %v3831, %v3866
        %v3871 = vmul.f32 %v3832, %v3866
        %v3872 = vmul.f32 %v3833, %v3866
        %v3873 = vmul.f32 %v3834, %v3866
        %v3874 = vmul.f32 %v3835, %v3866
        %v3875 = vmul.f32 %v3836, %v3866
        %v3876 = vmul.f32 %v3837, %v3866
        %v3877 = vmul.f32 %v3838, %v3866
        %v3878 = vmul.f32 %v3839, %v3866
        %v3879 = vmul.f32 %v3840, %v3866
        %v3880 = vmul.f32 %v3841, %v3866
        %v3881 = vmul.f32 %v3842, %v3866
        %v3882 = vmul.f32 %v3843, %v3866
        %v3883 = vmul.f32 %v3844, %v3866
        %v3884 = vmul.f32 %v3845, %v3866
        %v3885 = vmul.f32 %v3846, %v3866
        %v3886 = vmul.f32 %v3847, %v3866
        %v3887 = vmul.f32 %v3848, %v3866
        %v3888 = vmul.f32 %v3849, %v3866
        %v3889 = vmul.f32 %v3850, %v3866
        %v3890 = vmul.f32 %v3851, %v3866
        %v3891 = vmul.f32 %v3852, %v3866
        %v3892 = vmul.f32 %v3853, %v3866
        %v3893 = vmul.f32 %v3854, %v3866
        %v3894 = vmul.f32 %v3855, %v3866
        %v3895 = vmul.f32 %v3856, %v3866
        %v3896 = vmul.f32 %v3857, %v3866
        %v3897 = vmul.f32 %v3858, %v3866
        %v3898 = vmul.f32 %v3859, %v3866
        %v3899 = vmul.f32 %v3860, %v3866
        %v3900 = vld [vmem:[%s4] sm:$0x1]
        %v3902 = vlaneseq
        %v3903 = vshrl.u32 %v3902, 7
        %v3904 = vsub.s32 0, %v3903
        %v3905 = vrot.slane %v3900, %v3904
        %v3907 = vadd.f32 %v3868, %v3905
        %v3908 = vadd.f32 %v3869, %v3905
        %v3909 = vadd.f32 %v3870, %v3905
        %v3910 = vadd.f32 %v3871, %v3905
        %v3911 = vadd.f32 %v3872, %v3905
        %v3912 = vadd.f32 %v3873, %v3905
        %v3913 = vadd.f32 %v3874, %v3905
        %v3914 = vadd.f32 %v3875, %v3905
        %v3915 = vadd.f32 %v3876, %v3905
        %v3916 = vadd.f32 %v3877, %v3905
        %v3917 = vadd.f32 %v3878, %v3905
        %v3918 = vadd.f32 %v3879, %v3905
        %v3919 = vadd.f32 %v3880, %v3905
        %v3920 = vadd.f32 %v3881, %v3905
        %v3921 = vadd.f32 %v3882, %v3905
        %v3922 = vadd.f32 %v3883, %v3905
        %v3923 = vadd.f32 %v3884, %v3905
        %v3924 = vadd.f32 %v3885, %v3905
        %v3925 = vadd.f32 %v3886, %v3905
        %v3926 = vadd.f32 %v3887, %v3905
        %v3927 = vadd.f32 %v3888, %v3905
        %v3928 = vadd.f32 %v3889, %v3905
        %v3929 = vadd.f32 %v3890, %v3905
        %v3930 = vadd.f32 %v3891, %v3905
        %v3931 = vadd.f32 %v3892, %v3905
        %v3932 = vadd.f32 %v3893, %v3905
        %v3933 = vadd.f32 %v3894, %v3905
        %v3934 = vadd.f32 %v3895, %v3905
        %v3935 = vadd.f32 %v3896, %v3905
        %v3936 = vadd.f32 %v3897, %v3905
        %v3937 = vadd.f32 %v3898, %v3905
        %v3938 = vadd.f32 %v3899, %v3905
        %v3939 = vmax.f32 %v3907, 0.0
        %v3940 = vmax.f32 %v3908, 0.0
        %v3941 = vmax.f32 %v3909, 0.0
        %v3942 = vmax.f32 %v3910, 0.0
        %v3943 = vmax.f32 %v3911, 0.0
        %v3944 = vmax.f32 %v3912, 0.0
        %v3945 = vmax.f32 %v3913, 0.0
        %v3946 = vmax.f32 %v3914, 0.0
        %v3947 = vmax.f32 %v3915, 0.0
        %v3948 = vmax.f32 %v3916, 0.0
        %v3949 = vmax.f32 %v3917, 0.0
        %v3950 = vmax.f32 %v3918, 0.0
        %v3951 = vmax.f32 %v3919, 0.0
        %v3952 = vmax.f32 %v3920, 0.0
        %v3953 = vmax.f32 %v3921, 0.0
        %v3954 = vmax.f32 %v3922, 0.0
        %v3955 = vmax.f32 %v3923, 0.0
        %v3956 = vmax.f32 %v3924, 0.0
        %v3957 = vmax.f32 %v3925, 0.0
        %v3958 = vmax.f32 %v3926, 0.0
        %v3959 = vmax.f32 %v3927, 0.0
        %v3960 = vmax.f32 %v3928, 0.0
        %v3961 = vmax.f32 %v3929, 0.0
        %v3962 = vmax.f32 %v3930, 0.0
        %v3963 = vmax.f32 %v3931, 0.0
        %v3964 = vmax.f32 %v3932, 0.0
        %v3965 = vmax.f32 %v3933, 0.0
        %v3966 = vmax.f32 %v3934, 0.0
        %v3967 = vmax.f32 %v3935, 0.0
        %v3968 = vmax.f32 %v3936, 0.0
        %v3969 = vmax.f32 %v3937, 0.0
        %v3970 = vmax.f32 %v3938, 0.0
        %v3971 = vpack.c.bf16 %v3940, %v3939
        %v3972 = vpack.c.bf16 %v3942, %v3941
        %v3973 = vpack.c.bf16 %v3944, %v3943
        %v3974 = vpack.c.bf16 %v3946, %v3945
        %v3975 = vpack.c.bf16 %v3948, %v3947
        %v3976 = vpack.c.bf16 %v3950, %v3949
        %v3977 = vpack.c.bf16 %v3952, %v3951
        %v3978 = vpack.c.bf16 %v3954, %v3953
        %v3979 = vpack.c.bf16 %v3956, %v3955
        %v3980 = vpack.c.bf16 %v3958, %v3957
        %v3981 = vpack.c.bf16 %v3960, %v3959
        %v3982 = vpack.c.bf16 %v3962, %v3961
        %v3983 = vpack.c.bf16 %v3964, %v3963
        %v3984 = vpack.c.bf16 %v3966, %v3965
        %v3985 = vpack.c.bf16 %v3968, %v3967
        %v3986 = vpack.c.bf16 %v3970, %v3969
        %v4003 = vunpack.c.l.b16 %v3971
        %v4004 = vunpack.c.h.b16 %v3971
        %v4005 = vunpack.c.l.b16 %v3972
        %v4006 = vunpack.c.h.b16 %v3972
        %v4007 = vunpack.c.l.b16 %v3973
        %v4008 = vunpack.c.h.b16 %v3973
        %v4009 = vunpack.c.l.b16 %v3974
        %v4010 = vunpack.c.h.b16 %v3974
        %v4011 = vunpack.c.l.b16 %v3975
        %v4012 = vunpack.c.h.b16 %v3975
        %v4013 = vunpack.c.l.b16 %v3976
        %v4014 = vunpack.c.h.b16 %v3976
        %v4015 = vunpack.c.l.b16 %v3977
        %v4016 = vunpack.c.h.b16 %v3977
        %v4017 = vunpack.c.l.b16 %v3978
        %v4018 = vunpack.c.h.b16 %v3978
        %v4019 = vunpack.c.l.b16 %v3979
        %v4020 = vunpack.c.h.b16 %v3979
        %v4021 = vunpack.c.l.b16 %v3980
        %v4022 = vunpack.c.h.b16 %v3980
        %v4023 = vunpack.c.l.b16 %v3981
        %v4024 = vunpack.c.h.b16 %v3981
        %v4025 = vunpack.c.l.b16 %v3982
        %v4026 = vunpack.c.h.b16 %v3982
        %v4027 = vunpack.c.l.b16 %v3983
        %v4028 = vunpack.c.h.b16 %v3983
        %v4029 = vunpack.c.l.b16 %v3984
        %v4030 = vunpack.c.h.b16 %v3984
        %v4031 = vunpack.c.l.b16 %v3985
        %v4032 = vunpack.c.h.b16 %v3985
        %v4033 = vunpack.c.l.b16 %v3986
        %v4034 = vunpack.c.h.b16 %v3986
        %v4035 = vpack.c.b16 %v4003, %v4003
        %v4036 = vpack.c.b16 %v4004, %v4004
        %v4037 = vpack.c.b16 %v4005, %v4005
        %v4038 = vpack.c.b16 %v4006, %v4006
        %v4039 = vpack.c.b16 %v4007, %v4007
        %v4040 = vpack.c.b16 %v4008, %v4008
        %v4041 = vpack.c.b16 %v4009, %v4009
        %v4042 = vpack.c.b16 %v4010, %v4010
        %v4043 = vpack.c.b16 %v4011, %v4011
        %v4044 = vpack.c.b16 %v4012, %v4012
        %v4045 = vpack.c.b16 %v4013, %v4013
        %v4046 = vpack.c.b16 %v4014, %v4014
        %v4047 = vpack.c.b16 %v4015, %v4015
        %v4048 = vpack.c.b16 %v4016, %v4016
        %v4049 = vpack.c.b16 %v4017, %v4017
        %v4050 = vpack.c.b16 %v4018, %v4018
        %v4051 = vpack.c.b16 %v4019, %v4019
        %v4052 = vpack.c.b16 %v4020, %v4020
        %v4053 = vpack.c.b16 %v4021, %v4021
        %v4054 = vpack.c.b16 %v4022, %v4022
        %v4055 = vpack.c.b16 %v4023, %v4023
        %v4056 = vpack.c.b16 %v4024, %v4024
        %v4057 = vpack.c.b16 %v4025, %v4025
        %v4058 = vpack.c.b16 %v4026, %v4026
        %v4059 = vpack.c.b16 %v4027, %v4027
        %v4060 = vpack.c.b16 %v4028, %v4028
        %v4061 = vpack.c.b16 %v4029, %v4029
        %v4062 = vpack.c.b16 %v4030, %v4030
        %v4063 = vpack.c.b16 %v4031, %v4031
        %v4064 = vpack.c.b16 %v4032, %v4032
        %v4065 = vpack.c.b16 %v4033, %v4033
        %v4066 = vpack.c.b16 %v4034, %v4034
        %vm4067 = vsmask.f32 256
        %vm4068 = vsmask.f32 4368
        %vm4069 = vmor %vm4067, %vm4068
        %v4071 = vshrl.u32 %v4035, 16
        %v4073 = vrot.slane %v4071, 7
        %v4074 = vshll.u32 %v4035, 16
        %v4076 = vor.u32 %v4073, %v4074
        %v4077 = vrot.slane %v4073, 4
        %v4079 = vshrl.u32 %v4036, 16
        %v4081 = vrot.slane %v4079, 7
        %v4082 = vshll.u32 %v4036, 16
        %v4084 = vor.u32 %v4081, %v4082
        %v4085 = vsel %vm4069, %v4077, %v4084
        %v4086 = vrot.slane %v4081, 4
        %v4088 = vshrl.u32 %v4037, 16
        %v4090 = vrot.slane %v4088, 7
        %v4091 = vshll.u32 %v4037, 16
        %v4093 = vor.u32 %v4090, %v4091
        %v4094 = vrot.slane %v4090, 4
        %v4096 = vshrl.u32 %v4038, 16
        %v4098 = vrot.slane %v4096, 7
        %v4099 = vshll.u32 %v4038, 16
        %v4101 = vor.u32 %v4098, %v4099
        %v4102 = vsel %vm4069, %v4094, %v4101
        %v4103 = vrot.slane %v4098, 4
        %v4105 = vshrl.u32 %v4039, 16
        %v4107 = vrot.slane %v4105, 7
        %v4108 = vshll.u32 %v4039, 16
        %v4110 = vor.u32 %v4107, %v4108
        %v4111 = vrot.slane %v4107, 4
        %v4113 = vshrl.u32 %v4040, 16
        %v4115 = vrot.slane %v4113, 7
        %v4116 = vshll.u32 %v4040, 16
        %v4118 = vor.u32 %v4115, %v4116
        %v4119 = vsel %vm4069, %v4111, %v4118
        %v4120 = vrot.slane %v4115, 4
        %v4122 = vshrl.u32 %v4041, 16
        %v4124 = vrot.slane %v4122, 7
        %v4125 = vshll.u32 %v4041, 16
        %v4127 = vor.u32 %v4124, %v4125
        %v4128 = vrot.slane %v4124, 4
        %v4130 = vshrl.u32 %v4042, 16
        %v4132 = vrot.slane %v4130, 7
        %v4133 = vshll.u32 %v4042, 16
        %v4135 = vor.u32 %v4132, %v4133
        %v4136 = vsel %vm4069, %v4128, %v4135
        %v4137 = vrot.slane %v4132, 4
        %v4139 = vshrl.u32 %v4043, 16
        %v4141 = vrot.slane %v4139, 7
        %v4142 = vshll.u32 %v4043, 16
        %v4144 = vor.u32 %v4141, %v4142
        %v4145 = vrot.slane %v4141, 4
        %v4147 = vshrl.u32 %v4044, 16
        %v4149 = vrot.slane %v4147, 7
        %v4150 = vshll.u32 %v4044, 16
        %v4152 = vor.u32 %v4149, %v4150
        %v4153 = vsel %vm4069, %v4145, %v4152
        %v4154 = vrot.slane %v4149, 4
        %v4156 = vshrl.u32 %v4045, 16
        %v4158 = vrot.slane %v4156, 7
        %v4159 = vshll.u32 %v4045, 16
        %v4161 = vor.u32 %v4158, %v4159
        %v4162 = vrot.slane %v4158, 4
        %v4164 = vshrl.u32 %v4046, 16
        %v4166 = vrot.slane %v4164, 7
        %v4167 = vshll.u32 %v4046, 16
        %v4169 = vor.u32 %v4166, %v4167
        %v4170 = vsel %vm4069, %v4162, %v4169
        %v4171 = vrot.slane %v4166, 4
        %v4173 = vshrl.u32 %v4047, 16
        %v4175 = vrot.slane %v4173, 7
        %v4176 = vshll.u32 %v4047, 16
        %v4178 = vor.u32 %v4175, %v4176
        %v4179 = vrot.slane %v4175, 4
        %v4181 = vshrl.u32 %v4048, 16
        %v4183 = vrot.slane %v4181, 7
        %v4184 = vshll.u32 %v4048, 16
        %v4186 = vor.u32 %v4183, %v4184
        %v4187 = vsel %vm4069, %v4179, %v4186
        %v4188 = vrot.slane %v4183, 4
        %v4190 = vshrl.u32 %v4049, 16
        %v4192 = vrot.slane %v4190, 7
        %v4193 = vshll.u32 %v4049, 16
        %v4195 = vor.u32 %v4192, %v4193
        %v4196 = vrot.slane %v4192, 4
        %v4198 = vshrl.u32 %v4050, 16
        %v4200 = vrot.slane %v4198, 7
        %v4201 = vshll.u32 %v4050, 16
        %v4203 = vor.u32 %v4200, %v4201
        %v4204 = vsel %vm4069, %v4196, %v4203
        %v4205 = vrot.slane %v4200, 4
        %v4207 = vshrl.u32 %v4051, 16
        %v4209 = vrot.slane %v4207, 7
        %v4210 = vshll.u32 %v4051, 16
        %v4212 = vor.u32 %v4209, %v4210
        %v4213 = vrot.slane %v4209, 4
        %v4215 = vshrl.u32 %v4052, 16
        %v4217 = vrot.slane %v4215, 7
        %v4218 = vshll.u32 %v4052, 16
        %v4220 = vor.u32 %v4217, %v4218
        %v4221 = vsel %vm4069, %v4213, %v4220
        %v4222 = vrot.slane %v4217, 4
        %v4224 = vshrl.u32 %v4053, 16
        %v4226 = vrot.slane %v4224, 7
        %v4227 = vshll.u32 %v4053, 16
        %v4229 = vor.u32 %v4226, %v4227
        %v4230 = vrot.slane %v4226, 4
        %v4232 = vshrl.u32 %v4054, 16
        %v4234 = vrot.slane %v4232, 7
        %v4235 = vshll.u32 %v4054, 16
        %v4237 = vor.u32 %v4234, %v4235
        %v4238 = vsel %vm4069, %v4230, %v4237
        %v4239 = vrot.slane %v4234, 4
        %v4241 = vshrl.u32 %v4055, 16
        %v4243 = vrot.slane %v4241, 7
        %v4244 = vshll.u32 %v4055, 16
        %v4246 = vor.u32 %v4243, %v4244
        %v4247 = vrot.slane %v4243, 4
        %v4249 = vshrl.u32 %v4056, 16
        %v4251 = vrot.slane %v4249, 7
        %v4252 = vshll.u32 %v4056, 16
        %v4254 = vor.u32 %v4251, %v4252
        %v4255 = vsel %vm4069, %v4247, %v4254
        %v4256 = vrot.slane %v4251, 4
        %v4258 = vshrl.u32 %v4057, 16
        %v4260 = vrot.slane %v4258, 7
        %v4261 = vshll.u32 %v4057, 16
        %v4263 = vor.u32 %v4260, %v4261
        %v4264 = vrot.slane %v4260, 4
        %v4266 = vshrl.u32 %v4058, 16
        %v4268 = vrot.slane %v4266, 7
        %v4269 = vshll.u32 %v4058, 16
        %v4271 = vor.u32 %v4268, %v4269
        %v4272 = vsel %vm4069, %v4264, %v4271
        %v4273 = vrot.slane %v4268, 4
        %v4275 = vshrl.u32 %v4059, 16
        %v4277 = vrot.slane %v4275, 7
        %v4278 = vshll.u32 %v4059, 16
        %v4280 = vor.u32 %v4277, %v4278
        %v4281 = vrot.slane %v4277, 4
        %v4283 = vshrl.u32 %v4060, 16
        %v4285 = vrot.slane %v4283, 7
        %v4286 = vshll.u32 %v4060, 16
        %v4288 = vor.u32 %v4285, %v4286
        %v4289 = vsel %vm4069, %v4281, %v4288
        %v4290 = vrot.slane %v4285, 4
        %v4292 = vshrl.u32 %v4061, 16
        %v4294 = vrot.slane %v4292, 7
        %v4295 = vshll.u32 %v4061, 16
        %v4297 = vor.u32 %v4294, %v4295
        %v4298 = vrot.slane %v4294, 4
        %v4300 = vshrl.u32 %v4062, 16
        %v4302 = vrot.slane %v4300, 7
        %v4303 = vshll.u32 %v4062, 16
        %v4305 = vor.u32 %v4302, %v4303
        %v4306 = vsel %vm4069, %v4298, %v4305
        %v4307 = vrot.slane %v4302, 4
        %v4309 = vshrl.u32 %v4063, 16
        %v4311 = vrot.slane %v4309, 7
        %v4312 = vshll.u32 %v4063, 16
        %v4314 = vor.u32 %v4311, %v4312
        %v4315 = vrot.slane %v4311, 4
        %v4317 = vshrl.u32 %v4064, 16
        %v4319 = vrot.slane %v4317, 7
        %v4320 = vshll.u32 %v4064, 16
        %v4322 = vor.u32 %v4319, %v4320
        %v4323 = vsel %vm4069, %v4315, %v4322
        %v4324 = vrot.slane %v4319, 4
        %v4326 = vshrl.u32 %v4065, 16
        %v4328 = vrot.slane %v4326, 7
        %v4329 = vshll.u32 %v4065, 16
        %v4331 = vor.u32 %v4328, %v4329
        %v4332 = vrot.slane %v4328, 4
        %v4334 = vshrl.u32 %v4066, 16
        %v4336 = vrot.slane %v4334, 7
        %v4337 = vshll.u32 %v4066, 16
        %v4339 = vor.u32 %v4336, %v4337
        %v4340 = vsel %vm4069, %v4332, %v4339
        %v4341 = vrot.slane %v4336, 4
        %s4390 = scalar_lea.vmem [#allocation3], 12
        %vm4391 = vcmask 1043456
        %vm4392 = vsmask.f32 7938
        %vm4393 = vmand %vm4391, %vm4392
        %v4394 = vld [vmem:[%s4390] sm:$0xf]
        %v4395 = vsel %vm4393, %v4076, %v4394
        %4396 = vst [vmem:[%s4390] sm:$0xf] %v4395
        %4397 = vst [vmem:[%s4390 + $0x4] sm:$0xf] %v4085
        %vm4398 = vcmask 1040384
        %vm4399 = vmand %vm4398, %vm4067
        %v4400 = vld [vmem:[%s4390 + $0x8] sm:$0x1]
        %v4401 = vsel %vm4399, %v4086, %v4400
        %4402 = vst [vmem:[%s4390 + $0x8] sm:$0x1] %v4401
        %v4403 = vld [vmem:[%s4390 + $0xc] sm:$0xf]
        %v4404 = vsel %vm4393, %v4093, %v4403
        %4405 = vst [vmem:[%s4390 + $0xc] sm:$0xf] %v4404
        %4406 = vst [vmem:[%s4390 + $0x10] sm:$0xf] %v4102
        %v4407 = vld [vmem:[%s4390 + $0x14] sm:$0x1]
        %v4408 = vsel %vm4399, %v4103, %v4407
        %4409 = vst [vmem:[%s4390 + $0x14] sm:$0x1] %v4408
        %v4410 = vld [vmem:[%s4390 + $0x18] sm:$0xf]
        %v4411 = vsel %vm4393, %v4110, %v4410
        %4412 = vst [vmem:[%s4390 + $0x18] sm:$0xf] %v4411
        %4413 = vst [vmem:[%s4390 + $0x1c] sm:$0xf] %v4119
        %v4414 = vld [vmem:[%s4390 + $0x20] sm:$0x1]
        %v4415 = vsel %vm4399, %v4120, %v4414
        %4416 = vst [vmem:[%s4390 + $0x20] sm:$0x1] %v4415
        %v4417 = vld [vmem:[%s4390 + $0x24] sm:$0xf]
        %v4418 = vsel %vm4393, %v4127, %v4417
        %4419 = vst [vmem:[%s4390 + $0x24] sm:$0xf] %v4418
        %4420 = vst [vmem:[%s4390 + $0x28] sm:$0xf] %v4136
        %v4421 = vld [vmem:[%s4390 + $0x2c] sm:$0x1]
        %v4422 = vsel %vm4399, %v4137, %v4421
        %4423 = vst [vmem:[%s4390 + $0x2c] sm:$0x1] %v4422
        %v4424 = vld [vmem:[%s4390 + $0x30] sm:$0xf]
        %v4425 = vsel %vm4393, %v4144, %v4424
        %4426 = vst [vmem:[%s4390 + $0x30] sm:$0xf] %v4425
        %4427 = vst [vmem:[%s4390 + $0x34] sm:$0xf] %v4153
        %v4428 = vld [vmem:[%s4390 + $0x38] sm:$0x1]
        %v4429 = vsel %vm4399, %v4154, %v4428
        %4430 = vst [vmem:[%s4390 + $0x38] sm:$0x1] %v4429
        %v4431 = vld [vmem:[%s4390 + $0x3c] sm:$0xf]
        %v4432 = vsel %vm4393, %v4161, %v4431
        %4433 = vst [vmem:[%s4390 + $0x3c] sm:$0xf] %v4432
        %4434 = vst [vmem:[%s4390 + $0x40] sm:$0xf] %v4170
        %v4435 = vld [vmem:[%s4390 + $0x44] sm:$0x1]
        %v4436 = vsel %vm4399, %v4171, %v4435
        %4437 = vst [vmem:[%s4390 + $0x44] sm:$0x1] %v4436
        %v4438 = vld [vmem:[%s4390 + $0x48] sm:$0xf]
        %v4439 = vsel %vm4393, %v4178, %v4438
        %4440 = vst [vmem:[%s4390 + $0x48] sm:$0xf] %v4439
        %4441 = vst [vmem:[%s4390 + $0x4c] sm:$0xf] %v4187
        %v4442 = vld [vmem:[%s4390 + $0x50] sm:$0x1]
        %v4443 = vsel %vm4399, %v4188, %v4442
        %4444 = vst [vmem:[%s4390 + $0x50] sm:$0x1] %v4443
        %v4445 = vld [vmem:[%s4390 + $0x54] sm:$0xf]
        %v4446 = vsel %vm4393, %v4195, %v4445
        %4447 = vst [vmem:[%s4390 + $0x54] sm:$0xf] %v4446
        %4448 = vst [vmem:[%s4390 + $0x58] sm:$0xf] %v4204
        %v4449 = vld [vmem:[%s4390 + $0x5c] sm:$0x1]
        %v4450 = vsel %vm4399, %v4205, %v4449
        %4451 = vst [vmem:[%s4390 + $0x5c] sm:$0x1] %v4450
        %v4452 = vld [vmem:[%s4390 + $0x60] sm:$0xf]
        %v4453 = vsel %vm4393, %v4212, %v4452
        %4454 = vst [vmem:[%s4390 + $0x60] sm:$0xf] %v4453
        %4455 = vst [vmem:[%s4390 + $0x64] sm:$0xf] %v4221
        %v4456 = vld [vmem:[%s4390 + $0x68] sm:$0x1]
        %v4457 = vsel %vm4399, %v4222, %v4456
        %4458 = vst [vmem:[%s4390 + $0x68] sm:$0x1] %v4457
        %v4459 = vld [vmem:[%s4390 + $0x6c] sm:$0xf]
        %v4460 = vsel %vm4393, %v4229, %v4459
        %4461 = vst [vmem:[%s4390 + $0x6c] sm:$0xf] %v4460
        %4462 = vst [vmem:[%s4390 + $0x70] sm:$0xf] %v4238
        %v4463 = vld [vmem:[%s4390 + $0x74] sm:$0x1]
        %v4464 = vsel %vm4399, %v4239, %v4463
        %4465 = vst [vmem:[%s4390 + $0x74] sm:$0x1] %v4464
        %v4466 = vld [vmem:[%s4390 + $0x78] sm:$0xf]
        %v4467 = vsel %vm4393, %v4246, %v4466
        %4468 = vst [vmem:[%s4390 + $0x78] sm:$0xf] %v4467
        %4469 = vst [vmem:[%s4390 + $0x7c] sm:$0xf] %v4255
        %v4470 = vld [vmem:[%s4390 + $0x80] sm:$0x1]
        %v4471 = vsel %vm4399, %v4256, %v4470
        %4472 = vst [vmem:[%s4390 + $0x80] sm:$0x1] %v4471
        %v4473 = vld [vmem:[%s4390 + $0x84] sm:$0xf]
        %v4474 = vsel %vm4393, %v4263, %v4473
        %4475 = vst [vmem:[%s4390 + $0x84] sm:$0xf] %v4474
        %4476 = vst [vmem:[%s4390 + $0x88] sm:$0xf] %v4272
        %v4477 = vld [vmem:[%s4390 + $0x8c] sm:$0x1]
        %v4478 = vsel %vm4399, %v4273, %v4477
        %4479 = vst [vmem:[%s4390 + $0x8c] sm:$0x1] %v4478
        %v4480 = vld [vmem:[%s4390 + $0x90] sm:$0xf]
        %v4481 = vsel %vm4393, %v4280, %v4480
        %4482 = vst [vmem:[%s4390 + $0x90] sm:$0xf] %v4481
        %4483 = vst [vmem:[%s4390 + $0x94] sm:$0xf] %v4289
        %v4484 = vld [vmem:[%s4390 + $0x98] sm:$0x1]
        %v4485 = vsel %vm4399, %v4290, %v4484
        %4486 = vst [vmem:[%s4390 + $0x98] sm:$0x1] %v4485
        %v4487 = vld [vmem:[%s4390 + $0x9c] sm:$0xf]
        %v4488 = vsel %vm4393, %v4297, %v4487
        %4489 = vst [vmem:[%s4390 + $0x9c] sm:$0xf] %v4488
        %4490 = vst [vmem:[%s4390 + $0xa0] sm:$0xf] %v4306
        %v4491 = vld [vmem:[%s4390 + $0xa4] sm:$0x1]
        %v4492 = vsel %vm4399, %v4307, %v4491
        %4493 = vst [vmem:[%s4390 + $0xa4] sm:$0x1] %v4492
        %v4494 = vld [vmem:[%s4390 + $0xa8] sm:$0xf]
        %v4495 = vsel %vm4393, %v4314, %v4494
        %4496 = vst [vmem:[%s4390 + $0xa8] sm:$0xf] %v4495
        %4497 = vst [vmem:[%s4390 + $0xac] sm:$0xf] %v4323
        %v4498 = vld [vmem:[%s4390 + $0xb0] sm:$0x1]
        %v4499 = vsel %vm4399, %v4324, %v4498
        %4500 = vst [vmem:[%s4390 + $0xb0] sm:$0x1] %v4499
        %v4501 = vld [vmem:[%s4390 + $0xb4] sm:$0xf]
        %v4502 = vsel %vm4393, %v4331, %v4501
        %4503 = vst [vmem:[%s4390 + $0xb4] sm:$0xf] %v4502
        %4504 = vst [vmem:[%s4390 + $0xb8] sm:$0xf] %v4340
        %v4505 = vld [vmem:[%s4390 + $0xbc] sm:$0x1]
        %v4506 = vsel %vm4399, %v4341, %v4505
        %4507 = vst [vmem:[%s4390 + $0xbc] sm:$0x1] %v4506
        %4508 = vst [vmem:[#allocation4] sm:$0xff] 0.0
        %4509 = vst [vmem:[#allocation4 + $0x8] sm:$0xff] 0.0
        %4510 = vst [vmem:[#allocation4 + $0x10] sm:$0xff] 0.0
        %4511 = vst [vmem:[#allocation4 + $0x18] sm:$0xff] 0.0
        %4512 = vst [vmem:[#allocation4 + $0x20] sm:$0xff] 0.0
        %4513 = vst [vmem:[#allocation4 + $0x28] sm:$0xff] 0.0
        %4514 = vst [vmem:[#allocation4 + $0x30] sm:$0xff] 0.0
        %4515 = vst [vmem:[#allocation4 + $0x38] sm:$0xff] 0.0
        %4516 = vst [vmem:[#allocation4 + $0x40] sm:$0xff] 0.0
        %4517 = vst [vmem:[#allocation4 + $0x48] sm:$0xff] 0.0
        %4518 = vst [vmem:[#allocation4 + $0x50] sm:$0xff] 0.0
        %4519 = vst [vmem:[#allocation4 + $0x58] sm:$0xff] 0.0
        %4520 = vst [vmem:[#allocation4 + $0x60] sm:$0xff] 0.0
        %4521 = vst [vmem:[#allocation4 + $0x68] sm:$0xff] 0.0
        %4522 = vst [vmem:[#allocation4 + $0x70] sm:$0xff] 0.0
        %4523 = vst [vmem:[#allocation4 + $0x78] sm:$0xff] 0.0
        %4524 = vst [vmem:[#allocation4 + $0x80] sm:$0xff] 0.0
        %4525 = vst [vmem:[#allocation4 + $0x88] sm:$0xff] 0.0
        %4526 = vst [vmem:[#allocation4 + $0x90] sm:$0xff] 0.0
        %4527 = vst [vmem:[#allocation4 + $0x98] sm:$0xff] 0.0
        %4528 = vst [vmem:[#allocation4 + $0xa0] sm:$0xff] 0.0
        %4529 = vst [vmem:[#allocation4 + $0xa8] sm:$0xff] 0.0
        %4530 = vst [vmem:[#allocation4 + $0xb0] sm:$0xff] 0.0
        %4531 = vst [vmem:[#allocation4 + $0xb8] sm:$0xff] 0.0
        %4532 = vst [vmem:[#allocation4 + $0xc0] sm:$0xff] 0.0
        %4533 = vst [vmem:[#allocation4 + $0xc8] sm:$0xff] 0.0
        %4534 = vst [vmem:[#allocation4 + $0xd0] sm:$0xff] 0.0
        %4535 = vst [vmem:[#allocation4 + $0xd8] sm:$0xff] 0.0
        %4536 = vst [vmem:[#allocation4 + $0xe0] sm:$0xff] 0.0
        %4537 = vst [vmem:[#allocation4 + $0xe8] sm:$0xff] 0.0
        %4538 = vst [vmem:[#allocation4 + $0xf0] sm:$0xff] 0.0
        %4539 = vst [vmem:[#allocation4 + $0xf8] sm:$0xff] 0.0
        %v4540 = vld [vmem:[#allocation3] sm:$0xf]
        %v4541 = vld [vmem:[#allocation3 + $0x4] sm:$0xf]
        %v4542 = vld [vmem:[#allocation3 + $0xc] sm:$0xf]
        %v4543 = vld [vmem:[#allocation3 + $0x10] sm:$0xf]
        %v4544 = vld [vmem:[#allocation3 + $0x18] sm:$0xf]
        %v4545 = vld [vmem:[#allocation3 + $0x1c] sm:$0xf]
        %v4546 = vld [vmem:[#allocation3 + $0x24] sm:$0xf]
        %v4547 = vld [vmem:[#allocation3 + $0x28] sm:$0xf]
        %v4548 = vld [vmem:[#allocation3 + $0x30] sm:$0xf]
        %v4549 = vld [vmem:[#allocation3 + $0x34] sm:$0xf]
        %v4550 = vld [vmem:[#allocation3 + $0x3c] sm:$0xf]
        %v4551 = vld [vmem:[#allocation3 + $0x40] sm:$0xf]
        %v4552 = vld [vmem:[#allocation3 + $0x48] sm:$0xf]
        %v4553 = vld [vmem:[#allocation3 + $0x4c] sm:$0xf]
        %v4554 = vld [vmem:[#allocation3 + $0x54] sm:$0xf]
        %v4555 = vld [vmem:[#allocation3 + $0x58] sm:$0xf]
        %v4556 = vld [vmem:[#allocation3 + $0x60] sm:$0xf]
        %v4557 = vld [vmem:[#allocation3 + $0x64] sm:$0xf]
        %v4558 = vld [vmem:[#allocation3 + $0x6c] sm:$0xf]
        %v4559 = vld [vmem:[#allocation3 + $0x70] sm:$0xf]
        %v4560 = vld [vmem:[#allocation3 + $0x78] sm:$0xf]
        %v4561 = vld [vmem:[#allocation3 + $0x7c] sm:$0xf]
        %v4562 = vld [vmem:[#allocation3 + $0x84] sm:$0xf]
        %v4563 = vld [vmem:[#allocation3 + $0x88] sm:$0xf]
        %v4564 = vld [vmem:[#allocation3 + $0x90] sm:$0xf]
        %v4565 = vld [vmem:[#allocation3 + $0x94] sm:$0xf]
        %v4566 = vld [vmem:[#allocation3 + $0x9c] sm:$0xf]
        %v4567 = vld [vmem:[#allocation3 + $0xa0] sm:$0xf]
        %v4568 = vld [vmem:[#allocation3 + $0xa8] sm:$0xf]
        %v4569 = vld [vmem:[#allocation3 + $0xac] sm:$0xf]
        %v4570 = vld [vmem:[#allocation3 + $0xb4] sm:$0xf]
        %v4571 = vld [vmem:[#allocation3 + $0xb8] sm:$0xf]
        %v4572 = vld [vmem:[#allocation4] sm:$0xff]
        %v4573 = vld [vmem:[#allocation4 + $0x8] sm:$0xff]
        %v4574 = vld [vmem:[#allocation4 + $0x10] sm:$0xff]
        %v4575 = vld [vmem:[#allocation4 + $0x18] sm:$0xff]
        %v4576 = vld [vmem:[#allocation4 + $0x20] sm:$0xff]
        %v4577 = vld [vmem:[#allocation4 + $0x28] sm:$0xff]
        %v4578 = vld [vmem:[#allocation4 + $0x30] sm:$0xff]
        %v4579 = vld [vmem:[#allocation4 + $0x38] sm:$0xff]
        %v4580 = vld [vmem:[#allocation4 + $0x40] sm:$0xff]
        %v4581 = vld [vmem:[#allocation4 + $0x48] sm:$0xff]
        %v4582 = vld [vmem:[#allocation4 + $0x50] sm:$0xff]
        %v4583 = vld [vmem:[#allocation4 + $0x58] sm:$0xff]
        %v4584 = vld [vmem:[#allocation4 + $0x60] sm:$0xff]
        %v4585 = vld [vmem:[#allocation4 + $0x68] sm:$0xff]
        %v4586 = vld [vmem:[#allocation4 + $0x70] sm:$0xff]
        %v4587 = vld [vmem:[#allocation4 + $0x78] sm:$0xff]
        %v4588 = vld [vmem:[#allocation4 + $0x80] sm:$0xff]
        %v4589 = vld [vmem:[#allocation4 + $0x88] sm:$0xff]
        %v4590 = vld [vmem:[#allocation4 + $0x90] sm:$0xff]
        %v4591 = vld [vmem:[#allocation4 + $0x98] sm:$0xff]
        %v4592 = vld [vmem:[#allocation4 + $0xa0] sm:$0xff]
        %v4593 = vld [vmem:[#allocation4 + $0xa8] sm:$0xff]
        %v4594 = vld [vmem:[#allocation4 + $0xb0] sm:$0xff]
        %v4595 = vld [vmem:[#allocation4 + $0xb8] sm:$0xff]
        %v4596 = vld [vmem:[#allocation4 + $0xc0] sm:$0xff]
        %v4597 = vld [vmem:[#allocation4 + $0xc8] sm:$0xff]
        %v4598 = vld [vmem:[#allocation4 + $0xd0] sm:$0xff]
        %v4599 = vld [vmem:[#allocation4 + $0xd8] sm:$0xff]
        %v4600 = vld [vmem:[#allocation4 + $0xe0] sm:$0xff]
        %v4601 = vld [vmem:[#allocation4 + $0xe8] sm:$0xff]
        %v4602 = vld [vmem:[#allocation4 + $0xf0] sm:$0xff]
        %v4603 = vld [vmem:[#allocation4 + $0xf8] sm:$0xff]
        %v4604 = vld [vmem:[#allocation5] sm:$0xf]
        %v4605 = vld [vmem:[#allocation5 + $0x4] sm:$0xf]
        %v4606 = vld [vmem:[#allocation5 + $0x8] sm:$0xf]
        %v4607 = vld [vmem:[#allocation5 + $0xc] sm:$0xf]
        %v4608 = vld [vmem:[#allocation5 + $0x10] sm:$0xf]
        %v4609 = vld [vmem:[#allocation5 + $0x14] sm:$0xf]
        %v4610 = vld [vmem:[#allocation5 + $0x18] sm:$0xf]
        %v4611 = vld [vmem:[#allocation5 + $0x1c] sm:$0xf]
        %v4612 = vld [vmem:[#allocation5 + $0x20] sm:$0xf]
        %v4613 = vld [vmem:[#allocation5 + $0x24] sm:$0xf]
        %v4614 = vld [vmem:[#allocation5 + $0x28] sm:$0xf]
        %v4615 = vld [vmem:[#allocation5 + $0x2c] sm:$0xf]
        %v4616 = vld [vmem:[#allocation5 + $0x30] sm:$0xf]
        %v4617 = vld [vmem:[#allocation5 + $0x34] sm:$0xf]
        %v4618 = vld [vmem:[#allocation5 + $0x38] sm:$0xf]
        %v4619 = vld [vmem:[#allocation5 + $0x3c] sm:$0xf]
        %v4652 = vunpack.c.l.b16 %v4540
        %v4653 = vunpack.c.l.b16 %v4541
        %v4654 = vunpack.c.l.b16 %v4542
        %v4655 = vunpack.c.l.b16 %v4543
        %v4656 = vunpack.c.l.b16 %v4544
        %v4657 = vunpack.c.l.b16 %v4545
        %v4658 = vunpack.c.l.b16 %v4546
        %v4659 = vunpack.c.l.b16 %v4547
        %v4660 = vunpack.c.l.b16 %v4548
        %v4661 = vunpack.c.l.b16 %v4549
        %v4662 = vunpack.c.l.b16 %v4550
        %v4663 = vunpack.c.l.b16 %v4551
        %v4664 = vunpack.c.l.b16 %v4552
        %v4665 = vunpack.c.l.b16 %v4553
        %v4666 = vunpack.c.l.b16 %v4554
        %v4667 = vunpack.c.l.b16 %v4555
        %v4668 = vunpack.c.l.b16 %v4556
        %v4669 = vunpack.c.l.b16 %v4557
        %v4670 = vunpack.c.l.b16 %v4558
        %v4671 = vunpack.c.l.b16 %v4559
        %v4672 = vunpack.c.l.b16 %v4560
        %v4673 = vunpack.c.l.b16 %v4561
        %v4674 = vunpack.c.l.b16 %v4562
        %v4675 = vunpack.c.l.b16 %v4563
        %v4676 = vunpack.c.l.b16 %v4564
        %v4677 = vunpack.c.l.b16 %v4565
        %v4678 = vunpack.c.l.b16 %v4566
        %v4679 = vunpack.c.l.b16 %v4567
        %v4680 = vunpack.c.l.b16 %v4568
        %v4681 = vunpack.c.l.b16 %v4569
        %v4682 = vunpack.c.l.b16 %v4570
        %v4683 = vunpack.c.l.b16 %v4571
        %v4684 = vpack.c.b16 %v4653, %v4652
        %v4685 = vpack.c.b16 %v4655, %v4654
        %v4686 = vpack.c.b16 %v4657, %v4656
        %v4687 = vpack.c.b16 %v4659, %v4658
        %v4688 = vpack.c.b16 %v4661, %v4660
        %v4689 = vpack.c.b16 %v4663, %v4662
        %v4690 = vpack.c.b16 %v4665, %v4664
        %v4691 = vpack.c.b16 %v4667, %v4666
        %v4692 = vpack.c.b16 %v4669, %v4668
        %v4693 = vpack.c.b16 %v4671, %v4670
        %v4694 = vpack.c.b16 %v4673, %v4672
        %v4695 = vpack.c.b16 %v4675, %v4674
        %v4696 = vpack.c.b16 %v4677, %v4676
        %v4697 = vpack.c.b16 %v4679, %v4678
        %v4698 = vpack.c.b16 %v4681, %v4680
        %v4699 = vpack.c.b16 %v4683, %v4682
        %v4732 = vunpack.c.l.b16 %v4604
        %v4733 = vunpack.c.l.b16 %v4605
        %v4734 = vunpack.c.l.b16 %v4606
        %v4735 = vunpack.c.l.b16 %v4607
        %v4736 = vunpack.c.l.b16 %v4608
        %v4737 = vunpack.c.l.b16 %v4609
        %v4738 = vunpack.c.l.b16 %v4610
        %v4739 = vunpack.c.l.b16 %v4611
        %v4740 = vunpack.c.l.b16 %v4612
        %v4741 = vunpack.c.l.b16 %v4613
        %v4742 = vunpack.c.l.b16 %v4614
        %v4743 = vunpack.c.l.b16 %v4615
        %v4744 = vunpack.c.l.b16 %v4616
        %v4745 = vunpack.c.l.b16 %v4617
        %v4746 = vunpack.c.l.b16 %v4618
        %v4747 = vunpack.c.l.b16 %v4619
        %v4748 = vpack.c.b16 %v4733, %v4732
        %v4749 = vpack.c.b16 %v4735, %v4734
        %v4750 = vpack.c.b16 %v4737, %v4736
        %v4751 = vpack.c.b16 %v4739, %v4738
        %v4752 = vpack.c.b16 %v4741, %v4740
        %v4753 = vpack.c.b16 %v4743, %v4742
        %v4754 = vpack.c.b16 %v4745, %v4744
        %v4755 = vpack.c.b16 %v4747, %v4746
        %4764 = vmatprep.subr.bf16.mxu0 0
        %4765 = vmatpush1.bf16.msra.mxu0 %v4748
        %4766 = vmatprep.subr.bf16.mxu0 0
        %4767 = vmatpush1.bf16.msra.mxu0 %v4749
        %4768 = vmatprep.subr.bf16.mxu0 0
        %4769 = vmatpush1.bf16.msra.mxu0 %v4750
        %4770 = vmatprep.subr.bf16.mxu0 0
        %4771 = vmatpush1.bf16.msra.mxu0 %v4751
        %4772 = vmatprep.subr.bf16.mxu0 0
        %4773 = vmatpush1.bf16.msra.mxu0 %v4752
        %4774 = vmatprep.subr.bf16.mxu0 0
        %4775 = vmatpush1.bf16.msra.mxu0 %v4753
        %4776 = vmatprep.subr.bf16.mxu0 0
        %4777 = vmatpush1.bf16.msra.mxu0 %v4754
        %4778 = vmatprep.subr.bf16.mxu0 0
        %4779 = vmatpush1.bf16.msra.mxu0 %v4755
        %4780 = vmatprep.subr.bf16.mxu0 0
        %4781 = vmatpush1.bf16.msra.mxu0 0
        %4782 = vmatprep.subr.bf16.mxu0 0
        %4783 = vmatpush1.bf16.msra.mxu0 0
        %4784 = vmatprep.subr.bf16.mxu0 0
        %4785 = vmatpush1.bf16.msra.mxu0 0
        %4786 = vmatprep.subr.bf16.mxu0 0
        %4787 = vmatpush1.bf16.msra.mxu0 0
        %4788 = vmatprep.subr.bf16.mxu0 0
        %4789 = vmatpush1.bf16.msra.mxu0 0
        %4790 = vmatprep.subr.bf16.mxu0 0
        %4791 = vmatpush1.bf16.msra.mxu0 0
        %4792 = vmatprep.subr.bf16.mxu0 0
        %4793 = vmatpush1.bf16.msra.mxu0 0
        %4794 = vmatprep.subr.bf16.mxu0 0
        %4795 = vmatpush1.bf16.msra.mxu0 0
        %4796 = vmatprep.mubr.bf16.mxu0 0
        %4797 = vmatmul.mubr.bf16.gmra.mrb[0].mxu0 %v4684
        %v4798 = vpop.f32.mrb[0].mxu0
        %v4799 = vadd.f32 0.0, %v4798
        %v4800 = vpop.f32.mrb[0].mxu0
        %v4801 = vpop.f32.mrb[0].mxu0
        %v4802 = vadd.f32 0.0, %v4801
        %v4803 = vpop.f32.mrb[0].mxu0
        %4804 = vmatprep.mubr.bf16.mxu0 0
        %4805 = vmatmul.mubr.bf16.gmra.mrb[0].mxu0 %v4685
        %v4806 = vpop.f32.mrb[0].mxu0
        %v4807 = vadd.f32 0.0, %v4806
        %v4808 = vpop.f32.mrb[0].mxu0
        %v4809 = vpop.f32.mrb[0].mxu0
        %v4810 = vadd.f32 0.0, %v4809
        %v4811 = vpop.f32.mrb[0].mxu0
        %4812 = vmatprep.mubr.bf16.mxu0 0
        %4813 = vmatmul.mubr.bf16.gmra.mrb[0].mxu0 %v4686
        %v4814 = vpop.f32.mrb[0].mxu0
        %v4815 = vadd.f32 0.0, %v4814
        %v4816 = vpop.f32.mrb[0].mxu0
        %v4817 = vpop.f32.mrb[0].mxu0
        %v4818 = vadd.f32 0.0, %v4817
        %v4819 = vpop.f32.mrb[0].mxu0
        %4820 = vmatprep.mubr.bf16.mxu0 0
        %4821 = vmatmul.mubr.bf16.gmra.mrb[0].mxu0 %v4687
        %v4822 = vpop.f32.mrb[0].mxu0
        %v4823 = vadd.f32 0.0, %v4822
        %v4824 = vpop.f32.mrb[0].mxu0
        %v4825 = vpop.f32.mrb[0].mxu0
        %v4826 = vadd.f32 0.0, %v4825
        %v4827 = vpop.f32.mrb[0].mxu0
        %4828 = vmatprep.mubr.bf16.mxu0 0
        %4829 = vmatmul.mubr.bf16.gmra.mrb[0].mxu0 %v4688
        %v4830 = vpop.f32.mrb[0].mxu0
        %v4831 = vadd.f32 0.0, %v4830
        %v4832 = vpop.f32.mrb[0].mxu0
        %v4833 = vpop.f32.mrb[0].mxu0
        %v4834 = vadd.f32 0.0, %v4833
        %v4835 = vpop.f32.mrb[0].mxu0
        %4836 = vmatprep.mubr.bf16.mxu0 0
        %4837 = vmatmul.mubr.bf16.gmra.mrb[0].mxu0 %v4689
        %v4838 = vpop.f32.mrb[0].mxu0
        %v4839 = vadd.f32 0.0, %v4838
        %v4840 = vpop.f32.mrb[0].mxu0
        %v4841 = vpop.f32.mrb[0].mxu0
        %v4842 = vadd.f32 0.0, %v4841
        %v4843 = vpop.f32.mrb[0].mxu0
        %4844 = vmatprep.mubr.bf16.mxu0 0
        %4845 = vmatmul.mubr.bf16.gmra.mrb[0].mxu0 %v4690
        %v4846 = vpop.f32.mrb[0].mxu0
        %v4847 = vadd.f32 0.0, %v4846
        %v4848 = vpop.f32.mrb[0].mxu0
        %v4849 = vpop.f32.mrb[0].mxu0
        %v4850 = vadd.f32 0.0, %v4849
        %v4851 = vpop.f32.mrb[0].mxu0
        %4852 = vmatprep.mubr.bf16.mxu0 0
        %4853 = vmatmul.mubr.bf16.gmra.mrb[0].mxu0 %v4691
        %v4854 = vpop.f32.mrb[0].mxu0
        %v4855 = vadd.f32 0.0, %v4854
        %v4856 = vpop.f32.mrb[0].mxu0
        %v4857 = vpop.f32.mrb[0].mxu0
        %v4858 = vadd.f32 0.0, %v4857
        %v4859 = vpop.f32.mrb[0].mxu0
        %4860 = vmatprep.mubr.bf16.mxu0 0
        %4861 = vmatmul.mubr.bf16.gmra.mrb[0].mxu0 %v4692
        %v4862 = vpop.f32.mrb[0].mxu0
        %v4863 = vadd.f32 0.0, %v4862
        %v4864 = vpop.f32.mrb[0].mxu0
        %v4865 = vpop.f32.mrb[0].mxu0
        %v4866 = vadd.f32 0.0, %v4865
        %v4867 = vpop.f32.mrb[0].mxu0
        %4868 = vmatprep.mubr.bf16.mxu0 0
        %4869 = vmatmul.mubr.bf16.gmra.mrb[0].mxu0 %v4693
        %v4870 = vpop.f32.mrb[0].mxu0
        %v4871 = vadd.f32 0.0, %v4870
        %v4872 = vpop.f32.mrb[0].mxu0
        %v4873 = vpop.f32.mrb[0].mxu0
        %v4874 = vadd.f32 0.0, %v4873
        %v4875 = vpop.f32.mrb[0].mxu0
        %4876 = vmatprep.mubr.bf16.mxu0 0
        %4877 = vmatmul.mubr.bf16.gmra.mrb[0].mxu0 %v4694
        %v4878 = vpop.f32.mrb[0].mxu0
        %v4879 = vadd.f32 0.0, %v4878
        %v4880 = vpop.f32.mrb[0].mxu0
        %v4881 = vpop.f32.mrb[0].mxu0
        %v4882 = vadd.f32 0.0, %v4881
        %v4883 = vpop.f32.mrb[0].mxu0
        %4884 = vmatprep.mubr.bf16.mxu0 0
        %4885 = vmatmul.mubr.bf16.gmra.mrb[0].mxu0 %v4695
        %v4886 = vpop.f32.mrb[0].mxu0
        %v4887 = vadd.f32 0.0, %v4886
        %v4888 = vpop.f32.mrb[0].mxu0
        %v4889 = vpop.f32.mrb[0].mxu0
        %v4890 = vadd.f32 0.0, %v4889
        %v4891 = vpop.f32.mrb[0].mxu0
        %4892 = vmatprep.mubr.bf16.mxu0 0
        %4893 = vmatmul.mubr.bf16.gmra.mrb[0].mxu0 %v4696
        %v4894 = vpop.f32.mrb[0].mxu0
        %v4895 = vadd.f32 0.0, %v4894
        %v4896 = vpop.f32.mrb[0].mxu0
        %v4897 = vpop.f32.mrb[0].mxu0
        %v4898 = vadd.f32 0.0, %v4897
        %v4899 = vpop.f32.mrb[0].mxu0
        %4900 = vmatprep.mubr.bf16.mxu0 0
        %4901 = vmatmul.mubr.bf16.gmra.mrb[0].mxu0 %v4697
        %v4902 = vpop.f32.mrb[0].mxu0
        %v4903 = vadd.f32 0.0, %v4902
        %v4904 = vpop.f32.mrb[0].mxu0
        %v4905 = vpop.f32.mrb[0].mxu0
        %v4906 = vadd.f32 0.0, %v4905
        %v4907 = vpop.f32.mrb[0].mxu0
        %4908 = vmatprep.mubr.bf16.mxu0 0
        %4909 = vmatmul.mubr.bf16.gmra.mrb[0].mxu0 %v4698
        %v4910 = vpop.f32.mrb[0].mxu0
        %v4911 = vadd.f32 0.0, %v4910
        %v4912 = vpop.f32.mrb[0].mxu0
        %v4913 = vpop.f32.mrb[0].mxu0
        %v4914 = vadd.f32 0.0, %v4913
        %v4915 = vpop.f32.mrb[0].mxu0
        %4916 = vmatprep.mubr.bf16.mxu0 0
        %4917 = vmatmul.mubr.bf16.gmra.mrb[0].mxu0 %v4699
        %v4918 = vpop.f32.mrb[0].mxu0
        %v4919 = vadd.f32 0.0, %v4918
        %v4920 = vpop.f32.mrb[0].mxu0
        %v4921 = vpop.f32.mrb[0].mxu0
        %v4922 = vadd.f32 0.0, %v4921
        %v4923 = vpop.f32.mrb[0].mxu0
        %4924 = vdwg.mxu0
        %v4925 = vadd.f32 %v4572, %v4799
        %v4926 = vadd.f32 %v4573, %v4802
        %v4927 = vadd.f32 %v4574, %v4807
        %v4928 = vadd.f32 %v4575, %v4810
        %v4929 = vadd.f32 %v4576, %v4815
        %v4930 = vadd.f32 %v4577, %v4818
        %v4931 = vadd.f32 %v4578, %v4823
        %v4932 = vadd.f32 %v4579, %v4826
        %v4933 = vadd.f32 %v4580, %v4831
        %v4934 = vadd.f32 %v4581, %v4834
        %v4935 = vadd.f32 %v4582, %v4839
        %v4936 = vadd.f32 %v4583, %v4842
        %v4937 = vadd.f32 %v4584, %v4847
        %v4938 = vadd.f32 %v4585, %v4850
        %v4939 = vadd.f32 %v4586, %v4855
        %v4940 = vadd.f32 %v4587, %v4858
        %v4941 = vadd.f32 %v4588, %v4863
        %v4942 = vadd.f32 %v4589, %v4866
        %v4943 = vadd.f32 %v4590, %v4871
        %v4944 = vadd.f32 %v4591, %v4874
        %v4945 = vadd.f32 %v4592, %v4879
        %v4946 = vadd.f32 %v4593, %v4882
        %v4947 = vadd.f32 %v4594, %v4887
        %v4948 = vadd.f32 %v4595, %v4890
        %v4949 = vadd.f32 %v4596, %v4895
        %v4950 = vadd.f32 %v4597, %v4898
        %v4951 = vadd.f32 %v4598, %v4903
        %v4952 = vadd.f32 %v4599, %v4906
        %v4953 = vadd.f32 %v4600, %v4911
        %v4954 = vadd.f32 %v4601, %v4914
        %v4955 = vadd.f32 %v4602, %v4919
        %v4956 = vadd.f32 %v4603, %v4922
        %4957 = vst [vmem:[#allocation4] sm:$0xff] %v4925
        %4958 = vst [vmem:[#allocation4 + $0x8] sm:$0xff] %v4926
        %4959 = vst [vmem:[#allocation4 + $0x10] sm:$0xff] %v4927
        %4960 = vst [vmem:[#allocation4 + $0x18] sm:$0xff] %v4928
        %4961 = vst [vmem:[#allocation4 + $0x20] sm:$0xff] %v4929
        %4962 = vst [vmem:[#allocation4 + $0x28] sm:$0xff] %v4930
        %4963 = vst [vmem:[#allocation4 + $0x30] sm:$0xff] %v4931
        %4964 = vst [vmem:[#allocation4 + $0x38] sm:$0xff] %v4932
        %4965 = vst [vmem:[#allocation4 + $0x40] sm:$0xff] %v4933
        %4966 = vst [vmem:[#allocation4 + $0x48] sm:$0xff] %v4934
        %4967 = vst [vmem:[#allocation4 + $0x50] sm:$0xff] %v4935
        %4968 = vst [vmem:[#allocation4 + $0x58] sm:$0xff] %v4936
        %4969 = vst [vmem:[#allocation4 + $0x60] sm:$0xff] %v4937
        %4970 = vst [vmem:[#allocation4 + $0x68] sm:$0xff] %v4938
        %4971 = vst [vmem:[#allocation4 + $0x70] sm:$0xff] %v4939
        %4972 = vst [vmem:[#allocation4 + $0x78] sm:$0xff] %v4940
        %4973 = vst [vmem:[#allocation4 + $0x80] sm:$0xff] %v4941
        %4974 = vst [vmem:[#allocation4 + $0x88] sm:$0xff] %v4942
        %4975 = vst [vmem:[#allocation4 + $0x90] sm:$0xff] %v4943
        %4976 = vst [vmem:[#allocation4 + $0x98] sm:$0xff] %v4944
        %4977 = vst [vmem:[#allocation4 + $0xa0] sm:$0xff] %v4945
        %4978 = vst [vmem:[#allocation4 + $0xa8] sm:$0xff] %v4946
        %4979 = vst [vmem:[#allocation4 + $0xb0] sm:$0xff] %v4947
        %4980 = vst [vmem:[#allocation4 + $0xb8] sm:$0xff] %v4948
        %4981 = vst [vmem:[#allocation4 + $0xc0] sm:$0xff] %v4949
        %4982 = vst [vmem:[#allocation4 + $0xc8] sm:$0xff] %v4950
        %4983 = vst [vmem:[#allocation4 + $0xd0] sm:$0xff] %v4951
        %4984 = vst [vmem:[#allocation4 + $0xd8] sm:$0xff] %v4952
        %4985 = vst [vmem:[#allocation4 + $0xe0] sm:$0xff] %v4953
        %4986 = vst [vmem:[#allocation4 + $0xe8] sm:$0xff] %v4954
        %4987 = vst [vmem:[#allocation4 + $0xf0] sm:$0xff] %v4955
        %4988 = vst [vmem:[#allocation4 + $0xf8] sm:$0xff] %v4956
        %v4989 = vld [vmem:[#allocation3] sm:$0xf]
        %v4990 = vld [vmem:[#allocation3 + $0x4] sm:$0xf]
        %v4991 = vld [vmem:[#allocation3 + $0x8] sm:$0x1]
        %v4992 = vld [vmem:[#allocation3 + $0xc] sm:$0xf]
        %v4993 = vld [vmem:[#allocation3 + $0x10] sm:$0xf]
        %v4994 = vld [vmem:[#allocation3 + $0x14] sm:$0x1]
        %v4995 = vld [vmem:[#allocation3 + $0x18] sm:$0xf]
        %v4996 = vld [vmem:[#allocation3 + $0x1c] sm:$0xf]
        %v4997 = vld [vmem:[#allocation3 + $0x20] sm:$0x1]
        %v4998 = vld [vmem:[#allocation3 + $0x24] sm:$0xf]
        %v4999 = vld [vmem:[#allocation3 + $0x28] sm:$0xf]
        %v5000 = vld [vmem:[#allocation3 + $0x2c] sm:$0x1]
        %v5001 = vld [vmem:[#allocation3 + $0x30] sm:$0xf]
        %v5002 = vld [vmem:[#allocation3 + $0x34] sm:$0xf]
        %v5003 = vld [vmem:[#allocation3 + $0x38] sm:$0x1]
        %v5004 = vld [vmem:[#allocation3 + $0x3c] sm:$0xf]
        %v5005 = vld [vmem:[#allocation3 + $0x40] sm:$0xf]
        %v5006 = vld [vmem:[#allocation3 + $0x44] sm:$0x1]
        %v5007 = vld [vmem:[#allocation3 + $0x48] sm:$0xf]
        %v5008 = vld [vmem:[#allocation3 + $0x4c] sm:$0xf]
        %v5009 = vld [vmem:[#allocation3 + $0x50] sm:$0x1]
        %v5010 = vld [vmem:[#allocation3 + $0x54] sm:$0xf]
        %v5011 = vld [vmem:[#allocation3 + $0x58] sm:$0xf]
        %v5012 = vld [vmem:[#allocation3 + $0x5c] sm:$0x1]
        %v5013 = vld [vmem:[#allocation3 + $0x60] sm:$0xf]
        %v5014 = vld [vmem:[#allocation3 + $0x64] sm:$0xf]
        %v5015 = vld [vmem:[#allocation3 + $0x68] sm:$0x1]
        %v5016 = vld [vmem:[#allocation3 + $0x6c] sm:$0xf]
        %v5017 = vld [vmem:[#allocation3 + $0x70] sm:$0xf]
        %v5018 = vld [vmem:[#allocation3 + $0x74] sm:$0x1]
        %v5019 = vld [vmem:[#allocation3 + $0x78] sm:$0xf]
        %v5020 = vld [vmem:[#allocation3 + $0x7c] sm:$0xf]
        %v5021 = vld [vmem:[#allocation3 + $0x80] sm:$0x1]
        %v5022 = vld [vmem:[#allocation3 + $0x84] sm:$0xf]
        %v5023 = vld [vmem:[#allocation3 + $0x88] sm:$0xf]
        %v5024 = vld [vmem:[#allocation3 + $0x8c] sm:$0x1]
        %v5025 = vld [vmem:[#allocation3 + $0x90] sm:$0xf]
        %v5026 = vld [vmem:[#allocation3 + $0x94] sm:$0xf]
        %v5027 = vld [vmem:[#allocation3 + $0x98] sm:$0x1]
        %v5028 = vld [vmem:[#allocation3 + $0x9c] sm:$0xf]
        %v5029 = vld [vmem:[#allocation3 + $0xa0] sm:$0xf]
        %v5030 = vld [vmem:[#allocation3 + $0xa4] sm:$0x1]
        %v5031 = vld [vmem:[#allocation3 + $0xa8] sm:$0xf]
        %v5032 = vld [vmem:[#allocation3 + $0xac] sm:$0xf]
        %v5033 = vld [vmem:[#allocation3 + $0xb0] sm:$0x1]
        %v5034 = vld [vmem:[#allocation3 + $0xb4] sm:$0xf]
        %v5035 = vld [vmem:[#allocation3 + $0xb8] sm:$0xf]
        %v5036 = vld [vmem:[#allocation3 + $0xbc] sm:$0x1]
        %vm5037 = vsmask.f32 3328
        %vm5038 = vsmask.f32 7440
        %vm5039 = vmor %vm5037, %vm5038
        %v5041 = vshrl.u32 %v4989, 16
        %v5043 = vrot.slane %v5041, 4
        %v5044 = vshll.u32 %v4989, 16
        %v5046 = vrot.slane %v5044, 5
        %v5047 = vor.u32 %v5043, %v5046
        %v5048 = vrot.slane %v5047, 4
        %v5050 = vshll.u32 %v4990, 16
        %v5052 = vrot.slane %v5050, 5
        %v5053 = vsel %vm5039, %v5048, %v5052
        %v5054 = vshrl.u32 %v4990, 16
        %v5056 = vrot.slane %v5054, 4
        %v5057 = vor.u32 %v5056, %v5052
        %v5058 = vrot.slane %v5057, 4
        %v5060 = vshll.u32 %v4991, 16
        %v5062 = vrot.slane %v5060, 5
        %v5063 = vsel %vm5039, %v5058, %v5062
        %v5065 = vshrl.u32 %v4992, 16
        %v5067 = vrot.slane %v5065, 4
        %v5068 = vshll.u32 %v4992, 16
        %v5070 = vrot.slane %v5068, 5
        %v5071 = vor.u32 %v5067, %v5070
        %v5072 = vrot.slane %v5071, 4
        %v5074 = vshll.u32 %v4993, 16
        %v5076 = vrot.slane %v5074, 5
        %v5077 = vsel %vm5039, %v5072, %v5076
        %v5078 = vshrl.u32 %v4993, 16
        %v5080 = vrot.slane %v5078, 4
        %v5081 = vor.u32 %v5080, %v5076
        %v5082 = vrot.slane %v5081, 4
        %v5084 = vshll.u32 %v4994, 16
        %v5086 = vrot.slane %v5084, 5
        %v5087 = vsel %vm5039, %v5082, %v5086
        %v5089 = vshrl.u32 %v4995, 16
        %v5091 = vrot.slane %v5089, 4
        %v5092 = vshll.u32 %v4995, 16
        %v5094 = vrot.slane %v5092, 5
        %v5095 = vor.u32 %v5091, %v5094
        %v5096 = vrot.slane %v5095, 4
        %v5098 = vshll.u32 %v4996, 16
        %v5100 = vrot.slane %v5098, 5
        %v5101 = vsel %vm5039, %v5096, %v5100
        %v5102 = vshrl.u32 %v4996, 16
        %v5104 = vrot.slane %v5102, 4
        %v5105 = vor.u32 %v5104, %v5100
        %v5106 = vrot.slane %v5105, 4
        %v5108 = vshll.u32 %v4997, 16
        %v5110 = vrot.slane %v5108, 5
        %v5111 = vsel %vm5039, %v5106, %v5110
        %v5113 = vshrl.u32 %v4998, 16
        %v5115 = vrot.slane %v5113, 4
        %v5116 = vshll.u32 %v4998, 16
        %v5118 = vrot.slane %v5116, 5
        %v5119 = vor.u32 %v5115, %v5118
        %v5120 = vrot.slane %v5119, 4
        %v5122 = vshll.u32 %v4999, 16
        %v5124 = vrot.slane %v5122, 5
        %v5125 = vsel %vm5039, %v5120, %v5124
        %v5126 = vshrl.u32 %v4999, 16
        %v5128 = vrot.slane %v5126, 4
        %v5129 = vor.u32 %v5128, %v5124
        %v5130 = vrot.slane %v5129, 4
        %v5132 = vshll.u32 %v5000, 16
        %v5134 = vrot.slane %v5132, 5
        %v5135 = vsel %vm5039, %v5130, %v5134
        %v5137 = vshrl.u32 %v5001, 16
        %v5139 = vrot.slane %v5137, 4
        %v5140 = vshll.u32 %v5001, 16
        %v5142 = vrot.slane %v5140, 5
        %v5143 = vor.u32 %v5139, %v5142
        %v5144 = vrot.slane %v5143, 4
        %v5146 = vshll.u32 %v5002, 16
        %v5148 = vrot.slane %v5146, 5
        %v5149 = vsel %vm5039, %v5144, %v5148
        %v5150 = vshrl.u32 %v5002, 16
        %v5152 = vrot.slane %v5150, 4
        %v5153 = vor.u32 %v5152, %v5148
        %v5154 = vrot.slane %v5153, 4
        %v5156 = vshll.u32 %v5003, 16
        %v5158 = vrot.slane %v5156, 5
        %v5159 = vsel %vm5039, %v5154, %v5158
        %v5161 = vshrl.u32 %v5004, 16
        %v5163 = vrot.slane %v5161, 4
        %v5164 = vshll.u32 %v5004, 16
        %v5166 = vrot.slane %v5164, 5
        %v5167 = vor.u32 %v5163, %v5166
        %v5168 = vrot.slane %v5167, 4
        %v5170 = vshll.u32 %v5005, 16
        %v5172 = vrot.slane %v5170, 5
        %v5173 = vsel %vm5039, %v5168, %v5172
        %v5174 = vshrl.u32 %v5005, 16
        %v5176 = vrot.slane %v5174, 4
        %v5177 = vor.u32 %v5176, %v5172
        %v5178 = vrot.slane %v5177, 4
        %v5180 = vshll.u32 %v5006, 16
        %v5182 = vrot.slane %v5180, 5
        %v5183 = vsel %vm5039, %v5178, %v5182
        %v5185 = vshrl.u32 %v5007, 16
        %v5187 = vrot.slane %v5185, 4
        %v5188 = vshll.u32 %v5007, 16
        %v5190 = vrot.slane %v5188, 5
        %v5191 = vor.u32 %v5187, %v5190
        %v5192 = vrot.slane %v5191, 4
        %v5194 = vshll.u32 %v5008, 16
        %v5196 = vrot.slane %v5194, 5
        %v5197 = vsel %vm5039, %v5192, %v5196
        %v5198 = vshrl.u32 %v5008, 16
        %v5200 = vrot.slane %v5198, 4
        %v5201 = vor.u32 %v5200, %v5196
        %v5202 = vrot.slane %v5201, 4
        %v5204 = vshll.u32 %v5009, 16
        %v5206 = vrot.slane %v5204, 5
        %v5207 = vsel %vm5039, %v5202, %v5206
        %v5209 = vshrl.u32 %v5010, 16
        %v5211 = vrot.slane %v5209, 4
        %v5212 = vshll.u32 %v5010, 16
        %v5214 = vrot.slane %v5212, 5
        %v5215 = vor.u32 %v5211, %v5214
        %v5216 = vrot.slane %v5215, 4
        %v5218 = vshll.u32 %v5011, 16
        %v5220 = vrot.slane %v5218, 5
        %v5221 = vsel %vm5039, %v5216, %v5220
        %v5222 = vshrl.u32 %v5011, 16
        %v5224 = vrot.slane %v5222, 4
        %v5225 = vor.u32 %v5224, %v5220
        %v5226 = vrot.slane %v5225, 4
        %v5228 = vshll.u32 %v5012, 16
        %v5230 = vrot.slane %v5228, 5
        %v5231 = vsel %vm5039, %v5226, %v5230
        %v5233 = vshrl.u32 %v5013, 16
        %v5235 = vrot.slane %v5233, 4
        %v5236 = vshll.u32 %v5013, 16
        %v5238 = vrot.slane %v5236, 5
        %v5239 = vor.u32 %v5235, %v5238
        %v5240 = vrot.slane %v5239, 4
        %v5242 = vshll.u32 %v5014, 16
        %v5244 = vrot.slane %v5242, 5
        %v5245 = vsel %vm5039, %v5240, %v5244
        %v5246 = vshrl.u32 %v5014, 16
        %v5248 = vrot.slane %v5246, 4
        %v5249 = vor.u32 %v5248, %v5244
        %v5250 = vrot.slane %v5249, 4
        %v5252 = vshll.u32 %v5015, 16
        %v5254 = vrot.slane %v5252, 5
        %v5255 = vsel %vm5039, %v5250, %v5254
        %v5257 = vshrl.u32 %v5016, 16
        %v5259 = vrot.slane %v5257, 4
        %v5260 = vshll.u32 %v5016, 16
        %v5262 = vrot.slane %v5260, 5
        %v5263 = vor.u32 %v5259, %v5262
        %v5264 = vrot.slane %v5263, 4
        %v5266 = vshll.u32 %v5017, 16
        %v5268 = vrot.slane %v5266, 5
        %v5269 = vsel %vm5039, %v5264, %v5268
        %v5270 = vshrl.u32 %v5017, 16
        %v5272 = vrot.slane %v5270, 4
        %v5273 = vor.u32 %v5272, %v5268
        %v5274 = vrot.slane %v5273, 4
        %v5276 = vshll.u32 %v5018, 16
        %v5278 = vrot.slane %v5276, 5
        %v5279 = vsel %vm5039, %v5274, %v5278
        %v5281 = vshrl.u32 %v5019, 16
        %v5283 = vrot.slane %v5281, 4
        %v5284 = vshll.u32 %v5019, 16
        %v5286 = vrot.slane %v5284, 5
        %v5287 = vor.u32 %v5283, %v5286
        %v5288 = vrot.slane %v5287, 4
        %v5290 = vshll.u32 %v5020, 16
        %v5292 = vrot.slane %v5290, 5
        %v5293 = vsel %vm5039, %v5288, %v5292
        %v5294 = vshrl.u32 %v5020, 16
        %v5296 = vrot.slane %v5294, 4
        %v5297 = vor.u32 %v5296, %v5292
        %v5298 = vrot.slane %v5297, 4
        %v5300 = vshll.u32 %v5021, 16
        %v5302 = vrot.slane %v5300, 5
        %v5303 = vsel %vm5039, %v5298, %v5302
        %v5305 = vshrl.u32 %v5022, 16
        %v5307 = vrot.slane %v5305, 4
        %v5308 = vshll.u32 %v5022, 16
        %v5310 = vrot.slane %v5308, 5
        %v5311 = vor.u32 %v5307, %v5310
        %v5312 = vrot.slane %v5311, 4
        %v5314 = vshll.u32 %v5023, 16
        %v5316 = vrot.slane %v5314, 5
        %v5317 = vsel %vm5039, %v5312, %v5316
        %v5318 = vshrl.u32 %v5023, 16
        %v5320 = vrot.slane %v5318, 4
        %v5321 = vor.u32 %v5320, %v5316
        %v5322 = vrot.slane %v5321, 4
        %v5324 = vshll.u32 %v5024, 16
        %v5326 = vrot.slane %v5324, 5
        %v5327 = vsel %vm5039, %v5322, %v5326
        %v5329 = vshrl.u32 %v5025, 16
        %v5331 = vrot.slane %v5329, 4
        %v5332 = vshll.u32 %v5025, 16
        %v5334 = vrot.slane %v5332, 5
        %v5335 = vor.u32 %v5331, %v5334
        %v5336 = vrot.slane %v5335, 4
        %v5338 = vshll.u32 %v5026, 16
        %v5340 = vrot.slane %v5338, 5
        %v5341 = vsel %vm5039, %v5336, %v5340
        %v5342 = vshrl.u32 %v5026, 16
        %v5344 = vrot.slane %v5342, 4
        %v5345 = vor.u32 %v5344, %v5340
        %v5346 = vrot.slane %v5345, 4
        %v5348 = vshll.u32 %v5027, 16
        %v5350 = vrot.slane %v5348, 5
        %v5351 = vsel %vm5039, %v5346, %v5350
        %v5353 = vshrl.u32 %v5028, 16
        %v5355 = vrot.slane %v5353, 4
        %v5356 = vshll.u32 %v5028, 16
        %v5358 = vrot.slane %v5356, 5
        %v5359 = vor.u32 %v5355, %v5358
        %v5360 = vrot.slane %v5359, 4
        %v5362 = vshll.u32 %v5029, 16
        %v5364 = vrot.slane %v5362, 5
        %v5365 = vsel %vm5039, %v5360, %v5364
        %v5366 = vshrl.u32 %v5029, 16
        %v5368 = vrot.slane %v5366, 4
        %v5369 = vor.u32 %v5368, %v5364
        %v5370 = vrot.slane %v5369, 4
        %v5372 = vshll.u32 %v5030, 16
        %v5374 = vrot.slane %v5372, 5
        %v5375 = vsel %vm5039, %v5370, %v5374
        %v5377 = vshrl.u32 %v5031, 16
        %v5379 = vrot.slane %v5377, 4
        %v5380 = vshll.u32 %v5031, 16
        %v5382 = vrot.slane %v5380, 5
        %v5383 = vor.u32 %v5379, %v5382
        %v5384 = vrot.slane %v5383, 4
        %v5386 = vshll.u32 %v5032, 16
        %v5388 = vrot.slane %v5386, 5
        %v5389 = vsel %vm5039, %v5384, %v5388
        %v5390 = vshrl.u32 %v5032, 16
        %v5392 = vrot.slane %v5390, 4
        %v5393 = vor.u32 %v5392, %v5388
        %v5394 = vrot.slane %v5393, 4
        %v5396 = vshll.u32 %v5033, 16
        %v5398 = vrot.slane %v5396, 5
        %v5399 = vsel %vm5039, %v5394, %v5398
        %v5401 = vshrl.u32 %v5034, 16
        %v5403 = vrot.slane %v5401, 4
        %v5404 = vshll.u32 %v5034, 16
        %v5406 = vrot.slane %v5404, 5
        %v5407 = vor.u32 %v5403, %v5406
        %v5408 = vrot.slane %v5407, 4
        %v5410 = vshll.u32 %v5035, 16
        %v5412 = vrot.slane %v5410, 5
        %v5413 = vsel %vm5039, %v5408, %v5412
        %v5414 = vshrl.u32 %v5035, 16
        %v5416 = vrot.slane %v5414, 4
        %v5417 = vor.u32 %v5416, %v5412
        %v5418 = vrot.slane %v5417, 4
        %v5420 = vshll.u32 %v5036, 16
        %v5422 = vrot.slane %v5420, 5
        %v5423 = vsel %vm5039, %v5418, %v5422
        %v5424 = vld [vmem:[#allocation4] sm:$0xff]
        %v5425 = vld [vmem:[#allocation4 + $0x8] sm:$0xff]
        %v5426 = vld [vmem:[#allocation4 + $0x10] sm:$0xff]
        %v5427 = vld [vmem:[#allocation4 + $0x18] sm:$0xff]
        %v5428 = vld [vmem:[#allocation4 + $0x20] sm:$0xff]
        %v5429 = vld [vmem:[#allocation4 + $0x28] sm:$0xff]
        %v5430 = vld [vmem:[#allocation4 + $0x30] sm:$0xff]
        %v5431 = vld [vmem:[#allocation4 + $0x38] sm:$0xff]
        %v5432 = vld [vmem:[#allocation4 + $0x40] sm:$0xff]
        %v5433 = vld [vmem:[#allocation4 + $0x48] sm:$0xff]
        %v5434 = vld [vmem:[#allocation4 + $0x50] sm:$0xff]
        %v5435 = vld [vmem:[#allocation4 + $0x58] sm:$0xff]
        %v5436 = vld [vmem:[#allocation4 + $0x60] sm:$0xff]
        %v5437 = vld [vmem:[#allocation4 + $0x68] sm:$0xff]
        %v5438 = vld [vmem:[#allocation4 + $0x70] sm:$0xff]
        %v5439 = vld [vmem:[#allocation4 + $0x78] sm:$0xff]
        %v5440 = vld [vmem:[#allocation4 + $0x80] sm:$0xff]
        %v5441 = vld [vmem:[#allocation4 + $0x88] sm:$0xff]
        %v5442 = vld [vmem:[#allocation4 + $0x90] sm:$0xff]
        %v5443 = vld [vmem:[#allocation4 + $0x98] sm:$0xff]
        %v5444 = vld [vmem:[#allocation4 + $0xa0] sm:$0xff]
        %v5445 = vld [vmem:[#allocation4 + $0xa8] sm:$0xff]
        %v5446 = vld [vmem:[#allocation4 + $0xb0] sm:$0xff]
        %v5447 = vld [vmem:[#allocation4 + $0xb8] sm:$0xff]
        %v5448 = vld [vmem:[#allocation4 + $0xc0] sm:$0xff]
        %v5449 = vld [vmem:[#allocation4 + $0xc8] sm:$0xff]
        %v5450 = vld [vmem:[#allocation4 + $0xd0] sm:$0xff]
        %v5451 = vld [vmem:[#allocation4 + $0xd8] sm:$0xff]
        %v5452 = vld [vmem:[#allocation4 + $0xe0] sm:$0xff]
        %v5453 = vld [vmem:[#allocation4 + $0xe8] sm:$0xff]
        %v5454 = vld [vmem:[#allocation4 + $0xf0] sm:$0xff]
        %v5455 = vld [vmem:[#allocation4 + $0xf8] sm:$0xff]
        %s5456 = scalar_lea.vmem [#allocation5], 64
        %v5457 = vld [vmem:[%s5456] sm:$0xf]
        %v5458 = vld [vmem:[%s5456 + $0x4] sm:$0xf]
        %v5459 = vld [vmem:[%s5456 + $0x8] sm:$0xf]
        %v5460 = vld [vmem:[%s5456 + $0xc] sm:$0xf]
        %v5461 = vld [vmem:[%s5456 + $0x10] sm:$0xf]
        %v5462 = vld [vmem:[%s5456 + $0x14] sm:$0xf]
        %v5463 = vld [vmem:[%s5456 + $0x18] sm:$0xf]
        %v5464 = vld [vmem:[%s5456 + $0x1c] sm:$0xf]
        %v5465 = vld [vmem:[%s5456 + $0x20] sm:$0xf]
        %v5466 = vld [vmem:[%s5456 + $0x24] sm:$0xf]
        %v5467 = vld [vmem:[%s5456 + $0x28] sm:$0xf]
        %v5468 = vld [vmem:[%s5456 + $0x2c] sm:$0xf]
        %v5469 = vld [vmem:[%s5456 + $0x30] sm:$0xf]
        %v5470 = vld [vmem:[%s5456 + $0x34] sm:$0xf]
        %v5471 = vld [vmem:[%s5456 + $0x38] sm:$0xf]
        %v5472 = vld [vmem:[%s5456 + $0x3c] sm:$0xf]
        %v5473 = vunpack.c.l.b16 %v5053
        %v5474 = vunpack.c.l.b16 %v5063
        %v5475 = vunpack.c.l.b16 %v5077
        %v5476 = vunpack.c.l.b16 %v5087
        %v5477 = vunpack.c.l.b16 %v5101
        %v5478 = vunpack.c.l.b16 %v5111
        %v5479 = vunpack.c.l.b16 %v5125
        %v5480 = vunpack.c.l.b16 %v5135
        %v5481 = vunpack.c.l.b16 %v5149
        %v5482 = vunpack.c.l.b16 %v5159
        %v5483 = vunpack.c.l.b16 %v5173
        %v5484 = vunpack.c.l.b16 %v5183
        %v5485 = vunpack.c.l.b16 %v5197
        %v5486 = vunpack.c.l.b16 %v5207
        %v5487 = vunpack.c.l.b16 %v5221
        %v5488 = vunpack.c.l.b16 %v5231
        %v5489 = vunpack.c.l.b16 %v5245
        %v5490 = vunpack.c.l.b16 %v5255
        %v5491 = vunpack.c.l.b16 %v5269
        %v5492 = vunpack.c.l.b16 %v5279
        %v5493 = vunpack.c.l.b16 %v5293
        %v5494 = vunpack.c.l.b16 %v5303
        %v5495 = vunpack.c.l.b16 %v5317
        %v5496 = vunpack.c.l.b16 %v5327
        %v5497 = vunpack.c.l.b16 %v5341
        %v5498 = vunpack.c.l.b16 %v5351
        %v5499 = vunpack.c.l.b16 %v5365
        %v5500 = vunpack.c.l.b16 %v5375
        %v5501 = vunpack.c.l.b16 %v5389
        %v5502 = vunpack.c.l.b16 %v5399
        %v5503 = vunpack.c.l.b16 %v5413
        %v5504 = vunpack.c.l.b16 %v5423
        %v5505 = vpack.c.b16 %v5474, %v5473
        %v5506 = vpack.c.b16 %v5476, %v5475
        %v5507 = vpack.c.b16 %v5478, %v5477
        %v5508 = vpack.c.b16 %v5480, %v5479
        %v5509 = vpack.c.b16 %v5482, %v5481
        %v5510 = vpack.c.b16 %v5484, %v5483
        %v5511 = vpack.c.b16 %v5486, %v5485
        %v5512 = vpack.c.b16 %v5488, %v5487
        %v5513 = vpack.c.b16 %v5490, %v5489
        %v5514 = vpack.c.b16 %v5492, %v5491
        %v5515 = vpack.c.b16 %v5494, %v5493
        %v5516 = vpack.c.b16 %v5496, %v5495
        %v5517 = vpack.c.b16 %v5498, %v5497
        %v5518 = vpack.c.b16 %v5500, %v5499
        %v5519 = vpack.c.b16 %v5502, %v5501
        %v5520 = vpack.c.b16 %v5504, %v5503
        %v5553 = vunpack.c.l.b16 %v5457
        %v5554 = vunpack.c.l.b16 %v5458
        %v5555 = vunpack.c.l.b16 %v5459
        %v5556 = vunpack.c.l.b16 %v5460
        %v5557 = vunpack.c.l.b16 %v5461
        %v5558 = vunpack.c.l.b16 %v5462
        %v5559 = vunpack.c.l.b16 %v5463
        %v5560 = vunpack.c.l.b16 %v5464
        %v5561 = vunpack.c.l.b16 %v5465
        %v5562 = vunpack.c.l.b16 %v5466
        %v5563 = vunpack.c.l.b16 %v5467
        %v5564 = vunpack.c.l.b16 %v5468
        %v5565 = vunpack.c.l.b16 %v5469
        %v5566 = vunpack.c.l.b16 %v5470
        %v5567 = vunpack.c.l.b16 %v5471
        %v5568 = vunpack.c.l.b16 %v5472
        %v5569 = vpack.c.b16 %v5554, %v5553
        %v5570 = vpack.c.b16 %v5556, %v5555
        %v5571 = vpack.c.b16 %v5558, %v5557
        %v5572 = vpack.c.b16 %v5560, %v5559
        %v5573 = vpack.c.b16 %v5562, %v5561
        %v5574 = vpack.c.b16 %v5564, %v5563
        %v5575 = vpack.c.b16 %v5566, %v5565
        %v5576 = vpack.c.b16 %v5568, %v5567
        %5585 = vmatprep.subr.bf16.mxu0 0
        %5586 = vmatpush1.bf16.msra.mxu0 %v5569
        %5587 = vmatprep.subr.bf16.mxu0 0
        %5588 = vmatpush1.bf16.msra.mxu0 %v5570
        %5589 = vmatprep.subr.bf16.mxu0 0
        %5590 = vmatpush1.bf16.msra.mxu0 %v5571
        %5591 = vmatprep.subr.bf16.mxu0 0
        %5592 = vmatpush1.bf16.msra.mxu0 %v5572
        %5593 = vmatprep.subr.bf16.mxu0 0
        %5594 = vmatpush1.bf16.msra.mxu0 %v5573
        %5595 = vmatprep.subr.bf16.mxu0 0
        %5596 = vmatpush1.bf16.msra.mxu0 %v5574
        %5597 = vmatprep.subr.bf16.mxu0 0
        %5598 = vmatpush1.bf16.msra.mxu0 %v5575
        %5599 = vmatprep.subr.bf16.mxu0 0
        %5600 = vmatpush1.bf16.msra.mxu0 %v5576
        %5601 = vmatprep.subr.bf16.mxu0 0
        %5602 = vmatpush1.bf16.msra.mxu0 0
        %5603 = vmatprep.subr.bf16.mxu0 0
        %5604 = vmatpush1.bf16.msra.mxu0 0
        %5605 = vmatprep.subr.bf16.mxu0 0
        %5606 = vmatpush1.bf16.msra.mxu0 0
        %5607 = vmatprep.subr.bf16.mxu0 0
        %5608 = vmatpush1.bf16.msra.mxu0 0
        %5609 = vmatprep.subr.bf16.mxu0 0
        %5610 = vmatpush1.bf16.msra.mxu0 0
        %5611 = vmatprep.subr.bf16.mxu0 0
        %5612 = vmatpush1.bf16.msra.mxu0 0
        %5613 = vmatprep.subr.bf16.mxu0 0
        %5614 = vmatpush1.bf16.msra.mxu0 0
        %5615 = vmatprep.subr.bf16.mxu0 0
        %5616 = vmatpush1.bf16.msra.mxu0 0
        %5617 = vmatprep.mubr.bf16.mxu0 0
        %5618 = vmatmul.mubr.bf16.gmra.mrb[0].mxu0 %v5505
        %v5619 = vpop.f32.mrb[0].mxu0
        %v5620 = vadd.f32 0.0, %v5619
        %v5621 = vpop.f32.mrb[0].mxu0
        %v5622 = vpop.f32.mrb[0].mxu0
        %v5623 = vadd.f32 0.0, %v5622
        %v5624 = vpop.f32.mrb[0].mxu0
        %5625 = vmatprep.mubr.bf16.mxu0 0
        %5626 = vmatmul.mubr.bf16.gmra.mrb[0].mxu0 %v5506
        %v5627 = vpop.f32.mrb[0].mxu0
        %v5628 = vadd.f32 0.0, %v5627
        %v5629 = vpop.f32.mrb[0].mxu0
        %v5630 = vpop.f32.mrb[0].mxu0
        %v5631 = vadd.f32 0.0, %v5630
        %v5632 = vpop.f32.mrb[0].mxu0
        %5633 = vmatprep.mubr.bf16.mxu0 0
        %5634 = vmatmul.mubr.bf16.gmra.mrb[0].mxu0 %v5507
        %v5635 = vpop.f32.mrb[0].mxu0
        %v5636 = vadd.f32 0.0, %v5635
        %v5637 = vpop.f32.mrb[0].mxu0
        %v5638 = vpop.f32.mrb[0].mxu0
        %v5639 = vadd.f32 0.0, %v5638
        %v5640 = vpop.f32.mrb[0].mxu0
        %5641 = vmatprep.mubr.bf16.mxu0 0
        %5642 = vmatmul.mubr.bf16.gmra.mrb[0].mxu0 %v5508
        %v5643 = vpop.f32.mrb[0].mxu0
        %v5644 = vadd.f32 0.0, %v5643
        %v5645 = vpop.f32.mrb[0].mxu0
        %v5646 = vpop.f32.mrb[0].mxu0
        %v5647 = vadd.f32 0.0, %v5646
        %v5648 = vpop.f32.mrb[0].mxu0
        %5649 = vmatprep.mubr.bf16.mxu0 0
        %5650 = vmatmul.mubr.bf16.gmra.mrb[0].mxu0 %v5509
        %v5651 = vpop.f32.mrb[0].mxu0
        %v5652 = vadd.f32 0.0, %v5651
        %v5653 = vpop.f32.mrb[0].mxu0
        %v5654 = vpop.f32.mrb[0].mxu0
        %v5655 = vadd.f32 0.0, %v5654
        %v5656 = vpop.f32.mrb[0].mxu0
        %5657 = vmatprep.mubr.bf16.mxu0 0
        %5658 = vmatmul.mubr.bf16.gmra.mrb[0].mxu0 %v5510
        %v5659 = vpop.f32.mrb[0].mxu0
        %v5660 = vadd.f32 0.0, %v5659
        %v5661 = vpop.f32.mrb[0].mxu0
        %v5662 = vpop.f32.mrb[0].mxu0
        %v5663 = vadd.f32 0.0, %v5662
        %v5664 = vpop.f32.mrb[0].mxu0
        %5665 = vmatprep.mubr.bf16.mxu0 0
        %5666 = vmatmul.mubr.bf16.gmra.mrb[0].mxu0 %v5511
        %v5667 = vpop.f32.mrb[0].mxu0
        %v5668 = vadd.f32 0.0, %v5667
        %v5669 = vpop.f32.mrb[0].mxu0
        %v5670 = vpop.f32.mrb[0].mxu0
        %v5671 = vadd.f32 0.0, %v5670
        %v5672 = vpop.f32.mrb[0].mxu0
        %5673 = vmatprep.mubr.bf16.mxu0 0
        %5674 = vmatmul.mubr.bf16.gmra.mrb[0].mxu0 %v5512
        %v5675 = vpop.f32.mrb[0].mxu0
        %v5676 = vadd.f32 0.0, %v5675
        %v5677 = vpop.f32.mrb[0].mxu0
        %v5678 = vpop.f32.mrb[0].mxu0
        %v5679 = vadd.f32 0.0, %v5678
        %v5680 = vpop.f32.mrb[0].mxu0
        %5681 = vmatprep.mubr.bf16.mxu0 0
        %5682 = vmatmul.mubr.bf16.gmra.mrb[0].mxu0 %v5513
        %v5683 = vpop.f32.mrb[0].mxu0
        %v5684 = vadd.f32 0.0, %v5683
        %v5685 = vpop.f32.mrb[0].mxu0
        %v5686 = vpop.f32.mrb[0].mxu0
        %v5687 = vadd.f32 0.0, %v5686
        %v5688 = vpop.f32.mrb[0].mxu0
        %5689 = vmatprep.mubr.bf16.mxu0 0
        %5690 = vmatmul.mubr.bf16.gmra.mrb[0].mxu0 %v5514
        %v5691 = vpop.f32.mrb[0].mxu0
        %v5692 = vadd.f32 0.0, %v5691
        %v5693 = vpop.f32.mrb[0].mxu0
        %v5694 = vpop.f32.mrb[0].mxu0
        %v5695 = vadd.f32 0.0, %v5694
        %v5696 = vpop.f32.mrb[0].mxu0
        %5697 = vmatprep.mubr.bf16.mxu0 0
        %5698 = vmatmul.mubr.bf16.gmra.mrb[0].mxu0 %v5515
        %v5699 = vpop.f32.mrb[0].mxu0
        %v5700 = vadd.f32 0.0, %v5699
        %v5701 = vpop.f32.mrb[0].mxu0
        %v5702 = vpop.f32.mrb[0].mxu0
        %v5703 = vadd.f32 0.0, %v5702
        %v5704 = vpop.f32.mrb[0].mxu0
        %5705 = vmatprep.mubr.bf16.mxu0 0
        %5706 = vmatmul.mubr.bf16.gmra.mrb[0].mxu0 %v5516
        %v5707 = vpop.f32.mrb[0].mxu0
        %v5708 = vadd.f32 0.0, %v5707
        %v5709 = vpop.f32.mrb[0].mxu0
        %v5710 = vpop.f32.mrb[0].mxu0
        %v5711 = vadd.f32 0.0, %v5710
        %v5712 = vpop.f32.mrb[0].mxu0
        %5713 = vmatprep.mubr.bf16.mxu0 0
        %5714 = vmatmul.mubr.bf16.gmra.mrb[0].mxu0 %v5517
        %v5715 = vpop.f32.mrb[0].mxu0
        %v5716 = vadd.f32 0.0, %v5715
        %v5717 = vpop.f32.mrb[0].mxu0
        %v5718 = vpop.f32.mrb[0].mxu0
        %v5719 = vadd.f32 0.0, %v5718
        %v5720 = vpop.f32.mrb[0].mxu0
        %5721 = vmatprep.mubr.bf16.mxu0 0
        %5722 = vmatmul.mubr.bf16.gmra.mrb[0].mxu0 %v5518
        %v5723 = vpop.f32.mrb[0].mxu0
        %v5724 = vadd.f32 0.0, %v5723
        %v5725 = vpop.f32.mrb[0].mxu0
        %v5726 = vpop.f32.mrb[0].mxu0
        %v5727 = vadd.f32 0.0, %v5726
        %v5728 = vpop.f32.mrb[0].mxu0
        %5729 = vmatprep.mubr.bf16.mxu0 0
        %5730 = vmatmul.mubr.bf16.gmra.mrb[0].mxu0 %v5519
        %v5731 = vpop.f32.mrb[0].mxu0
        %v5732 = vadd.f32 0.0, %v5731
        %v5733 = vpop.f32.mrb[0].mxu0
        %v5734 = vpop.f32.mrb[0].mxu0
        %v5735 = vadd.f32 0.0, %v5734
        %v5736 = vpop.f32.mrb[0].mxu0
        %5737 = vmatprep.mubr.bf16.mxu0 0
        %5738 = vmatmul.mubr.bf16.gmra.mrb[0].mxu0 %v5520
        %v5739 = vpop.f32.mrb[0].mxu0
        %v5740 = vadd.f32 0.0, %v5739
        %v5741 = vpop.f32.mrb[0].mxu0
        %v5742 = vpop.f32.mrb[0].mxu0
        %v5743 = vadd.f32 0.0, %v5742
        %v5744 = vpop.f32.mrb[0].mxu0
        %5745 = vdwg.mxu0
        %v5746 = vadd.f32 %v5424, %v5620
        %v5747 = vadd.f32 %v5425, %v5623
        %v5748 = vadd.f32 %v5426, %v5628
        %v5749 = vadd.f32 %v5427, %v5631
        %v5750 = vadd.f32 %v5428, %v5636
        %v5751 = vadd.f32 %v5429, %v5639
        %v5752 = vadd.f32 %v5430, %v5644
        %v5753 = vadd.f32 %v5431, %v5647
        %v5754 = vadd.f32 %v5432, %v5652
        %v5755 = vadd.f32 %v5433, %v5655
        %v5756 = vadd.f32 %v5434, %v5660
        %v5757 = vadd.f32 %v5435, %v5663
        %v5758 = vadd.f32 %v5436, %v5668
        %v5759 = vadd.f32 %v5437, %v5671
        %v5760 = vadd.f32 %v5438, %v5676
        %v5761 = vadd.f32 %v5439, %v5679
        %v5762 = vadd.f32 %v5440, %v5684
        %v5763 = vadd.f32 %v5441, %v5687
        %v5764 = vadd.f32 %v5442, %v5692
        %v5765 = vadd.f32 %v5443, %v5695
        %v5766 = vadd.f32 %v5444, %v5700
        %v5767 = vadd.f32 %v5445, %v5703
        %v5768 = vadd.f32 %v5446, %v5708
        %v5769 = vadd.f32 %v5447, %v5711
        %v5770 = vadd.f32 %v5448, %v5716
        %v5771 = vadd.f32 %v5449, %v5719
        %v5772 = vadd.f32 %v5450, %v5724
        %v5773 = vadd.f32 %v5451, %v5727
        %v5774 = vadd.f32 %v5452, %v5732
        %v5775 = vadd.f32 %v5453, %v5735
        %v5776 = vadd.f32 %v5454, %v5740
        %v5777 = vadd.f32 %v5455, %v5743
        %5778 = vst [vmem:[#allocation4] sm:$0xff] %v5746
        %5779 = vst [vmem:[#allocation4 + $0x8] sm:$0xff] %v5747
        %5780 = vst [vmem:[#allocation4 + $0x10] sm:$0xff] %v5748
        %5781 = vst [vmem:[#allocation4 + $0x18] sm:$0xff] %v5749
        %5782 = vst [vmem:[#allocation4 + $0x20] sm:$0xff] %v5750
        %5783 = vst [vmem:[#allocation4 + $0x28] sm:$0xff] %v5751
        %5784 = vst [vmem:[#allocation4 + $0x30] sm:$0xff] %v5752
        %5785 = vst [vmem:[#allocation4 + $0x38] sm:$0xff] %v5753
        %5786 = vst [vmem:[#allocation4 + $0x40] sm:$0xff] %v5754
        %5787 = vst [vmem:[#allocation4 + $0x48] sm:$0xff] %v5755
        %5788 = vst [vmem:[#allocation4 + $0x50] sm:$0xff] %v5756
        %5789 = vst [vmem:[#allocation4 + $0x58] sm:$0xff] %v5757
        %5790 = vst [vmem:[#allocation4 + $0x60] sm:$0xff] %v5758
        %5791 = vst [vmem:[#allocation4 + $0x68] sm:$0xff] %v5759
        %5792 = vst [vmem:[#allocation4 + $0x70] sm:$0xff] %v5760
        %5793 = vst [vmem:[#allocation4 + $0x78] sm:$0xff] %v5761
        %5794 = vst [vmem:[#allocation4 + $0x80] sm:$0xff] %v5762
        %5795 = vst [vmem:[#allocation4 + $0x88] sm:$0xff] %v5763
        %5796 = vst [vmem:[#allocation4 + $0x90] sm:$0xff] %v5764
        %5797 = vst [vmem:[#allocation4 + $0x98] sm:$0xff] %v5765
        %5798 = vst [vmem:[#allocation4 + $0xa0] sm:$0xff] %v5766
        %5799 = vst [vmem:[#allocation4 + $0xa8] sm:$0xff] %v5767
        %5800 = vst [vmem:[#allocation4 + $0xb0] sm:$0xff] %v5768
        %5801 = vst [vmem:[#allocation4 + $0xb8] sm:$0xff] %v5769
        %5802 = vst [vmem:[#allocation4 + $0xc0] sm:$0xff] %v5770
        %5803 = vst [vmem:[#allocation4 + $0xc8] sm:$0xff] %v5771
        %5804 = vst [vmem:[#allocation4 + $0xd0] sm:$0xff] %v5772
        %5805 = vst [vmem:[#allocation4 + $0xd8] sm:$0xff] %v5773
        %5806 = vst [vmem:[#allocation4 + $0xe0] sm:$0xff] %v5774
        %5807 = vst [vmem:[#allocation4 + $0xe8] sm:$0xff] %v5775
        %5808 = vst [vmem:[#allocation4 + $0xf0] sm:$0xff] %v5776
        %5809 = vst [vmem:[#allocation4 + $0xf8] sm:$0xff] %v5777
        %v5810 = vld [vmem:[#allocation3] sm:$0xe]
        %v5811 = vld [vmem:[#allocation3 + $0x4] sm:$0xf]
        %v5812 = vld [vmem:[#allocation3 + $0x8] sm:$0x1]
        %v5813 = vld [vmem:[#allocation3 + $0xc] sm:$0xe]
        %v5814 = vld [vmem:[#allocation3 + $0x10] sm:$0xf]
        %v5815 = vld [vmem:[#allocation3 + $0x14] sm:$0x1]
        %v5816 = vld [vmem:[#allocation3 + $0x18] sm:$0xe]
        %v5817 = vld [vmem:[#allocation3 + $0x1c] sm:$0xf]
        %v5818 = vld [vmem:[#allocation3 + $0x20] sm:$0x1]
        %v5819 = vld [vmem:[#allocation3 + $0x24] sm:$0xe]
        %v5820 = vld [vmem:[#allocation3 + $0x28] sm:$0xf]
        %v5821 = vld [vmem:[#allocation3 + $0x2c] sm:$0x1]
        %v5822 = vld [vmem:[#allocation3 + $0x30] sm:$0xe]
        %v5823 = vld [vmem:[#allocation3 + $0x34] sm:$0xf]
        %v5824 = vld [vmem:[#allocation3 + $0x38] sm:$0x1]
        %v5825 = vld [vmem:[#allocation3 + $0x3c] sm:$0xe]
        %v5826 = vld [vmem:[#allocation3 + $0x40] sm:$0xf]
        %v5827 = vld [vmem:[#allocation3 + $0x44] sm:$0x1]
        %v5828 = vld [vmem:[#allocation3 + $0x48] sm:$0xe]
        %v5829 = vld [vmem:[#allocation3 + $0x4c] sm:$0xf]
        %v5830 = vld [vmem:[#allocation3 + $0x50] sm:$0x1]
        %v5831 = vld [vmem:[#allocation3 + $0x54] sm:$0xe]
        %v5832 = vld [vmem:[#allocation3 + $0x58] sm:$0xf]
        %v5833 = vld [vmem:[#allocation3 + $0x5c] sm:$0x1]
        %v5834 = vld [vmem:[#allocation3 + $0x60] sm:$0xe]
        %v5835 = vld [vmem:[#allocation3 + $0x64] sm:$0xf]
        %v5836 = vld [vmem:[#allocation3 + $0x68] sm:$0x1]
        %v5837 = vld [vmem:[#allocation3 + $0x6c] sm:$0xe]
        %v5838 = vld [vmem:[#allocation3 + $0x70] sm:$0xf]
        %v5839 = vld [vmem:[#allocation3 + $0x74] sm:$0x1]
        %v5840 = vld [vmem:[#allocation3 + $0x78] sm:$0xe]
        %v5841 = vld [vmem:[#allocation3 + $0x7c] sm:$0xf]
        %v5842 = vld [vmem:[#allocation3 + $0x80] sm:$0x1]
        %v5843 = vld [vmem:[#allocation3 + $0x84] sm:$0xe]
        %v5844 = vld [vmem:[#allocation3 + $0x88] sm:$0xf]
        %v5845 = vld [vmem:[#allocation3 + $0x8c] sm:$0x1]
        %v5846 = vld [vmem:[#allocation3 + $0x90] sm:$0xe]
        %v5847 = vld [vmem:[#allocation3 + $0x94] sm:$0xf]
        %v5848 = vld [vmem:[#allocation3 + $0x98] sm:$0x1]
        %v5849 = vld [vmem:[#allocation3 + $0x9c] sm:$0xe]
        %v5850 = vld [vmem:[#allocation3 + $0xa0] sm:$0xf]
        %v5851 = vld [vmem:[#allocation3 + $0xa4] sm:$0x1]
        %v5852 = vld [vmem:[#allocation3 + $0xa8] sm:$0xe]
        %v5853 = vld [vmem:[#allocation3 + $0xac] sm:$0xf]
        %v5854 = vld [vmem:[#allocation3 + $0xb0] sm:$0x1]
        %v5855 = vld [vmem:[#allocation3 + $0xb4] sm:$0xe]
        %v5856 = vld [vmem:[#allocation3 + $0xb8] sm:$0xf]
        %v5857 = vld [vmem:[#allocation3 + $0xbc] sm:$0x1]
        %vm5906 = vcmask 1042432
        %vm5907 = vcmask 1046532
        %vm5908 = vmor %vm5906, %vm5907
        %v5909 = vrot.slane %v5810, 5
        %v5910 = vrot.slane %v5909, 4
        %v5911 = vrot.slane %v5811, 5
        %v5912 = vsel %vm5908, %v5910, %v5911
        %v5913 = vrot.slane %v5911, 4
        %v5914 = vrot.slane %v5812, 5
        %v5915 = vsel %vm5908, %v5913, %v5914
        %v5916 = vrot.slane %v5813, 5
        %v5917 = vrot.slane %v5916, 4
        %v5918 = vrot.slane %v5814, 5
        %v5919 = vsel %vm5908, %v5917, %v5918
        %v5920 = vrot.slane %v5918, 4
        %v5921 = vrot.slane %v5815, 5
        %v5922 = vsel %vm5908, %v5920, %v5921
        %v5923 = vrot.slane %v5816, 5
        %v5924 = vrot.slane %v5923, 4
        %v5925 = vrot.slane %v5817, 5
        %v5926 = vsel %vm5908, %v5924, %v5925
        %v5927 = vrot.slane %v5925, 4
        %v5928 = vrot.slane %v5818, 5
        %v5929 = vsel %vm5908, %v5927, %v5928
        %v5930 = vrot.slane %v5819, 5
        %v5931 = vrot.slane %v5930, 4
        %v5932 = vrot.slane %v5820, 5
        %v5933 = vsel %vm5908, %v5931, %v5932
        %v5934 = vrot.slane %v5932, 4
        %v5935 = vrot.slane %v5821, 5
        %v5936 = vsel %vm5908, %v5934, %v5935
        %v5937 = vrot.slane %v5822, 5
        %v5938 = vrot.slane %v5937, 4
        %v5939 = vrot.slane %v5823, 5
        %v5940 = vsel %vm5908, %v5938, %v5939
        %v5941 = vrot.slane %v5939, 4
        %v5942 = vrot.slane %v5824, 5
        %v5943 = vsel %vm5908, %v5941, %v5942
        %v5944 = vrot.slane %v5825, 5
        %v5945 = vrot.slane %v5944, 4
        %v5946 = vrot.slane %v5826, 5
        %v5947 = vsel %vm5908, %v5945, %v5946
        %v5948 = vrot.slane %v5946, 4
        %v5949 = vrot.slane %v5827, 5
        %v5950 = vsel %vm5908, %v5948, %v5949
        %v5951 = vrot.slane %v5828, 5
        %v5952 = vrot.slane %v5951, 4
        %v5953 = vrot.slane %v5829, 5
        %v5954 = vsel %vm5908, %v5952, %v5953
        %v5955 = vrot.slane %v5953, 4
        %v5956 = vrot.slane %v5830, 5
        %v5957 = vsel %vm5908, %v5955, %v5956
        %v5958 = vrot.slane %v5831, 5
        %v5959 = vrot.slane %v5958, 4
        %v5960 = vrot.slane %v5832, 5
        %v5961 = vsel %vm5908, %v5959, %v5960
        %v5962 = vrot.slane %v5960, 4
        %v5963 = vrot.slane %v5833, 5
        %v5964 = vsel %vm5908, %v5962, %v5963
        %v5965 = vrot.slane %v5834, 5
        %v5966 = vrot.slane %v5965, 4
        %v5967 = vrot.slane %v5835, 5
        %v5968 = vsel %vm5908, %v5966, %v5967
        %v5969 = vrot.slane %v5967, 4
        %v5970 = vrot.slane %v5836, 5
        %v5971 = vsel %vm5908, %v5969, %v5970
        %v5972 = vrot.slane %v5837, 5
        %v5973 = vrot.slane %v5972, 4
        %v5974 = vrot.slane %v5838, 5
        %v5975 = vsel %vm5908, %v5973, %v5974
        %v5976 = vrot.slane %v5974, 4
        %v5977 = vrot.slane %v5839, 5
        %v5978 = vsel %vm5908, %v5976, %v5977
        %v5979 = vrot.slane %v5840, 5
        %v5980 = vrot.slane %v5979, 4
        %v5981 = vrot.slane %v5841, 5
        %v5982 = vsel %vm5908, %v5980, %v5981
        %v5983 = vrot.slane %v5981, 4
        %v5984 = vrot.slane %v5842, 5
        %v5985 = vsel %vm5908, %v5983, %v5984
        %v5986 = vrot.slane %v5843, 5
        %v5987 = vrot.slane %v5986, 4
        %v5988 = vrot.slane %v5844, 5
        %v5989 = vsel %vm5908, %v5987, %v5988
        %v5990 = vrot.slane %v5988, 4
        %v5991 = vrot.slane %v5845, 5
        %v5992 = vsel %vm5908, %v5990, %v5991
        %v5993 = vrot.slane %v5846, 5
        %v5994 = vrot.slane %v5993, 4
        %v5995 = vrot.slane %v5847, 5
        %v5996 = vsel %vm5908, %v5994, %v5995
        %v5997 = vrot.slane %v5995, 4
        %v5998 = vrot.slane %v5848, 5
        %v5999 = vsel %vm5908, %v5997, %v5998
        %v6000 = vrot.slane %v5849, 5
        %v6001 = vrot.slane %v6000, 4
        %v6002 = vrot.slane %v5850, 5
        %v6003 = vsel %vm5908, %v6001, %v6002
        %v6004 = vrot.slane %v6002, 4
        %v6005 = vrot.slane %v5851, 5
        %v6006 = vsel %vm5908, %v6004, %v6005
        %v6007 = vrot.slane %v5852, 5
        %v6008 = vrot.slane %v6007, 4
        %v6009 = vrot.slane %v5853, 5
        %v6010 = vsel %vm5908, %v6008, %v6009
        %v6011 = vrot.slane %v6009, 4
        %v6012 = vrot.slane %v5854, 5
        %v6013 = vsel %vm5908, %v6011, %v6012
        %v6014 = vrot.slane %v5855, 5
        %v6015 = vrot.slane %v6014, 4
        %v6016 = vrot.slane %v5856, 5
        %v6017 = vsel %vm5908, %v6015, %v6016
        %v6018 = vrot.slane %v6016, 4
        %v6019 = vrot.slane %v5857, 5
        %v6020 = vsel %vm5908, %v6018, %v6019
        %v6021 = vld [vmem:[#allocation4] sm:$0xff]
        %v6022 = vld [vmem:[#allocation4 + $0x8] sm:$0xff]
        %v6023 = vld [vmem:[#allocation4 + $0x10] sm:$0xff]
        %v6024 = vld [vmem:[#allocation4 + $0x18] sm:$0xff]
        %v6025 = vld [vmem:[#allocation4 + $0x20] sm:$0xff]
        %v6026 = vld [vmem:[#allocation4 + $0x28] sm:$0xff]
        %v6027 = vld [vmem:[#allocation4 + $0x30] sm:$0xff]
        %v6028 = vld [vmem:[#allocation4 + $0x38] sm:$0xff]
        %v6029 = vld [vmem:[#allocation4 + $0x40] sm:$0xff]
        %v6030 = vld [vmem:[#allocation4 + $0x48] sm:$0xff]
        %v6031 = vld [vmem:[#allocation4 + $0x50] sm:$0xff]
        %v6032 = vld [vmem:[#allocation4 + $0x58] sm:$0xff]
        %v6033 = vld [vmem:[#allocation4 + $0x60] sm:$0xff]
        %v6034 = vld [vmem:[#allocation4 + $0x68] sm:$0xff]
        %v6035 = vld [vmem:[#allocation4 + $0x70] sm:$0xff]
        %v6036 = vld [vmem:[#allocation4 + $0x78] sm:$0xff]
        %v6037 = vld [vmem:[#allocation4 + $0x80] sm:$0xff]
        %v6038 = vld [vmem:[#allocation4 + $0x88] sm:$0xff]
        %v6039 = vld [vmem:[#allocation4 + $0x90] sm:$0xff]
        %v6040 = vld [vmem:[#allocation4 + $0x98] sm:$0xff]
        %v6041 = vld [vmem:[#allocation4 + $0xa0] sm:$0xff]
        %v6042 = vld [vmem:[#allocation4 + $0xa8] sm:$0xff]
        %v6043 = vld [vmem:[#allocation4 + $0xb0] sm:$0xff]
        %v6044 = vld [vmem:[#allocation4 + $0xb8] sm:$0xff]
        %v6045 = vld [vmem:[#allocation4 + $0xc0] sm:$0xff]
        %v6046 = vld [vmem:[#allocation4 + $0xc8] sm:$0xff]
        %v6047 = vld [vmem:[#allocation4 + $0xd0] sm:$0xff]
        %v6048 = vld [vmem:[#allocation4 + $0xd8] sm:$0xff]
        %v6049 = vld [vmem:[#allocation4 + $0xe0] sm:$0xff]
        %v6050 = vld [vmem:[#allocation4 + $0xe8] sm:$0xff]
        %v6051 = vld [vmem:[#allocation4 + $0xf0] sm:$0xff]
        %v6052 = vld [vmem:[#allocation4 + $0xf8] sm:$0xff]
        %s6053 = scalar_lea.vmem [#allocation5], 128
        %v6054 = vld [vmem:[%s6053] sm:$0xf]
        %v6055 = vld [vmem:[%s6053 + $0x4] sm:$0xf]
        %v6056 = vld [vmem:[%s6053 + $0x8] sm:$0xf]
        %v6057 = vld [vmem:[%s6053 + $0xc] sm:$0xf]
        %v6058 = vld [vmem:[%s6053 + $0x10] sm:$0xf]
        %v6059 = vld [vmem:[%s6053 + $0x14] sm:$0xf]
        %v6060 = vld [vmem:[%s6053 + $0x18] sm:$0xf]
        %v6061 = vld [vmem:[%s6053 + $0x1c] sm:$0xf]
        %v6062 = vld [vmem:[%s6053 + $0x20] sm:$0xf]
        %v6063 = vld [vmem:[%s6053 + $0x24] sm:$0xf]
        %v6064 = vld [vmem:[%s6053 + $0x28] sm:$0xf]
        %v6065 = vld [vmem:[%s6053 + $0x2c] sm:$0xf]
        %v6066 = vld [vmem:[%s6053 + $0x30] sm:$0xf]
        %v6067 = vld [vmem:[%s6053 + $0x34] sm:$0xf]
        %v6068 = vld [vmem:[%s6053 + $0x38] sm:$0xf]
        %v6069 = vld [vmem:[%s6053 + $0x3c] sm:$0xf]
        %v6070 = vunpack.c.l.b16 %v5912
        %v6071 = vunpack.c.l.b16 %v5915
        %v6072 = vunpack.c.l.b16 %v5919
        %v6073 = vunpack.c.l.b16 %v5922
        %v6074 = vunpack.c.l.b16 %v5926
        %v6075 = vunpack.c.l.b16 %v5929
        %v6076 = vunpack.c.l.b16 %v5933
        %v6077 = vunpack.c.l.b16 %v5936
        %v6078 = vunpack.c.l.b16 %v5940
        %v6079 = vunpack.c.l.b16 %v5943
        %v6080 = vunpack.c.l.b16 %v5947
        %v6081 = vunpack.c.l.b16 %v5950
        %v6082 = vunpack.c.l.b16 %v5954
        %v6083 = vunpack.c.l.b16 %v5957
        %v6084 = vunpack.c.l.b16 %v5961
        %v6085 = vunpack.c.l.b16 %v5964
        %v6086 = vunpack.c.l.b16 %v5968
        %v6087 = vunpack.c.l.b16 %v5971
        %v6088 = vunpack.c.l.b16 %v5975
        %v6089 = vunpack.c.l.b16 %v5978
        %v6090 = vunpack.c.l.b16 %v5982
        %v6091 = vunpack.c.l.b16 %v5985
        %v6092 = vunpack.c.l.b16 %v5989
        %v6093 = vunpack.c.l.b16 %v5992
        %v6094 = vunpack.c.l.b16 %v5996
        %v6095 = vunpack.c.l.b16 %v5999
        %v6096 = vunpack.c.l.b16 %v6003
        %v6097 = vunpack.c.l.b16 %v6006
        %v6098 = vunpack.c.l.b16 %v6010
        %v6099 = vunpack.c.l.b16 %v6013
        %v6100 = vunpack.c.l.b16 %v6017
        %v6101 = vunpack.c.l.b16 %v6020
        %v6102 = vpack.c.b16 %v6071, %v6070
        %v6103 = vpack.c.b16 %v6073, %v6072
        %v6104 = vpack.c.b16 %v6075, %v6074
        %v6105 = vpack.c.b16 %v6077, %v6076
        %v6106 = vpack.c.b16 %v6079, %v6078
        %v6107 = vpack.c.b16 %v6081, %v6080
        %v6108 = vpack.c.b16 %v6083, %v6082
        %v6109 = vpack.c.b16 %v6085, %v6084
        %v6110 = vpack.c.b16 %v6087, %v6086
        %v6111 = vpack.c.b16 %v6089, %v6088
        %v6112 = vpack.c.b16 %v6091, %v6090
        %v6113 = vpack.c.b16 %v6093, %v6092
        %v6114 = vpack.c.b16 %v6095, %v6094
        %v6115 = vpack.c.b16 %v6097, %v6096
        %v6116 = vpack.c.b16 %v6099, %v6098
        %v6117 = vpack.c.b16 %v6101, %v6100
        %v6150 = vunpack.c.l.b16 %v6054
        %v6151 = vunpack.c.l.b16 %v6055
        %v6152 = vunpack.c.l.b16 %v6056
        %v6153 = vunpack.c.l.b16 %v6057
        %v6154 = vunpack.c.l.b16 %v6058
        %v6155 = vunpack.c.l.b16 %v6059
        %v6156 = vunpack.c.l.b16 %v6060
        %v6157 = vunpack.c.l.b16 %v6061
        %v6158 = vunpack.c.l.b16 %v6062
        %v6159 = vunpack.c.l.b16 %v6063
        %v6160 = vunpack.c.l.b16 %v6064
        %v6161 = vunpack.c.l.b16 %v6065
        %v6162 = vunpack.c.l.b16 %v6066
        %v6163 = vunpack.c.l.b16 %v6067
        %v6164 = vunpack.c.l.b16 %v6068
        %v6165 = vunpack.c.l.b16 %v6069
        %v6166 = vpack.c.b16 %v6151, %v6150
        %v6167 = vpack.c.b16 %v6153, %v6152
        %v6168 = vpack.c.b16 %v6155, %v6154
        %v6169 = vpack.c.b16 %v6157, %v6156
        %v6170 = vpack.c.b16 %v6159, %v6158
        %v6171 = vpack.c.b16 %v6161, %v6160
        %v6172 = vpack.c.b16 %v6163, %v6162
        %v6173 = vpack.c.b16 %v6165, %v6164
        %6182 = vmatprep.subr.bf16.mxu0 0
        %6183 = vmatpush1.bf16.msra.mxu0 %v6166
        %6184 = vmatprep.subr.bf16.mxu0 0
        %6185 = vmatpush1.bf16.msra.mxu0 %v6167
        %6186 = vmatprep.subr.bf16.mxu0 0
        %6187 = vmatpush1.bf16.msra.mxu0 %v6168
        %6188 = vmatprep.subr.bf16.mxu0 0
        %6189 = vmatpush1.bf16.msra.mxu0 %v6169
        %6190 = vmatprep.subr.bf16.mxu0 0
        %6191 = vmatpush1.bf16.msra.mxu0 %v6170
        %6192 = vmatprep.subr.bf16.mxu0 0
        %6193 = vmatpush1.bf16.msra.mxu0 %v6171
        %6194 = vmatprep.subr.bf16.mxu0 0
        %6195 = vmatpush1.bf16.msra.mxu0 %v6172
        %6196 = vmatprep.subr.bf16.mxu0 0
        %6197 = vmatpush1.bf16.msra.mxu0 %v6173
        %6198 = vmatprep.subr.bf16.mxu0 0
        %6199 = vmatpush1.bf16.msra.mxu0 0
        %6200 = vmatprep.subr.bf16.mxu0 0
        %6201 = vmatpush1.bf16.msra.mxu0 0
        %6202 = vmatprep.subr.bf16.mxu0 0
        %6203 = vmatpush1.bf16.msra.mxu0 0
        %6204 = vmatprep.subr.bf16.mxu0 0
        %6205 = vmatpush1.bf16.msra.mxu0 0
        %6206 = vmatprep.subr.bf16.mxu0 0
        %6207 = vmatpush1.bf16.msra.mxu0 0
        %6208 = vmatprep.subr.bf16.mxu0 0
        %6209 = vmatpush1.bf16.msra.mxu0 0
        %6210 = vmatprep.subr.bf16.mxu0 0
        %6211 = vmatpush1.bf16.msra.mxu0 0
        %6212 = vmatprep.subr.bf16.mxu0 0
        %6213 = vmatpush1.bf16.msra.mxu0 0
        %6214 = vmatprep.mubr.bf16.mxu0 0
        %6215 = vmatmul.mubr.bf16.gmra.mrb[0].mxu0 %v6102
        %v6216 = vpop.f32.mrb[0].mxu0
        %v6217 = vadd.f32 0.0, %v6216
        %v6218 = vpop.f32.mrb[0].mxu0
        %v6219 = vpop.f32.mrb[0].mxu0
        %v6220 = vadd.f32 0.0, %v6219
        %v6221 = vpop.f32.mrb[0].mxu0
        %6222 = vmatprep.mubr.bf16.mxu0 0
        %6223 = vmatmul.mubr.bf16.gmra.mrb[0].mxu0 %v6103
        %v6224 = vpop.f32.mrb[0].mxu0
        %v6225 = vadd.f32 0.0, %v6224
        %v6226 = vpop.f32.mrb[0].mxu0
        %v6227 = vpop.f32.mrb[0].mxu0
        %v6228 = vadd.f32 0.0, %v6227
        %v6229 = vpop.f32.mrb[0].mxu0
        %6230 = vmatprep.mubr.bf16.mxu0 0
        %6231 = vmatmul.mubr.bf16.gmra.mrb[0].mxu0 %v6104
        %v6232 = vpop.f32.mrb[0].mxu0
        %v6233 = vadd.f32 0.0, %v6232
        %v6234 = vpop.f32.mrb[0].mxu0
        %v6235 = vpop.f32.mrb[0].mxu0
        %v6236 = vadd.f32 0.0, %v6235
        %v6237 = vpop.f32.mrb[0].mxu0
        %6238 = vmatprep.mubr.bf16.mxu0 0
        %6239 = vmatmul.mubr.bf16.gmra.mrb[0].mxu0 %v6105
        %v6240 = vpop.f32.mrb[0].mxu0
        %v6241 = vadd.f32 0.0, %v6240
        %v6242 = vpop.f32.mrb[0].mxu0
        %v6243 = vpop.f32.mrb[0].mxu0
        %v6244 = vadd.f32 0.0, %v6243
        %v6245 = vpop.f32.mrb[0].mxu0
        %6246 = vmatprep.mubr.bf16.mxu0 0
        %6247 = vmatmul.mubr.bf16.gmra.mrb[0].mxu0 %v6106
        %v6248 = vpop.f32.mrb[0].mxu0
        %v6249 = vadd.f32 0.0, %v6248
        %v6250 = vpop.f32.mrb[0].mxu0
        %v6251 = vpop.f32.mrb[0].mxu0
        %v6252 = vadd.f32 0.0, %v6251
        %v6253 = vpop.f32.mrb[0].mxu0
        %6254 = vmatprep.mubr.bf16.mxu0 0
        %6255 = vmatmul.mubr.bf16.gmra.mrb[0].mxu0 %v6107
        %v6256 = vpop.f32.mrb[0].mxu0
        %v6257 = vadd.f32 0.0, %v6256
        %v6258 = vpop.f32.mrb[0].mxu0
        %v6259 = vpop.f32.mrb[0].mxu0
        %v6260 = vadd.f32 0.0, %v6259
        %v6261 = vpop.f32.mrb[0].mxu0
        %6262 = vmatprep.mubr.bf16.mxu0 0
        %6263 = vmatmul.mubr.bf16.gmra.mrb[0].mxu0 %v6108
        %v6264 = vpop.f32.mrb[0].mxu0
        %v6265 = vadd.f32 0.0, %v6264
        %v6266 = vpop.f32.mrb[0].mxu0
        %v6267 = vpop.f32.mrb[0].mxu0
        %v6268 = vadd.f32 0.0, %v6267
        %v6269 = vpop.f32.mrb[0].mxu0
        %6270 = vmatprep.mubr.bf16.mxu0 0
        %6271 = vmatmul.mubr.bf16.gmra.mrb[0].mxu0 %v6109
        %v6272 = vpop.f32.mrb[0].mxu0
        %v6273 = vadd.f32 0.0, %v6272
        %v6274 = vpop.f32.mrb[0].mxu0
        %v6275 = vpop.f32.mrb[0].mxu0
        %v6276 = vadd.f32 0.0, %v6275
        %v6277 = vpop.f32.mrb[0].mxu0
        %6278 = vmatprep.mubr.bf16.mxu0 0
        %6279 = vmatmul.mubr.bf16.gmra.mrb[0].mxu0 %v6110
        %v6280 = vpop.f32.mrb[0].mxu0
        %v6281 = vadd.f32 0.0, %v6280
        %v6282 = vpop.f32.mrb[0].mxu0
        %v6283 = vpop.f32.mrb[0].mxu0
        %v6284 = vadd.f32 0.0, %v6283
        %v6285 = vpop.f32.mrb[0].mxu0
        %6286 = vmatprep.mubr.bf16.mxu0 0
        %6287 = vmatmul.mubr.bf16.gmra.mrb[0].mxu0 %v6111
        %v6288 = vpop.f32.mrb[0].mxu0
        %v6289 = vadd.f32 0.0, %v6288
        %v6290 = vpop.f32.mrb[0].mxu0
        %v6291 = vpop.f32.mrb[0].mxu0
        %v6292 = vadd.f32 0.0, %v6291
        %v6293 = vpop.f32.mrb[0].mxu0
        %6294 = vmatprep.mubr.bf16.mxu0 0
        %6295 = vmatmul.mubr.bf16.gmra.mrb[0].mxu0 %v6112
        %v6296 = vpop.f32.mrb[0].mxu0
        %v6297 = vadd.f32 0.0, %v6296
        %v6298 = vpop.f32.mrb[0].mxu0
        %v6299 = vpop.f32.mrb[0].mxu0
        %v6300 = vadd.f32 0.0, %v6299
        %v6301 = vpop.f32.mrb[0].mxu0
        %6302 = vmatprep.mubr.bf16.mxu0 0
        %6303 = vmatmul.mubr.bf16.gmra.mrb[0].mxu0 %v6113
        %v6304 = vpop.f32.mrb[0].mxu0
        %v6305 = vadd.f32 0.0, %v6304
        %v6306 = vpop.f32.mrb[0].mxu0
        %v6307 = vpop.f32.mrb[0].mxu0
        %v6308 = vadd.f32 0.0, %v6307
        %v6309 = vpop.f32.mrb[0].mxu0
        %6310 = vmatprep.mubr.bf16.mxu0 0
        %6311 = vmatmul.mubr.bf16.gmra.mrb[0].mxu0 %v6114
        %v6312 = vpop.f32.mrb[0].mxu0
        %v6313 = vadd.f32 0.0, %v6312
        %v6314 = vpop.f32.mrb[0].mxu0
        %v6315 = vpop.f32.mrb[0].mxu0
        %v6316 = vadd.f32 0.0, %v6315
        %v6317 = vpop.f32.mrb[0].mxu0
        %6318 = vmatprep.mubr.bf16.mxu0 0
        %6319 = vmatmul.mubr.bf16.gmra.mrb[0].mxu0 %v6115
        %v6320 = vpop.f32.mrb[0].mxu0
        %v6321 = vadd.f32 0.0, %v6320
        %v6322 = vpop.f32.mrb[0].mxu0
        %v6323 = vpop.f32.mrb[0].mxu0
        %v6324 = vadd.f32 0.0, %v6323
        %v6325 = vpop.f32.mrb[0].mxu0
        %6326 = vmatprep.mubr.bf16.mxu0 0
        %6327 = vmatmul.mubr.bf16.gmra.mrb[0].mxu0 %v6116
        %v6328 = vpop.f32.mrb[0].mxu0
        %v6329 = vadd.f32 0.0, %v6328
        %v6330 = vpop.f32.mrb[0].mxu0
        %v6331 = vpop.f32.mrb[0].mxu0
        %v6332 = vadd.f32 0.0, %v6331
        %v6333 = vpop.f32.mrb[0].mxu0
        %6334 = vmatprep.mubr.bf16.mxu0 0
        %6335 = vmatmul.mubr.bf16.gmra.mrb[0].mxu0 %v6117
        %v6336 = vpop.f32.mrb[0].mxu0
        %v6337 = vadd.f32 0.0, %v6336
        %v6338 = vpop.f32.mrb[0].mxu0
        %v6339 = vpop.f32.mrb[0].mxu0
        %v6340 = vadd.f32 0.0, %v6339
        %v6341 = vpop.f32.mrb[0].mxu0
        %6342 = vdwg.mxu0
        %v6343 = vadd.f32 %v6021, %v6217
        %v6344 = vadd.f32 %v6022, %v6220
        %v6345 = vadd.f32 %v6023, %v6225
        %v6346 = vadd.f32 %v6024, %v6228
        %v6347 = vadd.f32 %v6025, %v6233
        %v6348 = vadd.f32 %v6026, %v6236
        %v6349 = vadd.f32 %v6027, %v6241
        %v6350 = vadd.f32 %v6028, %v6244
        %v6351 = vadd.f32 %v6029, %v6249
        %v6352 = vadd.f32 %v6030, %v6252
        %v6353 = vadd.f32 %v6031, %v6257
        %v6354 = vadd.f32 %v6032, %v6260
        %v6355 = vadd.f32 %v6033, %v6265
        %v6356 = vadd.f32 %v6034, %v6268
        %v6357 = vadd.f32 %v6035, %v6273
        %v6358 = vadd.f32 %v6036, %v6276
        %v6359 = vadd.f32 %v6037, %v6281
        %v6360 = vadd.f32 %v6038, %v6284
        %v6361 = vadd.f32 %v6039, %v6289
        %v6362 = vadd.f32 %v6040, %v6292
        %v6363 = vadd.f32 %v6041, %v6297
        %v6364 = vadd.f32 %v6042, %v6300
        %v6365 = vadd.f32 %v6043, %v6305
        %v6366 = vadd.f32 %v6044, %v6308
        %v6367 = vadd.f32 %v6045, %v6313
        %v6368 = vadd.f32 %v6046, %v6316
        %v6369 = vadd.f32 %v6047, %v6321
        %v6370 = vadd.f32 %v6048, %v6324
        %v6371 = vadd.f32 %v6049, %v6329
        %v6372 = vadd.f32 %v6050, %v6332
        %v6373 = vadd.f32 %v6051, %v6337
        %v6374 = vadd.f32 %v6052, %v6340
        %6375 = vst [vmem:[#allocation4] sm:$0xff] %v6343
        %6376 = vst [vmem:[#allocation4 + $0x8] sm:$0xff] %v6344
        %6377 = vst [vmem:[#allocation4 + $0x10] sm:$0xff] %v6345
        %6378 = vst [vmem:[#allocation4 + $0x18] sm:$0xff] %v6346
        %6379 = vst [vmem:[#allocation4 + $0x20] sm:$0xff] %v6347
        %6380 = vst [vmem:[#allocation4 + $0x28] sm:$0xff] %v6348
        %6381 = vst [vmem:[#allocation4 + $0x30] sm:$0xff] %v6349
        %6382 = vst [vmem:[#allocation4 + $0x38] sm:$0xff] %v6350
        %6383 = vst [vmem:[#allocation4 + $0x40] sm:$0xff] %v6351
        %6384 = vst [vmem:[#allocation4 + $0x48] sm:$0xff] %v6352
        %6385 = vst [vmem:[#allocation4 + $0x50] sm:$0xff] %v6353
        %6386 = vst [vmem:[#allocation4 + $0x58] sm:$0xff] %v6354
        %6387 = vst [vmem:[#allocation4 + $0x60] sm:$0xff] %v6355
        %6388 = vst [vmem:[#allocation4 + $0x68] sm:$0xff] %v6356
        %6389 = vst [vmem:[#allocation4 + $0x70] sm:$0xff] %v6357
        %6390 = vst [vmem:[#allocation4 + $0x78] sm:$0xff] %v6358
        %6391 = vst [vmem:[#allocation4 + $0x80] sm:$0xff] %v6359
        %6392 = vst [vmem:[#allocation4 + $0x88] sm:$0xff] %v6360
        %6393 = vst [vmem:[#allocation4 + $0x90] sm:$0xff] %v6361
        %6394 = vst [vmem:[#allocation4 + $0x98] sm:$0xff] %v6362
        %6395 = vst [vmem:[#allocation4 + $0xa0] sm:$0xff] %v6363
        %6396 = vst [vmem:[#allocation4 + $0xa8] sm:$0xff] %v6364
        %6397 = vst [vmem:[#allocation4 + $0xb0] sm:$0xff] %v6365
        %6398 = vst [vmem:[#allocation4 + $0xb8] sm:$0xff] %v6366
        %6399 = vst [vmem:[#allocation4 + $0xc0] sm:$0xff] %v6367
        %6400 = vst [vmem:[#allocation4 + $0xc8] sm:$0xff] %v6368
        %6401 = vst [vmem:[#allocation4 + $0xd0] sm:$0xff] %v6369
        %6402 = vst [vmem:[#allocation4 + $0xd8] sm:$0xff] %v6370
        %6403 = vst [vmem:[#allocation4 + $0xe0] sm:$0xff] %v6371
        %6404 = vst [vmem:[#allocation4 + $0xe8] sm:$0xff] %v6372
        %6405 = vst [vmem:[#allocation4 + $0xf0] sm:$0xff] %v6373
        %6406 = vst [vmem:[#allocation4 + $0xf8] sm:$0xff] %v6374
        %v6407 = vld [vmem:[%s4390] sm:$0xf]
        %v6408 = vld [vmem:[%s4390 + $0x4] sm:$0xf]
        %v6409 = vld [vmem:[%s4390 + $0xc] sm:$0xf]
        %v6410 = vld [vmem:[%s4390 + $0x10] sm:$0xf]
        %v6411 = vld [vmem:[%s4390 + $0x18] sm:$0xf]
        %v6412 = vld [vmem:[%s4390 + $0x1c] sm:$0xf]
        %v6413 = vld [vmem:[%s4390 + $0x24] sm:$0xf]
        %v6414 = vld [vmem:[%s4390 + $0x28] sm:$0xf]
        %v6415 = vld [vmem:[%s4390 + $0x30] sm:$0xf]
        %v6416 = vld [vmem:[%s4390 + $0x34] sm:$0xf]
        %v6417 = vld [vmem:[%s4390 + $0x3c] sm:$0xf]
        %v6418 = vld [vmem:[%s4390 + $0x40] sm:$0xf]
        %v6419 = vld [vmem:[%s4390 + $0x48] sm:$0xf]
        %v6420 = vld [vmem:[%s4390 + $0x4c] sm:$0xf]
        %v6421 = vld [vmem:[%s4390 + $0x54] sm:$0xf]
        %v6422 = vld [vmem:[%s4390 + $0x58] sm:$0xf]
        %v6423 = vld [vmem:[%s4390 + $0x60] sm:$0xf]
        %v6424 = vld [vmem:[%s4390 + $0x64] sm:$0xf]
        %v6425 = vld [vmem:[%s4390 + $0x6c] sm:$0xf]
        %v6426 = vld [vmem:[%s4390 + $0x70] sm:$0xf]
        %v6427 = vld [vmem:[%s4390 + $0x78] sm:$0xf]
        %v6428 = vld [vmem:[%s4390 + $0x7c] sm:$0xf]
        %v6429 = vld [vmem:[%s4390 + $0x84] sm:$0xf]
        %v6430 = vld [vmem:[%s4390 + $0x88] sm:$0xf]
        %v6431 = vld [vmem:[%s4390 + $0x90] sm:$0xf]
        %v6432 = vld [vmem:[%s4390 + $0x94] sm:$0xf]
        %v6433 = vld [vmem:[%s4390 + $0x9c] sm:$0xf]
        %v6434 = vld [vmem:[%s4390 + $0xa0] sm:$0xf]
        %v6435 = vld [vmem:[%s4390 + $0xa8] sm:$0xf]
        %v6436 = vld [vmem:[%s4390 + $0xac] sm:$0xf]
        %v6437 = vld [vmem:[%s4390 + $0xb4] sm:$0xf]
        %v6438 = vld [vmem:[%s4390 + $0xb8] sm:$0xf]
        %v6439 = vld [vmem:[#allocation4] sm:$0xff]
        %v6440 = vld [vmem:[#allocation4 + $0x8] sm:$0xff]
        %v6441 = vld [vmem:[#allocation4 + $0x10] sm:$0xff]
        %v6442 = vld [vmem:[#allocation4 + $0x18] sm:$0xff]
        %v6443 = vld [vmem:[#allocation4 + $0x20] sm:$0xff]
        %v6444 = vld [vmem:[#allocation4 + $0x28] sm:$0xff]
        %v6445 = vld [vmem:[#allocation4 + $0x30] sm:$0xff]
        %v6446 = vld [vmem:[#allocation4 + $0x38] sm:$0xff]
        %v6447 = vld [vmem:[#allocation4 + $0x40] sm:$0xff]
        %v6448 = vld [vmem:[#allocation4 + $0x48] sm:$0xff]
        %v6449 = vld [vmem:[#allocation4 + $0x50] sm:$0xff]
        %v6450 = vld [vmem:[#allocation4 + $0x58] sm:$0xff]
        %v6451 = vld [vmem:[#allocation4 + $0x60] sm:$0xff]
        %v6452 = vld [vmem:[#allocation4 + $0x68] sm:$0xff]
        %v6453 = vld [vmem:[#allocation4 + $0x70] sm:$0xff]
        %v6454 = vld [vmem:[#allocation4 + $0x78] sm:$0xff]
        %v6455 = vld [vmem:[#allocation4 + $0x80] sm:$0xff]
        %v6456 = vld [vmem:[#allocation4 + $0x88] sm:$0xff]
        %v6457 = vld [vmem:[#allocation4 + $0x90] sm:$0xff]
        %v6458 = vld [vmem:[#allocation4 + $0x98] sm:$0xff]
        %v6459 = vld [vmem:[#allocation4 + $0xa0] sm:$0xff]
        %v6460 = vld [vmem:[#allocation4 + $0xa8] sm:$0xff]
        %v6461 = vld [vmem:[#allocation4 + $0xb0] sm:$0xff]
        %v6462 = vld [vmem:[#allocation4 + $0xb8] sm:$0xff]
        %v6463 = vld [vmem:[#allocation4 + $0xc0] sm:$0xff]
        %v6464 = vld [vmem:[#allocation4 + $0xc8] sm:$0xff]
        %v6465 = vld [vmem:[#allocation4 + $0xd0] sm:$0xff]
        %v6466 = vld [vmem:[#allocation4 + $0xd8] sm:$0xff]
        %v6467 = vld [vmem:[#allocation4 + $0xe0] sm:$0xff]
        %v6468 = vld [vmem:[#allocation4 + $0xe8] sm:$0xff]
        %v6469 = vld [vmem:[#allocation4 + $0xf0] sm:$0xff]
        %v6470 = vld [vmem:[#allocation4 + $0xf8] sm:$0xff]
        %s6471 = scalar_lea.vmem [#allocation5], 192
        %v6472 = vld [vmem:[%s6471] sm:$0xf]
        %v6473 = vld [vmem:[%s6471 + $0x4] sm:$0xf]
        %v6474 = vld [vmem:[%s6471 + $0x8] sm:$0xf]
        %v6475 = vld [vmem:[%s6471 + $0xc] sm:$0xf]
        %v6476 = vld [vmem:[%s6471 + $0x10] sm:$0xf]
        %v6477 = vld [vmem:[%s6471 + $0x14] sm:$0xf]
        %v6478 = vld [vmem:[%s6471 + $0x18] sm:$0xf]
        %v6479 = vld [vmem:[%s6471 + $0x1c] sm:$0xf]
        %v6480 = vld [vmem:[%s6471 + $0x20] sm:$0xf]
        %v6481 = vld [vmem:[%s6471 + $0x24] sm:$0xf]
        %v6482 = vld [vmem:[%s6471 + $0x28] sm:$0xf]
        %v6483 = vld [vmem:[%s6471 + $0x2c] sm:$0xf]
        %v6484 = vld [vmem:[%s6471 + $0x30] sm:$0xf]
        %v6485 = vld [vmem:[%s6471 + $0x34] sm:$0xf]
        %v6486 = vld [vmem:[%s6471 + $0x38] sm:$0xf]
        %v6487 = vld [vmem:[%s6471 + $0x3c] sm:$0xf]
        %v6520 = vunpack.c.l.b16 %v6407
        %v6521 = vunpack.c.l.b16 %v6408
        %v6522 = vunpack.c.l.b16 %v6409
        %v6523 = vunpack.c.l.b16 %v6410
        %v6524 = vunpack.c.l.b16 %v6411
        %v6525 = vunpack.c.l.b16 %v6412
        %v6526 = vunpack.c.l.b16 %v6413
        %v6527 = vunpack.c.l.b16 %v6414
        %v6528 = vunpack.c.l.b16 %v6415
        %v6529 = vunpack.c.l.b16 %v6416
        %v6530 = vunpack.c.l.b16 %v6417
        %v6531 = vunpack.c.l.b16 %v6418
        %v6532 = vunpack.c.l.b16 %v6419
        %v6533 = vunpack.c.l.b16 %v6420
        %v6534 = vunpack.c.l.b16 %v6421
        %v6535 = vunpack.c.l.b16 %v6422
        %v6536 = vunpack.c.l.b16 %v6423
        %v6537 = vunpack.c.l.b16 %v6424
        %v6538 = vunpack.c.l.b16 %v6425
        %v6539 = vunpack.c.l.b16 %v6426
        %v6540 = vunpack.c.l.b16 %v6427
        %v6541 = vunpack.c.l.b16 %v6428
        %v6542 = vunpack.c.l.b16 %v6429
        %v6543 = vunpack.c.l.b16 %v6430
        %v6544 = vunpack.c.l.b16 %v6431
        %v6545 = vunpack.c.l.b16 %v6432
        %v6546 = vunpack.c.l.b16 %v6433
        %v6547 = vunpack.c.l.b16 %v6434
        %v6548 = vunpack.c.l.b16 %v6435
        %v6549 = vunpack.c.l.b16 %v6436
        %v6550 = vunpack.c.l.b16 %v6437
        %v6551 = vunpack.c.l.b16 %v6438
        %v6552 = vpack.c.b16 %v6521, %v6520
        %v6553 = vpack.c.b16 %v6523, %v6522
        %v6554 = vpack.c.b16 %v6525, %v6524
        %v6555 = vpack.c.b16 %v6527, %v6526
        %v6556 = vpack.c.b16 %v6529, %v6528
        %v6557 = vpack.c.b16 %v6531, %v6530
        %v6558 = vpack.c.b16 %v6533, %v6532
        %v6559 = vpack.c.b16 %v6535, %v6534
        %v6560 = vpack.c.b16 %v6537, %v6536
        %v6561 = vpack.c.b16 %v6539, %v6538
        %v6562 = vpack.c.b16 %v6541, %v6540
        %v6563 = vpack.c.b16 %v6543, %v6542
        %v6564 = vpack.c.b16 %v6545, %v6544
        %v6565 = vpack.c.b16 %v6547, %v6546
        %v6566 = vpack.c.b16 %v6549, %v6548
        %v6567 = vpack.c.b16 %v6551, %v6550
        %v6600 = vunpack.c.l.b16 %v6472
        %v6601 = vunpack.c.l.b16 %v6473
        %v6602 = vunpack.c.l.b16 %v6474
        %v6603 = vunpack.c.l.b16 %v6475
        %v6604 = vunpack.c.l.b16 %v6476
        %v6605 = vunpack.c.l.b16 %v6477
        %v6606 = vunpack.c.l.b16 %v6478
        %v6607 = vunpack.c.l.b16 %v6479
        %v6608 = vunpack.c.l.b16 %v6480
        %v6609 = vunpack.c.l.b16 %v6481
        %v6610 = vunpack.c.l.b16 %v6482
        %v6611 = vunpack.c.l.b16 %v6483
        %v6612 = vunpack.c.l.b16 %v6484
        %v6613 = vunpack.c.l.b16 %v6485
        %v6614 = vunpack.c.l.b16 %v6486
        %v6615 = vunpack.c.l.b16 %v6487
        %v6616 = vpack.c.b16 %v6601, %v6600
        %v6617 = vpack.c.b16 %v6603, %v6602
        %v6618 = vpack.c.b16 %v6605, %v6604
        %v6619 = vpack.c.b16 %v6607, %v6606
        %v6620 = vpack.c.b16 %v6609, %v6608
        %v6621 = vpack.c.b16 %v6611, %v6610
        %v6622 = vpack.c.b16 %v6613, %v6612
        %v6623 = vpack.c.b16 %v6615, %v6614
        %6632 = vmatprep.subr.bf16.mxu0 0
        %6633 = vmatpush1.bf16.msra.mxu0 %v6616
        %6634 = vmatprep.subr.bf16.mxu0 0
        %6635 = vmatpush1.bf16.msra.mxu0 %v6617
        %6636 = vmatprep.subr.bf16.mxu0 0
        %6637 = vmatpush1.bf16.msra.mxu0 %v6618
        %6638 = vmatprep.subr.bf16.mxu0 0
        %6639 = vmatpush1.bf16.msra.mxu0 %v6619
        %6640 = vmatprep.subr.bf16.mxu0 0
        %6641 = vmatpush1.bf16.msra.mxu0 %v6620
        %6642 = vmatprep.subr.bf16.mxu0 0
        %6643 = vmatpush1.bf16.msra.mxu0 %v6621
        %6644 = vmatprep.subr.bf16.mxu0 0
        %6645 = vmatpush1.bf16.msra.mxu0 %v6622
        %6646 = vmatprep.subr.bf16.mxu0 0
        %6647 = vmatpush1.bf16.msra.mxu0 %v6623
        %6648 = vmatprep.subr.bf16.mxu0 0
        %6649 = vmatpush1.bf16.msra.mxu0 0
        %6650 = vmatprep.subr.bf16.mxu0 0
        %6651 = vmatpush1.bf16.msra.mxu0 0
        %6652 = vmatprep.subr.bf16.mxu0 0
        %6653 = vmatpush1.bf16.msra.mxu0 0
        %6654 = vmatprep.subr.bf16.mxu0 0
        %6655 = vmatpush1.bf16.msra.mxu0 0
        %6656 = vmatprep.subr.bf16.mxu0 0
        %6657 = vmatpush1.bf16.msra.mxu0 0
        %6658 = vmatprep.subr.bf16.mxu0 0
        %6659 = vmatpush1.bf16.msra.mxu0 0
        %6660 = vmatprep.subr.bf16.mxu0 0
        %6661 = vmatpush1.bf16.msra.mxu0 0
        %6662 = vmatprep.subr.bf16.mxu0 0
        %6663 = vmatpush1.bf16.msra.mxu0 0
        %6664 = vmatprep.mubr.bf16.mxu0 0
        %6665 = vmatmul.mubr.bf16.gmra.mrb[0].mxu0 %v6552
        %v6666 = vpop.f32.mrb[0].mxu0
        %v6667 = vadd.f32 0.0, %v6666
        %v6668 = vpop.f32.mrb[0].mxu0
        %v6669 = vpop.f32.mrb[0].mxu0
        %v6670 = vadd.f32 0.0, %v6669
        %v6671 = vpop.f32.mrb[0].mxu0
        %6672 = vmatprep.mubr.bf16.mxu0 0
        %6673 = vmatmul.mubr.bf16.gmra.mrb[0].mxu0 %v6553
        %v6674 = vpop.f32.mrb[0].mxu0
        %v6675 = vadd.f32 0.0, %v6674
        %v6676 = vpop.f32.mrb[0].mxu0
        %v6677 = vpop.f32.mrb[0].mxu0
        %v6678 = vadd.f32 0.0, %v6677
        %v6679 = vpop.f32.mrb[0].mxu0
        %6680 = vmatprep.mubr.bf16.mxu0 0
        %6681 = vmatmul.mubr.bf16.gmra.mrb[0].mxu0 %v6554
        %v6682 = vpop.f32.mrb[0].mxu0
        %v6683 = vadd.f32 0.0, %v6682
        %v6684 = vpop.f32.mrb[0].mxu0
        %v6685 = vpop.f32.mrb[0].mxu0
        %v6686 = vadd.f32 0.0, %v6685
        %v6687 = vpop.f32.mrb[0].mxu0
        %6688 = vmatprep.mubr.bf16.mxu0 0
        %6689 = vmatmul.mubr.bf16.gmra.mrb[0].mxu0 %v6555
        %v6690 = vpop.f32.mrb[0].mxu0
        %v6691 = vadd.f32 0.0, %v6690
        %v6692 = vpop.f32.mrb[0].mxu0
        %v6693 = vpop.f32.mrb[0].mxu0
        %v6694 = vadd.f32 0.0, %v6693
        %v6695 = vpop.f32.mrb[0].mxu0
        %6696 = vmatprep.mubr.bf16.mxu0 0
        %6697 = vmatmul.mubr.bf16.gmra.mrb[0].mxu0 %v6556
        %v6698 = vpop.f32.mrb[0].mxu0
        %v6699 = vadd.f32 0.0, %v6698
        %v6700 = vpop.f32.mrb[0].mxu0
        %v6701 = vpop.f32.mrb[0].mxu0
        %v6702 = vadd.f32 0.0, %v6701
        %v6703 = vpop.f32.mrb[0].mxu0
        %6704 = vmatprep.mubr.bf16.mxu0 0
        %6705 = vmatmul.mubr.bf16.gmra.mrb[0].mxu0 %v6557
        %v6706 = vpop.f32.mrb[0].mxu0
        %v6707 = vadd.f32 0.0, %v6706
        %v6708 = vpop.f32.mrb[0].mxu0
        %v6709 = vpop.f32.mrb[0].mxu0
        %v6710 = vadd.f32 0.0, %v6709
        %v6711 = vpop.f32.mrb[0].mxu0
        %6712 = vmatprep.mubr.bf16.mxu0 0
        %6713 = vmatmul.mubr.bf16.gmra.mrb[0].mxu0 %v6558
        %v6714 = vpop.f32.mrb[0].mxu0
        %v6715 = vadd.f32 0.0, %v6714
        %v6716 = vpop.f32.mrb[0].mxu0
        %v6717 = vpop.f32.mrb[0].mxu0
        %v6718 = vadd.f32 0.0, %v6717
        %v6719 = vpop.f32.mrb[0].mxu0
        %6720 = vmatprep.mubr.bf16.mxu0 0
        %6721 = vmatmul.mubr.bf16.gmra.mrb[0].mxu0 %v6559
        %v6722 = vpop.f32.mrb[0].mxu0
        %v6723 = vadd.f32 0.0, %v6722
        %v6724 = vpop.f32.mrb[0].mxu0
        %v6725 = vpop.f32.mrb[0].mxu0
        %v6726 = vadd.f32 0.0, %v6725
        %v6727 = vpop.f32.mrb[0].mxu0
        %6728 = vmatprep.mubr.bf16.mxu0 0
        %6729 = vmatmul.mubr.bf16.gmra.mrb[0].mxu0 %v6560
        %v6730 = vpop.f32.mrb[0].mxu0
        %v6731 = vadd.f32 0.0, %v6730
        %v6732 = vpop.f32.mrb[0].mxu0
        %v6733 = vpop.f32.mrb[0].mxu0
        %v6734 = vadd.f32 0.0, %v6733
        %v6735 = vpop.f32.mrb[0].mxu0
        %6736 = vmatprep.mubr.bf16.mxu0 0
        %6737 = vmatmul.mubr.bf16.gmra.mrb[0].mxu0 %v6561
        %v6738 = vpop.f32.mrb[0].mxu0
        %v6739 = vadd.f32 0.0, %v6738
        %v6740 = vpop.f32.mrb[0].mxu0
        %v6741 = vpop.f32.mrb[0].mxu0
        %v6742 = vadd.f32 0.0, %v6741
        %v6743 = vpop.f32.mrb[0].mxu0
        %6744 = vmatprep.mubr.bf16.mxu0 0
        %6745 = vmatmul.mubr.bf16.gmra.mrb[0].mxu0 %v6562
        %v6746 = vpop.f32.mrb[0].mxu0
        %v6747 = vadd.f32 0.0, %v6746
        %v6748 = vpop.f32.mrb[0].mxu0
        %v6749 = vpop.f32.mrb[0].mxu0
        %v6750 = vadd.f32 0.0, %v6749
        %v6751 = vpop.f32.mrb[0].mxu0
        %6752 = vmatprep.mubr.bf16.mxu0 0
        %6753 = vmatmul.mubr.bf16.gmra.mrb[0].mxu0 %v6563
        %v6754 = vpop.f32.mrb[0].mxu0
        %v6755 = vadd.f32 0.0, %v6754
        %v6756 = vpop.f32.mrb[0].mxu0
        %v6757 = vpop.f32.mrb[0].mxu0
        %v6758 = vadd.f32 0.0, %v6757
        %v6759 = vpop.f32.mrb[0].mxu0
        %6760 = vmatprep.mubr.bf16.mxu0 0
        %6761 = vmatmul.mubr.bf16.gmra.mrb[0].mxu0 %v6564
        %v6762 = vpop.f32.mrb[0].mxu0
        %v6763 = vadd.f32 0.0, %v6762
        %v6764 = vpop.f32.mrb[0].mxu0
        %v6765 = vpop.f32.mrb[0].mxu0
        %v6766 = vadd.f32 0.0, %v6765
        %v6767 = vpop.f32.mrb[0].mxu0
        %6768 = vmatprep.mubr.bf16.mxu0 0
        %6769 = vmatmul.mubr.bf16.gmra.mrb[0].mxu0 %v6565
        %v6770 = vpop.f32.mrb[0].mxu0
        %v6771 = vadd.f32 0.0, %v6770
        %v6772 = vpop.f32.mrb[0].mxu0
        %v6773 = vpop.f32.mrb[0].mxu0
        %v6774 = vadd.f32 0.0, %v6773
        %v6775 = vpop.f32.mrb[0].mxu0
        %6776 = vmatprep.mubr.bf16.mxu0 0
        %6777 = vmatmul.mubr.bf16.gmra.mrb[0].mxu0 %v6566
        %v6778 = vpop.f32.mrb[0].mxu0
        %v6779 = vadd.f32 0.0, %v6778
        %v6780 = vpop.f32.mrb[0].mxu0
        %v6781 = vpop.f32.mrb[0].mxu0
        %v6782 = vadd.f32 0.0, %v6781
        %v6783 = vpop.f32.mrb[0].mxu0
        %6784 = vmatprep.mubr.bf16.mxu0 0
        %6785 = vmatmul.mubr.bf16.gmra.mrb[0].mxu0 %v6567
        %v6786 = vpop.f32.mrb[0].mxu0
        %v6787 = vadd.f32 0.0, %v6786
        %v6788 = vpop.f32.mrb[0].mxu0
        %v6789 = vpop.f32.mrb[0].mxu0
        %v6790 = vadd.f32 0.0, %v6789
        %v6791 = vpop.f32.mrb[0].mxu0
        %6792 = vdwg.mxu0
        %v6793 = vadd.f32 %v6439, %v6667
        %v6794 = vadd.f32 %v6440, %v6670
        %v6795 = vadd.f32 %v6441, %v6675
        %v6796 = vadd.f32 %v6442, %v6678
        %v6797 = vadd.f32 %v6443, %v6683
        %v6798 = vadd.f32 %v6444, %v6686
        %v6799 = vadd.f32 %v6445, %v6691
        %v6800 = vadd.f32 %v6446, %v6694
        %v6801 = vadd.f32 %v6447, %v6699
        %v6802 = vadd.f32 %v6448, %v6702
        %v6803 = vadd.f32 %v6449, %v6707
        %v6804 = vadd.f32 %v6450, %v6710
        %v6805 = vadd.f32 %v6451, %v6715
        %v6806 = vadd.f32 %v6452, %v6718
        %v6807 = vadd.f32 %v6453, %v6723
        %v6808 = vadd.f32 %v6454, %v6726
        %v6809 = vadd.f32 %v6455, %v6731
        %v6810 = vadd.f32 %v6456, %v6734
        %v6811 = vadd.f32 %v6457, %v6739
        %v6812 = vadd.f32 %v6458, %v6742
        %v6813 = vadd.f32 %v6459, %v6747
        %v6814 = vadd.f32 %v6460, %v6750
        %v6815 = vadd.f32 %v6461, %v6755
        %v6816 = vadd.f32 %v6462, %v6758
        %v6817 = vadd.f32 %v6463, %v6763
        %v6818 = vadd.f32 %v6464, %v6766
        %v6819 = vadd.f32 %v6465, %v6771
        %v6820 = vadd.f32 %v6466, %v6774
        %v6821 = vadd.f32 %v6467, %v6779
        %v6822 = vadd.f32 %v6468, %v6782
        %v6823 = vadd.f32 %v6469, %v6787
        %v6824 = vadd.f32 %v6470, %v6790
        %6825 = vst [vmem:[#allocation4] sm:$0xff] %v6793
        %6826 = vst [vmem:[#allocation4 + $0x8] sm:$0xff] %v6794
        %6827 = vst [vmem:[#allocation4 + $0x10] sm:$0xff] %v6795
        %6828 = vst [vmem:[#allocation4 + $0x18] sm:$0xff] %v6796
        %6829 = vst [vmem:[#allocation4 + $0x20] sm:$0xff] %v6797
        %6830 = vst [vmem:[#allocation4 + $0x28] sm:$0xff] %v6798
        %6831 = vst [vmem:[#allocation4 + $0x30] sm:$0xff] %v6799
        %6832 = vst [vmem:[#allocation4 + $0x38] sm:$0xff] %v6800
        %6833 = vst [vmem:[#allocation4 + $0x40] sm:$0xff] %v6801
        %6834 = vst [vmem:[#allocation4 + $0x48] sm:$0xff] %v6802
        %6835 = vst [vmem:[#allocation4 + $0x50] sm:$0xff] %v6803
        %6836 = vst [vmem:[#allocation4 + $0x58] sm:$0xff] %v6804
        %6837 = vst [vmem:[#allocation4 + $0x60] sm:$0xff] %v6805
        %6838 = vst [vmem:[#allocation4 + $0x68] sm:$0xff] %v6806
        %6839 = vst [vmem:[#allocation4 + $0x70] sm:$0xff] %v6807
        %6840 = vst [vmem:[#allocation4 + $0x78] sm:$0xff] %v6808
        %6841 = vst [vmem:[#allocation4 + $0x80] sm:$0xff] %v6809
        %6842 = vst [vmem:[#allocation4 + $0x88] sm:$0xff] %v6810
        %6843 = vst [vmem:[#allocation4 + $0x90] sm:$0xff] %v6811
        %6844 = vst [vmem:[#allocation4 + $0x98] sm:$0xff] %v6812
        %6845 = vst [vmem:[#allocation4 + $0xa0] sm:$0xff] %v6813
        %6846 = vst [vmem:[#allocation4 + $0xa8] sm:$0xff] %v6814
        %6847 = vst [vmem:[#allocation4 + $0xb0] sm:$0xff] %v6815
        %6848 = vst [vmem:[#allocation4 + $0xb8] sm:$0xff] %v6816
        %6849 = vst [vmem:[#allocation4 + $0xc0] sm:$0xff] %v6817
        %6850 = vst [vmem:[#allocation4 + $0xc8] sm:$0xff] %v6818
        %6851 = vst [vmem:[#allocation4 + $0xd0] sm:$0xff] %v6819
        %6852 = vst [vmem:[#allocation4 + $0xd8] sm:$0xff] %v6820
        %6853 = vst [vmem:[#allocation4 + $0xe0] sm:$0xff] %v6821
        %6854 = vst [vmem:[#allocation4 + $0xe8] sm:$0xff] %v6822
        %6855 = vst [vmem:[#allocation4 + $0xf0] sm:$0xff] %v6823
        %6856 = vst [vmem:[#allocation4 + $0xf8] sm:$0xff] %v6824
        %v6857 = vld [vmem:[%s4390] sm:$0xf]
        %v6858 = vld [vmem:[%s4390 + $0x4] sm:$0xf]
        %v6859 = vld [vmem:[%s4390 + $0x8] sm:$0x1]
        %v6860 = vld [vmem:[%s4390 + $0xc] sm:$0xf]
        %v6861 = vld [vmem:[%s4390 + $0x10] sm:$0xf]
        %v6862 = vld [vmem:[%s4390 + $0x14] sm:$0x1]
        %v6863 = vld [vmem:[%s4390 + $0x18] sm:$0xf]
        %v6864 = vld [vmem:[%s4390 + $0x1c] sm:$0xf]
        %v6865 = vld [vmem:[%s4390 + $0x20] sm:$0x1]
        %v6866 = vld [vmem:[%s4390 + $0x24] sm:$0xf]
        %v6867 = vld [vmem:[%s4390 + $0x28] sm:$0xf]
        %v6868 = vld [vmem:[%s4390 + $0x2c] sm:$0x1]
        %v6869 = vld [vmem:[%s4390 + $0x30] sm:$0xf]
        %v6870 = vld [vmem:[%s4390 + $0x34] sm:$0xf]
        %v6871 = vld [vmem:[%s4390 + $0x38] sm:$0x1]
        %v6872 = vld [vmem:[%s4390 + $0x3c] sm:$0xf]
        %v6873 = vld [vmem:[%s4390 + $0x40] sm:$0xf]
        %v6874 = vld [vmem:[%s4390 + $0x44] sm:$0x1]
        %v6875 = vld [vmem:[%s4390 + $0x48] sm:$0xf]
        %v6876 = vld [vmem:[%s4390 + $0x4c] sm:$0xf]
        %v6877 = vld [vmem:[%s4390 + $0x50] sm:$0x1]
        %v6878 = vld [vmem:[%s4390 + $0x54] sm:$0xf]
        %v6879 = vld [vmem:[%s4390 + $0x58] sm:$0xf]
        %v6880 = vld [vmem:[%s4390 + $0x5c] sm:$0x1]
        %v6881 = vld [vmem:[%s4390 + $0x60] sm:$0xf]
        %v6882 = vld [vmem:[%s4390 + $0x64] sm:$0xf]
        %v6883 = vld [vmem:[%s4390 + $0x68] sm:$0x1]
        %v6884 = vld [vmem:[%s4390 + $0x6c] sm:$0xf]
        %v6885 = vld [vmem:[%s4390 + $0x70] sm:$0xf]
        %v6886 = vld [vmem:[%s4390 + $0x74] sm:$0x1]
        %v6887 = vld [vmem:[%s4390 + $0x78] sm:$0xf]
        %v6888 = vld [vmem:[%s4390 + $0x7c] sm:$0xf]
        %v6889 = vld [vmem:[%s4390 + $0x80] sm:$0x1]
        %v6890 = vld [vmem:[%s4390 + $0x84] sm:$0xf]
        %v6891 = vld [vmem:[%s4390 + $0x88] sm:$0xf]
        %v6892 = vld [vmem:[%s4390 + $0x8c] sm:$0x1]
        %v6893 = vld [vmem:[%s4390 + $0x90] sm:$0xf]
        %v6894 = vld [vmem:[%s4390 + $0x94] sm:$0xf]
        %v6895 = vld [vmem:[%s4390 + $0x98] sm:$0x1]
        %v6896 = vld [vmem:[%s4390 + $0x9c] sm:$0xf]
        %v6897 = vld [vmem:[%s4390 + $0xa0] sm:$0xf]
        %v6898 = vld [vmem:[%s4390 + $0xa4] sm:$0x1]
        %v6899 = vld [vmem:[%s4390 + $0xa8] sm:$0xf]
        %v6900 = vld [vmem:[%s4390 + $0xac] sm:$0xf]
        %v6901 = vld [vmem:[%s4390 + $0xb0] sm:$0x1]
        %v6902 = vld [vmem:[%s4390 + $0xb4] sm:$0xf]
        %v6903 = vld [vmem:[%s4390 + $0xb8] sm:$0xf]
        %v6904 = vld [vmem:[%s4390 + $0xbc] sm:$0x1]
        %v6906 = vshrl.u32 %v6857, 16
        %v6908 = vrot.slane %v6906, 4
        %v6909 = vshll.u32 %v6857, 16
        %v6911 = vrot.slane %v6909, 5
        %v6912 = vor.u32 %v6908, %v6911
        %v6913 = vrot.slane %v6912, 4
        %v6915 = vshll.u32 %v6858, 16
        %v6917 = vrot.slane %v6915, 5
        %v6918 = vsel %vm5039, %v6913, %v6917
        %v6919 = vshrl.u32 %v6858, 16
        %v6921 = vrot.slane %v6919, 4
        %v6922 = vor.u32 %v6921, %v6917
        %v6923 = vrot.slane %v6922, 4
        %v6925 = vshll.u32 %v6859, 16
        %v6927 = vrot.slane %v6925, 5
        %v6928 = vsel %vm5039, %v6923, %v6927
        %v6930 = vshrl.u32 %v6860, 16
        %v6932 = vrot.slane %v6930, 4
        %v6933 = vshll.u32 %v6860, 16
        %v6935 = vrot.slane %v6933, 5
        %v6936 = vor.u32 %v6932, %v6935
        %v6937 = vrot.slane %v6936, 4
        %v6939 = vshll.u32 %v6861, 16
        %v6941 = vrot.slane %v6939, 5
        %v6942 = vsel %vm5039, %v6937, %v6941
        %v6943 = vshrl.u32 %v6861, 16
        %v6945 = vrot.slane %v6943, 4
        %v6946 = vor.u32 %v6945, %v6941
        %v6947 = vrot.slane %v6946, 4
        %v6949 = vshll.u32 %v6862, 16
        %v6951 = vrot.slane %v6949, 5
        %v6952 = vsel %vm5039, %v6947, %v6951
        %v6954 = vshrl.u32 %v6863, 16
        %v6956 = vrot.slane %v6954, 4
        %v6957 = vshll.u32 %v6863, 16
        %v6959 = vrot.slane %v6957, 5
        %v6960 = vor.u32 %v6956, %v6959
        %v6961 = vrot.slane %v6960, 4
        %v6963 = vshll.u32 %v6864, 16
        %v6965 = vrot.slane %v6963, 5
        %v6966 = vsel %vm5039, %v6961, %v6965
        %v6967 = vshrl.u32 %v6864, 16
        %v6969 = vrot.slane %v6967, 4
        %v6970 = vor.u32 %v6969, %v6965
        %v6971 = vrot.slane %v6970, 4
        %v6973 = vshll.u32 %v6865, 16
        %v6975 = vrot.slane %v6973, 5
        %v6976 = vsel %vm5039, %v6971, %v6975
        %v6978 = vshrl.u32 %v6866, 16
        %v6980 = vrot.slane %v6978, 4
        %v6981 = vshll.u32 %v6866, 16
        %v6983 = vrot.slane %v6981, 5
        %v6984 = vor.u32 %v6980, %v6983
        %v6985 = vrot.slane %v6984, 4
        %v6987 = vshll.u32 %v6867, 16
        %v6989 = vrot.slane %v6987, 5
        %v6990 = vsel %vm5039, %v6985, %v6989
        %v6991 = vshrl.u32 %v6867, 16
        %v6993 = vrot.slane %v6991, 4
        %v6994 = vor.u32 %v6993, %v6989
        %v6995 = vrot.slane %v6994, 4
        %v6997 = vshll.u32 %v6868, 16
        %v6999 = vrot.slane %v6997, 5
        %v7000 = vsel %vm5039, %v6995, %v6999
        %v7002 = vshrl.u32 %v6869, 16
        %v7004 = vrot.slane %v7002, 4
        %v7005 = vshll.u32 %v6869, 16
        %v7007 = vrot.slane %v7005, 5
        %v7008 = vor.u32 %v7004, %v7007
        %v7009 = vrot.slane %v7008, 4
        %v7011 = vshll.u32 %v6870, 16
        %v7013 = vrot.slane %v7011, 5
        %v7014 = vsel %vm5039, %v7009, %v7013
        %v7015 = vshrl.u32 %v6870, 16
        %v7017 = vrot.slane %v7015, 4
        %v7018 = vor.u32 %v7017, %v7013
        %v7019 = vrot.slane %v7018, 4
        %v7021 = vshll.u32 %v6871, 16
        %v7023 = vrot.slane %v7021, 5
        %v7024 = vsel %vm5039, %v7019, %v7023
        %v7026 = vshrl.u32 %v6872, 16
        %v7028 = vrot.slane %v7026, 4
        %v7029 = vshll.u32 %v6872, 16
        %v7031 = vrot.slane %v7029, 5
        %v7032 = vor.u32 %v7028, %v7031
        %v7033 = vrot.slane %v7032, 4
        %v7035 = vshll.u32 %v6873, 16
        %v7037 = vrot.slane %v7035, 5
        %v7038 = vsel %vm5039, %v7033, %v7037
        %v7039 = vshrl.u32 %v6873, 16
        %v7041 = vrot.slane %v7039, 4
        %v7042 = vor.u32 %v7041, %v7037
        %v7043 = vrot.slane %v7042, 4
        %v7045 = vshll.u32 %v6874, 16
        %v7047 = vrot.slane %v7045, 5
        %v7048 = vsel %vm5039, %v7043, %v7047
        %v7050 = vshrl.u32 %v6875, 16
        %v7052 = vrot.slane %v7050, 4
        %v7053 = vshll.u32 %v6875, 16
        %v7055 = vrot.slane %v7053, 5
        %v7056 = vor.u32 %v7052, %v7055
        %v7057 = vrot.slane %v7056, 4
        %v7059 = vshll.u32 %v6876, 16
        %v7061 = vrot.slane %v7059, 5
        %v7062 = vsel %vm5039, %v7057, %v7061
        %v7063 = vshrl.u32 %v6876, 16
        %v7065 = vrot.slane %v7063, 4
        %v7066 = vor.u32 %v7065, %v7061
        %v7067 = vrot.slane %v7066, 4
        %v7069 = vshll.u32 %v6877, 16
        %v7071 = vrot.slane %v7069, 5
        %v7072 = vsel %vm5039, %v7067, %v7071
        %v7074 = vshrl.u32 %v6878, 16
        %v7076 = vrot.slane %v7074, 4
        %v7077 = vshll.u32 %v6878, 16
        %v7079 = vrot.slane %v7077, 5
        %v7080 = vor.u32 %v7076, %v7079
        %v7081 = vrot.slane %v7080, 4
        %v7083 = vshll.u32 %v6879, 16
        %v7085 = vrot.slane %v7083, 5
        %v7086 = vsel %vm5039, %v7081, %v7085
        %v7087 = vshrl.u32 %v6879, 16
        %v7089 = vrot.slane %v7087, 4
        %v7090 = vor.u32 %v7089, %v7085
        %v7091 = vrot.slane %v7090, 4
        %v7093 = vshll.u32 %v6880, 16
        %v7095 = vrot.slane %v7093, 5
        %v7096 = vsel %vm5039, %v7091, %v7095
        %v7098 = vshrl.u32 %v6881, 16
        %v7100 = vrot.slane %v7098, 4
        %v7101 = vshll.u32 %v6881, 16
        %v7103 = vrot.slane %v7101, 5
        %v7104 = vor.u32 %v7100, %v7103
        %v7105 = vrot.slane %v7104, 4
        %v7107 = vshll.u32 %v6882, 16
        %v7109 = vrot.slane %v7107, 5
        %v7110 = vsel %vm5039, %v7105, %v7109
        %v7111 = vshrl.u32 %v6882, 16
        %v7113 = vrot.slane %v7111, 4
        %v7114 = vor.u32 %v7113, %v7109
        %v7115 = vrot.slane %v7114, 4
        %v7117 = vshll.u32 %v6883, 16
        %v7119 = vrot.slane %v7117, 5
        %v7120 = vsel %vm5039, %v7115, %v7119
        %v7122 = vshrl.u32 %v6884, 16
        %v7124 = vrot.slane %v7122, 4
        %v7125 = vshll.u32 %v6884, 16
        %v7127 = vrot.slane %v7125, 5
        %v7128 = vor.u32 %v7124, %v7127
        %v7129 = vrot.slane %v7128, 4
        %v7131 = vshll.u32 %v6885, 16
        %v7133 = vrot.slane %v7131, 5
        %v7134 = vsel %vm5039, %v7129, %v7133
        %v7135 = vshrl.u32 %v6885, 16
        %v7137 = vrot.slane %v7135, 4
        %v7138 = vor.u32 %v7137, %v7133
        %v7139 = vrot.slane %v7138, 4
        %v7141 = vshll.u32 %v6886, 16
        %v7143 = vrot.slane %v7141, 5
        %v7144 = vsel %vm5039, %v7139, %v7143
        %v7146 = vshrl.u32 %v6887, 16
        %v7148 = vrot.slane %v7146, 4
        %v7149 = vshll.u32 %v6887, 16
        %v7151 = vrot.slane %v7149, 5
        %v7152 = vor.u32 %v7148, %v7151
        %v7153 = vrot.slane %v7152, 4
        %v7155 = vshll.u32 %v6888, 16
        %v7157 = vrot.slane %v7155, 5
        %v7158 = vsel %vm5039, %v7153, %v7157
        %v7159 = vshrl.u32 %v6888, 16
        %v7161 = vrot.slane %v7159, 4
        %v7162 = vor.u32 %v7161, %v7157
        %v7163 = vrot.slane %v7162, 4
        %v7165 = vshll.u32 %v6889, 16
        %v7167 = vrot.slane %v7165, 5
        %v7168 = vsel %vm5039, %v7163, %v7167
        %v7170 = vshrl.u32 %v6890, 16
        %v7172 = vrot.slane %v7170, 4
        %v7173 = vshll.u32 %v6890, 16
        %v7175 = vrot.slane %v7173, 5
        %v7176 = vor.u32 %v7172, %v7175
        %v7177 = vrot.slane %v7176, 4
        %v7179 = vshll.u32 %v6891, 16
        %v7181 = vrot.slane %v7179, 5
        %v7182 = vsel %vm5039, %v7177, %v7181
        %v7183 = vshrl.u32 %v6891, 16
        %v7185 = vrot.slane %v7183, 4
        %v7186 = vor.u32 %v7185, %v7181
        %v7187 = vrot.slane %v7186, 4
        %v7189 = vshll.u32 %v6892, 16
        %v7191 = vrot.slane %v7189, 5
        %v7192 = vsel %vm5039, %v7187, %v7191
        %v7194 = vshrl.u32 %v6893, 16
        %v7196 = vrot.slane %v7194, 4
        %v7197 = vshll.u32 %v6893, 16
        %v7199 = vrot.slane %v7197, 5
        %v7200 = vor.u32 %v7196, %v7199
        %v7201 = vrot.slane %v7200, 4
        %v7203 = vshll.u32 %v6894, 16
        %v7205 = vrot.slane %v7203, 5
        %v7206 = vsel %vm5039, %v7201, %v7205
        %v7207 = vshrl.u32 %v6894, 16
        %v7209 = vrot.slane %v7207, 4
        %v7210 = vor.u32 %v7209, %v7205
        %v7211 = vrot.slane %v7210, 4
        %v7213 = vshll.u32 %v6895, 16
        %v7215 = vrot.slane %v7213, 5
        %v7216 = vsel %vm5039, %v7211, %v7215
        %v7218 = vshrl.u32 %v6896, 16
        %v7220 = vrot.slane %v7218, 4
        %v7221 = vshll.u32 %v6896, 16
        %v7223 = vrot.slane %v7221, 5
        %v7224 = vor.u32 %v7220, %v7223
        %v7225 = vrot.slane %v7224, 4
        %v7227 = vshll.u32 %v6897, 16
        %v7229 = vrot.slane %v7227, 5
        %v7230 = vsel %vm5039, %v7225, %v7229
        %v7231 = vshrl.u32 %v6897, 16
        %v7233 = vrot.slane %v7231, 4
        %v7234 = vor.u32 %v7233, %v7229
        %v7235 = vrot.slane %v7234, 4
        %v7237 = vshll.u32 %v6898, 16
        %v7239 = vrot.slane %v7237, 5
        %v7240 = vsel %vm5039, %v7235, %v7239
        %v7242 = vshrl.u32 %v6899, 16
        %v7244 = vrot.slane %v7242, 4
        %v7245 = vshll.u32 %v6899, 16
        %v7247 = vrot.slane %v7245, 5
        %v7248 = vor.u32 %v7244, %v7247
        %v7249 = vrot.slane %v7248, 4
        %v7251 = vshll.u32 %v6900, 16
        %v7253 = vrot.slane %v7251, 5
        %v7254 = vsel %vm5039, %v7249, %v7253
        %v7255 = vshrl.u32 %v6900, 16
        %v7257 = vrot.slane %v7255, 4
        %v7258 = vor.u32 %v7257, %v7253
        %v7259 = vrot.slane %v7258, 4
        %v7261 = vshll.u32 %v6901, 16
        %v7263 = vrot.slane %v7261, 5
        %v7264 = vsel %vm5039, %v7259, %v7263
        %v7266 = vshrl.u32 %v6902, 16
        %v7268 = vrot.slane %v7266, 4
        %v7269 = vshll.u32 %v6902, 16
        %v7271 = vrot.slane %v7269, 5
        %v7272 = vor.u32 %v7268, %v7271
        %v7273 = vrot.slane %v7272, 4
        %v7275 = vshll.u32 %v6903, 16
        %v7277 = vrot.slane %v7275, 5
        %v7278 = vsel %vm5039, %v7273, %v7277
        %v7279 = vshrl.u32 %v6903, 16
        %v7281 = vrot.slane %v7279, 4
        %v7282 = vor.u32 %v7281, %v7277
        %v7283 = vrot.slane %v7282, 4
        %v7285 = vshll.u32 %v6904, 16
        %v7287 = vrot.slane %v7285, 5
        %v7288 = vsel %vm5039, %v7283, %v7287
        %v7289 = vld [vmem:[#allocation4] sm:$0xff]
        %v7290 = vld [vmem:[#allocation4 + $0x8] sm:$0xff]
        %v7291 = vld [vmem:[#allocation4 + $0x10] sm:$0xff]
        %v7292 = vld [vmem:[#allocation4 + $0x18] sm:$0xff]
        %v7293 = vld [vmem:[#allocation4 + $0x20] sm:$0xff]
        %v7294 = vld [vmem:[#allocation4 + $0x28] sm:$0xff]
        %v7295 = vld [vmem:[#allocation4 + $0x30] sm:$0xff]
        %v7296 = vld [vmem:[#allocation4 + $0x38] sm:$0xff]
        %v7297 = vld [vmem:[#allocation4 + $0x40] sm:$0xff]
        %v7298 = vld [vmem:[#allocation4 + $0x48] sm:$0xff]
        %v7299 = vld [vmem:[#allocation4 + $0x50] sm:$0xff]
        %v7300 = vld [vmem:[#allocation4 + $0x58] sm:$0xff]
        %v7301 = vld [vmem:[#allocation4 + $0x60] sm:$0xff]
        %v7302 = vld [vmem:[#allocation4 + $0x68] sm:$0xff]
        %v7303 = vld [vmem:[#allocation4 + $0x70] sm:$0xff]
        %v7304 = vld [vmem:[#allocation4 + $0x78] sm:$0xff]
        %v7305 = vld [vmem:[#allocation4 + $0x80] sm:$0xff]
        %v7306 = vld [vmem:[#allocation4 + $0x88] sm:$0xff]
        %v7307 = vld [vmem:[#allocation4 + $0x90] sm:$0xff]
        %v7308 = vld [vmem:[#allocation4 + $0x98] sm:$0xff]
        %v7309 = vld [vmem:[#allocation4 + $0xa0] sm:$0xff]
        %v7310 = vld [vmem:[#allocation4 + $0xa8] sm:$0xff]
        %v7311 = vld [vmem:[#allocation4 + $0xb0] sm:$0xff]
        %v7312 = vld [vmem:[#allocation4 + $0xb8] sm:$0xff]
        %v7313 = vld [vmem:[#allocation4 + $0xc0] sm:$0xff]
        %v7314 = vld [vmem:[#allocation4 + $0xc8] sm:$0xff]
        %v7315 = vld [vmem:[#allocation4 + $0xd0] sm:$0xff]
        %v7316 = vld [vmem:[#allocation4 + $0xd8] sm:$0xff]
        %v7317 = vld [vmem:[#allocation4 + $0xe0] sm:$0xff]
        %v7318 = vld [vmem:[#allocation4 + $0xe8] sm:$0xff]
        %v7319 = vld [vmem:[#allocation4 + $0xf0] sm:$0xff]
        %v7320 = vld [vmem:[#allocation4 + $0xf8] sm:$0xff]
        %s7321 = scalar_lea.vmem [#allocation5], 256
        %v7322 = vld [vmem:[%s7321] sm:$0xf]
        %v7323 = vld [vmem:[%s7321 + $0x4] sm:$0xf]
        %v7324 = vld [vmem:[%s7321 + $0x8] sm:$0xf]
        %v7325 = vld [vmem:[%s7321 + $0xc] sm:$0xf]
        %v7326 = vld [vmem:[%s7321 + $0x10] sm:$0xf]
        %v7327 = vld [vmem:[%s7321 + $0x14] sm:$0xf]
        %v7328 = vld [vmem:[%s7321 + $0x18] sm:$0xf]
        %v7329 = vld [vmem:[%s7321 + $0x1c] sm:$0xf]
        %v7330 = vld [vmem:[%s7321 + $0x20] sm:$0xf]
        %v7331 = vld [vmem:[%s7321 + $0x24] sm:$0xf]
        %v7332 = vld [vmem:[%s7321 + $0x28] sm:$0xf]
        %v7333 = vld [vmem:[%s7321 + $0x2c] sm:$0xf]
        %v7334 = vld [vmem:[%s7321 + $0x30] sm:$0xf]
        %v7335 = vld [vmem:[%s7321 + $0x34] sm:$0xf]
        %v7336 = vld [vmem:[%s7321 + $0x38] sm:$0xf]
        %v7337 = vld [vmem:[%s7321 + $0x3c] sm:$0xf]
        %v7338 = vunpack.c.l.b16 %v6918
        %v7339 = vunpack.c.l.b16 %v6928
        %v7340 = vunpack.c.l.b16 %v6942
        %v7341 = vunpack.c.l.b16 %v6952
        %v7342 = vunpack.c.l.b16 %v6966
        %v7343 = vunpack.c.l.b16 %v6976
        %v7344 = vunpack.c.l.b16 %v6990
        %v7345 = vunpack.c.l.b16 %v7000
        %v7346 = vunpack.c.l.b16 %v7014
        %v7347 = vunpack.c.l.b16 %v7024
        %v7348 = vunpack.c.l.b16 %v7038
        %v7349 = vunpack.c.l.b16 %v7048
        %v7350 = vunpack.c.l.b16 %v7062
        %v7351 = vunpack.c.l.b16 %v7072
        %v7352 = vunpack.c.l.b16 %v7086
        %v7353 = vunpack.c.l.b16 %v7096
        %v7354 = vunpack.c.l.b16 %v7110
        %v7355 = vunpack.c.l.b16 %v7120
        %v7356 = vunpack.c.l.b16 %v7134
        %v7357 = vunpack.c.l.b16 %v7144
        %v7358 = vunpack.c.l.b16 %v7158
        %v7359 = vunpack.c.l.b16 %v7168
        %v7360 = vunpack.c.l.b16 %v7182
        %v7361 = vunpack.c.l.b16 %v7192
        %v7362 = vunpack.c.l.b16 %v7206
        %v7363 = vunpack.c.l.b16 %v7216
        %v7364 = vunpack.c.l.b16 %v7230
        %v7365 = vunpack.c.l.b16 %v7240
        %v7366 = vunpack.c.l.b16 %v7254
        %v7367 = vunpack.c.l.b16 %v7264
        %v7368 = vunpack.c.l.b16 %v7278
        %v7369 = vunpack.c.l.b16 %v7288
        %v7370 = vpack.c.b16 %v7339, %v7338
        %v7371 = vpack.c.b16 %v7341, %v7340
        %v7372 = vpack.c.b16 %v7343, %v7342
        %v7373 = vpack.c.b16 %v7345, %v7344
        %v7374 = vpack.c.b16 %v7347, %v7346
        %v7375 = vpack.c.b16 %v7349, %v7348
        %v7376 = vpack.c.b16 %v7351, %v7350
        %v7377 = vpack.c.b16 %v7353, %v7352
        %v7378 = vpack.c.b16 %v7355, %v7354
        %v7379 = vpack.c.b16 %v7357, %v7356
        %v7380 = vpack.c.b16 %v7359, %v7358
        %v7381 = vpack.c.b16 %v7361, %v7360
        %v7382 = vpack.c.b16 %v7363, %v7362
        %v7383 = vpack.c.b16 %v7365, %v7364
        %v7384 = vpack.c.b16 %v7367, %v7366
        %v7385 = vpack.c.b16 %v7369, %v7368
        %v7418 = vunpack.c.l.b16 %v7322
        %v7419 = vunpack.c.l.b16 %v7323
        %v7420 = vunpack.c.l.b16 %v7324
        %v7421 = vunpack.c.l.b16 %v7325
        %v7422 = vunpack.c.l.b16 %v7326
        %v7423 = vunpack.c.l.b16 %v7327
        %v7424 = vunpack.c.l.b16 %v7328
        %v7425 = vunpack.c.l.b16 %v7329
        %v7426 = vunpack.c.l.b16 %v7330
        %v7427 = vunpack.c.l.b16 %v7331
        %v7428 = vunpack.c.l.b16 %v7332
        %v7429 = vunpack.c.l.b16 %v7333
        %v7430 = vunpack.c.l.b16 %v7334
        %v7431 = vunpack.c.l.b16 %v7335
        %v7432 = vunpack.c.l.b16 %v7336
        %v7433 = vunpack.c.l.b16 %v7337
        %v7434 = vpack.c.b16 %v7419, %v7418
        %v7435 = vpack.c.b16 %v7421, %v7420
        %v7436 = vpack.c.b16 %v7423, %v7422
        %v7437 = vpack.c.b16 %v7425, %v7424
        %v7438 = vpack.c.b16 %v7427, %v7426
        %v7439 = vpack.c.b16 %v7429, %v7428
        %v7440 = vpack.c.b16 %v7431, %v7430
        %v7441 = vpack.c.b16 %v7433, %v7432
        %7450 = vmatprep.subr.bf16.mxu0 0
        %7451 = vmatpush1.bf16.msra.mxu0 %v7434
        %7452 = vmatprep.subr.bf16.mxu0 0
        %7453 = vmatpush1.bf16.msra.mxu0 %v7435
        %7454 = vmatprep.subr.bf16.mxu0 0
        %7455 = vmatpush1.bf16.msra.mxu0 %v7436
        %7456 = vmatprep.subr.bf16.mxu0 0
        %7457 = vmatpush1.bf16.msra.mxu0 %v7437
        %7458 = vmatprep.subr.bf16.mxu0 0
        %7459 = vmatpush1.bf16.msra.mxu0 %v7438
        %7460 = vmatprep.subr.bf16.mxu0 0
        %7461 = vmatpush1.bf16.msra.mxu0 %v7439
        %7462 = vmatprep.subr.bf16.mxu0 0
        %7463 = vmatpush1.bf16.msra.mxu0 %v7440
        %7464 = vmatprep.subr.bf16.mxu0 0
        %7465 = vmatpush1.bf16.msra.mxu0 %v7441
        %7466 = vmatprep.subr.bf16.mxu0 0
        %7467 = vmatpush1.bf16.msra.mxu0 0
        %7468 = vmatprep.subr.bf16.mxu0 0
        %7469 = vmatpush1.bf16.msra.mxu0 0
        %7470 = vmatprep.subr.bf16.mxu0 0
        %7471 = vmatpush1.bf16.msra.mxu0 0
        %7472 = vmatprep.subr.bf16.mxu0 0
        %7473 = vmatpush1.bf16.msra.mxu0 0
        %7474 = vmatprep.subr.bf16.mxu0 0
        %7475 = vmatpush1.bf16.msra.mxu0 0
        %7476 = vmatprep.subr.bf16.mxu0 0
        %7477 = vmatpush1.bf16.msra.mxu0 0
        %7478 = vmatprep.subr.bf16.mxu0 0
        %7479 = vmatpush1.bf16.msra.mxu0 0
        %7480 = vmatprep.subr.bf16.mxu0 0
        %7481 = vmatpush1.bf16.msra.mxu0 0
        %7482 = vmatprep.mubr.bf16.mxu0 0
        %7483 = vmatmul.mubr.bf16.gmra.mrb[0].mxu0 %v7370
        %v7484 = vpop.f32.mrb[0].mxu0
        %v7485 = vadd.f32 0.0, %v7484
        %v7486 = vpop.f32.mrb[0].mxu0
        %v7487 = vpop.f32.mrb[0].mxu0
        %v7488 = vadd.f32 0.0, %v7487
        %v7489 = vpop.f32.mrb[0].mxu0
        %7490 = vmatprep.mubr.bf16.mxu0 0
        %7491 = vmatmul.mubr.bf16.gmra.mrb[0].mxu0 %v7371
        %v7492 = vpop.f32.mrb[0].mxu0
        %v7493 = vadd.f32 0.0, %v7492
        %v7494 = vpop.f32.mrb[0].mxu0
        %v7495 = vpop.f32.mrb[0].mxu0
        %v7496 = vadd.f32 0.0, %v7495
        %v7497 = vpop.f32.mrb[0].mxu0
        %7498 = vmatprep.mubr.bf16.mxu0 0
        %7499 = vmatmul.mubr.bf16.gmra.mrb[0].mxu0 %v7372
        %v7500 = vpop.f32.mrb[0].mxu0
        %v7501 = vadd.f32 0.0, %v7500
        %v7502 = vpop.f32.mrb[0].mxu0
        %v7503 = vpop.f32.mrb[0].mxu0
        %v7504 = vadd.f32 0.0, %v7503
        %v7505 = vpop.f32.mrb[0].mxu0
        %7506 = vmatprep.mubr.bf16.mxu0 0
        %7507 = vmatmul.mubr.bf16.gmra.mrb[0].mxu0 %v7373
        %v7508 = vpop.f32.mrb[0].mxu0
        %v7509 = vadd.f32 0.0, %v7508
        %v7510 = vpop.f32.mrb[0].mxu0
        %v7511 = vpop.f32.mrb[0].mxu0
        %v7512 = vadd.f32 0.0, %v7511
        %v7513 = vpop.f32.mrb[0].mxu0
        %7514 = vmatprep.mubr.bf16.mxu0 0
        %7515 = vmatmul.mubr.bf16.gmra.mrb[0].mxu0 %v7374
        %v7516 = vpop.f32.mrb[0].mxu0
        %v7517 = vadd.f32 0.0, %v7516
        %v7518 = vpop.f32.mrb[0].mxu0
        %v7519 = vpop.f32.mrb[0].mxu0
        %v7520 = vadd.f32 0.0, %v7519
        %v7521 = vpop.f32.mrb[0].mxu0
        %7522 = vmatprep.mubr.bf16.mxu0 0
        %7523 = vmatmul.mubr.bf16.gmra.mrb[0].mxu0 %v7375
        %v7524 = vpop.f32.mrb[0].mxu0
        %v7525 = vadd.f32 0.0, %v7524
        %v7526 = vpop.f32.mrb[0].mxu0
        %v7527 = vpop.f32.mrb[0].mxu0
        %v7528 = vadd.f32 0.0, %v7527
        %v7529 = vpop.f32.mrb[0].mxu0
        %7530 = vmatprep.mubr.bf16.mxu0 0
        %7531 = vmatmul.mubr.bf16.gmra.mrb[0].mxu0 %v7376
        %v7532 = vpop.f32.mrb[0].mxu0
        %v7533 = vadd.f32 0.0, %v7532
        %v7534 = vpop.f32.mrb[0].mxu0
        %v7535 = vpop.f32.mrb[0].mxu0
        %v7536 = vadd.f32 0.0, %v7535
        %v7537 = vpop.f32.mrb[0].mxu0
        %7538 = vmatprep.mubr.bf16.mxu0 0
        %7539 = vmatmul.mubr.bf16.gmra.mrb[0].mxu0 %v7377
        %v7540 = vpop.f32.mrb[0].mxu0
        %v7541 = vadd.f32 0.0, %v7540
        %v7542 = vpop.f32.mrb[0].mxu0
        %v7543 = vpop.f32.mrb[0].mxu0
        %v7544 = vadd.f32 0.0, %v7543
        %v7545 = vpop.f32.mrb[0].mxu0
        %7546 = vmatprep.mubr.bf16.mxu0 0
        %7547 = vmatmul.mubr.bf16.gmra.mrb[0].mxu0 %v7378
        %v7548 = vpop.f32.mrb[0].mxu0
        %v7549 = vadd.f32 0.0, %v7548
        %v7550 = vpop.f32.mrb[0].mxu0
        %v7551 = vpop.f32.mrb[0].mxu0
        %v7552 = vadd.f32 0.0, %v7551
        %v7553 = vpop.f32.mrb[0].mxu0
        %7554 = vmatprep.mubr.bf16.mxu0 0
        %7555 = vmatmul.mubr.bf16.gmra.mrb[0].mxu0 %v7379
        %v7556 = vpop.f32.mrb[0].mxu0
        %v7557 = vadd.f32 0.0, %v7556
        %v7558 = vpop.f32.mrb[0].mxu0
        %v7559 = vpop.f32.mrb[0].mxu0
        %v7560 = vadd.f32 0.0, %v7559
        %v7561 = vpop.f32.mrb[0].mxu0
        %7562 = vmatprep.mubr.bf16.mxu0 0
        %7563 = vmatmul.mubr.bf16.gmra.mrb[0].mxu0 %v7380
        %v7564 = vpop.f32.mrb[0].mxu0
        %v7565 = vadd.f32 0.0, %v7564
        %v7566 = vpop.f32.mrb[0].mxu0
        %v7567 = vpop.f32.mrb[0].mxu0
        %v7568 = vadd.f32 0.0, %v7567
        %v7569 = vpop.f32.mrb[0].mxu0
        %7570 = vmatprep.mubr.bf16.mxu0 0
        %7571 = vmatmul.mubr.bf16.gmra.mrb[0].mxu0 %v7381
        %v7572 = vpop.f32.mrb[0].mxu0
        %v7573 = vadd.f32 0.0, %v7572
        %v7574 = vpop.f32.mrb[0].mxu0
        %v7575 = vpop.f32.mrb[0].mxu0
        %v7576 = vadd.f32 0.0, %v7575
        %v7577 = vpop.f32.mrb[0].mxu0
        %7578 = vmatprep.mubr.bf16.mxu0 0
        %7579 = vmatmul.mubr.bf16.gmra.mrb[0].mxu0 %v7382
        %v7580 = vpop.f32.mrb[0].mxu0
        %v7581 = vadd.f32 0.0, %v7580
        %v7582 = vpop.f32.mrb[0].mxu0
        %v7583 = vpop.f32.mrb[0].mxu0
        %v7584 = vadd.f32 0.0, %v7583
        %v7585 = vpop.f32.mrb[0].mxu0
        %7586 = vmatprep.mubr.bf16.mxu0 0
        %7587 = vmatmul.mubr.bf16.gmra.mrb[0].mxu0 %v7383
        %v7588 = vpop.f32.mrb[0].mxu0
        %v7589 = vadd.f32 0.0, %v7588
        %v7590 = vpop.f32.mrb[0].mxu0
        %v7591 = vpop.f32.mrb[0].mxu0
        %v7592 = vadd.f32 0.0, %v7591
        %v7593 = vpop.f32.mrb[0].mxu0
        %7594 = vmatprep.mubr.bf16.mxu0 0
        %7595 = vmatmul.mubr.bf16.gmra.mrb[0].mxu0 %v7384
        %v7596 = vpop.f32.mrb[0].mxu0
        %v7597 = vadd.f32 0.0, %v7596
        %v7598 = vpop.f32.mrb[0].mxu0
        %v7599 = vpop.f32.mrb[0].mxu0
        %v7600 = vadd.f32 0.0, %v7599
        %v7601 = vpop.f32.mrb[0].mxu0
        %7602 = vmatprep.mubr.bf16.mxu0 0
        %7603 = vmatmul.mubr.bf16.gmra.mrb[0].mxu0 %v7385
        %v7604 = vpop.f32.mrb[0].mxu0
        %v7605 = vadd.f32 0.0, %v7604
        %v7606 = vpop.f32.mrb[0].mxu0
        %v7607 = vpop.f32.mrb[0].mxu0
        %v7608 = vadd.f32 0.0, %v7607
        %v7609 = vpop.f32.mrb[0].mxu0
        %7610 = vdwg.mxu0
        %v7611 = vadd.f32 %v7289, %v7485
        %v7612 = vadd.f32 %v7290, %v7488
        %v7613 = vadd.f32 %v7291, %v7493
        %v7614 = vadd.f32 %v7292, %v7496
        %v7615 = vadd.f32 %v7293, %v7501
        %v7616 = vadd.f32 %v7294, %v7504
        %v7617 = vadd.f32 %v7295, %v7509
        %v7618 = vadd.f32 %v7296, %v7512
        %v7619 = vadd.f32 %v7297, %v7517
        %v7620 = vadd.f32 %v7298, %v7520
        %v7621 = vadd.f32 %v7299, %v7525
        %v7622 = vadd.f32 %v7300, %v7528
        %v7623 = vadd.f32 %v7301, %v7533
        %v7624 = vadd.f32 %v7302, %v7536
        %v7625 = vadd.f32 %v7303, %v7541
        %v7626 = vadd.f32 %v7304, %v7544
        %v7627 = vadd.f32 %v7305, %v7549
        %v7628 = vadd.f32 %v7306, %v7552
        %v7629 = vadd.f32 %v7307, %v7557
        %v7630 = vadd.f32 %v7308, %v7560
        %v7631 = vadd.f32 %v7309, %v7565
        %v7632 = vadd.f32 %v7310, %v7568
        %v7633 = vadd.f32 %v7311, %v7573
        %v7634 = vadd.f32 %v7312, %v7576
        %v7635 = vadd.f32 %v7313, %v7581
        %v7636 = vadd.f32 %v7314, %v7584
        %v7637 = vadd.f32 %v7315, %v7589
        %v7638 = vadd.f32 %v7316, %v7592
        %v7639 = vadd.f32 %v7317, %v7597
        %v7640 = vadd.f32 %v7318, %v7600
        %v7641 = vadd.f32 %v7319, %v7605
        %v7642 = vadd.f32 %v7320, %v7608
        %7643 = vst [vmem:[#allocation4] sm:$0xff] %v7611
        %7644 = vst [vmem:[#allocation4 + $0x8] sm:$0xff] %v7612
        %7645 = vst [vmem:[#allocation4 + $0x10] sm:$0xff] %v7613
        %7646 = vst [vmem:[#allocation4 + $0x18] sm:$0xff] %v7614
        %7647 = vst [vmem:[#allocation4 + $0x20] sm:$0xff] %v7615
        %7648 = vst [vmem:[#allocation4 + $0x28] sm:$0xff] %v7616
        %7649 = vst [vmem:[#allocation4 + $0x30] sm:$0xff] %v7617
        %7650 = vst [vmem:[#allocation4 + $0x38] sm:$0xff] %v7618
        %7651 = vst [vmem:[#allocation4 + $0x40] sm:$0xff] %v7619
        %7652 = vst [vmem:[#allocation4 + $0x48] sm:$0xff] %v7620
        %7653 = vst [vmem:[#allocation4 + $0x50] sm:$0xff] %v7621
        %7654 = vst [vmem:[#allocation4 + $0x58] sm:$0xff] %v7622
        %7655 = vst [vmem:[#allocation4 + $0x60] sm:$0xff] %v7623
        %7656 = vst [vmem:[#allocation4 + $0x68] sm:$0xff] %v7624
        %7657 = vst [vmem:[#allocation4 + $0x70] sm:$0xff] %v7625
        %7658 = vst [vmem:[#allocation4 + $0x78] sm:$0xff] %v7626
        %7659 = vst [vmem:[#allocation4 + $0x80] sm:$0xff] %v7627
        %7660 = vst [vmem:[#allocation4 + $0x88] sm:$0xff] %v7628
        %7661 = vst [vmem:[#allocation4 + $0x90] sm:$0xff] %v7629
        %7662 = vst [vmem:[#allocation4 + $0x98] sm:$0xff] %v7630
        %7663 = vst [vmem:[#allocation4 + $0xa0] sm:$0xff] %v7631
        %7664 = vst [vmem:[#allocation4 + $0xa8] sm:$0xff] %v7632
        %7665 = vst [vmem:[#allocation4 + $0xb0] sm:$0xff] %v7633
        %7666 = vst [vmem:[#allocation4 + $0xb8] sm:$0xff] %v7634
        %7667 = vst [vmem:[#allocation4 + $0xc0] sm:$0xff] %v7635
        %7668 = vst [vmem:[#allocation4 + $0xc8] sm:$0xff] %v7636
        %7669 = vst [vmem:[#allocation4 + $0xd0] sm:$0xff] %v7637
        %7670 = vst [vmem:[#allocation4 + $0xd8] sm:$0xff] %v7638
        %7671 = vst [vmem:[#allocation4 + $0xe0] sm:$0xff] %v7639
        %7672 = vst [vmem:[#allocation4 + $0xe8] sm:$0xff] %v7640
        %7673 = vst [vmem:[#allocation4 + $0xf0] sm:$0xff] %v7641
        %7674 = vst [vmem:[#allocation4 + $0xf8] sm:$0xff] %v7642
        %v7675 = vld [vmem:[%s4390] sm:$0xe]
        %v7676 = vld [vmem:[%s4390 + $0x4] sm:$0xf]
        %v7677 = vld [vmem:[%s4390 + $0x8] sm:$0x1]
        %v7678 = vld [vmem:[%s4390 + $0xc] sm:$0xe]
        %v7679 = vld [vmem:[%s4390 + $0x10] sm:$0xf]
        %v7680 = vld [vmem:[%s4390 + $0x14] sm:$0x1]
        %v7681 = vld [vmem:[%s4390 + $0x18] sm:$0xe]
        %v7682 = vld [vmem:[%s4390 + $0x1c] sm:$0xf]
        %v7683 = vld [vmem:[%s4390 + $0x20] sm:$0x1]
        %v7684 = vld [vmem:[%s4390 + $0x24] sm:$0xe]
        %v7685 = vld [vmem:[%s4390 + $0x28] sm:$0xf]
        %v7686 = vld [vmem:[%s4390 + $0x2c] sm:$0x1]
        %v7687 = vld [vmem:[%s4390 + $0x30] sm:$0xe]
        %v7688 = vld [vmem:[%s4390 + $0x34] sm:$0xf]
        %v7689 = vld [vmem:[%s4390 + $0x38] sm:$0x1]
        %v7690 = vld [vmem:[%s4390 + $0x3c] sm:$0xe]
        %v7691 = vld [vmem:[%s4390 + $0x40] sm:$0xf]
        %v7692 = vld [vmem:[%s4390 + $0x44] sm:$0x1]
        %v7693 = vld [vmem:[%s4390 + $0x48] sm:$0xe]
        %v7694 = vld [vmem:[%s4390 + $0x4c] sm:$0xf]
        %v7695 = vld [vmem:[%s4390 + $0x50] sm:$0x1]
        %v7696 = vld [vmem:[%s4390 + $0x54] sm:$0xe]
        %v7697 = vld [vmem:[%s4390 + $0x58] sm:$0xf]
        %v7698 = vld [vmem:[%s4390 + $0x5c] sm:$0x1]
        %v7699 = vld [vmem:[%s4390 + $0x60] sm:$0xe]
        %v7700 = vld [vmem:[%s4390 + $0x64] sm:$0xf]
        %v7701 = vld [vmem:[%s4390 + $0x68] sm:$0x1]
        %v7702 = vld [vmem:[%s4390 + $0x6c] sm:$0xe]
        %v7703 = vld [vmem:[%s4390 + $0x70] sm:$0xf]
        %v7704 = vld [vmem:[%s4390 + $0x74] sm:$0x1]
        %v7705 = vld [vmem:[%s4390 + $0x78] sm:$0xe]
        %v7706 = vld [vmem:[%s4390 + $0x7c] sm:$0xf]
        %v7707 = vld [vmem:[%s4390 + $0x80] sm:$0x1]
        %v7708 = vld [vmem:[%s4390 + $0x84] sm:$0xe]
        %v7709 = vld [vmem:[%s4390 + $0x88] sm:$0xf]
        %v7710 = vld [vmem:[%s4390 + $0x8c] sm:$0x1]
        %v7711 = vld [vmem:[%s4390 + $0x90] sm:$0xe]
        %v7712 = vld [vmem:[%s4390 + $0x94] sm:$0xf]
        %v7713 = vld [vmem:[%s4390 + $0x98] sm:$0x1]
        %v7714 = vld [vmem:[%s4390 + $0x9c] sm:$0xe]
        %v7715 = vld [vmem:[%s4390 + $0xa0] sm:$0xf]
        %v7716 = vld [vmem:[%s4390 + $0xa4] sm:$0x1]
        %v7717 = vld [vmem:[%s4390 + $0xa8] sm:$0xe]
        %v7718 = vld [vmem:[%s4390 + $0xac] sm:$0xf]
        %v7719 = vld [vmem:[%s4390 + $0xb0] sm:$0x1]
        %v7720 = vld [vmem:[%s4390 + $0xb4] sm:$0xe]
        %v7721 = vld [vmem:[%s4390 + $0xb8] sm:$0xf]
        %v7722 = vld [vmem:[%s4390 + $0xbc] sm:$0x1]
        %v7771 = vrot.slane %v7675, 5
        %v7772 = vrot.slane %v7771, 4
        %v7773 = vrot.slane %v7676, 5
        %v7774 = vsel %vm5908, %v7772, %v7773
        %v7775 = vrot.slane %v7773, 4
        %v7776 = vrot.slane %v7677, 5
        %v7777 = vsel %vm5908, %v7775, %v7776
        %v7778 = vrot.slane %v7678, 5
        %v7779 = vrot.slane %v7778, 4
        %v7780 = vrot.slane %v7679, 5
        %v7781 = vsel %vm5908, %v7779, %v7780
        %v7782 = vrot.slane %v7780, 4
        %v7783 = vrot.slane %v7680, 5
        %v7784 = vsel %vm5908, %v7782, %v7783
        %v7785 = vrot.slane %v7681, 5
        %v7786 = vrot.slane %v7785, 4
        %v7787 = vrot.slane %v7682, 5
        %v7788 = vsel %vm5908, %v7786, %v7787
        %v7789 = vrot.slane %v7787, 4
        %v7790 = vrot.slane %v7683, 5
        %v7791 = vsel %vm5908, %v7789, %v7790
        %v7792 = vrot.slane %v7684, 5
        %v7793 = vrot.slane %v7792, 4
        %v7794 = vrot.slane %v7685, 5
        %v7795 = vsel %vm5908, %v7793, %v7794
        %v7796 = vrot.slane %v7794, 4
        %v7797 = vrot.slane %v7686, 5
        %v7798 = vsel %vm5908, %v7796, %v7797
        %v7799 = vrot.slane %v7687, 5
        %v7800 = vrot.slane %v7799, 4
        %v7801 = vrot.slane %v7688, 5
        %v7802 = vsel %vm5908, %v7800, %v7801
        %v7803 = vrot.slane %v7801, 4
        %v7804 = vrot.slane %v7689, 5
        %v7805 = vsel %vm5908, %v7803, %v7804
        %v7806 = vrot.slane %v7690, 5
        %v7807 = vrot.slane %v7806, 4
        %v7808 = vrot.slane %v7691, 5
        %v7809 = vsel %vm5908, %v7807, %v7808
        %v7810 = vrot.slane %v7808, 4
        %v7811 = vrot.slane %v7692, 5
        %v7812 = vsel %vm5908, %v7810, %v7811
        %v7813 = vrot.slane %v7693, 5
        %v7814 = vrot.slane %v7813, 4
        %v7815 = vrot.slane %v7694, 5
        %v7816 = vsel %vm5908, %v7814, %v7815
        %v7817 = vrot.slane %v7815, 4
        %v7818 = vrot.slane %v7695, 5
        %v7819 = vsel %vm5908, %v7817, %v7818
        %v7820 = vrot.slane %v7696, 5
        %v7821 = vrot.slane %v7820, 4
        %v7822 = vrot.slane %v7697, 5
        %v7823 = vsel %vm5908, %v7821, %v7822
        %v7824 = vrot.slane %v7822, 4
        %v7825 = vrot.slane %v7698, 5
        %v7826 = vsel %vm5908, %v7824, %v7825
        %v7827 = vrot.slane %v7699, 5
        %v7828 = vrot.slane %v7827, 4
        %v7829 = vrot.slane %v7700, 5
        %v7830 = vsel %vm5908, %v7828, %v7829
        %v7831 = vrot.slane %v7829, 4
        %v7832 = vrot.slane %v7701, 5
        %v7833 = vsel %vm5908, %v7831, %v7832
        %v7834 = vrot.slane %v7702, 5
        %v7835 = vrot.slane %v7834, 4
        %v7836 = vrot.slane %v7703, 5
        %v7837 = vsel %vm5908, %v7835, %v7836
        %v7838 = vrot.slane %v7836, 4
        %v7839 = vrot.slane %v7704, 5
        %v7840 = vsel %vm5908, %v7838, %v7839
        %v7841 = vrot.slane %v7705, 5
        %v7842 = vrot.slane %v7841, 4
        %v7843 = vrot.slane %v7706, 5
        %v7844 = vsel %vm5908, %v7842, %v7843
        %v7845 = vrot.slane %v7843, 4
        %v7846 = vrot.slane %v7707, 5
        %v7847 = vsel %vm5908, %v7845, %v7846
        %v7848 = vrot.slane %v7708, 5
        %v7849 = vrot.slane %v7848, 4
        %v7850 = vrot.slane %v7709, 5
        %v7851 = vsel %vm5908, %v7849, %v7850
        %v7852 = vrot.slane %v7850, 4
        %v7853 = vrot.slane %v7710, 5
        %v7854 = vsel %vm5908, %v7852, %v7853
        %v7855 = vrot.slane %v7711, 5
        %v7856 = vrot.slane %v7855, 4
        %v7857 = vrot.slane %v7712, 5
        %v7858 = vsel %vm5908, %v7856, %v7857
        %v7859 = vrot.slane %v7857, 4
        %v7860 = vrot.slane %v7713, 5
        %v7861 = vsel %vm5908, %v7859, %v7860
        %v7862 = vrot.slane %v7714, 5
        %v7863 = vrot.slane %v7862, 4
        %v7864 = vrot.slane %v7715, 5
        %v7865 = vsel %vm5908, %v7863, %v7864
        %v7866 = vrot.slane %v7864, 4
        %v7867 = vrot.slane %v7716, 5
        %v7868 = vsel %vm5908, %v7866, %v7867
        %v7869 = vrot.slane %v7717, 5
        %v7870 = vrot.slane %v7869, 4
        %v7871 = vrot.slane %v7718, 5
        %v7872 = vsel %vm5908, %v7870, %v7871
        %v7873 = vrot.slane %v7871, 4
        %v7874 = vrot.slane %v7719, 5
        %v7875 = vsel %vm5908, %v7873, %v7874
        %v7876 = vrot.slane %v7720, 5
        %v7877 = vrot.slane %v7876, 4
        %v7878 = vrot.slane %v7721, 5
        %v7879 = vsel %vm5908, %v7877, %v7878
        %v7880 = vrot.slane %v7878, 4
        %v7881 = vrot.slane %v7722, 5
        %v7882 = vsel %vm5908, %v7880, %v7881
        %v7883 = vld [vmem:[#allocation4] sm:$0xff]
        %v7884 = vld [vmem:[#allocation4 + $0x8] sm:$0xff]
        %v7885 = vld [vmem:[#allocation4 + $0x10] sm:$0xff]
        %v7886 = vld [vmem:[#allocation4 + $0x18] sm:$0xff]
        %v7887 = vld [vmem:[#allocation4 + $0x20] sm:$0xff]
        %v7888 = vld [vmem:[#allocation4 + $0x28] sm:$0xff]
        %v7889 = vld [vmem:[#allocation4 + $0x30] sm:$0xff]
        %v7890 = vld [vmem:[#allocation4 + $0x38] sm:$0xff]
        %v7891 = vld [vmem:[#allocation4 + $0x40] sm:$0xff]
        %v7892 = vld [vmem:[#allocation4 + $0x48] sm:$0xff]
        %v7893 = vld [vmem:[#allocation4 + $0x50] sm:$0xff]
        %v7894 = vld [vmem:[#allocation4 + $0x58] sm:$0xff]
        %v7895 = vld [vmem:[#allocation4 + $0x60] sm:$0xff]
        %v7896 = vld [vmem:[#allocation4 + $0x68] sm:$0xff]
        %v7897 = vld [vmem:[#allocation4 + $0x70] sm:$0xff]
        %v7898 = vld [vmem:[#allocation4 + $0x78] sm:$0xff]
        %v7899 = vld [vmem:[#allocation4 + $0x80] sm:$0xff]
        %v7900 = vld [vmem:[#allocation4 + $0x88] sm:$0xff]
        %v7901 = vld [vmem:[#allocation4 + $0x90] sm:$0xff]
        %v7902 = vld [vmem:[#allocation4 + $0x98] sm:$0xff]
        %v7903 = vld [vmem:[#allocation4 + $0xa0] sm:$0xff]
        %v7904 = vld [vmem:[#allocation4 + $0xa8] sm:$0xff]
        %v7905 = vld [vmem:[#allocation4 + $0xb0] sm:$0xff]
        %v7906 = vld [vmem:[#allocation4 + $0xb8] sm:$0xff]
        %v7907 = vld [vmem:[#allocation4 + $0xc0] sm:$0xff]
        %v7908 = vld [vmem:[#allocation4 + $0xc8] sm:$0xff]
        %v7909 = vld [vmem:[#allocation4 + $0xd0] sm:$0xff]
        %v7910 = vld [vmem:[#allocation4 + $0xd8] sm:$0xff]
        %v7911 = vld [vmem:[#allocation4 + $0xe0] sm:$0xff]
        %v7912 = vld [vmem:[#allocation4 + $0xe8] sm:$0xff]
        %v7913 = vld [vmem:[#allocation4 + $0xf0] sm:$0xff]
        %v7914 = vld [vmem:[#allocation4 + $0xf8] sm:$0xff]
        %s7915 = scalar_lea.vmem [#allocation5], 320
        %v7916 = vld [vmem:[%s7915] sm:$0xf]
        %v7917 = vld [vmem:[%s7915 + $0x4] sm:$0xf]
        %v7918 = vld [vmem:[%s7915 + $0x8] sm:$0xf]
        %v7919 = vld [vmem:[%s7915 + $0xc] sm:$0xf]
        %v7920 = vld [vmem:[%s7915 + $0x10] sm:$0xf]
        %v7921 = vld [vmem:[%s7915 + $0x14] sm:$0xf]
        %v7922 = vld [vmem:[%s7915 + $0x18] sm:$0xf]
        %v7923 = vld [vmem:[%s7915 + $0x1c] sm:$0xf]
        %v7924 = vld [vmem:[%s7915 + $0x20] sm:$0xf]
        %v7925 = vld [vmem:[%s7915 + $0x24] sm:$0xf]
        %v7926 = vld [vmem:[%s7915 + $0x28] sm:$0xf]
        %v7927 = vld [vmem:[%s7915 + $0x2c] sm:$0xf]
        %v7928 = vld [vmem:[%s7915 + $0x30] sm:$0xf]
        %v7929 = vld [vmem:[%s7915 + $0x34] sm:$0xf]
        %v7930 = vld [vmem:[%s7915 + $0x38] sm:$0xf]
        %v7931 = vld [vmem:[%s7915 + $0x3c] sm:$0xf]
        %v7932 = vunpack.c.l.b16 %v7774
        %v7933 = vunpack.c.l.b16 %v7777
        %v7934 = vunpack.c.l.b16 %v7781
        %v7935 = vunpack.c.l.b16 %v7784
        %v7936 = vunpack.c.l.b16 %v7788
        %v7937 = vunpack.c.l.b16 %v7791
        %v7938 = vunpack.c.l.b16 %v7795
        %v7939 = vunpack.c.l.b16 %v7798
        %v7940 = vunpack.c.l.b16 %v7802
        %v7941 = vunpack.c.l.b16 %v7805
        %v7942 = vunpack.c.l.b16 %v7809
        %v7943 = vunpack.c.l.b16 %v7812
        %v7944 = vunpack.c.l.b16 %v7816
        %v7945 = vunpack.c.l.b16 %v7819
        %v7946 = vunpack.c.l.b16 %v7823
        %v7947 = vunpack.c.l.b16 %v7826
        %v7948 = vunpack.c.l.b16 %v7830
        %v7949 = vunpack.c.l.b16 %v7833
        %v7950 = vunpack.c.l.b16 %v7837
        %v7951 = vunpack.c.l.b16 %v7840
        %v7952 = vunpack.c.l.b16 %v7844
        %v7953 = vunpack.c.l.b16 %v7847
        %v7954 = vunpack.c.l.b16 %v7851
        %v7955 = vunpack.c.l.b16 %v7854
        %v7956 = vunpack.c.l.b16 %v7858
        %v7957 = vunpack.c.l.b16 %v7861
        %v7958 = vunpack.c.l.b16 %v7865
        %v7959 = vunpack.c.l.b16 %v7868
        %v7960 = vunpack.c.l.b16 %v7872
        %v7961 = vunpack.c.l.b16 %v7875
        %v7962 = vunpack.c.l.b16 %v7879
        %v7963 = vunpack.c.l.b16 %v7882
        %v7964 = vpack.c.b16 %v7933, %v7932
        %v7965 = vpack.c.b16 %v7935, %v7934
        %v7966 = vpack.c.b16 %v7937, %v7936
        %v7967 = vpack.c.b16 %v7939, %v7938
        %v7968 = vpack.c.b16 %v7941, %v7940
        %v7969 = vpack.c.b16 %v7943, %v7942
        %v7970 = vpack.c.b16 %v7945, %v7944
        %v7971 = vpack.c.b16 %v7947, %v7946
        %v7972 = vpack.c.b16 %v7949, %v7948
        %v7973 = vpack.c.b16 %v7951, %v7950
        %v7974 = vpack.c.b16 %v7953, %v7952
        %v7975 = vpack.c.b16 %v7955, %v7954
        %v7976 = vpack.c.b16 %v7957, %v7956
        %v7977 = vpack.c.b16 %v7959, %v7958
        %v7978 = vpack.c.b16 %v7961, %v7960
        %v7979 = vpack.c.b16 %v7963, %v7962
        %v8012 = vunpack.c.l.b16 %v7916
        %v8013 = vunpack.c.l.b16 %v7917
        %v8014 = vunpack.c.l.b16 %v7918
        %v8015 = vunpack.c.l.b16 %v7919
        %v8016 = vunpack.c.l.b16 %v7920
        %v8017 = vunpack.c.l.b16 %v7921
        %v8018 = vunpack.c.l.b16 %v7922
        %v8019 = vunpack.c.l.b16 %v7923
        %v8020 = vunpack.c.l.b16 %v7924
        %v8021 = vunpack.c.l.b16 %v7925
        %v8022 = vunpack.c.l.b16 %v7926
        %v8023 = vunpack.c.l.b16 %v7927
        %v8024 = vunpack.c.l.b16 %v7928
        %v8025 = vunpack.c.l.b16 %v7929
        %v8026 = vunpack.c.l.b16 %v7930
        %v8027 = vunpack.c.l.b16 %v7931
        %v8028 = vpack.c.b16 %v8013, %v8012
        %v8029 = vpack.c.b16 %v8015, %v8014
        %v8030 = vpack.c.b16 %v8017, %v8016
        %v8031 = vpack.c.b16 %v8019, %v8018
        %v8032 = vpack.c.b16 %v8021, %v8020
        %v8033 = vpack.c.b16 %v8023, %v8022
        %v8034 = vpack.c.b16 %v8025, %v8024
        %v8035 = vpack.c.b16 %v8027, %v8026
        %8044 = vmatprep.subr.bf16.mxu0 0
        %8045 = vmatpush1.bf16.msra.mxu0 %v8028
        %8046 = vmatprep.subr.bf16.mxu0 0
        %8047 = vmatpush1.bf16.msra.mxu0 %v8029
        %8048 = vmatprep.subr.bf16.mxu0 0
        %8049 = vmatpush1.bf16.msra.mxu0 %v8030
        %8050 = vmatprep.subr.bf16.mxu0 0
        %8051 = vmatpush1.bf16.msra.mxu0 %v8031
        %8052 = vmatprep.subr.bf16.mxu0 0
        %8053 = vmatpush1.bf16.msra.mxu0 %v8032
        %8054 = vmatprep.subr.bf16.mxu0 0
        %8055 = vmatpush1.bf16.msra.mxu0 %v8033
        %8056 = vmatprep.subr.bf16.mxu0 0
        %8057 = vmatpush1.bf16.msra.mxu0 %v8034
        %8058 = vmatprep.subr.bf16.mxu0 0
        %8059 = vmatpush1.bf16.msra.mxu0 %v8035
        %8060 = vmatprep.subr.bf16.mxu0 0
        %8061 = vmatpush1.bf16.msra.mxu0 0
        %8062 = vmatprep.subr.bf16.mxu0 0
        %8063 = vmatpush1.bf16.msra.mxu0 0
        %8064 = vmatprep.subr.bf16.mxu0 0
        %8065 = vmatpush1.bf16.msra.mxu0 0
        %8066 = vmatprep.subr.bf16.mxu0 0
        %8067 = vmatpush1.bf16.msra.mxu0 0
        %8068 = vmatprep.subr.bf16.mxu0 0
        %8069 = vmatpush1.bf16.msra.mxu0 0
        %8070 = vmatprep.subr.bf16.mxu0 0
        %8071 = vmatpush1.bf16.msra.mxu0 0
        %8072 = vmatprep.subr.bf16.mxu0 0
        %8073 = vmatpush1.bf16.msra.mxu0 0
        %8074 = vmatprep.subr.bf16.mxu0 0
        %8075 = vmatpush1.bf16.msra.mxu0 0
        %8076 = vmatprep.mubr.bf16.mxu0 0
        %8077 = vmatmul.mubr.bf16.gmra.mrb[0].mxu0 %v7964
        %v8078 = vpop.f32.mrb[0].mxu0
        %v8079 = vadd.f32 0.0, %v8078
        %v8080 = vpop.f32.mrb[0].mxu0
        %v8081 = vpop.f32.mrb[0].mxu0
        %v8082 = vadd.f32 0.0, %v8081
        %v8083 = vpop.f32.mrb[0].mxu0
        %8084 = vmatprep.mubr.bf16.mxu0 0
        %8085 = vmatmul.mubr.bf16.gmra.mrb[0].mxu0 %v7965
        %v8086 = vpop.f32.mrb[0].mxu0
        %v8087 = vadd.f32 0.0, %v8086
        %v8088 = vpop.f32.mrb[0].mxu0
        %v8089 = vpop.f32.mrb[0].mxu0
        %v8090 = vadd.f32 0.0, %v8089
        %v8091 = vpop.f32.mrb[0].mxu0
        %8092 = vmatprep.mubr.bf16.mxu0 0
        %8093 = vmatmul.mubr.bf16.gmra.mrb[0].mxu0 %v7966
        %v8094 = vpop.f32.mrb[0].mxu0
        %v8095 = vadd.f32 0.0, %v8094
        %v8096 = vpop.f32.mrb[0].mxu0
        %v8097 = vpop.f32.mrb[0].mxu0
        %v8098 = vadd.f32 0.0, %v8097
        %v8099 = vpop.f32.mrb[0].mxu0
        %8100 = vmatprep.mubr.bf16.mxu0 0
        %8101 = vmatmul.mubr.bf16.gmra.mrb[0].mxu0 %v7967
        %v8102 = vpop.f32.mrb[0].mxu0
        %v8103 = vadd.f32 0.0, %v8102
        %v8104 = vpop.f32.mrb[0].mxu0
        %v8105 = vpop.f32.mrb[0].mxu0
        %v8106 = vadd.f32 0.0, %v8105
        %v8107 = vpop.f32.mrb[0].mxu0
        %8108 = vmatprep.mubr.bf16.mxu0 0
        %8109 = vmatmul.mubr.bf16.gmra.mrb[0].mxu0 %v7968
        %v8110 = vpop.f32.mrb[0].mxu0
        %v8111 = vadd.f32 0.0, %v8110
        %v8112 = vpop.f32.mrb[0].mxu0
        %v8113 = vpop.f32.mrb[0].mxu0
        %v8114 = vadd.f32 0.0, %v8113
        %v8115 = vpop.f32.mrb[0].mxu0
        %8116 = vmatprep.mubr.bf16.mxu0 0
        %8117 = vmatmul.mubr.bf16.gmra.mrb[0].mxu0 %v7969
        %v8118 = vpop.f32.mrb[0].mxu0
        %v8119 = vadd.f32 0.0, %v8118
        %v8120 = vpop.f32.mrb[0].mxu0
        %v8121 = vpop.f32.mrb[0].mxu0
        %v8122 = vadd.f32 0.0, %v8121
        %v8123 = vpop.f32.mrb[0].mxu0
        %8124 = vmatprep.mubr.bf16.mxu0 0
        %8125 = vmatmul.mubr.bf16.gmra.mrb[0].mxu0 %v7970
        %v8126 = vpop.f32.mrb[0].mxu0
        %v8127 = vadd.f32 0.0, %v8126
        %v8128 = vpop.f32.mrb[0].mxu0
        %v8129 = vpop.f32.mrb[0].mxu0
        %v8130 = vadd.f32 0.0, %v8129
        %v8131 = vpop.f32.mrb[0].mxu0
        %8132 = vmatprep.mubr.bf16.mxu0 0
        %8133 = vmatmul.mubr.bf16.gmra.mrb[0].mxu0 %v7971
        %v8134 = vpop.f32.mrb[0].mxu0
        %v8135 = vadd.f32 0.0, %v8134
        %v8136 = vpop.f32.mrb[0].mxu0
        %v8137 = vpop.f32.mrb[0].mxu0
        %v8138 = vadd.f32 0.0, %v8137
        %v8139 = vpop.f32.mrb[0].mxu0
        %8140 = vmatprep.mubr.bf16.mxu0 0
        %8141 = vmatmul.mubr.bf16.gmra.mrb[0].mxu0 %v7972
        %v8142 = vpop.f32.mrb[0].mxu0
        %v8143 = vadd.f32 0.0, %v8142
        %v8144 = vpop.f32.mrb[0].mxu0
        %v8145 = vpop.f32.mrb[0].mxu0
        %v8146 = vadd.f32 0.0, %v8145
        %v8147 = vpop.f32.mrb[0].mxu0
        %8148 = vmatprep.mubr.bf16.mxu0 0
        %8149 = vmatmul.mubr.bf16.gmra.mrb[0].mxu0 %v7973
        %v8150 = vpop.f32.mrb[0].mxu0
        %v8151 = vadd.f32 0.0, %v8150
        %v8152 = vpop.f32.mrb[0].mxu0
        %v8153 = vpop.f32.mrb[0].mxu0
        %v8154 = vadd.f32 0.0, %v8153
        %v8155 = vpop.f32.mrb[0].mxu0
        %8156 = vmatprep.mubr.bf16.mxu0 0
        %8157 = vmatmul.mubr.bf16.gmra.mrb[0].mxu0 %v7974
        %v8158 = vpop.f32.mrb[0].mxu0
        %v8159 = vadd.f32 0.0, %v8158
        %v8160 = vpop.f32.mrb[0].mxu0
        %v8161 = vpop.f32.mrb[0].mxu0
        %v8162 = vadd.f32 0.0, %v8161
        %v8163 = vpop.f32.mrb[0].mxu0
        %8164 = vmatprep.mubr.bf16.mxu0 0
        %8165 = vmatmul.mubr.bf16.gmra.mrb[0].mxu0 %v7975
        %v8166 = vpop.f32.mrb[0].mxu0
        %v8167 = vadd.f32 0.0, %v8166
        %v8168 = vpop.f32.mrb[0].mxu0
        %v8169 = vpop.f32.mrb[0].mxu0
        %v8170 = vadd.f32 0.0, %v8169
        %v8171 = vpop.f32.mrb[0].mxu0
        %8172 = vmatprep.mubr.bf16.mxu0 0
        %8173 = vmatmul.mubr.bf16.gmra.mrb[0].mxu0 %v7976
        %v8174 = vpop.f32.mrb[0].mxu0
        %v8175 = vadd.f32 0.0, %v8174
        %v8176 = vpop.f32.mrb[0].mxu0
        %v8177 = vpop.f32.mrb[0].mxu0
        %v8178 = vadd.f32 0.0, %v8177
        %v8179 = vpop.f32.mrb[0].mxu0
        %8180 = vmatprep.mubr.bf16.mxu0 0
        %8181 = vmatmul.mubr.bf16.gmra.mrb[0].mxu0 %v7977
        %v8182 = vpop.f32.mrb[0].mxu0
        %v8183 = vadd.f32 0.0, %v8182
        %v8184 = vpop.f32.mrb[0].mxu0
        %v8185 = vpop.f32.mrb[0].mxu0
        %v8186 = vadd.f32 0.0, %v8185
        %v8187 = vpop.f32.mrb[0].mxu0
        %8188 = vmatprep.mubr.bf16.mxu0 0
        %8189 = vmatmul.mubr.bf16.gmra.mrb[0].mxu0 %v7978
        %v8190 = vpop.f32.mrb[0].mxu0
        %v8191 = vadd.f32 0.0, %v8190
        %v8192 = vpop.f32.mrb[0].mxu0
        %v8193 = vpop.f32.mrb[0].mxu0
        %v8194 = vadd.f32 0.0, %v8193
        %v8195 = vpop.f32.mrb[0].mxu0
        %8196 = vmatprep.mubr.bf16.mxu0 0
        %8197 = vmatmul.mubr.bf16.gmra.mrb[0].mxu0 %v7979
        %v8198 = vpop.f32.mrb[0].mxu0
        %v8199 = vadd.f32 0.0, %v8198
        %v8200 = vpop.f32.mrb[0].mxu0
        %v8201 = vpop.f32.mrb[0].mxu0
        %v8202 = vadd.f32 0.0, %v8201
        %v8203 = vpop.f32.mrb[0].mxu0
        %8204 = vdwg.mxu0
        %v8205 = vadd.f32 %v7883, %v8079
        %v8206 = vadd.f32 %v7884, %v8082
        %v8207 = vadd.f32 %v7885, %v8087
        %v8208 = vadd.f32 %v7886, %v8090
        %v8209 = vadd.f32 %v7887, %v8095
        %v8210 = vadd.f32 %v7888, %v8098
        %v8211 = vadd.f32 %v7889, %v8103
        %v8212 = vadd.f32 %v7890, %v8106
        %v8213 = vadd.f32 %v7891, %v8111
        %v8214 = vadd.f32 %v7892, %v8114
        %v8215 = vadd.f32 %v7893, %v8119
        %v8216 = vadd.f32 %v7894, %v8122
        %v8217 = vadd.f32 %v7895, %v8127
        %v8218 = vadd.f32 %v7896, %v8130
        %v8219 = vadd.f32 %v7897, %v8135
        %v8220 = vadd.f32 %v7898, %v8138
        %v8221 = vadd.f32 %v7899, %v8143
        %v8222 = vadd.f32 %v7900, %v8146
        %v8223 = vadd.f32 %v7901, %v8151
        %v8224 = vadd.f32 %v7902, %v8154
        %v8225 = vadd.f32 %v7903, %v8159
        %v8226 = vadd.f32 %v7904, %v8162
        %v8227 = vadd.f32 %v7905, %v8167
        %v8228 = vadd.f32 %v7906, %v8170
        %v8229 = vadd.f32 %v7907, %v8175
        %v8230 = vadd.f32 %v7908, %v8178
        %v8231 = vadd.f32 %v7909, %v8183
        %v8232 = vadd.f32 %v7910, %v8186
        %v8233 = vadd.f32 %v7911, %v8191
        %v8234 = vadd.f32 %v7912, %v8194
        %v8235 = vadd.f32 %v7913, %v8199
        %v8236 = vadd.f32 %v7914, %v8202
        %8237 = vst [vmem:[#allocation4] sm:$0xff] %v8205
        %8238 = vst [vmem:[#allocation4 + $0x8] sm:$0xff] %v8206
        %8239 = vst [vmem:[#allocation4 + $0x10] sm:$0xff] %v8207
        %8240 = vst [vmem:[#allocation4 + $0x18] sm:$0xff] %v8208
        %8241 = vst [vmem:[#allocation4 + $0x20] sm:$0xff] %v8209
        %8242 = vst [vmem:[#allocation4 + $0x28] sm:$0xff] %v8210
        %8243 = vst [vmem:[#allocation4 + $0x30] sm:$0xff] %v8211
        %8244 = vst [vmem:[#allocation4 + $0x38] sm:$0xff] %v8212
        %8245 = vst [vmem:[#allocation4 + $0x40] sm:$0xff] %v8213
        %8246 = vst [vmem:[#allocation4 + $0x48] sm:$0xff] %v8214
        %8247 = vst [vmem:[#allocation4 + $0x50] sm:$0xff] %v8215
        %8248 = vst [vmem:[#allocation4 + $0x58] sm:$0xff] %v8216
        %8249 = vst [vmem:[#allocation4 + $0x60] sm:$0xff] %v8217
        %8250 = vst [vmem:[#allocation4 + $0x68] sm:$0xff] %v8218
        %8251 = vst [vmem:[#allocation4 + $0x70] sm:$0xff] %v8219
        %8252 = vst [vmem:[#allocation4 + $0x78] sm:$0xff] %v8220
        %8253 = vst [vmem:[#allocation4 + $0x80] sm:$0xff] %v8221
        %8254 = vst [vmem:[#allocation4 + $0x88] sm:$0xff] %v8222
        %8255 = vst [vmem:[#allocation4 + $0x90] sm:$0xff] %v8223
        %8256 = vst [vmem:[#allocation4 + $0x98] sm:$0xff] %v8224
        %8257 = vst [vmem:[#allocation4 + $0xa0] sm:$0xff] %v8225
        %8258 = vst [vmem:[#allocation4 + $0xa8] sm:$0xff] %v8226
        %8259 = vst [vmem:[#allocation4 + $0xb0] sm:$0xff] %v8227
        %8260 = vst [vmem:[#allocation4 + $0xb8] sm:$0xff] %v8228
        %8261 = vst [vmem:[#allocation4 + $0xc0] sm:$0xff] %v8229
        %8262 = vst [vmem:[#allocation4 + $0xc8] sm:$0xff] %v8230
        %8263 = vst [vmem:[#allocation4 + $0xd0] sm:$0xff] %v8231
        %8264 = vst [vmem:[#allocation4 + $0xd8] sm:$0xff] %v8232
        %8265 = vst [vmem:[#allocation4 + $0xe0] sm:$0xff] %v8233
        %8266 = vst [vmem:[#allocation4 + $0xe8] sm:$0xff] %v8234
        %8267 = vst [vmem:[#allocation4 + $0xf0] sm:$0xff] %v8235
        %8268 = vst [vmem:[#allocation4 + $0xf8] sm:$0xff] %v8236
        %s8269 = scalar_lea.vmem [#allocation3], 24
        %v8270 = vld [vmem:[%s8269] sm:$0xf]
        %v8271 = vld [vmem:[%s8269 + $0x4] sm:$0xf]
        %v8272 = vld [vmem:[%s8269 + $0xc] sm:$0xf]
        %v8273 = vld [vmem:[%s8269 + $0x10] sm:$0xf]
        %v8274 = vld [vmem:[%s8269 + $0x18] sm:$0xf]
        %v8275 = vld [vmem:[%s8269 + $0x1c] sm:$0xf]
        %v8276 = vld [vmem:[%s8269 + $0x24] sm:$0xf]
        %v8277 = vld [vmem:[%s8269 + $0x28] sm:$0xf]
        %v8278 = vld [vmem:[%s8269 + $0x30] sm:$0xf]
        %v8279 = vld [vmem:[%s8269 + $0x34] sm:$0xf]
        %v8280 = vld [vmem:[%s8269 + $0x3c] sm:$0xf]
        %v8281 = vld [vmem:[%s8269 + $0x40] sm:$0xf]
        %v8282 = vld [vmem:[%s8269 + $0x48] sm:$0xf]
        %v8283 = vld [vmem:[%s8269 + $0x4c] sm:$0xf]
        %v8284 = vld [vmem:[%s8269 + $0x54] sm:$0xf]
        %v8285 = vld [vmem:[%s8269 + $0x58] sm:$0xf]
        %v8286 = vld [vmem:[%s8269 + $0x60] sm:$0xf]
        %v8287 = vld [vmem:[%s8269 + $0x64] sm:$0xf]
        %v8288 = vld [vmem:[%s8269 + $0x6c] sm:$0xf]
        %v8289 = vld [vmem:[%s8269 + $0x70] sm:$0xf]
        %v8290 = vld [vmem:[%s8269 + $0x78] sm:$0xf]
        %v8291 = vld [vmem:[%s8269 + $0x7c] sm:$0xf]
        %v8292 = vld [vmem:[%s8269 + $0x84] sm:$0xf]
        %v8293 = vld [vmem:[%s8269 + $0x88] sm:$0xf]
        %v8294 = vld [vmem:[%s8269 + $0x90] sm:$0xf]
        %v8295 = vld [vmem:[%s8269 + $0x94] sm:$0xf]
        %v8296 = vld [vmem:[%s8269 + $0x9c] sm:$0xf]
        %v8297 = vld [vmem:[%s8269 + $0xa0] sm:$0xf]
        %v8298 = vld [vmem:[%s8269 + $0xa8] sm:$0xf]
        %v8299 = vld [vmem:[%s8269 + $0xac] sm:$0xf]
        %v8300 = vld [vmem:[%s8269 + $0xb4] sm:$0xf]
        %v8301 = vld [vmem:[%s8269 + $0xb8] sm:$0xf]
        %v8302 = vld [vmem:[#allocation4] sm:$0xff]
        %v8303 = vld [vmem:[#allocation4 + $0x8] sm:$0xff]
        %v8304 = vld [vmem:[#allocation4 + $0x10] sm:$0xff]
        %v8305 = vld [vmem:[#allocation4 + $0x18] sm:$0xff]
        %v8306 = vld [vmem:[#allocation4 + $0x20] sm:$0xff]
        %v8307 = vld [vmem:[#allocation4 + $0x28] sm:$0xff]
        %v8308 = vld [vmem:[#allocation4 + $0x30] sm:$0xff]
        %v8309 = vld [vmem:[#allocation4 + $0x38] sm:$0xff]
        %v8310 = vld [vmem:[#allocation4 + $0x40] sm:$0xff]
        %v8311 = vld [vmem:[#allocation4 + $0x48] sm:$0xff]
        %v8312 = vld [vmem:[#allocation4 + $0x50] sm:$0xff]
        %v8313 = vld [vmem:[#allocation4 + $0x58] sm:$0xff]
        %v8314 = vld [vmem:[#allocation4 + $0x60] sm:$0xff]
        %v8315 = vld [vmem:[#allocation4 + $0x68] sm:$0xff]
        %v8316 = vld [vmem:[#allocation4 + $0x70] sm:$0xff]
        %v8317 = vld [vmem:[#allocation4 + $0x78] sm:$0xff]
        %v8318 = vld [vmem:[#allocation4 + $0x80] sm:$0xff]
        %v8319 = vld [vmem:[#allocation4 + $0x88] sm:$0xff]
        %v8320 = vld [vmem:[#allocation4 + $0x90] sm:$0xff]
        %v8321 = vld [vmem:[#allocation4 + $0x98] sm:$0xff]
        %v8322 = vld [vmem:[#allocation4 + $0xa0] sm:$0xff]
        %v8323 = vld [vmem:[#allocation4 + $0xa8] sm:$0xff]
        %v8324 = vld [vmem:[#allocation4 + $0xb0] sm:$0xff]
        %v8325 = vld [vmem:[#allocation4 + $0xb8] sm:$0xff]
        %v8326 = vld [vmem:[#allocation4 + $0xc0] sm:$0xff]
        %v8327 = vld [vmem:[#allocation4 + $0xc8] sm:$0xff]
        %v8328 = vld [vmem:[#allocation4 + $0xd0] sm:$0xff]
        %v8329 = vld [vmem:[#allocation4 + $0xd8] sm:$0xff]
        %v8330 = vld [vmem:[#allocation4 + $0xe0] sm:$0xff]
        %v8331 = vld [vmem:[#allocation4 + $0xe8] sm:$0xff]
        %v8332 = vld [vmem:[#allocation4 + $0xf0] sm:$0xff]
        %v8333 = vld [vmem:[#allocation4 + $0xf8] sm:$0xff]
        %s8334 = scalar_lea.vmem [#allocation5], 384
        %v8335 = vld [vmem:[%s8334] sm:$0xf]
        %v8336 = vld [vmem:[%s8334 + $0x4] sm:$0xf]
        %v8337 = vld [vmem:[%s8334 + $0x8] sm:$0xf]
        %v8338 = vld [vmem:[%s8334 + $0xc] sm:$0xf]
        %v8339 = vld [vmem:[%s8334 + $0x10] sm:$0xf]
        %v8340 = vld [vmem:[%s8334 + $0x14] sm:$0xf]
        %v8341 = vld [vmem:[%s8334 + $0x18] sm:$0xf]
        %v8342 = vld [vmem:[%s8334 + $0x1c] sm:$0xf]
        %v8343 = vld [vmem:[%s8334 + $0x20] sm:$0xf]
        %v8344 = vld [vmem:[%s8334 + $0x24] sm:$0xf]
        %v8345 = vld [vmem:[%s8334 + $0x28] sm:$0xf]
        %v8346 = vld [vmem:[%s8334 + $0x2c] sm:$0xf]
        %v8347 = vld [vmem:[%s8334 + $0x30] sm:$0xf]
        %v8348 = vld [vmem:[%s8334 + $0x34] sm:$0xf]
        %v8349 = vld [vmem:[%s8334 + $0x38] sm:$0xf]
        %v8350 = vld [vmem:[%s8334 + $0x3c] sm:$0xf]
        %v8383 = vunpack.c.l.b16 %v8270
        %v8384 = vunpack.c.l.b16 %v8271
        %v8385 = vunpack.c.l.b16 %v8272
        %v8386 = vunpack.c.l.b16 %v8273
        %v8387 = vunpack.c.l.b16 %v8274
        %v8388 = vunpack.c.l.b16 %v8275
        %v8389 = vunpack.c.l.b16 %v8276
        %v8390 = vunpack.c.l.b16 %v8277
        %v8391 = vunpack.c.l.b16 %v8278
        %v8392 = vunpack.c.l.b16 %v8279
        %v8393 = vunpack.c.l.b16 %v8280
        %v8394 = vunpack.c.l.b16 %v8281
        %v8395 = vunpack.c.l.b16 %v8282
        %v8396 = vunpack.c.l.b16 %v8283
        %v8397 = vunpack.c.l.b16 %v8284
        %v8398 = vunpack.c.l.b16 %v8285
        %v8399 = vunpack.c.l.b16 %v8286
        %v8400 = vunpack.c.l.b16 %v8287
        %v8401 = vunpack.c.l.b16 %v8288
        %v8402 = vunpack.c.l.b16 %v8289
        %v8403 = vunpack.c.l.b16 %v8290
        %v8404 = vunpack.c.l.b16 %v8291
        %v8405 = vunpack.c.l.b16 %v8292
        %v8406 = vunpack.c.l.b16 %v8293
        %v8407 = vunpack.c.l.b16 %v8294
        %v8408 = vunpack.c.l.b16 %v8295
        %v8409 = vunpack.c.l.b16 %v8296
        %v8410 = vunpack.c.l.b16 %v8297
        %v8411 = vunpack.c.l.b16 %v8298
        %v8412 = vunpack.c.l.b16 %v8299
        %v8413 = vunpack.c.l.b16 %v8300
        %v8414 = vunpack.c.l.b16 %v8301
        %v8415 = vpack.c.b16 %v8384, %v8383
        %v8416 = vpack.c.b16 %v8386, %v8385
        %v8417 = vpack.c.b16 %v8388, %v8387
        %v8418 = vpack.c.b16 %v8390, %v8389
        %v8419 = vpack.c.b16 %v8392, %v8391
        %v8420 = vpack.c.b16 %v8394, %v8393
        %v8421 = vpack.c.b16 %v8396, %v8395
        %v8422 = vpack.c.b16 %v8398, %v8397
        %v8423 = vpack.c.b16 %v8400, %v8399
        %v8424 = vpack.c.b16 %v8402, %v8401
        %v8425 = vpack.c.b16 %v8404, %v8403
        %v8426 = vpack.c.b16 %v8406, %v8405
        %v8427 = vpack.c.b16 %v8408, %v8407
        %v8428 = vpack.c.b16 %v8410, %v8409
        %v8429 = vpack.c.b16 %v8412, %v8411
        %v8430 = vpack.c.b16 %v8414, %v8413
        %v8463 = vunpack.c.l.b16 %v8335
        %v8464 = vunpack.c.l.b16 %v8336
        %v8465 = vunpack.c.l.b16 %v8337
        %v8466 = vunpack.c.l.b16 %v8338
        %v8467 = vunpack.c.l.b16 %v8339
        %v8468 = vunpack.c.l.b16 %v8340
        %v8469 = vunpack.c.l.b16 %v8341
        %v8470 = vunpack.c.l.b16 %v8342
        %v8471 = vunpack.c.l.b16 %v8343
        %v8472 = vunpack.c.l.b16 %v8344
        %v8473 = vunpack.c.l.b16 %v8345
        %v8474 = vunpack.c.l.b16 %v8346
        %v8475 = vunpack.c.l.b16 %v8347
        %v8476 = vunpack.c.l.b16 %v8348
        %v8477 = vunpack.c.l.b16 %v8349
        %v8478 = vunpack.c.l.b16 %v8350
        %v8479 = vpack.c.b16 %v8464, %v8463
        %v8480 = vpack.c.b16 %v8466, %v8465
        %v8481 = vpack.c.b16 %v8468, %v8467
        %v8482 = vpack.c.b16 %v8470, %v8469
        %v8483 = vpack.c.b16 %v8472, %v8471
        %v8484 = vpack.c.b16 %v8474, %v8473
        %v8485 = vpack.c.b16 %v8476, %v8475
        %v8486 = vpack.c.b16 %v8478, %v8477
        %8495 = vmatprep.subr.bf16.mxu0 0
        %8496 = vmatpush1.bf16.msra.mxu0 %v8479
        %8497 = vmatprep.subr.bf16.mxu0 0
        %8498 = vmatpush1.bf16.msra.mxu0 %v8480
        %8499 = vmatprep.subr.bf16.mxu0 0
        %8500 = vmatpush1.bf16.msra.mxu0 %v8481
        %8501 = vmatprep.subr.bf16.mxu0 0
        %8502 = vmatpush1.bf16.msra.mxu0 %v8482
        %8503 = vmatprep.subr.bf16.mxu0 0
        %8504 = vmatpush1.bf16.msra.mxu0 %v8483
        %8505 = vmatprep.subr.bf16.mxu0 0
        %8506 = vmatpush1.bf16.msra.mxu0 %v8484
        %8507 = vmatprep.subr.bf16.mxu0 0
        %8508 = vmatpush1.bf16.msra.mxu0 %v8485
        %8509 = vmatprep.subr.bf16.mxu0 0
        %8510 = vmatpush1.bf16.msra.mxu0 %v8486
        %8511 = vmatprep.subr.bf16.mxu0 0
        %8512 = vmatpush1.bf16.msra.mxu0 0
        %8513 = vmatprep.subr.bf16.mxu0 0
        %8514 = vmatpush1.bf16.msra.mxu0 0
        %8515 = vmatprep.subr.bf16.mxu0 0
        %8516 = vmatpush1.bf16.msra.mxu0 0
        %8517 = vmatprep.subr.bf16.mxu0 0
        %8518 = vmatpush1.bf16.msra.mxu0 0
        %8519 = vmatprep.subr.bf16.mxu0 0
        %8520 = vmatpush1.bf16.msra.mxu0 0
        %8521 = vmatprep.subr.bf16.mxu0 0
        %8522 = vmatpush1.bf16.msra.mxu0 0
        %8523 = vmatprep.subr.bf16.mxu0 0
        %8524 = vmatpush1.bf16.msra.mxu0 0
        %8525 = vmatprep.subr.bf16.mxu0 0
        %8526 = vmatpush1.bf16.msra.mxu0 0
        %8527 = vmatprep.mubr.bf16.mxu0 0
        %8528 = vmatmul.mubr.bf16.gmra.mrb[0].mxu0 %v8415
        %v8529 = vpop.f32.mrb[0].mxu0
        %v8530 = vadd.f32 0.0, %v8529
        %v8531 = vpop.f32.mrb[0].mxu0
        %v8532 = vpop.f32.mrb[0].mxu0
        %v8533 = vadd.f32 0.0, %v8532
        %v8534 = vpop.f32.mrb[0].mxu0
        %8535 = vmatprep.mubr.bf16.mxu0 0
        %8536 = vmatmul.mubr.bf16.gmra.mrb[0].mxu0 %v8416
        %v8537 = vpop.f32.mrb[0].mxu0
        %v8538 = vadd.f32 0.0, %v8537
        %v8539 = vpop.f32.mrb[0].mxu0
        %v8540 = vpop.f32.mrb[0].mxu0
        %v8541 = vadd.f32 0.0, %v8540
        %v8542 = vpop.f32.mrb[0].mxu0
        %8543 = vmatprep.mubr.bf16.mxu0 0
        %8544 = vmatmul.mubr.bf16.gmra.mrb[0].mxu0 %v8417
        %v8545 = vpop.f32.mrb[0].mxu0
        %v8546 = vadd.f32 0.0, %v8545
        %v8547 = vpop.f32.mrb[0].mxu0
        %v8548 = vpop.f32.mrb[0].mxu0
        %v8549 = vadd.f32 0.0, %v8548
        %v8550 = vpop.f32.mrb[0].mxu0
        %8551 = vmatprep.mubr.bf16.mxu0 0
        %8552 = vmatmul.mubr.bf16.gmra.mrb[0].mxu0 %v8418
        %v8553 = vpop.f32.mrb[0].mxu0
        %v8554 = vadd.f32 0.0, %v8553
        %v8555 = vpop.f32.mrb[0].mxu0
        %v8556 = vpop.f32.mrb[0].mxu0
        %v8557 = vadd.f32 0.0, %v8556
        %v8558 = vpop.f32.mrb[0].mxu0
        %8559 = vmatprep.mubr.bf16.mxu0 0
        %8560 = vmatmul.mubr.bf16.gmra.mrb[0].mxu0 %v8419
        %v8561 = vpop.f32.mrb[0].mxu0
        %v8562 = vadd.f32 0.0, %v8561
        %v8563 = vpop.f32.mrb[0].mxu0
        %v8564 = vpop.f32.mrb[0].mxu0
        %v8565 = vadd.f32 0.0, %v8564
        %v8566 = vpop.f32.mrb[0].mxu0
        %8567 = vmatprep.mubr.bf16.mxu0 0
        %8568 = vmatmul.mubr.bf16.gmra.mrb[0].mxu0 %v8420
        %v8569 = vpop.f32.mrb[0].mxu0
        %v8570 = vadd.f32 0.0, %v8569
        %v8571 = vpop.f32.mrb[0].mxu0
        %v8572 = vpop.f32.mrb[0].mxu0
        %v8573 = vadd.f32 0.0, %v8572
        %v8574 = vpop.f32.mrb[0].mxu0
        %8575 = vmatprep.mubr.bf16.mxu0 0
        %8576 = vmatmul.mubr.bf16.gmra.mrb[0].mxu0 %v8421
        %v8577 = vpop.f32.mrb[0].mxu0
        %v8578 = vadd.f32 0.0, %v8577
        %v8579 = vpop.f32.mrb[0].mxu0
        %v8580 = vpop.f32.mrb[0].mxu0
        %v8581 = vadd.f32 0.0, %v8580
        %v8582 = vpop.f32.mrb[0].mxu0
        %8583 = vmatprep.mubr.bf16.mxu0 0
        %8584 = vmatmul.mubr.bf16.gmra.mrb[0].mxu0 %v8422
        %v8585 = vpop.f32.mrb[0].mxu0
        %v8586 = vadd.f32 0.0, %v8585
        %v8587 = vpop.f32.mrb[0].mxu0
        %v8588 = vpop.f32.mrb[0].mxu0
        %v8589 = vadd.f32 0.0, %v8588
        %v8590 = vpop.f32.mrb[0].mxu0
        %8591 = vmatprep.mubr.bf16.mxu0 0
        %8592 = vmatmul.mubr.bf16.gmra.mrb[0].mxu0 %v8423
        %v8593 = vpop.f32.mrb[0].mxu0
        %v8594 = vadd.f32 0.0, %v8593
        %v8595 = vpop.f32.mrb[0].mxu0
        %v8596 = vpop.f32.mrb[0].mxu0
        %v8597 = vadd.f32 0.0, %v8596
        %v8598 = vpop.f32.mrb[0].mxu0
        %8599 = vmatprep.mubr.bf16.mxu0 0
        %8600 = vmatmul.mubr.bf16.gmra.mrb[0].mxu0 %v8424
        %v8601 = vpop.f32.mrb[0].mxu0
        %v8602 = vadd.f32 0.0, %v8601
        %v8603 = vpop.f32.mrb[0].mxu0
        %v8604 = vpop.f32.mrb[0].mxu0
        %v8605 = vadd.f32 0.0, %v8604
        %v8606 = vpop.f32.mrb[0].mxu0
        %8607 = vmatprep.mubr.bf16.mxu0 0
        %8608 = vmatmul.mubr.bf16.gmra.mrb[0].mxu0 %v8425
        %v8609 = vpop.f32.mrb[0].mxu0
        %v8610 = vadd.f32 0.0, %v8609
        %v8611 = vpop.f32.mrb[0].mxu0
        %v8612 = vpop.f32.mrb[0].mxu0
        %v8613 = vadd.f32 0.0, %v8612
        %v8614 = vpop.f32.mrb[0].mxu0
        %8615 = vmatprep.mubr.bf16.mxu0 0
        %8616 = vmatmul.mubr.bf16.gmra.mrb[0].mxu0 %v8426
        %v8617 = vpop.f32.mrb[0].mxu0
        %v8618 = vadd.f32 0.0, %v8617
        %v8619 = vpop.f32.mrb[0].mxu0
        %v8620 = vpop.f32.mrb[0].mxu0
        %v8621 = vadd.f32 0.0, %v8620
        %v8622 = vpop.f32.mrb[0].mxu0
        %8623 = vmatprep.mubr.bf16.mxu0 0
        %8624 = vmatmul.mubr.bf16.gmra.mrb[0].mxu0 %v8427
        %v8625 = vpop.f32.mrb[0].mxu0
        %v8626 = vadd.f32 0.0, %v8625
        %v8627 = vpop.f32.mrb[0].mxu0
        %v8628 = vpop.f32.mrb[0].mxu0
        %v8629 = vadd.f32 0.0, %v8628
        %v8630 = vpop.f32.mrb[0].mxu0
        %8631 = vmatprep.mubr.bf16.mxu0 0
        %8632 = vmatmul.mubr.bf16.gmra.mrb[0].mxu0 %v8428
        %v8633 = vpop.f32.mrb[0].mxu0
        %v8634 = vadd.f32 0.0, %v8633
        %v8635 = vpop.f32.mrb[0].mxu0
        %v8636 = vpop.f32.mrb[0].mxu0
        %v8637 = vadd.f32 0.0, %v8636
        %v8638 = vpop.f32.mrb[0].mxu0
        %8639 = vmatprep.mubr.bf16.mxu0 0
        %8640 = vmatmul.mubr.bf16.gmra.mrb[0].mxu0 %v8429
        %v8641 = vpop.f32.mrb[0].mxu0
        %v8642 = vadd.f32 0.0, %v8641
        %v8643 = vpop.f32.mrb[0].mxu0
        %v8644 = vpop.f32.mrb[0].mxu0
        %v8645 = vadd.f32 0.0, %v8644
        %v8646 = vpop.f32.mrb[0].mxu0
        %8647 = vmatprep.mubr.bf16.mxu0 0
        %8648 = vmatmul.mubr.bf16.gmra.mrb[0].mxu0 %v8430
        %v8649 = vpop.f32.mrb[0].mxu0
        %v8650 = vadd.f32 0.0, %v8649
        %v8651 = vpop.f32.mrb[0].mxu0
        %v8652 = vpop.f32.mrb[0].mxu0
        %v8653 = vadd.f32 0.0, %v8652
        %v8654 = vpop.f32.mrb[0].mxu0
        %8655 = vdwg.mxu0
        %v8656 = vadd.f32 %v8302, %v8530
        %v8657 = vadd.f32 %v8303, %v8533
        %v8658 = vadd.f32 %v8304, %v8538
        %v8659 = vadd.f32 %v8305, %v8541
        %v8660 = vadd.f32 %v8306, %v8546
        %v8661 = vadd.f32 %v8307, %v8549
        %v8662 = vadd.f32 %v8308, %v8554
        %v8663 = vadd.f32 %v8309, %v8557
        %v8664 = vadd.f32 %v8310, %v8562
        %v8665 = vadd.f32 %v8311, %v8565
        %v8666 = vadd.f32 %v8312, %v8570
        %v8667 = vadd.f32 %v8313, %v8573
        %v8668 = vadd.f32 %v8314, %v8578
        %v8669 = vadd.f32 %v8315, %v8581
        %v8670 = vadd.f32 %v8316, %v8586
        %v8671 = vadd.f32 %v8317, %v8589
        %v8672 = vadd.f32 %v8318, %v8594
        %v8673 = vadd.f32 %v8319, %v8597
        %v8674 = vadd.f32 %v8320, %v8602
        %v8675 = vadd.f32 %v8321, %v8605
        %v8676 = vadd.f32 %v8322, %v8610
        %v8677 = vadd.f32 %v8323, %v8613
        %v8678 = vadd.f32 %v8324, %v8618
        %v8679 = vadd.f32 %v8325, %v8621
        %v8680 = vadd.f32 %v8326, %v8626
        %v8681 = vadd.f32 %v8327, %v8629
        %v8682 = vadd.f32 %v8328, %v8634
        %v8683 = vadd.f32 %v8329, %v8637
        %v8684 = vadd.f32 %v8330, %v8642
        %v8685 = vadd.f32 %v8331, %v8645
        %v8686 = vadd.f32 %v8332, %v8650
        %v8687 = vadd.f32 %v8333, %v8653
        %8688 = vst [vmem:[#allocation4] sm:$0xff] %v8656
        %8689 = vst [vmem:[#allocation4 + $0x8] sm:$0xff] %v8657
        %8690 = vst [vmem:[#allocation4 + $0x10] sm:$0xff] %v8658
        %8691 = vst [vmem:[#allocation4 + $0x18] sm:$0xff] %v8659
        %8692 = vst [vmem:[#allocation4 + $0x20] sm:$0xff] %v8660
        %8693 = vst [vmem:[#allocation4 + $0x28] sm:$0xff] %v8661
        %8694 = vst [vmem:[#allocation4 + $0x30] sm:$0xff] %v8662
        %8695 = vst [vmem:[#allocation4 + $0x38] sm:$0xff] %v8663
        %8696 = vst [vmem:[#allocation4 + $0x40] sm:$0xff] %v8664
        %8697 = vst [vmem:[#allocation4 + $0x48] sm:$0xff] %v8665
        %8698 = vst [vmem:[#allocation4 + $0x50] sm:$0xff] %v8666
        %8699 = vst [vmem:[#allocation4 + $0x58] sm:$0xff] %v8667
        %8700 = vst [vmem:[#allocation4 + $0x60] sm:$0xff] %v8668
        %8701 = vst [vmem:[#allocation4 + $0x68] sm:$0xff] %v8669
        %8702 = vst [vmem:[#allocation4 + $0x70] sm:$0xff] %v8670
        %8703 = vst [vmem:[#allocation4 + $0x78] sm:$0xff] %v8671
        %8704 = vst [vmem:[#allocation4 + $0x80] sm:$0xff] %v8672
        %8705 = vst [vmem:[#allocation4 + $0x88] sm:$0xff] %v8673
        %8706 = vst [vmem:[#allocation4 + $0x90] sm:$0xff] %v8674
        %8707 = vst [vmem:[#allocation4 + $0x98] sm:$0xff] %v8675
        %8708 = vst [vmem:[#allocation4 + $0xa0] sm:$0xff] %v8676
        %8709 = vst [vmem:[#allocation4 + $0xa8] sm:$0xff] %v8677
        %8710 = vst [vmem:[#allocation4 + $0xb0] sm:$0xff] %v8678
        %8711 = vst [vmem:[#allocation4 + $0xb8] sm:$0xff] %v8679
        %8712 = vst [vmem:[#allocation4 + $0xc0] sm:$0xff] %v8680
        %8713 = vst [vmem:[#allocation4 + $0xc8] sm:$0xff] %v8681
        %8714 = vst [vmem:[#allocation4 + $0xd0] sm:$0xff] %v8682
        %8715 = vst [vmem:[#allocation4 + $0xd8] sm:$0xff] %v8683
        %8716 = vst [vmem:[#allocation4 + $0xe0] sm:$0xff] %v8684
        %8717 = vst [vmem:[#allocation4 + $0xe8] sm:$0xff] %v8685
        %8718 = vst [vmem:[#allocation4 + $0xf0] sm:$0xff] %v8686
        %8719 = vst [vmem:[#allocation4 + $0xf8] sm:$0xff] %v8687
        %v8720 = vld [vmem:[%s8269] sm:$0xf]
        %v8721 = vld [vmem:[%s8269 + $0x4] sm:$0xf]
        %v8722 = vld [vmem:[%s8269 + $0x8] sm:$0x1]
        %v8723 = vld [vmem:[%s8269 + $0xc] sm:$0xf]
        %v8724 = vld [vmem:[%s8269 + $0x10] sm:$0xf]
        %v8725 = vld [vmem:[%s8269 + $0x14] sm:$0x1]
        %v8726 = vld [vmem:[%s8269 + $0x18] sm:$0xf]
        %v8727 = vld [vmem:[%s8269 + $0x1c] sm:$0xf]
        %v8728 = vld [vmem:[%s8269 + $0x20] sm:$0x1]
        %v8729 = vld [vmem:[%s8269 + $0x24] sm:$0xf]
        %v8730 = vld [vmem:[%s8269 + $0x28] sm:$0xf]
        %v8731 = vld [vmem:[%s8269 + $0x2c] sm:$0x1]
        %v8732 = vld [vmem:[%s8269 + $0x30] sm:$0xf]
        %v8733 = vld [vmem:[%s8269 + $0x34] sm:$0xf]
        %v8734 = vld [vmem:[%s8269 + $0x38] sm:$0x1]
        %v8735 = vld [vmem:[%s8269 + $0x3c] sm:$0xf]
        %v8736 = vld [vmem:[%s8269 + $0x40] sm:$0xf]
        %v8737 = vld [vmem:[%s8269 + $0x44] sm:$0x1]
        %v8738 = vld [vmem:[%s8269 + $0x48] sm:$0xf]
        %v8739 = vld [vmem:[%s8269 + $0x4c] sm:$0xf]
        %v8740 = vld [vmem:[%s8269 + $0x50] sm:$0x1]
        %v8741 = vld [vmem:[%s8269 + $0x54] sm:$0xf]
        %v8742 = vld [vmem:[%s8269 + $0x58] sm:$0xf]
        %v8743 = vld [vmem:[%s8269 + $0x5c] sm:$0x1]
        %v8744 = vld [vmem:[%s8269 + $0x60] sm:$0xf]
        %v8745 = vld [vmem:[%s8269 + $0x64] sm:$0xf]
        %v8746 = vld [vmem:[%s8269 + $0x68] sm:$0x1]
        %v8747 = vld [vmem:[%s8269 + $0x6c] sm:$0xf]
        %v8748 = vld [vmem:[%s8269 + $0x70] sm:$0xf]
        %v8749 = vld [vmem:[%s8269 + $0x74] sm:$0x1]
        %v8750 = vld [vmem:[%s8269 + $0x78] sm:$0xf]
        %v8751 = vld [vmem:[%s8269 + $0x7c] sm:$0xf]
        %v8752 = vld [vmem:[%s8269 + $0x80] sm:$0x1]
        %v8753 = vld [vmem:[%s8269 + $0x84] sm:$0xf]
        %v8754 = vld [vmem:[%s8269 + $0x88] sm:$0xf]
        %v8755 = vld [vmem:[%s8269 + $0x8c] sm:$0x1]
        %v8756 = vld [vmem:[%s8269 + $0x90] sm:$0xf]
        %v8757 = vld [vmem:[%s8269 + $0x94] sm:$0xf]
        %v8758 = vld [vmem:[%s8269 + $0x98] sm:$0x1]
        %v8759 = vld [vmem:[%s8269 + $0x9c] sm:$0xf]
        %v8760 = vld [vmem:[%s8269 + $0xa0] sm:$0xf]
        %v8761 = vld [vmem:[%s8269 + $0xa4] sm:$0x1]
        %v8762 = vld [vmem:[%s8269 + $0xa8] sm:$0xf]
        %v8763 = vld [vmem:[%s8269 + $0xac] sm:$0xf]
        %v8764 = vld [vmem:[%s8269 + $0xb0] sm:$0x1]
        %v8765 = vld [vmem:[%s8269 + $0xb4] sm:$0xf]
        %v8766 = vld [vmem:[%s8269 + $0xb8] sm:$0xf]
        %v8767 = vld [vmem:[%s8269 + $0xbc] sm:$0x1]
        %v8769 = vshrl.u32 %v8720, 16
        %v8771 = vrot.slane %v8769, 4
        %v8772 = vshll.u32 %v8720, 16
        %v8774 = vrot.slane %v8772, 5
        %v8775 = vor.u32 %v8771, %v8774
        %v8776 = vrot.slane %v8775, 4
        %v8778 = vshll.u32 %v8721, 16
        %v8780 = vrot.slane %v8778, 5
        %v8781 = vsel %vm5039, %v8776, %v8780
        %v8782 = vshrl.u32 %v8721, 16
        %v8784 = vrot.slane %v8782, 4
        %v8785 = vor.u32 %v8784, %v8780
        %v8786 = vrot.slane %v8785, 4
        %v8788 = vshll.u32 %v8722, 16
        %v8790 = vrot.slane %v8788, 5
        %v8791 = vsel %vm5039, %v8786, %v8790
        %v8793 = vshrl.u32 %v8723, 16
        %v8795 = vrot.slane %v8793, 4
        %v8796 = vshll.u32 %v8723, 16
        %v8798 = vrot.slane %v8796, 5
        %v8799 = vor.u32 %v8795, %v8798
        %v8800 = vrot.slane %v8799, 4
        %v8802 = vshll.u32 %v8724, 16
        %v8804 = vrot.slane %v8802, 5
        %v8805 = vsel %vm5039, %v8800, %v8804
        %v8806 = vshrl.u32 %v8724, 16
        %v8808 = vrot.slane %v8806, 4
        %v8809 = vor.u32 %v8808, %v8804
        %v8810 = vrot.slane %v8809, 4
        %v8812 = vshll.u32 %v8725, 16
        %v8814 = vrot.slane %v8812, 5
        %v8815 = vsel %vm5039, %v8810, %v8814
        %v8817 = vshrl.u32 %v8726, 16
        %v8819 = vrot.slane %v8817, 4
        %v8820 = vshll.u32 %v8726, 16
        %v8822 = vrot.slane %v8820, 5
        %v8823 = vor.u32 %v8819, %v8822
        %v8824 = vrot.slane %v8823, 4
        %v8826 = vshll.u32 %v8727, 16
        %v8828 = vrot.slane %v8826, 5
        %v8829 = vsel %vm5039, %v8824, %v8828
        %v8830 = vshrl.u32 %v8727, 16
        %v8832 = vrot.slane %v8830, 4
        %v8833 = vor.u32 %v8832, %v8828
        %v8834 = vrot.slane %v8833, 4
        %v8836 = vshll.u32 %v8728, 16
        %v8838 = vrot.slane %v8836, 5
        %v8839 = vsel %vm5039, %v8834, %v8838
        %v8841 = vshrl.u32 %v8729, 16
        %v8843 = vrot.slane %v8841, 4
        %v8844 = vshll.u32 %v8729, 16
        %v8846 = vrot.slane %v8844, 5
        %v8847 = vor.u32 %v8843, %v8846
        %v8848 = vrot.slane %v8847, 4
        %v8850 = vshll.u32 %v8730, 16
        %v8852 = vrot.slane %v8850, 5
        %v8853 = vsel %vm5039, %v8848, %v8852
        %v8854 = vshrl.u32 %v8730, 16
        %v8856 = vrot.slane %v8854, 4
        %v8857 = vor.u32 %v8856, %v8852
        %v8858 = vrot.slane %v8857, 4
        %v8860 = vshll.u32 %v8731, 16
        %v8862 = vrot.slane %v8860, 5
        %v8863 = vsel %vm5039, %v8858, %v8862
        %v8865 = vshrl.u32 %v8732, 16
        %v8867 = vrot.slane %v8865, 4
        %v8868 = vshll.u32 %v8732, 16
        %v8870 = vrot.slane %v8868, 5
        %v8871 = vor.u32 %v8867, %v8870
        %v8872 = vrot.slane %v8871, 4
        %v8874 = vshll.u32 %v8733, 16
        %v8876 = vrot.slane %v8874, 5
        %v8877 = vsel %vm5039, %v8872, %v8876
        %v8878 = vshrl.u32 %v8733, 16
        %v8880 = vrot.slane %v8878, 4
        %v8881 = vor.u32 %v8880, %v8876
        %v8882 = vrot.slane %v8881, 4
        %v8884 = vshll.u32 %v8734, 16
        %v8886 = vrot.slane %v8884, 5
        %v8887 = vsel %vm5039, %v8882, %v8886
        %v8889 = vshrl.u32 %v8735, 16
        %v8891 = vrot.slane %v8889, 4
        %v8892 = vshll.u32 %v8735, 16
        %v8894 = vrot.slane %v8892, 5
        %v8895 = vor.u32 %v8891, %v8894
        %v8896 = vrot.slane %v8895, 4
        %v8898 = vshll.u32 %v8736, 16
        %v8900 = vrot.slane %v8898, 5
        %v8901 = vsel %vm5039, %v8896, %v8900
        %v8902 = vshrl.u32 %v8736, 16
        %v8904 = vrot.slane %v8902, 4
        %v8905 = vor.u32 %v8904, %v8900
        %v8906 = vrot.slane %v8905, 4
        %v8908 = vshll.u32 %v8737, 16
        %v8910 = vrot.slane %v8908, 5
        %v8911 = vsel %vm5039, %v8906, %v8910
        %v8913 = vshrl.u32 %v8738, 16
        %v8915 = vrot.slane %v8913, 4
        %v8916 = vshll.u32 %v8738, 16
        %v8918 = vrot.slane %v8916, 5
        %v8919 = vor.u32 %v8915, %v8918
        %v8920 = vrot.slane %v8919, 4
        %v8922 = vshll.u32 %v8739, 16
        %v8924 = vrot.slane %v8922, 5
        %v8925 = vsel %vm5039, %v8920, %v8924
        %v8926 = vshrl.u32 %v8739, 16
        %v8928 = vrot.slane %v8926, 4
        %v8929 = vor.u32 %v8928, %v8924
        %v8930 = vrot.slane %v8929, 4
        %v8932 = vshll.u32 %v8740, 16
        %v8934 = vrot.slane %v8932, 5
        %v8935 = vsel %vm5039, %v8930, %v8934
        %v8937 = vshrl.u32 %v8741, 16
        %v8939 = vrot.slane %v8937, 4
        %v8940 = vshll.u32 %v8741, 16
        %v8942 = vrot.slane %v8940, 5
        %v8943 = vor.u32 %v8939, %v8942
        %v8944 = vrot.slane %v8943, 4
        %v8946 = vshll.u32 %v8742, 16
        %v8948 = vrot.slane %v8946, 5
        %v8949 = vsel %vm5039, %v8944, %v8948
        %v8950 = vshrl.u32 %v8742, 16
        %v8952 = vrot.slane %v8950, 4
        %v8953 = vor.u32 %v8952, %v8948
        %v8954 = vrot.slane %v8953, 4
        %v8956 = vshll.u32 %v8743, 16
        %v8958 = vrot.slane %v8956, 5
        %v8959 = vsel %vm5039, %v8954, %v8958
        %v8961 = vshrl.u32 %v8744, 16
        %v8963 = vrot.slane %v8961, 4
        %v8964 = vshll.u32 %v8744, 16
        %v8966 = vrot.slane %v8964, 5
        %v8967 = vor.u32 %v8963, %v8966
        %v8968 = vrot.slane %v8967, 4
        %v8970 = vshll.u32 %v8745, 16
        %v8972 = vrot.slane %v8970, 5
        %v8973 = vsel %vm5039, %v8968, %v8972
        %v8974 = vshrl.u32 %v8745, 16
        %v8976 = vrot.slane %v8974, 4
        %v8977 = vor.u32 %v8976, %v8972
        %v8978 = vrot.slane %v8977, 4
        %v8980 = vshll.u32 %v8746, 16
        %v8982 = vrot.slane %v8980, 5
        %v8983 = vsel %vm5039, %v8978, %v8982
        %v8985 = vshrl.u32 %v8747, 16
        %v8987 = vrot.slane %v8985, 4
        %v8988 = vshll.u32 %v8747, 16
        %v8990 = vrot.slane %v8988, 5
        %v8991 = vor.u32 %v8987, %v8990
        %v8992 = vrot.slane %v8991, 4
        %v8994 = vshll.u32 %v8748, 16
        %v8996 = vrot.slane %v8994, 5
        %v8997 = vsel %vm5039, %v8992, %v8996
        %v8998 = vshrl.u32 %v8748, 16
        %v9000 = vrot.slane %v8998, 4
        %v9001 = vor.u32 %v9000, %v8996
        %v9002 = vrot.slane %v9001, 4
        %v9004 = vshll.u32 %v8749, 16
        %v9006 = vrot.slane %v9004, 5
        %v9007 = vsel %vm5039, %v9002, %v9006
        %v9009 = vshrl.u32 %v8750, 16
        %v9011 = vrot.slane %v9009, 4
        %v9012 = vshll.u32 %v8750, 16
        %v9014 = vrot.slane %v9012, 5
        %v9015 = vor.u32 %v9011, %v9014
        %v9016 = vrot.slane %v9015, 4
        %v9018 = vshll.u32 %v8751, 16
        %v9020 = vrot.slane %v9018, 5
        %v9021 = vsel %vm5039, %v9016, %v9020
        %v9022 = vshrl.u32 %v8751, 16
        %v9024 = vrot.slane %v9022, 4
        %v9025 = vor.u32 %v9024, %v9020
        %v9026 = vrot.slane %v9025, 4
        %v9028 = vshll.u32 %v8752, 16
        %v9030 = vrot.slane %v9028, 5
        %v9031 = vsel %vm5039, %v9026, %v9030
        %v9033 = vshrl.u32 %v8753, 16
        %v9035 = vrot.slane %v9033, 4
        %v9036 = vshll.u32 %v8753, 16
        %v9038 = vrot.slane %v9036, 5
        %v9039 = vor.u32 %v9035, %v9038
        %v9040 = vrot.slane %v9039, 4
        %v9042 = vshll.u32 %v8754, 16
        %v9044 = vrot.slane %v9042, 5
        %v9045 = vsel %vm5039, %v9040, %v9044
        %v9046 = vshrl.u32 %v8754, 16
        %v9048 = vrot.slane %v9046, 4
        %v9049 = vor.u32 %v9048, %v9044
        %v9050 = vrot.slane %v9049, 4
        %v9052 = vshll.u32 %v8755, 16
        %v9054 = vrot.slane %v9052, 5
        %v9055 = vsel %vm5039, %v9050, %v9054
        %v9057 = vshrl.u32 %v8756, 16
        %v9059 = vrot.slane %v9057, 4
        %v9060 = vshll.u32 %v8756, 16
        %v9062 = vrot.slane %v9060, 5
        %v9063 = vor.u32 %v9059, %v9062
        %v9064 = vrot.slane %v9063, 4
        %v9066 = vshll.u32 %v8757, 16
        %v9068 = vrot.slane %v9066, 5
        %v9069 = vsel %vm5039, %v9064, %v9068
        %v9070 = vshrl.u32 %v8757, 16
        %v9072 = vrot.slane %v9070, 4
        %v9073 = vor.u32 %v9072, %v9068
        %v9074 = vrot.slane %v9073, 4
        %v9076 = vshll.u32 %v8758, 16
        %v9078 = vrot.slane %v9076, 5
        %v9079 = vsel %vm5039, %v9074, %v9078
        %v9081 = vshrl.u32 %v8759, 16
        %v9083 = vrot.slane %v9081, 4
        %v9084 = vshll.u32 %v8759, 16
        %v9086 = vrot.slane %v9084, 5
        %v9087 = vor.u32 %v9083, %v9086
        %v9088 = vrot.slane %v9087, 4
        %v9090 = vshll.u32 %v8760, 16
        %v9092 = vrot.slane %v9090, 5
        %v9093 = vsel %vm5039, %v9088, %v9092
        %v9094 = vshrl.u32 %v8760, 16
        %v9096 = vrot.slane %v9094, 4
        %v9097 = vor.u32 %v9096, %v9092
        %v9098 = vrot.slane %v9097, 4
        %v9100 = vshll.u32 %v8761, 16
        %v9102 = vrot.slane %v9100, 5
        %v9103 = vsel %vm5039, %v9098, %v9102
        %v9105 = vshrl.u32 %v8762, 16
        %v9107 = vrot.slane %v9105, 4
        %v9108 = vshll.u32 %v8762, 16
        %v9110 = vrot.slane %v9108, 5
        %v9111 = vor.u32 %v9107, %v9110
        %v9112 = vrot.slane %v9111, 4
        %v9114 = vshll.u32 %v8763, 16
        %v9116 = vrot.slane %v9114, 5
        %v9117 = vsel %vm5039, %v9112, %v9116
        %v9118 = vshrl.u32 %v8763, 16
        %v9120 = vrot.slane %v9118, 4
        %v9121 = vor.u32 %v9120, %v9116
        %v9122 = vrot.slane %v9121, 4
        %v9124 = vshll.u32 %v8764, 16
        %v9126 = vrot.slane %v9124, 5
        %v9127 = vsel %vm5039, %v9122, %v9126
        %v9129 = vshrl.u32 %v8765, 16
        %v9131 = vrot.slane %v9129, 4
        %v9132 = vshll.u32 %v8765, 16
        %v9134 = vrot.slane %v9132, 5
        %v9135 = vor.u32 %v9131, %v9134
        %v9136 = vrot.slane %v9135, 4
        %v9138 = vshll.u32 %v8766, 16
        %v9140 = vrot.slane %v9138, 5
        %v9141 = vsel %vm5039, %v9136, %v9140
        %v9142 = vshrl.u32 %v8766, 16
        %v9144 = vrot.slane %v9142, 4
        %v9145 = vor.u32 %v9144, %v9140
        %v9146 = vrot.slane %v9145, 4
        %v9148 = vshll.u32 %v8767, 16
        %v9150 = vrot.slane %v9148, 5
        %v9151 = vsel %vm5039, %v9146, %v9150
        %v9152 = vld [vmem:[#allocation4] sm:$0xff]
        %v9153 = vld [vmem:[#allocation4 + $0x8] sm:$0xff]
        %v9154 = vld [vmem:[#allocation4 + $0x10] sm:$0xff]
        %v9155 = vld [vmem:[#allocation4 + $0x18] sm:$0xff]
        %v9156 = vld [vmem:[#allocation4 + $0x20] sm:$0xff]
        %v9157 = vld [vmem:[#allocation4 + $0x28] sm:$0xff]
        %v9158 = vld [vmem:[#allocation4 + $0x30] sm:$0xff]
        %v9159 = vld [vmem:[#allocation4 + $0x38] sm:$0xff]
        %v9160 = vld [vmem:[#allocation4 + $0x40] sm:$0xff]
        %v9161 = vld [vmem:[#allocation4 + $0x48] sm:$0xff]
        %v9162 = vld [vmem:[#allocation4 + $0x50] sm:$0xff]
        %v9163 = vld [vmem:[#allocation4 + $0x58] sm:$0xff]
        %v9164 = vld [vmem:[#allocation4 + $0x60] sm:$0xff]
        %v9165 = vld [vmem:[#allocation4 + $0x68] sm:$0xff]
        %v9166 = vld [vmem:[#allocation4 + $0x70] sm:$0xff]
        %v9167 = vld [vmem:[#allocation4 + $0x78] sm:$0xff]
        %v9168 = vld [vmem:[#allocation4 + $0x80] sm:$0xff]
        %v9169 = vld [vmem:[#allocation4 + $0x88] sm:$0xff]
        %v9170 = vld [vmem:[#allocation4 + $0x90] sm:$0xff]
        %v9171 = vld [vmem:[#allocation4 + $0x98] sm:$0xff]
        %v9172 = vld [vmem:[#allocation4 + $0xa0] sm:$0xff]
        %v9173 = vld [vmem:[#allocation4 + $0xa8] sm:$0xff]
        %v9174 = vld [vmem:[#allocation4 + $0xb0] sm:$0xff]
        %v9175 = vld [vmem:[#allocation4 + $0xb8] sm:$0xff]
        %v9176 = vld [vmem:[#allocation4 + $0xc0] sm:$0xff]
        %v9177 = vld [vmem:[#allocation4 + $0xc8] sm:$0xff]
        %v9178 = vld [vmem:[#allocation4 + $0xd0] sm:$0xff]
        %v9179 = vld [vmem:[#allocation4 + $0xd8] sm:$0xff]
        %v9180 = vld [vmem:[#allocation4 + $0xe0] sm:$0xff]
        %v9181 = vld [vmem:[#allocation4 + $0xe8] sm:$0xff]
        %v9182 = vld [vmem:[#allocation4 + $0xf0] sm:$0xff]
        %v9183 = vld [vmem:[#allocation4 + $0xf8] sm:$0xff]
        %s9184 = scalar_lea.vmem [#allocation5], 448
        %v9185 = vld [vmem:[%s9184] sm:$0xf]
        %v9186 = vld [vmem:[%s9184 + $0x4] sm:$0xf]
        %v9187 = vld [vmem:[%s9184 + $0x8] sm:$0xf]
        %v9188 = vld [vmem:[%s9184 + $0xc] sm:$0xf]
        %v9189 = vld [vmem:[%s9184 + $0x10] sm:$0xf]
        %v9190 = vld [vmem:[%s9184 + $0x14] sm:$0xf]
        %v9191 = vld [vmem:[%s9184 + $0x18] sm:$0xf]
        %v9192 = vld [vmem:[%s9184 + $0x1c] sm:$0xf]
        %v9193 = vld [vmem:[%s9184 + $0x20] sm:$0xf]
        %v9194 = vld [vmem:[%s9184 + $0x24] sm:$0xf]
        %v9195 = vld [vmem:[%s9184 + $0x28] sm:$0xf]
        %v9196 = vld [vmem:[%s9184 + $0x2c] sm:$0xf]
        %v9197 = vld [vmem:[%s9184 + $0x30] sm:$0xf]
        %v9198 = vld [vmem:[%s9184 + $0x34] sm:$0xf]
        %v9199 = vld [vmem:[%s9184 + $0x38] sm:$0xf]
        %v9200 = vld [vmem:[%s9184 + $0x3c] sm:$0xf]
        %v9201 = vunpack.c.l.b16 %v8781
        %v9202 = vunpack.c.l.b16 %v8791
        %v9203 = vunpack.c.l.b16 %v8805
        %v9204 = vunpack.c.l.b16 %v8815
        %v9205 = vunpack.c.l.b16 %v8829
        %v9206 = vunpack.c.l.b16 %v8839
        %v9207 = vunpack.c.l.b16 %v8853
        %v9208 = vunpack.c.l.b16 %v8863
        %v9209 = vunpack.c.l.b16 %v8877
        %v9210 = vunpack.c.l.b16 %v8887
        %v9211 = vunpack.c.l.b16 %v8901
        %v9212 = vunpack.c.l.b16 %v8911
        %v9213 = vunpack.c.l.b16 %v8925
        %v9214 = vunpack.c.l.b16 %v8935
        %v9215 = vunpack.c.l.b16 %v8949
        %v9216 = vunpack.c.l.b16 %v8959
        %v9217 = vunpack.c.l.b16 %v8973
        %v9218 = vunpack.c.l.b16 %v8983
        %v9219 = vunpack.c.l.b16 %v8997
        %v9220 = vunpack.c.l.b16 %v9007
        %v9221 = vunpack.c.l.b16 %v9021
        %v9222 = vunpack.c.l.b16 %v9031
        %v9223 = vunpack.c.l.b16 %v9045
        %v9224 = vunpack.c.l.b16 %v9055
        %v9225 = vunpack.c.l.b16 %v9069
        %v9226 = vunpack.c.l.b16 %v9079
        %v9227 = vunpack.c.l.b16 %v9093
        %v9228 = vunpack.c.l.b16 %v9103
        %v9229 = vunpack.c.l.b16 %v9117
        %v9230 = vunpack.c.l.b16 %v9127
        %v9231 = vunpack.c.l.b16 %v9141
        %v9232 = vunpack.c.l.b16 %v9151
        %v9233 = vpack.c.b16 %v9202, %v9201
        %v9234 = vpack.c.b16 %v9204, %v9203
        %v9235 = vpack.c.b16 %v9206, %v9205
        %v9236 = vpack.c.b16 %v9208, %v9207
        %v9237 = vpack.c.b16 %v9210, %v9209
        %v9238 = vpack.c.b16 %v9212, %v9211
        %v9239 = vpack.c.b16 %v9214, %v9213
        %v9240 = vpack.c.b16 %v9216, %v9215
        %v9241 = vpack.c.b16 %v9218, %v9217
        %v9242 = vpack.c.b16 %v9220, %v9219
        %v9243 = vpack.c.b16 %v9222, %v9221
        %v9244 = vpack.c.b16 %v9224, %v9223
        %v9245 = vpack.c.b16 %v9226, %v9225
        %v9246 = vpack.c.b16 %v9228, %v9227
        %v9247 = vpack.c.b16 %v9230, %v9229
        %v9248 = vpack.c.b16 %v9232, %v9231
        %v9281 = vunpack.c.l.b16 %v9185
        %v9282 = vunpack.c.l.b16 %v9186
        %v9283 = vunpack.c.l.b16 %v9187
        %v9284 = vunpack.c.l.b16 %v9188
        %v9285 = vunpack.c.l.b16 %v9189
        %v9286 = vunpack.c.l.b16 %v9190
        %v9287 = vunpack.c.l.b16 %v9191
        %v9288 = vunpack.c.l.b16 %v9192
        %v9289 = vunpack.c.l.b16 %v9193
        %v9290 = vunpack.c.l.b16 %v9194
        %v9291 = vunpack.c.l.b16 %v9195
        %v9292 = vunpack.c.l.b16 %v9196
        %v9293 = vunpack.c.l.b16 %v9197
        %v9294 = vunpack.c.l.b16 %v9198
        %v9295 = vunpack.c.l.b16 %v9199
        %v9296 = vunpack.c.l.b16 %v9200
        %v9297 = vpack.c.b16 %v9282, %v9281
        %v9298 = vpack.c.b16 %v9284, %v9283
        %v9299 = vpack.c.b16 %v9286, %v9285
        %v9300 = vpack.c.b16 %v9288, %v9287
        %v9301 = vpack.c.b16 %v9290, %v9289
        %v9302 = vpack.c.b16 %v9292, %v9291
        %v9303 = vpack.c.b16 %v9294, %v9293
        %v9304 = vpack.c.b16 %v9296, %v9295
        %9313 = vmatprep.subr.bf16.mxu0 0
        %9314 = vmatpush1.bf16.msra.mxu0 %v9297
        %9315 = vmatprep.subr.bf16.mxu0 0
        %9316 = vmatpush1.bf16.msra.mxu0 %v9298
        %9317 = vmatprep.subr.bf16.mxu0 0
        %9318 = vmatpush1.bf16.msra.mxu0 %v9299
        %9319 = vmatprep.subr.bf16.mxu0 0
        %9320 = vmatpush1.bf16.msra.mxu0 %v9300
        %9321 = vmatprep.subr.bf16.mxu0 0
        %9322 = vmatpush1.bf16.msra.mxu0 %v9301
        %9323 = vmatprep.subr.bf16.mxu0 0
        %9324 = vmatpush1.bf16.msra.mxu0 %v9302
        %9325 = vmatprep.subr.bf16.mxu0 0
        %9326 = vmatpush1.bf16.msra.mxu0 %v9303
        %9327 = vmatprep.subr.bf16.mxu0 0
        %9328 = vmatpush1.bf16.msra.mxu0 %v9304
        %9329 = vmatprep.subr.bf16.mxu0 0
        %9330 = vmatpush1.bf16.msra.mxu0 0
        %9331 = vmatprep.subr.bf16.mxu0 0
        %9332 = vmatpush1.bf16.msra.mxu0 0
        %9333 = vmatprep.subr.bf16.mxu0 0
        %9334 = vmatpush1.bf16.msra.mxu0 0
        %9335 = vmatprep.subr.bf16.mxu0 0
        %9336 = vmatpush1.bf16.msra.mxu0 0
        %9337 = vmatprep.subr.bf16.mxu0 0
        %9338 = vmatpush1.bf16.msra.mxu0 0
        %9339 = vmatprep.subr.bf16.mxu0 0
        %9340 = vmatpush1.bf16.msra.mxu0 0
        %9341 = vmatprep.subr.bf16.mxu0 0
        %9342 = vmatpush1.bf16.msra.mxu0 0
        %9343 = vmatprep.subr.bf16.mxu0 0
        %9344 = vmatpush1.bf16.msra.mxu0 0
        %9345 = vmatprep.mubr.bf16.mxu0 0
        %9346 = vmatmul.mubr.bf16.gmra.mrb[0].mxu0 %v9233
        %v9347 = vpop.f32.mrb[0].mxu0
        %v9348 = vadd.f32 0.0, %v9347
        %v9349 = vpop.f32.mrb[0].mxu0
        %v9350 = vpop.f32.mrb[0].mxu0
        %v9351 = vadd.f32 0.0, %v9350
        %v9352 = vpop.f32.mrb[0].mxu0
        %9353 = vmatprep.mubr.bf16.mxu0 0
        %9354 = vmatmul.mubr.bf16.gmra.mrb[0].mxu0 %v9234
        %v9355 = vpop.f32.mrb[0].mxu0
        %v9356 = vadd.f32 0.0, %v9355
        %v9357 = vpop.f32.mrb[0].mxu0
        %v9358 = vpop.f32.mrb[0].mxu0
        %v9359 = vadd.f32 0.0, %v9358
        %v9360 = vpop.f32.mrb[0].mxu0
        %9361 = vmatprep.mubr.bf16.mxu0 0
        %9362 = vmatmul.mubr.bf16.gmra.mrb[0].mxu0 %v9235
        %v9363 = vpop.f32.mrb[0].mxu0
        %v9364 = vadd.f32 0.0, %v9363
        %v9365 = vpop.f32.mrb[0].mxu0
        %v9366 = vpop.f32.mrb[0].mxu0
        %v9367 = vadd.f32 0.0, %v9366
        %v9368 = vpop.f32.mrb[0].mxu0
        %9369 = vmatprep.mubr.bf16.mxu0 0
        %9370 = vmatmul.mubr.bf16.gmra.mrb[0].mxu0 %v9236
        %v9371 = vpop.f32.mrb[0].mxu0
        %v9372 = vadd.f32 0.0, %v9371
        %v9373 = vpop.f32.mrb[0].mxu0
        %v9374 = vpop.f32.mrb[0].mxu0
        %v9375 = vadd.f32 0.0, %v9374
        %v9376 = vpop.f32.mrb[0].mxu0
        %9377 = vmatprep.mubr.bf16.mxu0 0
        %9378 = vmatmul.mubr.bf16.gmra.mrb[0].mxu0 %v9237
        %v9379 = vpop.f32.mrb[0].mxu0
        %v9380 = vadd.f32 0.0, %v9379
        %v9381 = vpop.f32.mrb[0].mxu0
        %v9382 = vpop.f32.mrb[0].mxu0
        %v9383 = vadd.f32 0.0, %v9382
        %v9384 = vpop.f32.mrb[0].mxu0
        %9385 = vmatprep.mubr.bf16.mxu0 0
        %9386 = vmatmul.mubr.bf16.gmra.mrb[0].mxu0 %v9238
        %v9387 = vpop.f32.mrb[0].mxu0
        %v9388 = vadd.f32 0.0, %v9387
        %v9389 = vpop.f32.mrb[0].mxu0
        %v9390 = vpop.f32.mrb[0].mxu0
        %v9391 = vadd.f32 0.0, %v9390
        %v9392 = vpop.f32.mrb[0].mxu0
        %9393 = vmatprep.mubr.bf16.mxu0 0
        %9394 = vmatmul.mubr.bf16.gmra.mrb[0].mxu0 %v9239
        %v9395 = vpop.f32.mrb[0].mxu0
        %v9396 = vadd.f32 0.0, %v9395
        %v9397 = vpop.f32.mrb[0].mxu0
        %v9398 = vpop.f32.mrb[0].mxu0
        %v9399 = vadd.f32 0.0, %v9398
        %v9400 = vpop.f32.mrb[0].mxu0
        %9401 = vmatprep.mubr.bf16.mxu0 0
        %9402 = vmatmul.mubr.bf16.gmra.mrb[0].mxu0 %v9240
        %v9403 = vpop.f32.mrb[0].mxu0
        %v9404 = vadd.f32 0.0, %v9403
        %v9405 = vpop.f32.mrb[0].mxu0
        %v9406 = vpop.f32.mrb[0].mxu0
        %v9407 = vadd.f32 0.0, %v9406
        %v9408 = vpop.f32.mrb[0].mxu0
        %9409 = vmatprep.mubr.bf16.mxu0 0
        %9410 = vmatmul.mubr.bf16.gmra.mrb[0].mxu0 %v9241
        %v9411 = vpop.f32.mrb[0].mxu0
        %v9412 = vadd.f32 0.0, %v9411
        %v9413 = vpop.f32.mrb[0].mxu0
        %v9414 = vpop.f32.mrb[0].mxu0
        %v9415 = vadd.f32 0.0, %v9414
        %v9416 = vpop.f32.mrb[0].mxu0
        %9417 = vmatprep.mubr.bf16.mxu0 0
        %9418 = vmatmul.mubr.bf16.gmra.mrb[0].mxu0 %v9242
        %v9419 = vpop.f32.mrb[0].mxu0
        %v9420 = vadd.f32 0.0, %v9419
        %v9421 = vpop.f32.mrb[0].mxu0
        %v9422 = vpop.f32.mrb[0].mxu0
        %v9423 = vadd.f32 0.0, %v9422
        %v9424 = vpop.f32.mrb[0].mxu0
        %9425 = vmatprep.mubr.bf16.mxu0 0
        %9426 = vmatmul.mubr.bf16.gmra.mrb[0].mxu0 %v9243
        %v9427 = vpop.f32.mrb[0].mxu0
        %v9428 = vadd.f32 0.0, %v9427
        %v9429 = vpop.f32.mrb[0].mxu0
        %v9430 = vpop.f32.mrb[0].mxu0
        %v9431 = vadd.f32 0.0, %v9430
        %v9432 = vpop.f32.mrb[0].mxu0
        %9433 = vmatprep.mubr.bf16.mxu0 0
        %9434 = vmatmul.mubr.bf16.gmra.mrb[0].mxu0 %v9244
        %v9435 = vpop.f32.mrb[0].mxu0
        %v9436 = vadd.f32 0.0, %v9435
        %v9437 = vpop.f32.mrb[0].mxu0
        %v9438 = vpop.f32.mrb[0].mxu0
        %v9439 = vadd.f32 0.0, %v9438
        %v9440 = vpop.f32.mrb[0].mxu0
        %9441 = vmatprep.mubr.bf16.mxu0 0
        %9442 = vmatmul.mubr.bf16.gmra.mrb[0].mxu0 %v9245
        %v9443 = vpop.f32.mrb[0].mxu0
        %v9444 = vadd.f32 0.0, %v9443
        %v9445 = vpop.f32.mrb[0].mxu0
        %v9446 = vpop.f32.mrb[0].mxu0
        %v9447 = vadd.f32 0.0, %v9446
        %v9448 = vpop.f32.mrb[0].mxu0
        %9449 = vmatprep.mubr.bf16.mxu0 0
        %9450 = vmatmul.mubr.bf16.gmra.mrb[0].mxu0 %v9246
        %v9451 = vpop.f32.mrb[0].mxu0
        %v9452 = vadd.f32 0.0, %v9451
        %v9453 = vpop.f32.mrb[0].mxu0
        %v9454 = vpop.f32.mrb[0].mxu0
        %v9455 = vadd.f32 0.0, %v9454
        %v9456 = vpop.f32.mrb[0].mxu0
        %9457 = vmatprep.mubr.bf16.mxu0 0
        %9458 = vmatmul.mubr.bf16.gmra.mrb[0].mxu0 %v9247
        %v9459 = vpop.f32.mrb[0].mxu0
        %v9460 = vadd.f32 0.0, %v9459
        %v9461 = vpop.f32.mrb[0].mxu0
        %v9462 = vpop.f32.mrb[0].mxu0
        %v9463 = vadd.f32 0.0, %v9462
        %v9464 = vpop.f32.mrb[0].mxu0
        %9465 = vmatprep.mubr.bf16.mxu0 0
        %9466 = vmatmul.mubr.bf16.gmra.mrb[0].mxu0 %v9248
        %v9467 = vpop.f32.mrb[0].mxu0
        %v9468 = vadd.f32 0.0, %v9467
        %v9469 = vpop.f32.mrb[0].mxu0
        %v9470 = vpop.f32.mrb[0].mxu0
        %v9471 = vadd.f32 0.0, %v9470
        %v9472 = vpop.f32.mrb[0].mxu0
        %9473 = vdwg.mxu0
        %v9474 = vadd.f32 %v9152, %v9348
        %v9475 = vadd.f32 %v9153, %v9351
        %v9476 = vadd.f32 %v9154, %v9356
        %v9477 = vadd.f32 %v9155, %v9359
        %v9478 = vadd.f32 %v9156, %v9364
        %v9479 = vadd.f32 %v9157, %v9367
        %v9480 = vadd.f32 %v9158, %v9372
        %v9481 = vadd.f32 %v9159, %v9375
        %v9482 = vadd.f32 %v9160, %v9380
        %v9483 = vadd.f32 %v9161, %v9383
        %v9484 = vadd.f32 %v9162, %v9388
        %v9485 = vadd.f32 %v9163, %v9391
        %v9486 = vadd.f32 %v9164, %v9396
        %v9487 = vadd.f32 %v9165, %v9399
        %v9488 = vadd.f32 %v9166, %v9404
        %v9489 = vadd.f32 %v9167, %v9407
        %v9490 = vadd.f32 %v9168, %v9412
        %v9491 = vadd.f32 %v9169, %v9415
        %v9492 = vadd.f32 %v9170, %v9420
        %v9493 = vadd.f32 %v9171, %v9423
        %v9494 = vadd.f32 %v9172, %v9428
        %v9495 = vadd.f32 %v9173, %v9431
        %v9496 = vadd.f32 %v9174, %v9436
        %v9497 = vadd.f32 %v9175, %v9439
        %v9498 = vadd.f32 %v9176, %v9444
        %v9499 = vadd.f32 %v9177, %v9447
        %v9500 = vadd.f32 %v9178, %v9452
        %v9501 = vadd.f32 %v9179, %v9455
        %v9502 = vadd.f32 %v9180, %v9460
        %v9503 = vadd.f32 %v9181, %v9463
        %v9504 = vadd.f32 %v9182, %v9468
        %v9505 = vadd.f32 %v9183, %v9471
        %9506 = vst [vmem:[#allocation4] sm:$0xff] %v9474
        %9507 = vst [vmem:[#allocation4 + $0x8] sm:$0xff] %v9475
        %9508 = vst [vmem:[#allocation4 + $0x10] sm:$0xff] %v9476
        %9509 = vst [vmem:[#allocation4 + $0x18] sm:$0xff] %v9477
        %9510 = vst [vmem:[#allocation4 + $0x20] sm:$0xff] %v9478
        %9511 = vst [vmem:[#allocation4 + $0x28] sm:$0xff] %v9479
        %9512 = vst [vmem:[#allocation4 + $0x30] sm:$0xff] %v9480
        %9513 = vst [vmem:[#allocation4 + $0x38] sm:$0xff] %v9481
        %9514 = vst [vmem:[#allocation4 + $0x40] sm:$0xff] %v9482
        %9515 = vst [vmem:[#allocation4 + $0x48] sm:$0xff] %v9483
        %9516 = vst [vmem:[#allocation4 + $0x50] sm:$0xff] %v9484
        %9517 = vst [vmem:[#allocation4 + $0x58] sm:$0xff] %v9485
        %9518 = vst [vmem:[#allocation4 + $0x60] sm:$0xff] %v9486
        %9519 = vst [vmem:[#allocation4 + $0x68] sm:$0xff] %v9487
        %9520 = vst [vmem:[#allocation4 + $0x70] sm:$0xff] %v9488
        %9521 = vst [vmem:[#allocation4 + $0x78] sm:$0xff] %v9489
        %9522 = vst [vmem:[#allocation4 + $0x80] sm:$0xff] %v9490
        %9523 = vst [vmem:[#allocation4 + $0x88] sm:$0xff] %v9491
        %9524 = vst [vmem:[#allocation4 + $0x90] sm:$0xff] %v9492
        %9525 = vst [vmem:[#allocation4 + $0x98] sm:$0xff] %v9493
        %9526 = vst [vmem:[#allocation4 + $0xa0] sm:$0xff] %v9494
        %9527 = vst [vmem:[#allocation4 + $0xa8] sm:$0xff] %v9495
        %9528 = vst [vmem:[#allocation4 + $0xb0] sm:$0xff] %v9496
        %9529 = vst [vmem:[#allocation4 + $0xb8] sm:$0xff] %v9497
        %9530 = vst [vmem:[#allocation4 + $0xc0] sm:$0xff] %v9498
        %9531 = vst [vmem:[#allocation4 + $0xc8] sm:$0xff] %v9499
        %9532 = vst [vmem:[#allocation4 + $0xd0] sm:$0xff] %v9500
        %9533 = vst [vmem:[#allocation4 + $0xd8] sm:$0xff] %v9501
        %9534 = vst [vmem:[#allocation4 + $0xe0] sm:$0xff] %v9502
        %9535 = vst [vmem:[#allocation4 + $0xe8] sm:$0xff] %v9503
        %9536 = vst [vmem:[#allocation4 + $0xf0] sm:$0xff] %v9504
        %9537 = vst [vmem:[#allocation4 + $0xf8] sm:$0xff] %v9505
        %v9538 = vld [vmem:[%s8269] sm:$0xe]
        %v9539 = vld [vmem:[%s8269 + $0x4] sm:$0xf]
        %v9540 = vld [vmem:[%s8269 + $0x8] sm:$0x1]
        %v9541 = vld [vmem:[%s8269 + $0xc] sm:$0xe]
        %v9542 = vld [vmem:[%s8269 + $0x10] sm:$0xf]
        %v9543 = vld [vmem:[%s8269 + $0x14] sm:$0x1]
        %v9544 = vld [vmem:[%s8269 + $0x18] sm:$0xe]
        %v9545 = vld [vmem:[%s8269 + $0x1c] sm:$0xf]
        %v9546 = vld [vmem:[%s8269 + $0x20] sm:$0x1]
        %v9547 = vld [vmem:[%s8269 + $0x24] sm:$0xe]
        %v9548 = vld [vmem:[%s8269 + $0x28] sm:$0xf]
        %v9549 = vld [vmem:[%s8269 + $0x2c] sm:$0x1]
        %v9550 = vld [vmem:[%s8269 + $0x30] sm:$0xe]
        %v9551 = vld [vmem:[%s8269 + $0x34] sm:$0xf]
        %v9552 = vld [vmem:[%s8269 + $0x38] sm:$0x1]
        %v9553 = vld [vmem:[%s8269 + $0x3c] sm:$0xe]
        %v9554 = vld [vmem:[%s8269 + $0x40] sm:$0xf]
        %v9555 = vld [vmem:[%s8269 + $0x44] sm:$0x1]
        %v9556 = vld [vmem:[%s8269 + $0x48] sm:$0xe]
        %v9557 = vld [vmem:[%s8269 + $0x4c] sm:$0xf]
        %v9558 = vld [vmem:[%s8269 + $0x50] sm:$0x1]
        %v9559 = vld [vmem:[%s8269 + $0x54] sm:$0xe]
        %v9560 = vld [vmem:[%s8269 + $0x58] sm:$0xf]
        %v9561 = vld [vmem:[%s8269 + $0x5c] sm:$0x1]
        %v9562 = vld [vmem:[%s8269 + $0x60] sm:$0xe]
        %v9563 = vld [vmem:[%s8269 + $0x64] sm:$0xf]
        %v9564 = vld [vmem:[%s8269 + $0x68] sm:$0x1]
        %v9565 = vld [vmem:[%s8269 + $0x6c] sm:$0xe]
        %v9566 = vld [vmem:[%s8269 + $0x70] sm:$0xf]
        %v9567 = vld [vmem:[%s8269 + $0x74] sm:$0x1]
        %v9568 = vld [vmem:[%s8269 + $0x78] sm:$0xe]
        %v9569 = vld [vmem:[%s8269 + $0x7c] sm:$0xf]
        %v9570 = vld [vmem:[%s8269 + $0x80] sm:$0x1]
        %v9571 = vld [vmem:[%s8269 + $0x84] sm:$0xe]
        %v9572 = vld [vmem:[%s8269 + $0x88] sm:$0xf]
        %v9573 = vld [vmem:[%s8269 + $0x8c] sm:$0x1]
        %v9574 = vld [vmem:[%s8269 + $0x90] sm:$0xe]
        %v9575 = vld [vmem:[%s8269 + $0x94] sm:$0xf]
        %v9576 = vld [vmem:[%s8269 + $0x98] sm:$0x1]
        %v9577 = vld [vmem:[%s8269 + $0x9c] sm:$0xe]
        %v9578 = vld [vmem:[%s8269 + $0xa0] sm:$0xf]
        %v9579 = vld [vmem:[%s8269 + $0xa4] sm:$0x1]
        %v9580 = vld [vmem:[%s8269 + $0xa8] sm:$0xe]
        %v9581 = vld [vmem:[%s8269 + $0xac] sm:$0xf]
        %v9582 = vld [vmem:[%s8269 + $0xb0] sm:$0x1]
        %v9583 = vld [vmem:[%s8269 + $0xb4] sm:$0xe]
        %v9584 = vld [vmem:[%s8269 + $0xb8] sm:$0xf]
        %v9585 = vld [vmem:[%s8269 + $0xbc] sm:$0x1]
        %v9634 = vrot.slane %v9538, 5
        %v9635 = vrot.slane %v9634, 4
        %v9636 = vrot.slane %v9539, 5
        %v9637 = vsel %vm5908, %v9635, %v9636
        %v9638 = vrot.slane %v9636, 4
        %v9639 = vrot.slane %v9540, 5
        %v9640 = vsel %vm5908, %v9638, %v9639
        %v9641 = vrot.slane %v9541, 5
        %v9642 = vrot.slane %v9641, 4
        %v9643 = vrot.slane %v9542, 5
        %v9644 = vsel %vm5908, %v9642, %v9643
        %v9645 = vrot.slane %v9643, 4
        %v9646 = vrot.slane %v9543, 5
        %v9647 = vsel %vm5908, %v9645, %v9646
        %v9648 = vrot.slane %v9544, 5
        %v9649 = vrot.slane %v9648, 4
        %v9650 = vrot.slane %v9545, 5
        %v9651 = vsel %vm5908, %v9649, %v9650
        %v9652 = vrot.slane %v9650, 4
        %v9653 = vrot.slane %v9546, 5
        %v9654 = vsel %vm5908, %v9652, %v9653
        %v9655 = vrot.slane %v9547, 5
        %v9656 = vrot.slane %v9655, 4
        %v9657 = vrot.slane %v9548, 5
        %v9658 = vsel %vm5908, %v9656, %v9657
        %v9659 = vrot.slane %v9657, 4
        %v9660 = vrot.slane %v9549, 5
        %v9661 = vsel %vm5908, %v9659, %v9660
        %v9662 = vrot.slane %v9550, 5
        %v9663 = vrot.slane %v9662, 4
        %v9664 = vrot.slane %v9551, 5
        %v9665 = vsel %vm5908, %v9663, %v9664
        %v9666 = vrot.slane %v9664, 4
        %v9667 = vrot.slane %v9552, 5
        %v9668 = vsel %vm5908, %v9666, %v9667
        %v9669 = vrot.slane %v9553, 5
        %v9670 = vrot.slane %v9669, 4
        %v9671 = vrot.slane %v9554, 5
        %v9672 = vsel %vm5908, %v9670, %v9671
        %v9673 = vrot.slane %v9671, 4
        %v9674 = vrot.slane %v9555, 5
        %v9675 = vsel %vm5908, %v9673, %v9674
        %v9676 = vrot.slane %v9556, 5
        %v9677 = vrot.slane %v9676, 4
        %v9678 = vrot.slane %v9557, 5
        %v9679 = vsel %vm5908, %v9677, %v9678
        %v9680 = vrot.slane %v9678, 4
        %v9681 = vrot.slane %v9558, 5
        %v9682 = vsel %vm5908, %v9680, %v9681
        %v9683 = vrot.slane %v9559, 5
        %v9684 = vrot.slane %v9683, 4
        %v9685 = vrot.slane %v9560, 5
        %v9686 = vsel %vm5908, %v9684, %v9685
        %v9687 = vrot.slane %v9685, 4
        %v9688 = vrot.slane %v9561, 5
        %v9689 = vsel %vm5908, %v9687, %v9688
        %v9690 = vrot.slane %v9562, 5
        %v9691 = vrot.slane %v9690, 4
        %v9692 = vrot.slane %v9563, 5
        %v9693 = vsel %vm5908, %v9691, %v9692
        %v9694 = vrot.slane %v9692, 4
        %v9695 = vrot.slane %v9564, 5
        %v9696 = vsel %vm5908, %v9694, %v9695
        %v9697 = vrot.slane %v9565, 5
        %v9698 = vrot.slane %v9697, 4
        %v9699 = vrot.slane %v9566, 5
        %v9700 = vsel %vm5908, %v9698, %v9699
        %v9701 = vrot.slane %v9699, 4
        %v9702 = vrot.slane %v9567, 5
        %v9703 = vsel %vm5908, %v9701, %v9702
        %v9704 = vrot.slane %v9568, 5
        %v9705 = vrot.slane %v9704, 4
        %v9706 = vrot.slane %v9569, 5
        %v9707 = vsel %vm5908, %v9705, %v9706
        %v9708 = vrot.slane %v9706, 4
        %v9709 = vrot.slane %v9570, 5
        %v9710 = vsel %vm5908, %v9708, %v9709
        %v9711 = vrot.slane %v9571, 5
        %v9712 = vrot.slane %v9711, 4
        %v9713 = vrot.slane %v9572, 5
        %v9714 = vsel %vm5908, %v9712, %v9713
        %v9715 = vrot.slane %v9713, 4
        %v9716 = vrot.slane %v9573, 5
        %v9717 = vsel %vm5908, %v9715, %v9716
        %v9718 = vrot.slane %v9574, 5
        %v9719 = vrot.slane %v9718, 4
        %v9720 = vrot.slane %v9575, 5
        %v9721 = vsel %vm5908, %v9719, %v9720
        %v9722 = vrot.slane %v9720, 4
        %v9723 = vrot.slane %v9576, 5
        %v9724 = vsel %vm5908, %v9722, %v9723
        %v9725 = vrot.slane %v9577, 5
        %v9726 = vrot.slane %v9725, 4
        %v9727 = vrot.slane %v9578, 5
        %v9728 = vsel %vm5908, %v9726, %v9727
        %v9729 = vrot.slane %v9727, 4
        %v9730 = vrot.slane %v9579, 5
        %v9731 = vsel %vm5908, %v9729, %v9730
        %v9732 = vrot.slane %v9580, 5
        %v9733 = vrot.slane %v9732, 4
        %v9734 = vrot.slane %v9581, 5
        %v9735 = vsel %vm5908, %v9733, %v9734
        %v9736 = vrot.slane %v9734, 4
        %v9737 = vrot.slane %v9582, 5
        %v9738 = vsel %vm5908, %v9736, %v9737
        %v9739 = vrot.slane %v9583, 5
        %v9740 = vrot.slane %v9739, 4
        %v9741 = vrot.slane %v9584, 5
        %v9742 = vsel %vm5908, %v9740, %v9741
        %v9743 = vrot.slane %v9741, 4
        %v9744 = vrot.slane %v9585, 5
        %v9745 = vsel %vm5908, %v9743, %v9744
        %v9746 = vld [vmem:[#allocation4] sm:$0xff]
        %v9747 = vld [vmem:[#allocation4 + $0x8] sm:$0xff]
        %v9748 = vld [vmem:[#allocation4 + $0x10] sm:$0xff]
        %v9749 = vld [vmem:[#allocation4 + $0x18] sm:$0xff]
        %v9750 = vld [vmem:[#allocation4 + $0x20] sm:$0xff]
        %v9751 = vld [vmem:[#allocation4 + $0x28] sm:$0xff]
        %v9752 = vld [vmem:[#allocation4 + $0x30] sm:$0xff]
        %v9753 = vld [vmem:[#allocation4 + $0x38] sm:$0xff]
        %v9754 = vld [vmem:[#allocation4 + $0x40] sm:$0xff]
        %v9755 = vld [vmem:[#allocation4 + $0x48] sm:$0xff]
        %v9756 = vld [vmem:[#allocation4 + $0x50] sm:$0xff]
        %v9757 = vld [vmem:[#allocation4 + $0x58] sm:$0xff]
        %v9758 = vld [vmem:[#allocation4 + $0x60] sm:$0xff]
        %v9759 = vld [vmem:[#allocation4 + $0x68] sm:$0xff]
        %v9760 = vld [vmem:[#allocation4 + $0x70] sm:$0xff]
        %v9761 = vld [vmem:[#allocation4 + $0x78] sm:$0xff]
        %v9762 = vld [vmem:[#allocation4 + $0x80] sm:$0xff]
        %v9763 = vld [vmem:[#allocation4 + $0x88] sm:$0xff]
        %v9764 = vld [vmem:[#allocation4 + $0x90] sm:$0xff]
        %v9765 = vld [vmem:[#allocation4 + $0x98] sm:$0xff]
        %v9766 = vld [vmem:[#allocation4 + $0xa0] sm:$0xff]
        %v9767 = vld [vmem:[#allocation4 + $0xa8] sm:$0xff]
        %v9768 = vld [vmem:[#allocation4 + $0xb0] sm:$0xff]
        %v9769 = vld [vmem:[#allocation4 + $0xb8] sm:$0xff]
        %v9770 = vld [vmem:[#allocation4 + $0xc0] sm:$0xff]
        %v9771 = vld [vmem:[#allocation4 + $0xc8] sm:$0xff]
        %v9772 = vld [vmem:[#allocation4 + $0xd0] sm:$0xff]
        %v9773 = vld [vmem:[#allocation4 + $0xd8] sm:$0xff]
        %v9774 = vld [vmem:[#allocation4 + $0xe0] sm:$0xff]
        %v9775 = vld [vmem:[#allocation4 + $0xe8] sm:$0xff]
        %v9776 = vld [vmem:[#allocation4 + $0xf0] sm:$0xff]
        %v9777 = vld [vmem:[#allocation4 + $0xf8] sm:$0xff]
        %s9778 = scalar_lea.vmem [#allocation5], 512
        %v9779 = vld [vmem:[%s9778] sm:$0xf]
        %v9780 = vld [vmem:[%s9778 + $0x4] sm:$0xf]
        %v9781 = vld [vmem:[%s9778 + $0x8] sm:$0xf]
        %v9782 = vld [vmem:[%s9778 + $0xc] sm:$0xf]
        %v9783 = vld [vmem:[%s9778 + $0x10] sm:$0xf]
        %v9784 = vld [vmem:[%s9778 + $0x14] sm:$0xf]
        %v9785 = vld [vmem:[%s9778 + $0x18] sm:$0xf]
        %v9786 = vld [vmem:[%s9778 + $0x1c] sm:$0xf]
        %v9787 = vld [vmem:[%s9778 + $0x20] sm:$0xf]
        %v9788 = vld [vmem:[%s9778 + $0x24] sm:$0xf]
        %v9789 = vld [vmem:[%s9778 + $0x28] sm:$0xf]
        %v9790 = vld [vmem:[%s9778 + $0x2c] sm:$0xf]
        %v9791 = vld [vmem:[%s9778 + $0x30] sm:$0xf]
        %v9792 = vld [vmem:[%s9778 + $0x34] sm:$0xf]
        %v9793 = vld [vmem:[%s9778 + $0x38] sm:$0xf]
        %v9794 = vld [vmem:[%s9778 + $0x3c] sm:$0xf]
        %v9795 = vunpack.c.l.b16 %v9637
        %v9796 = vunpack.c.l.b16 %v9640
        %v9797 = vunpack.c.l.b16 %v9644
        %v9798 = vunpack.c.l.b16 %v9647
        %v9799 = vunpack.c.l.b16 %v9651
        %v9800 = vunpack.c.l.b16 %v9654
        %v9801 = vunpack.c.l.b16 %v9658
        %v9802 = vunpack.c.l.b16 %v9661
        %v9803 = vunpack.c.l.b16 %v9665
        %v9804 = vunpack.c.l.b16 %v9668
        %v9805 = vunpack.c.l.b16 %v9672
        %v9806 = vunpack.c.l.b16 %v9675
        %v9807 = vunpack.c.l.b16 %v9679
        %v9808 = vunpack.c.l.b16 %v9682
        %v9809 = vunpack.c.l.b16 %v9686
        %v9810 = vunpack.c.l.b16 %v9689
        %v9811 = vunpack.c.l.b16 %v9693
        %v9812 = vunpack.c.l.b16 %v9696
        %v9813 = vunpack.c.l.b16 %v9700
        %v9814 = vunpack.c.l.b16 %v9703
        %v9815 = vunpack.c.l.b16 %v9707
        %v9816 = vunpack.c.l.b16 %v9710
        %v9817 = vunpack.c.l.b16 %v9714
        %v9818 = vunpack.c.l.b16 %v9717
        %v9819 = vunpack.c.l.b16 %v9721
        %v9820 = vunpack.c.l.b16 %v9724
        %v9821 = vunpack.c.l.b16 %v9728
        %v9822 = vunpack.c.l.b16 %v9731
        %v9823 = vunpack.c.l.b16 %v9735
        %v9824 = vunpack.c.l.b16 %v9738
        %v9825 = vunpack.c.l.b16 %v9742
        %v9826 = vunpack.c.l.b16 %v9745
        %v9827 = vpack.c.b16 %v9796, %v9795
        %v9828 = vpack.c.b16 %v9798, %v9797
        %v9829 = vpack.c.b16 %v9800, %v9799
        %v9830 = vpack.c.b16 %v9802, %v9801
        %v9831 = vpack.c.b16 %v9804, %v9803
        %v9832 = vpack.c.b16 %v9806, %v9805
        %v9833 = vpack.c.b16 %v9808, %v9807
        %v9834 = vpack.c.b16 %v9810, %v9809
        %v9835 = vpack.c.b16 %v9812, %v9811
        %v9836 = vpack.c.b16 %v9814, %v9813
        %v9837 = vpack.c.b16 %v9816, %v9815
        %v9838 = vpack.c.b16 %v9818, %v9817
        %v9839 = vpack.c.b16 %v9820, %v9819
        %v9840 = vpack.c.b16 %v9822, %v9821
        %v9841 = vpack.c.b16 %v9824, %v9823
        %v9842 = vpack.c.b16 %v9826, %v9825
        %v9875 = vunpack.c.l.b16 %v9779
        %v9876 = vunpack.c.l.b16 %v9780
        %v9877 = vunpack.c.l.b16 %v9781
        %v9878 = vunpack.c.l.b16 %v9782
        %v9879 = vunpack.c.l.b16 %v9783
        %v9880 = vunpack.c.l.b16 %v9784
        %v9881 = vunpack.c.l.b16 %v9785
        %v9882 = vunpack.c.l.b16 %v9786
        %v9883 = vunpack.c.l.b16 %v9787
        %v9884 = vunpack.c.l.b16 %v9788
        %v9885 = vunpack.c.l.b16 %v9789
        %v9886 = vunpack.c.l.b16 %v9790
        %v9887 = vunpack.c.l.b16 %v9791
        %v9888 = vunpack.c.l.b16 %v9792
        %v9889 = vunpack.c.l.b16 %v9793
        %v9890 = vunpack.c.l.b16 %v9794
        %v9891 = vpack.c.b16 %v9876, %v9875
        %v9892 = vpack.c.b16 %v9878, %v9877
        %v9893 = vpack.c.b16 %v9880, %v9879
        %v9894 = vpack.c.b16 %v9882, %v9881
        %v9895 = vpack.c.b16 %v9884, %v9883
        %v9896 = vpack.c.b16 %v9886, %v9885
        %v9897 = vpack.c.b16 %v9888, %v9887
        %v9898 = vpack.c.b16 %v9890, %v9889
        %9907 = vmatprep.subr.bf16.mxu0 0
        %9908 = vmatpush1.bf16.msra.mxu0 %v9891
        %9909 = vmatprep.subr.bf16.mxu0 0
        %9910 = vmatpush1.bf16.msra.mxu0 %v9892
        %9911 = vmatprep.subr.bf16.mxu0 0
        %9912 = vmatpush1.bf16.msra.mxu0 %v9893
        %9913 = vmatprep.subr.bf16.mxu0 0
        %9914 = vmatpush1.bf16.msra.mxu0 %v9894
        %9915 = vmatprep.subr.bf16.mxu0 0
        %9916 = vmatpush1.bf16.msra.mxu0 %v9895
        %9917 = vmatprep.subr.bf16.mxu0 0
        %9918 = vmatpush1.bf16.msra.mxu0 %v9896
        %9919 = vmatprep.subr.bf16.mxu0 0
        %9920 = vmatpush1.bf16.msra.mxu0 %v9897
        %9921 = vmatprep.subr.bf16.mxu0 0
        %9922 = vmatpush1.bf16.msra.mxu0 %v9898
        %9923 = vmatprep.subr.bf16.mxu0 0
        %9924 = vmatpush1.bf16.msra.mxu0 0
        %9925 = vmatprep.subr.bf16.mxu0 0
        %9926 = vmatpush1.bf16.msra.mxu0 0
        %9927 = vmatprep.subr.bf16.mxu0 0
        %9928 = vmatpush1.bf16.msra.mxu0 0
        %9929 = vmatprep.subr.bf16.mxu0 0
        %9930 = vmatpush1.bf16.msra.mxu0 0
        %9931 = vmatprep.subr.bf16.mxu0 0
        %9932 = vmatpush1.bf16.msra.mxu0 0
        %9933 = vmatprep.subr.bf16.mxu0 0
        %9934 = vmatpush1.bf16.msra.mxu0 0
        %9935 = vmatprep.subr.bf16.mxu0 0
        %9936 = vmatpush1.bf16.msra.mxu0 0
        %9937 = vmatprep.subr.bf16.mxu0 0
        %9938 = vmatpush1.bf16.msra.mxu0 0
        %9939 = vmatprep.mubr.bf16.mxu0 0
        %9940 = vmatmul.mubr.bf16.gmra.mrb[0].mxu0 %v9827
        %v9941 = vpop.f32.mrb[0].mxu0
        %v9942 = vadd.f32 0.0, %v9941
        %v9943 = vpop.f32.mrb[0].mxu0
        %v9944 = vpop.f32.mrb[0].mxu0
        %v9945 = vadd.f32 0.0, %v9944
        %v9946 = vpop.f32.mrb[0].mxu0
        %9947 = vmatprep.mubr.bf16.mxu0 0
        %9948 = vmatmul.mubr.bf16.gmra.mrb[0].mxu0 %v9828
        %v9949 = vpop.f32.mrb[0].mxu0
        %v9950 = vadd.f32 0.0, %v9949
        %v9951 = vpop.f32.mrb[0].mxu0
        %v9952 = vpop.f32.mrb[0].mxu0
        %v9953 = vadd.f32 0.0, %v9952
        %v9954 = vpop.f32.mrb[0].mxu0
        %9955 = vmatprep.mubr.bf16.mxu0 0
        %9956 = vmatmul.mubr.bf16.gmra.mrb[0].mxu0 %v9829
        %v9957 = vpop.f32.mrb[0].mxu0
        %v9958 = vadd.f32 0.0, %v9957
        %v9959 = vpop.f32.mrb[0].mxu0
        %v9960 = vpop.f32.mrb[0].mxu0
        %v9961 = vadd.f32 0.0, %v9960
        %v9962 = vpop.f32.mrb[0].mxu0
        %9963 = vmatprep.mubr.bf16.mxu0 0
        %9964 = vmatmul.mubr.bf16.gmra.mrb[0].mxu0 %v9830
        %v9965 = vpop.f32.mrb[0].mxu0
        %v9966 = vadd.f32 0.0, %v9965
        %v9967 = vpop.f32.mrb[0].mxu0
        %v9968 = vpop.f32.mrb[0].mxu0
        %v9969 = vadd.f32 0.0, %v9968
        %v9970 = vpop.f32.mrb[0].mxu0
        %9971 = vmatprep.mubr.bf16.mxu0 0
        %9972 = vmatmul.mubr.bf16.gmra.mrb[0].mxu0 %v9831
        %v9973 = vpop.f32.mrb[0].mxu0
        %v9974 = vadd.f32 0.0, %v9973
        %v9975 = vpop.f32.mrb[0].mxu0
        %v9976 = vpop.f32.mrb[0].mxu0
        %v9977 = vadd.f32 0.0, %v9976
        %v9978 = vpop.f32.mrb[0].mxu0
        %9979 = vmatprep.mubr.bf16.mxu0 0
        %9980 = vmatmul.mubr.bf16.gmra.mrb[0].mxu0 %v9832
        %v9981 = vpop.f32.mrb[0].mxu0
        %v9982 = vadd.f32 0.0, %v9981
        %v9983 = vpop.f32.mrb[0].mxu0
        %v9984 = vpop.f32.mrb[0].mxu0
        %v9985 = vadd.f32 0.0, %v9984
        %v9986 = vpop.f32.mrb[0].mxu0
        %9987 = vmatprep.mubr.bf16.mxu0 0
        %9988 = vmatmul.mubr.bf16.gmra.mrb[0].mxu0 %v9833
        %v9989 = vpop.f32.mrb[0].mxu0
        %v9990 = vadd.f32 0.0, %v9989
        %v9991 = vpop.f32.mrb[0].mxu0
        %v9992 = vpop.f32.mrb[0].mxu0
        %v9993 = vadd.f32 0.0, %v9992
        %v9994 = vpop.f32.mrb[0].mxu0
        %9995 = vmatprep.mubr.bf16.mxu0 0
        %9996 = vmatmul.mubr.bf16.gmra.mrb[0].mxu0 %v9834
        %v9997 = vpop.f32.mrb[0].mxu0
        %v9998 = vadd.f32 0.0, %v9997
        %v9999 = vpop.f32.mrb[0].mxu0
        %v10000 = vpop.f32.mrb[0].mxu0
        %v10001 = vadd.f32 0.0, %v10000
        %v10002 = vpop.f32.mrb[0].mxu0
        %10003 = vmatprep.mubr.bf16.mxu0 0
        %10004 = vmatmul.mubr.bf16.gmra.mrb[0].mxu0 %v9835
        %v10005 = vpop.f32.mrb[0].mxu0
        %v10006 = vadd.f32 0.0, %v10005
        %v10007 = vpop.f32.mrb[0].mxu0
        %v10008 = vpop.f32.mrb[0].mxu0
        %v10009 = vadd.f32 0.0, %v10008
        %v10010 = vpop.f32.mrb[0].mxu0
        %10011 = vmatprep.mubr.bf16.mxu0 0
        %10012 = vmatmul.mubr.bf16.gmra.mrb[0].mxu0 %v9836
        %v10013 = vpop.f32.mrb[0].mxu0
        %v10014 = vadd.f32 0.0, %v10013
        %v10015 = vpop.f32.mrb[0].mxu0
        %v10016 = vpop.f32.mrb[0].mxu0
        %v10017 = vadd.f32 0.0, %v10016
        %v10018 = vpop.f32.mrb[0].mxu0
        %10019 = vmatprep.mubr.bf16.mxu0 0
        %10020 = vmatmul.mubr.bf16.gmra.mrb[0].mxu0 %v9837
        %v10021 = vpop.f32.mrb[0].mxu0
        %v10022 = vadd.f32 0.0, %v10021
        %v10023 = vpop.f32.mrb[0].mxu0
        %v10024 = vpop.f32.mrb[0].mxu0
        %v10025 = vadd.f32 0.0, %v10024
        %v10026 = vpop.f32.mrb[0].mxu0
        %10027 = vmatprep.mubr.bf16.mxu0 0
        %10028 = vmatmul.mubr.bf16.gmra.mrb[0].mxu0 %v9838
        %v10029 = vpop.f32.mrb[0].mxu0
        %v10030 = vadd.f32 0.0, %v10029
        %v10031 = vpop.f32.mrb[0].mxu0
        %v10032 = vpop.f32.mrb[0].mxu0
        %v10033 = vadd.f32 0.0, %v10032
        %v10034 = vpop.f32.mrb[0].mxu0
        %10035 = vmatprep.mubr.bf16.mxu0 0
        %10036 = vmatmul.mubr.bf16.gmra.mrb[0].mxu0 %v9839
        %v10037 = vpop.f32.mrb[0].mxu0
        %v10038 = vadd.f32 0.0, %v10037
        %v10039 = vpop.f32.mrb[0].mxu0
        %v10040 = vpop.f32.mrb[0].mxu0
        %v10041 = vadd.f32 0.0, %v10040
        %v10042 = vpop.f32.mrb[0].mxu0
        %10043 = vmatprep.mubr.bf16.mxu0 0
        %10044 = vmatmul.mubr.bf16.gmra.mrb[0].mxu0 %v9840
        %v10045 = vpop.f32.mrb[0].mxu0
        %v10046 = vadd.f32 0.0, %v10045
        %v10047 = vpop.f32.mrb[0].mxu0
        %v10048 = vpop.f32.mrb[0].mxu0
        %v10049 = vadd.f32 0.0, %v10048
        %v10050 = vpop.f32.mrb[0].mxu0
        %10051 = vmatprep.mubr.bf16.mxu0 0
        %10052 = vmatmul.mubr.bf16.gmra.mrb[0].mxu0 %v9841
        %v10053 = vpop.f32.mrb[0].mxu0
        %v10054 = vadd.f32 0.0, %v10053
        %v10055 = vpop.f32.mrb[0].mxu0
        %v10056 = vpop.f32.mrb[0].mxu0
        %v10057 = vadd.f32 0.0, %v10056
        %v10058 = vpop.f32.mrb[0].mxu0
        %10059 = vmatprep.mubr.bf16.mxu0 0
        %10060 = vmatmul.mubr.bf16.gmra.mrb[0].mxu0 %v9842
        %v10061 = vpop.f32.mrb[0].mxu0
        %v10062 = vadd.f32 0.0, %v10061
        %v10063 = vpop.f32.mrb[0].mxu0
        %v10064 = vpop.f32.mrb[0].mxu0
        %v10065 = vadd.f32 0.0, %v10064
        %v10066 = vpop.f32.mrb[0].mxu0
        %10067 = vdwg.mxu0
        %v10068 = vadd.f32 %v9746, %v9942
        %v10069 = vadd.f32 %v9747, %v9945
        %v10070 = vadd.f32 %v9748, %v9950
        %v10071 = vadd.f32 %v9749, %v9953
        %v10072 = vadd.f32 %v9750, %v9958
        %v10073 = vadd.f32 %v9751, %v9961
        %v10074 = vadd.f32 %v9752, %v9966
        %v10075 = vadd.f32 %v9753, %v9969
        %v10076 = vadd.f32 %v9754, %v9974
        %v10077 = vadd.f32 %v9755, %v9977
        %v10078 = vadd.f32 %v9756, %v9982
        %v10079 = vadd.f32 %v9757, %v9985
        %v10080 = vadd.f32 %v9758, %v9990
        %v10081 = vadd.f32 %v9759, %v9993
        %v10082 = vadd.f32 %v9760, %v9998
        %v10083 = vadd.f32 %v9761, %v10001
        %v10084 = vadd.f32 %v9762, %v10006
        %v10085 = vadd.f32 %v9763, %v10009
        %v10086 = vadd.f32 %v9764, %v10014
        %v10087 = vadd.f32 %v9765, %v10017
        %v10088 = vadd.f32 %v9766, %v10022
        %v10089 = vadd.f32 %v9767, %v10025
        %v10090 = vadd.f32 %v9768, %v10030
        %v10091 = vadd.f32 %v9769, %v10033
        %v10092 = vadd.f32 %v9770, %v10038
        %v10093 = vadd.f32 %v9771, %v10041
        %v10094 = vadd.f32 %v9772, %v10046
        %v10095 = vadd.f32 %v9773, %v10049
        %v10096 = vadd.f32 %v9774, %v10054
        %v10097 = vadd.f32 %v9775, %v10057
        %v10098 = vadd.f32 %v9776, %v10062
        %v10099 = vadd.f32 %v9777, %v10065
        %10100 = vst [vmem:[#allocation4] sm:$0xff] %v10068
        %10101 = vst [vmem:[#allocation4 + $0x8] sm:$0xff] %v10069
        %10102 = vst [vmem:[#allocation4 + $0x10] sm:$0xff] %v10070
        %10103 = vst [vmem:[#allocation4 + $0x18] sm:$0xff] %v10071
        %10104 = vst [vmem:[#allocation4 + $0x20] sm:$0xff] %v10072
        %10105 = vst [vmem:[#allocation4 + $0x28] sm:$0xff] %v10073
        %10106 = vst [vmem:[#allocation4 + $0x30] sm:$0xff] %v10074
        %10107 = vst [vmem:[#allocation4 + $0x38] sm:$0xff] %v10075
        %10108 = vst [vmem:[#allocation4 + $0x40] sm:$0xff] %v10076
        %10109 = vst [vmem:[#allocation4 + $0x48] sm:$0xff] %v10077
        %10110 = vst [vmem:[#allocation4 + $0x50] sm:$0xff] %v10078
        %10111 = vst [vmem:[#allocation4 + $0x58] sm:$0xff] %v10079
        %10112 = vst [vmem:[#allocation4 + $0x60] sm:$0xff] %v10080
        %10113 = vst [vmem:[#allocation4 + $0x68] sm:$0xff] %v10081
        %10114 = vst [vmem:[#allocation4 + $0x70] sm:$0xff] %v10082
        %10115 = vst [vmem:[#allocation4 + $0x78] sm:$0xff] %v10083
        %10116 = vst [vmem:[#allocation4 + $0x80] sm:$0xff] %v10084
        %10117 = vst [vmem:[#allocation4 + $0x88] sm:$0xff] %v10085
        %10118 = vst [vmem:[#allocation4 + $0x90] sm:$0xff] %v10086
        %10119 = vst [vmem:[#allocation4 + $0x98] sm:$0xff] %v10087
        %10120 = vst [vmem:[#allocation4 + $0xa0] sm:$0xff] %v10088
        %10121 = vst [vmem:[#allocation4 + $0xa8] sm:$0xff] %v10089
        %10122 = vst [vmem:[#allocation4 + $0xb0] sm:$0xff] %v10090
        %10123 = vst [vmem:[#allocation4 + $0xb8] sm:$0xff] %v10091
        %10124 = vst [vmem:[#allocation4 + $0xc0] sm:$0xff] %v10092
        %10125 = vst [vmem:[#allocation4 + $0xc8] sm:$0xff] %v10093
        %10126 = vst [vmem:[#allocation4 + $0xd0] sm:$0xff] %v10094
        %10127 = vst [vmem:[#allocation4 + $0xd8] sm:$0xff] %v10095
        %10128 = vst [vmem:[#allocation4 + $0xe0] sm:$0xff] %v10096
        %10129 = vst [vmem:[#allocation4 + $0xe8] sm:$0xff] %v10097
        %10130 = vst [vmem:[#allocation4 + $0xf0] sm:$0xff] %v10098
        %10131 = vst [vmem:[#allocation4 + $0xf8] sm:$0xff] %v10099
        %v10132 = vld [vmem:[#allocation4] sm:$0xff]
        %v10133 = vld [vmem:[#allocation4 + $0x8] sm:$0xff]
        %v10134 = vld [vmem:[#allocation4 + $0x10] sm:$0xff]
        %v10135 = vld [vmem:[#allocation4 + $0x18] sm:$0xff]
        %v10136 = vld [vmem:[#allocation4 + $0x20] sm:$0xff]
        %v10137 = vld [vmem:[#allocation4 + $0x28] sm:$0xff]
        %v10138 = vld [vmem:[#allocation4 + $0x30] sm:$0xff]
        %v10139 = vld [vmem:[#allocation4 + $0x38] sm:$0xff]
        %v10140 = vld [vmem:[#allocation4 + $0x40] sm:$0xff]
        %v10141 = vld [vmem:[#allocation4 + $0x48] sm:$0xff]
        %v10142 = vld [vmem:[#allocation4 + $0x50] sm:$0xff]
        %v10143 = vld [vmem:[#allocation4 + $0x58] sm:$0xff]
        %v10144 = vld [vmem:[#allocation4 + $0x60] sm:$0xff]
        %v10145 = vld [vmem:[#allocation4 + $0x68] sm:$0xff]
        %v10146 = vld [vmem:[#allocation4 + $0x70] sm:$0xff]
        %v10147 = vld [vmem:[#allocation4 + $0x78] sm:$0xff]
        %v10148 = vld [vmem:[#allocation4 + $0x80] sm:$0xff]
        %v10149 = vld [vmem:[#allocation4 + $0x88] sm:$0xff]
        %v10150 = vld [vmem:[#allocation4 + $0x90] sm:$0xff]
        %v10151 = vld [vmem:[#allocation4 + $0x98] sm:$0xff]
        %v10152 = vld [vmem:[#allocation4 + $0xa0] sm:$0xff]
        %v10153 = vld [vmem:[#allocation4 + $0xa8] sm:$0xff]
        %v10154 = vld [vmem:[#allocation4 + $0xb0] sm:$0xff]
        %v10155 = vld [vmem:[#allocation4 + $0xb8] sm:$0xff]
        %v10156 = vld [vmem:[#allocation4 + $0xc0] sm:$0xff]
        %v10157 = vld [vmem:[#allocation4 + $0xc8] sm:$0xff]
        %v10158 = vld [vmem:[#allocation4 + $0xd0] sm:$0xff]
        %v10159 = vld [vmem:[#allocation4 + $0xd8] sm:$0xff]
        %v10160 = vld [vmem:[#allocation4 + $0xe0] sm:$0xff]
        %v10161 = vld [vmem:[#allocation4 + $0xe8] sm:$0xff]
        %v10162 = vld [vmem:[#allocation4 + $0xf0] sm:$0xff]
        %v10163 = vld [vmem:[#allocation4 + $0xf8] sm:$0xff]
        %v10164 = vld [vmem:[%s5] sm:$0x1]
        %v10166 = vlaneseq
        %v10167 = vshrl.u32 %v10166, 7
        %v10168 = vsub.s32 0, %v10167
        %v10169 = vrot.slane %v10164, %v10168
        %v10171 = vmul.f32 %v10132, %v10169
        %v10172 = vmul.f32 %v10133, %v10169
        %v10173 = vmul.f32 %v10134, %v10169
        %v10174 = vmul.f32 %v10135, %v10169
        %v10175 = vmul.f32 %v10136, %v10169
        %v10176 = vmul.f32 %v10137, %v10169
        %v10177 = vmul.f32 %v10138, %v10169
        %v10178 = vmul.f32 %v10139, %v10169
        %v10179 = vmul.f32 %v10140, %v10169
        %v10180 = vmul.f32 %v10141, %v10169
        %v10181 = vmul.f32 %v10142, %v10169
        %v10182 = vmul.f32 %v10143, %v10169
        %v10183 = vmul.f32 %v10144, %v10169
        %v10184 = vmul.f32 %v10145, %v10169
        %v10185 = vmul.f32 %v10146, %v10169
        %v10186 = vmul.f32 %v10147, %v10169
        %v10187 = vmul.f32 %v10148, %v10169
        %v10188 = vmul.f32 %v10149, %v10169
        %v10189 = vmul.f32 %v10150, %v10169
        %v10190 = vmul.f32 %v10151, %v10169
        %v10191 = vmul.f32 %v10152, %v10169
        %v10192 = vmul.f32 %v10153, %v10169
        %v10193 = vmul.f32 %v10154, %v10169
        %v10194 = vmul.f32 %v10155, %v10169
        %v10195 = vmul.f32 %v10156, %v10169
        %v10196 = vmul.f32 %v10157, %v10169
        %v10197 = vmul.f32 %v10158, %v10169
        %v10198 = vmul.f32 %v10159, %v10169
        %v10199 = vmul.f32 %v10160, %v10169
        %v10200 = vmul.f32 %v10161, %v10169
        %v10201 = vmul.f32 %v10162, %v10169
        %v10202 = vmul.f32 %v10163, %v10169
        %v10203 = vld [vmem:[%s6] sm:$0x1]
        %v10205 = vlaneseq
        %v10206 = vshrl.u32 %v10205, 7
        %v10207 = vsub.s32 0, %v10206
        %v10208 = vrot.slane %v10203, %v10207
        %v10210 = vadd.f32 %v10171, %v10208
        %v10211 = vadd.f32 %v10172, %v10208
        %v10212 = vadd.f32 %v10173, %v10208
        %v10213 = vadd.f32 %v10174, %v10208
        %v10214 = vadd.f32 %v10175, %v10208
        %v10215 = vadd.f32 %v10176, %v10208
        %v10216 = vadd.f32 %v10177, %v10208
        %v10217 = vadd.f32 %v10178, %v10208
        %v10218 = vadd.f32 %v10179, %v10208
        %v10219 = vadd.f32 %v10180, %v10208
        %v10220 = vadd.f32 %v10181, %v10208
        %v10221 = vadd.f32 %v10182, %v10208
        %v10222 = vadd.f32 %v10183, %v10208
        %v10223 = vadd.f32 %v10184, %v10208
        %v10224 = vadd.f32 %v10185, %v10208
        %v10225 = vadd.f32 %v10186, %v10208
        %v10226 = vadd.f32 %v10187, %v10208
        %v10227 = vadd.f32 %v10188, %v10208
        %v10228 = vadd.f32 %v10189, %v10208
        %v10229 = vadd.f32 %v10190, %v10208
        %v10230 = vadd.f32 %v10191, %v10208
        %v10231 = vadd.f32 %v10192, %v10208
        %v10232 = vadd.f32 %v10193, %v10208
        %v10233 = vadd.f32 %v10194, %v10208
        %v10234 = vadd.f32 %v10195, %v10208
        %v10235 = vadd.f32 %v10196, %v10208
        %v10236 = vadd.f32 %v10197, %v10208
        %v10237 = vadd.f32 %v10198, %v10208
        %v10238 = vadd.f32 %v10199, %v10208
        %v10239 = vadd.f32 %v10200, %v10208
        %v10240 = vadd.f32 %v10201, %v10208
        %v10241 = vadd.f32 %v10202, %v10208
        %v10242 = vld [vmem:[%s433 + $0x1] sm:$0xff]
        %v10243 = vld [vmem:[%s433 + $0x9] sm:$0xff]
        %v10244 = vld [vmem:[%s433 + $0x19] sm:$0xff]
        %v10245 = vld [vmem:[%s433 + $0x21] sm:$0xff]
        %v10246 = vld [vmem:[%s433 + $0x31] sm:$0xff]
        %v10247 = vld [vmem:[%s433 + $0x39] sm:$0xff]
        %v10248 = vld [vmem:[%s433 + $0x49] sm:$0xff]
        %v10249 = vld [vmem:[%s433 + $0x51] sm:$0xff]
        %v10250 = vld [vmem:[%s433 + $0x61] sm:$0xff]
        %v10251 = vld [vmem:[%s433 + $0x69] sm:$0xff]
        %v10252 = vld [vmem:[%s433 + $0x79] sm:$0xff]
        %v10253 = vld [vmem:[%s433 + $0x81] sm:$0xff]
        %v10254 = vld [vmem:[%s433 + $0x91] sm:$0xff]
        %v10255 = vld [vmem:[%s433 + $0x99] sm:$0xff]
        %v10256 = vld [vmem:[%s433 + $0xa9] sm:$0xff]
        %v10257 = vld [vmem:[%s433 + $0xb1] sm:$0xff]
        %v10258 = vld [vmem:[%s433 + $0xc1] sm:$0xff]
        %v10259 = vld [vmem:[%s433 + $0xc9] sm:$0xff]
        %v10260 = vld [vmem:[%s433 + $0xd9] sm:$0xff]
        %v10261 = vld [vmem:[%s433 + $0xe1] sm:$0xff]
        %v10262 = vld [vmem:[%s433 + $0xf1] sm:$0xff]
        %v10263 = vld [vmem:[%s433 + $0xf9] sm:$0xff]
        %v10264 = vld [vmem:[%s433 + $0x109] sm:$0xff]
        %v10265 = vld [vmem:[%s433 + $0x111] sm:$0xff]
        %v10266 = vld [vmem:[%s433 + $0x121] sm:$0xff]
        %v10267 = vld [vmem:[%s433 + $0x129] sm:$0xff]
        %v10268 = vld [vmem:[%s433 + $0x139] sm:$0xff]
        %v10269 = vld [vmem:[%s433 + $0x141] sm:$0xff]
        %v10270 = vld [vmem:[%s433 + $0x151] sm:$0xff]
        %v10271 = vld [vmem:[%s433 + $0x159] sm:$0xff]
        %v10272 = vld [vmem:[%s433 + $0x169] sm:$0xff]
        %v10273 = vld [vmem:[%s433 + $0x171] sm:$0xff]
        %v10274 = vadd.f32 %v10210, %v10242
        %v10275 = vadd.f32 %v10211, %v10243
        %v10276 = vadd.f32 %v10212, %v10244
        %v10277 = vadd.f32 %v10213, %v10245
        %v10278 = vadd.f32 %v10214, %v10246
        %v10279 = vadd.f32 %v10215, %v10247
        %v10280 = vadd.f32 %v10216, %v10248
        %v10281 = vadd.f32 %v10217, %v10249
        %v10282 = vadd.f32 %v10218, %v10250
        %v10283 = vadd.f32 %v10219, %v10251
        %v10284 = vadd.f32 %v10220, %v10252
        %v10285 = vadd.f32 %v10221, %v10253
        %v10286 = vadd.f32 %v10222, %v10254
        %v10287 = vadd.f32 %v10223, %v10255
        %v10288 = vadd.f32 %v10224, %v10256
        %v10289 = vadd.f32 %v10225, %v10257
        %v10290 = vadd.f32 %v10226, %v10258
        %v10291 = vadd.f32 %v10227, %v10259
        %v10292 = vadd.f32 %v10228, %v10260
        %v10293 = vadd.f32 %v10229, %v10261
        %v10294 = vadd.f32 %v10230, %v10262
        %v10295 = vadd.f32 %v10231, %v10263
        %v10296 = vadd.f32 %v10232, %v10264
        %v10297 = vadd.f32 %v10233, %v10265
        %v10298 = vadd.f32 %v10234, %v10266
        %v10299 = vadd.f32 %v10235, %v10267
        %v10300 = vadd.f32 %v10236, %v10268
        %v10301 = vadd.f32 %v10237, %v10269
        %v10302 = vadd.f32 %v10238, %v10270
        %v10303 = vadd.f32 %v10239, %v10271
        %v10304 = vadd.f32 %v10240, %v10272
        %v10305 = vadd.f32 %v10241, %v10273
        %v10306 = vmax.f32 %v10274, 0.0
        %v10307 = vmax.f32 %v10275, 0.0
        %v10308 = vmax.f32 %v10276, 0.0
        %v10309 = vmax.f32 %v10277, 0.0
        %v10310 = vmax.f32 %v10278, 0.0
        %v10311 = vmax.f32 %v10279, 0.0
        %v10312 = vmax.f32 %v10280, 0.0
        %v10313 = vmax.f32 %v10281, 0.0
        %v10314 = vmax.f32 %v10282, 0.0
        %v10315 = vmax.f32 %v10283, 0.0
        %v10316 = vmax.f32 %v10284, 0.0
        %v10317 = vmax.f32 %v10285, 0.0
        %v10318 = vmax.f32 %v10286, 0.0
        %v10319 = vmax.f32 %v10287, 0.0
        %v10320 = vmax.f32 %v10288, 0.0
        %v10321 = vmax.f32 %v10289, 0.0
        %v10322 = vmax.f32 %v10290, 0.0
        %v10323 = vmax.f32 %v10291, 0.0
        %v10324 = vmax.f32 %v10292, 0.0
        %v10325 = vmax.f32 %v10293, 0.0
        %v10326 = vmax.f32 %v10294, 0.0
        %v10327 = vmax.f32 %v10295, 0.0
        %v10328 = vmax.f32 %v10296, 0.0
        %v10329 = vmax.f32 %v10297, 0.0
        %v10330 = vmax.f32 %v10298, 0.0
        %v10331 = vmax.f32 %v10299, 0.0
        %v10332 = vmax.f32 %v10300, 0.0
        %v10333 = vmax.f32 %v10301, 0.0
        %v10334 = vmax.f32 %v10302, 0.0
        %v10335 = vmax.f32 %v10303, 0.0
        %v10336 = vmax.f32 %v10304, 0.0
        %v10337 = vmax.f32 %v10305, 0.0
        %10338 = vst [vmem:[%s286] sm:$0xff] %v10306
        %10339 = vst [vmem:[%s286 + $0x8] sm:$0xff] %v10307
        %10340 = vst [vmem:[%s286 + $0x10] sm:$0xff] %v10308
        %10341 = vst [vmem:[%s286 + $0x18] sm:$0xff] %v10309
        %10342 = vst [vmem:[%s286 + $0x20] sm:$0xff] %v10310
        %10343 = vst [vmem:[%s286 + $0x28] sm:$0xff] %v10311
        %10344 = vst [vmem:[%s286 + $0x30] sm:$0xff] %v10312
        %10345 = vst [vmem:[%s286 + $0x38] sm:$0xff] %v10313
        %10346 = vst [vmem:[%s286 + $0x40] sm:$0xff] %v10314
        %10347 = vst [vmem:[%s286 + $0x48] sm:$0xff] %v10315
        %10348 = vst [vmem:[%s286 + $0x50] sm:$0xff] %v10316
        %10349 = vst [vmem:[%s286 + $0x58] sm:$0xff] %v10317
        %10350 = vst [vmem:[%s286 + $0x60] sm:$0xff] %v10318
        %10351 = vst [vmem:[%s286 + $0x68] sm:$0xff] %v10319
        %10352 = vst [vmem:[%s286 + $0x70] sm:$0xff] %v10320
        %10353 = vst [vmem:[%s286 + $0x78] sm:$0xff] %v10321
        %10354 = vst [vmem:[%s286 + $0x80] sm:$0xff] %v10322
        %10355 = vst [vmem:[%s286 + $0x88] sm:$0xff] %v10323
        %10356 = vst [vmem:[%s286 + $0x90] sm:$0xff] %v10324
        %10357 = vst [vmem:[%s286 + $0x98] sm:$0xff] %v10325
        %10358 = vst [vmem:[%s286 + $0xa0] sm:$0xff] %v10326
        %10359 = vst [vmem:[%s286 + $0xa8] sm:$0xff] %v10327
        %10360 = vst [vmem:[%s286 + $0xb0] sm:$0xff] %v10328
        %10361 = vst [vmem:[%s286 + $0xb8] sm:$0xff] %v10329
        %10362 = vst [vmem:[%s286 + $0xc0] sm:$0xff] %v10330
        %10363 = vst [vmem:[%s286 + $0xc8] sm:$0xff] %v10331
        %10364 = vst [vmem:[%s286 + $0xd0] sm:$0xff] %v10332
        %10365 = vst [vmem:[%s286 + $0xd8] sm:$0xff] %v10333
        %10366 = vst [vmem:[%s286 + $0xe0] sm:$0xff] %v10334
        %10367 = vst [vmem:[%s286 + $0xe8] sm:$0xff] %v10335
        %10368 = vst [vmem:[%s286 + $0xf0] sm:$0xff] %v10336
        %10369 = vst [vmem:[%s286 + $0xf8] sm:$0xff] %v10337
        %s10370 = sand.u32 %s182, 1
        %s10371 = scalar_lea.sflag [#allocation7], %s10370
        %s10372 = sand.u32 %s182, 1
        %s10373 = smul.addr %s10372, 256
        %s10374 = scalar_lea.vmem [#allocation8], %s10373
        // Predicated region
        $region53: #{tpu_custom_call.1} parent=47 // pred_check
          %p10375 = pneg %p192
        $region54: #{tpu_custom_call.1} parent=47 // pred_check_branch
          %10377 = sbr.rel (%p10375) target = $region56
        $region55: #{tpu_custom_call.1} parent=47 // pred_region
          %s10379 = ssub.s32 4096, 4096
          %10380 = vsyncadd %s10371, %s10379
          %s10381 = smul.addr %s22, 32
          %s10382 = smul.addr %s10381, 128
          %s10383 = scalar_lea.hbm %s7, %s10382
          %s10384 = sshll.u32 %s10374, 4
          %s10385 = int_to_ptr.vmem [resolvable:$true] %s10384
          %10390 = dma.vmem_to_hbm [thread:$0]  %s10385, 4096, %s10383, %s10371, 128, 128, 8
        $region56: #{tpu_custom_call.1} parent=47 // pred_fallthru
          _
      $region48: #{tpu_custom_call.1} parent=5 // pred_fallthru
        _
      %p10391 = scmp.le.s32.totalorder 2, %s17
      // Predicated region
      $region57: #{tpu_custom_call.1} parent=5 // pred_check
        %p10392 = pneg %p10391
      $region58: #{tpu_custom_call.1} parent=5 // pred_check_branch
        %10394 = sbr.rel (%p10392) target = $region60
      $region59: #{tpu_custom_call.1} parent=5 // pred_region
        %s10395 = ssub.s32 %s17, 2
        // Predicated region
        $region61: #{tpu_custom_call.1} parent=59 // pred_check
          %p10396 = pneg %p198
        $region62: #{tpu_custom_call.1} parent=59 // pred_check_branch
          %10398 = sbr.rel (%p10396) target = $region64
        $region63: #{tpu_custom_call.1} parent=59 // pred_region
          %s10399 = sand.u32 %s183, 1
          %s10400 = scalar_lea.sflag [#allocation7], %s10399
          %s10401 = sand.u32 %s183, 1
          %s10402 = smul.addr %s10401, 256
          %s10403 = scalar_lea.vmem [#allocation8], %s10402
          %10404 = dma.done %s10400, 4096
        $region64: #{tpu_custom_call.1} parent=59 // pred_fallthru
          _
      $region60: #{tpu_custom_call.1} parent=5 // pred_fallthru
        _
    $region6: #{tpu_custom_call.1} parent=1 // loop_footer
      %s21 = sadd.s32 1, %s17
    $region7: #{tpu_custom_call.1} parent=1 // loop_footer_branch
      %16 = sbr.rel target = $region3
    $region8: #{tpu_custom_call.1} parent=1 // loop_exit
      _
    %10405 = vsyncpa [#allocation6], 1
    %s10406 = scalar_lea.sflag [#allocation6], 1
    %10407 = vsyncpa %s10406, 1
    %10408 = vsyncpa [#allocation7], 1
    %s10409 = scalar_lea.sflag [#allocation7], 1
    %10410 = vsyncpa %s10409, 1

</llo_original>
